<compile_context>
chip_gen: v7x
topology: tpu7x:2x2x1
jax: 0.10.0
libtpu: 0.0.40
codegen_flags: <defaults>
</compile_context>

<pallas_src>
import math
from functools import partial

import jax
import jax.numpy as jnp
from jax.experimental import pallas as pl
from jax.experimental.pallas import tpu as pltpu


VMEM_LIMIT = 64 * 1024 * 1024  # safe on v5e/v6e (128 MiB phys) and v7x (64 MiB)

# Default tiles; per-chip tuning: v5e -> 128, v6e/v7x -> 256+ (M), 512-1024 (N).
TQ_DEFAULT = 256        # query tile for attention
TM_FFN_DEFAULT = 256    # row tile for the FFN
DENSE_TM, DENSE_TN, DENSE_TK = 256, 512, 512


def _round_up(x, m):
    return (x + m - 1) // m * m


# ----------------------------------------------------------------------------
# Fused multi-head-attention block kernel
#   y = LayerNorm(x + Wo @ MHA(x, kv, kv))      per (batch, query-tile)
# ----------------------------------------------------------------------------

def _mha_core(x, kv, key_bias, wq, bq, wkv, bkv, wo, bo, g, bb,
              *, n_heads, inv_scale, eps, causal, q_start, attn_sink=None):
    """x: [TQ, D] bf16, kv: [Lk, D] bf16, key_bias: [1, Lk] additive f32."""
    TQ, D = x.shape
    Lk = kv.shape[0]
    Dh = D // n_heads

    # Q projection and fused K/V projection (single [D, 2D] matmul).
    q = jnp.dot(x, wq, preferred_element_type=jnp.float32) + bq          # [TQ, D]
    kvp = jnp.dot(kv, wkv, preferred_element_type=jnp.float32) + bkv     # [Lk, 2D]

    # Cast once before the head loop (saves repeated VPU cast passes on v5e).
    q_bf = (q * inv_scale).astype(jnp.bfloat16)   # fold 1/sqrt(Dh) into Q once
    k_bf = kvp[:, :D].astype(jnp.bfloat16)
    v_bf = kvp[:, D:].astype(jnp.bfloat16)

    # Additive bias: per-batch key-row bias (+ in-kernel causal term if needed).
    bias2d = key_bias                                                    # [1, Lk]
    if causal:
        row = jax.lax.broadcasted_iota(jnp.int32, (TQ, Lk), 0) + q_start
        col = jax.lax.broadcasted_iota(jnp.int32, (TQ, Lk), 1)
        bias2d = bias2d + jnp.where(col <= row, jnp.float32(0.0),
                                    jnp.float32(-1e10))                  # [TQ, Lk]

    # Static head unroll; accumulate ctx_h @ Wo[h] directly (no concat).
    acc = jnp.zeros((TQ, D), jnp.float32)
    for h in range(n_heads):
        sl = slice(h * Dh, (h + 1) * Dh)
        e = jax.lax.dot_general(q_bf[:, sl], k_bf[:, sl],
                                (((1,), (1,)), ((), ())),
                                preferred_element_type=jnp.float32)      # [TQ, Lk]
        e = e + bias2d
        m = jnp.max(e, axis=-1, keepdims=True)
        p = jnp.exp(e - m)
        a = p * pl.reciprocal(jnp.sum(p, axis=-1, keepdims=True), approx=True)
        if attn_sink is not None:
            attn_sink(h, a)
        ctx = jnp.dot(a.astype(jnp.bfloat16), v_bf[:, sl],
                      preferred_element_type=jnp.float32)                # [TQ, Dh]
        acc = acc + jnp.dot(ctx.astype(jnp.bfloat16), wo[sl, :],
                            preferred_element_type=jnp.float32)          # [TQ, D]

    # residual + LayerNorm epilogue (f32 math, matches nn.LayerNorm)
    y = x.astype(jnp.float32) + acc + bo
    mu = jnp.mean(y, axis=-1, keepdims=True)
    var = jnp.mean((y - mu) ** 2, axis=-1, keepdims=True)
    return (y - mu) * jax.lax.rsqrt(var + eps) * g + bb


def _mha_block_kernel(x_ref, kv_ref, bias_ref, wq_ref, bq_ref, wkv_ref, bkv_ref,
                      wo_ref, bo_ref, g_ref, bb_ref, y_ref,
                      *, n_heads, inv_scale, eps, causal, tq):
    q_start = pl.program_id(1) * tq
    y = _mha_core(x_ref[0], kv_ref[0], bias_ref[0], wq_ref[...], bq_ref[...],
                  wkv_ref[...], bkv_ref[...], wo_ref[...], bo_ref[...],
                  g_ref[...], bb_ref[...],
                  n_heads=n_heads, inv_scale=inv_scale, eps=eps,
                  causal=causal, q_start=q_start)
    y_ref[0] = y.astype(y_ref.dtype)


def _mha_block_attn_kernel(x_ref, kv_ref, bias_ref, wq_ref, bq_ref, wkv_ref,
                           bkv_ref, wo_ref, bo_ref, g_ref, bb_ref,
                           y_ref, attn_ref,
                           *, n_heads, inv_scale, eps, causal, tq):
    q_start = pl.program_id(1) * tq

    def sink(h, a):
        attn_ref[0, h] = a

    y = _mha_core(x_ref[0], kv_ref[0], bias_ref[0], wq_ref[...], bq_ref[...],
                  wkv_ref[...], bkv_ref[...], wo_ref[...], bo_ref[...],
                  g_ref[...], bb_ref[...],
                  n_heads=n_heads, inv_scale=inv_scale, eps=eps,
                  causal=causal, q_start=q_start, attn_sink=sink)
    y_ref[0] = y.astype(y_ref.dtype)


def mha_block(p, x, kv, key_bias, ln_g, ln_b, n_heads, *, causal=False,
              return_attn=False, tq=TQ_DEFAULT, eps=1e-5):
    """x: [B, Lq, D] bf16, kv: [B, Lk, D] bf16, key_bias: [B, 1, Lk] f32."""
    B, Lq, D = x.shape
    Lk = kv.shape[1]
    H = n_heads
    inv_scale = 1.0 / math.sqrt(D // H)

    # Query-tile grid axis (pipelining + bounded per-step VMEM).
    TQ = Lq if Lq <= tq else tq
    Lq_pad = _round_up(Lq, TQ)
    xp = x if Lq_pad == Lq else jnp.pad(x, ((0, 0), (0, Lq_pad - Lq), (0, 0)))
    n_qt = Lq_pad // TQ

    kern_fn = _mha_block_attn_kernel if return_attn else _mha_block_kernel
    kern = partial(kern_fn, n_heads=H, inv_scale=inv_scale, eps=eps,
                   causal=causal, tq=TQ)

    # Weights / KV have constant-per-b index maps, so they stay VMEM-resident
    # across the query-tile axis.  (pipeline_mode=pl.Buffered(1) on the weight
    # specs is a further v7x VMEM knob; left at the default here.)
    in_specs = [
        pl.BlockSpec((1, TQ, D), lambda b, qt: (b, qt, 0)),    # x (bf16)
        pl.BlockSpec((1, Lk, D), lambda b, qt: (b, 0, 0)),     # kv source (bf16)
        pl.BlockSpec((1, 1, Lk), lambda b, qt: (b, 0, 0)),     # key-row bias (f32)
        pl.BlockSpec((D, D), lambda b, qt: (0, 0)),            # wq (bf16)
        pl.BlockSpec((1, D), lambda b, qt: (0, 0)),            # bq
        pl.BlockSpec((D, 2 * D), lambda b, qt: (0, 0)),        # wkv (bf16)
        pl.BlockSpec((1, 2 * D), lambda b, qt: (0, 0)),        # bkv
        pl.BlockSpec((D, D), lambda b, qt: (0, 0)),            # wo (bf16)
        pl.BlockSpec((1, D), lambda b, qt: (0, 0)),            # bo
        pl.BlockSpec((1, D), lambda b, qt: (0, 0)),            # ln gamma
        pl.BlockSpec((1, D), lambda b, qt: (0, 0)),            # ln beta
    ]
    if return_attn:
        out_shape = (jax.ShapeDtypeStruct((B, Lq_pad, D), jnp.bfloat16),
                     jax.ShapeDtypeStruct((B, H, Lq_pad, Lk), jnp.float32))
        out_specs = (pl.BlockSpec((1, TQ, D), lambda b, qt: (b, qt, 0)),
                     pl.BlockSpec((1, H, TQ, Lk), lambda b, qt: (b, 0, qt, 0)))
    else:
        out_shape = jax.ShapeDtypeStruct((B, Lq_pad, D), jnp.bfloat16)
        out_specs = pl.BlockSpec((1, TQ, D), lambda b, qt: (b, qt, 0))

    res = pl.pallas_call(
        kern,
        out_shape=out_shape,
        grid=(B, n_qt),
        in_specs=in_specs,
        out_specs=out_specs,
        compiler_params=pltpu.CompilerParams(
            dimension_semantics=("parallel", "parallel"),
            vmem_limit_bytes=VMEM_LIMIT),
    )(xp, kv, key_bias, p["wq"], p["bq"], p["wkv"], p["bkv"], p["wo"], p["bo"],
      ln_g, ln_b)

    if return_attn:
        y, attn = res
        return y[:, :Lq], attn[:, :, :Lq]
    return res[:, :Lq]


# ----------------------------------------------------------------------------
# Fused position-wise FFN block kernel (row-tiled over flattened [B*L, D])
#   y = LayerNorm(x + W2 @ relu(W1 @ x))
# ----------------------------------------------------------------------------

def _ffn_row_kernel(x_ref, w1_ref, b1_ref, w2_ref, b2_ref, g_ref, bb_ref,
                    y_ref, *, eps):
    x = x_ref[...]                                                # [TM, D] bf16
    h = jnp.dot(x, w1_ref[...], preferred_element_type=jnp.float32) + b1_ref[...]
    h = jnp.maximum(h, 0.0)
    f = jnp.dot(h.astype(jnp.bfloat16), w2_ref[...],
                preferred_element_type=jnp.float32) + b2_ref[...]
    y = x.astype(jnp.float32) + f
    mu = jnp.mean(y, axis=-1, keepdims=True)
    var = jnp.mean((y - mu) ** 2, axis=-1, keepdims=True)
    y_ref[...] = ((y - mu) * jax.lax.rsqrt(var + eps) * g_ref[...]
                  + bb_ref[...]).astype(y_ref.dtype)


def ffn_block(x, w1, b1, w2, b2, ln_g, ln_b, *, tm=TM_FFN_DEFAULT, eps=1e-5):
    B, L, D = x.shape
    P = w1.shape[1]
    M = B * L
    TM = M if M <= tm else tm
    Mp = _round_up(M, TM)
    xr = x.reshape(M, D)
    if Mp != M:
        xr = jnp.pad(xr, ((0, Mp - M), (0, 0)))

    y = pl.pallas_call(
        partial(_ffn_row_kernel, eps=eps),
        out_shape=jax.ShapeDtypeStruct((Mp, D), jnp.bfloat16),
        grid=(Mp // TM,),
        in_specs=[
            pl.BlockSpec((TM, D), lambda i: (i, 0)),
            pl.BlockSpec((D, P), lambda i: (0, 0)),
            pl.BlockSpec((1, P), lambda i: (0, 0)),
            pl.BlockSpec((P, D), lambda i: (0, 0)),
            pl.BlockSpec((1, D), lambda i: (0, 0)),
            pl.BlockSpec((1, D), lambda i: (0, 0)),
            pl.BlockSpec((1, D), lambda i: (0, 0)),
        ],
        out_specs=pl.BlockSpec((TM, D), lambda i: (i, 0)),
        compiler_params=pltpu.CompilerParams(
            dimension_semantics=("parallel",),
            vmem_limit_bytes=VMEM_LIMIT),
    )(xr, w1, b1, w2, b2, ln_g, ln_b)
    return y[:M].reshape(B, L, D)


# ----------------------------------------------------------------------------
# Tiled dense (final vocab projection): grid over (M, N, K) tiles with an f32
# VMEM accumulator.  Inputs are padded up to 128-aligned tile multiples so a
# real vocab (e.g. 32005) never degenerates to an untiled dimension.
# ----------------------------------------------------------------------------

def _dense_tiled_kernel(x_ref, w_ref, b_ref, o_ref, acc_ref):
    @pl.when(pl.program_id(2) == 0)
    def _():
        acc_ref[...] = jnp.zeros_like(acc_ref)

    acc_ref[...] += jnp.dot(x_ref[...], w_ref[...],
                            preferred_element_type=jnp.float32)

    @pl.when(pl.program_id(2) == pl.num_programs(2) - 1)
    def _():
        o_ref[...] = acc_ref[...] + b_ref[...]


def dense_tiled(x, w, b, *, tm=DENSE_TM, tn=DENSE_TN, tk=DENSE_TK):
    """x: [M, K] bf16 @ w: [K, N] bf16 + b: [1, N] f32 -> [M, N] f32."""
    M, K = x.shape
    N = w.shape[1]
    tm = min(tm, _round_up(M, 128))
    tn = min(tn, _round_up(N, 128))
    tk = min(tk, _round_up(K, 128))
    Mp, Kp, Np = _round_up(M, tm), _round_up(K, tk), _round_up(N, tn)

    xp = x if (Mp == M and Kp == K) else jnp.pad(x, ((0, Mp - M), (0, Kp - K)))
    wp = w if (Kp == K and Np == N) else jnp.pad(w, ((0, Kp - K), (0, Np - N)))
    bp = b if Np == N else jnp.pad(b, ((0, 0), (0, Np - N)))

    out = pl.pallas_call(
        _dense_tiled_kernel,
        out_shape=jax.ShapeDtypeStruct((Mp, Np), jnp.float32),
        grid=(Mp // tm, Np // tn, Kp // tk),
        in_specs=[
            pl.BlockSpec((tm, tk), lambda i, j, k: (i, k)),
            pl.BlockSpec((tk, tn), lambda i, j, k: (k, j)),
            pl.BlockSpec((1, tn), lambda i, j, k: (0, j)),
        ],
        out_specs=pl.BlockSpec((tm, tn), lambda i, j, k: (i, j)),
        scratch_shapes=[pltpu.VMEM((tm, tn), jnp.float32)],
        compiler_params=pltpu.CompilerParams(
            dimension_semantics=("parallel", "parallel", "arbitrary"),
            vmem_limit_bytes=VMEM_LIMIT),
    )(xp, wp, bp)
    return out[:M, :N]


# ----------------------------------------------------------------------------
# Transformer encoder / decoder (JAX glue around the fused Pallas kernels)
# ----------------------------------------------------------------------------

def encoder(params, src, src_bias, n_heads):
    B, L = src.shape
    D = params["tok_emb"].shape[1]
    # TODO(synk): token/positional embedding gather stays in plain JAX (no clean BlockSpec form).
    x = params["tok_emb"][src] * math.sqrt(D) + params["pos_emb"][:L][None, :, :]
    x = x.astype(jnp.bfloat16)           # bf16 inter-layer activations
    # dropout -> identity (eval mode)
    for lp in params["layers"]:
        x = mha_block(lp["attn"], x, x, src_bias, lp["ln1_g"], lp["ln1_b"],
                      n_heads, causal=False, return_attn=False)
        x = ffn_block(x, lp["ff_w1"], lp["ff_b1"], lp["ff_w2"], lp["ff_b2"],
                      lp["ln2_g"], lp["ln2_b"])
    return x


def decoder(params, trg, enc_src, trg_bias, src_bias, n_heads):
    B, L = trg.shape
    D = params["tok_emb"].shape[1]
    x = params["tok_emb"][trg] * math.sqrt(D) + params["pos_emb"][:L][None, :, :]
    x = x.astype(jnp.bfloat16)
    attention = None
    n_layers = len(params["layers"])
    for li, lp in enumerate(params["layers"]):
        x = mha_block(lp["self_attn"], x, x, trg_bias,
                      lp["ln1_g"], lp["ln1_b"], n_heads,
                      causal=True, return_attn=False)
        if li == n_layers - 1:
            # Only the last layer's cross-attention probabilities are returned
            # by the module, so only this call materializes them to HBM.
            x, attention = mha_block(lp["cross_attn"], x, enc_src, src_bias,
                                     lp["ln2_g"], lp["ln2_b"], n_heads,
                                     causal=False, return_attn=True)
        else:
            x = mha_block(lp["cross_attn"], x, enc_src, src_bias,
                          lp["ln2_g"], lp["ln2_b"], n_heads,
                          causal=False, return_attn=False)
        x = ffn_block(x, lp["ff_w1"], lp["ff_b1"], lp["ff_w2"], lp["ff_b2"],
                      lp["ln3_g"], lp["ln3_b"])
    V = params["fc_out_w"].shape[1]
    out = dense_tiled(x.reshape(B * L, D), params["fc_out_w"], params["fc_out_b"])
    return out.reshape(B, L, V), attention


# ----------------------------------------------------------------------------
# Mask construction: tiny per-batch key-row biases (0.0 keep, -1e10 mask).
# The causal part of the decoder self-attention mask is built in-kernel.
# ----------------------------------------------------------------------------

def make_key_biases(src, trg, src_pad_idx, trg_pad_idx):
    NEG = jnp.float32(-1e10)
    src_bias = jnp.where((src != src_pad_idx)[:, None, :], 0.0, NEG).astype(jnp.float32)
    trg_bias = jnp.where((trg != trg_pad_idx)[:, None, :], 0.0, NEG).astype(jnp.float32)
    return src_bias, trg_bias                     # [B,1,Ls], [B,1,Lt]


def seq2seq_forward(params, src, trg, src_pad_idx, trg_pad_idx, n_heads):
    src_bias, trg_bias = make_key_biases(src, trg, src_pad_idx, trg_pad_idx)
    enc_src = encoder(params["encoder"], src, src_bias, n_heads)
    output, attention = decoder(params["decoder"], trg, enc_src,
                                trg_bias, src_bias, n_heads)
    return output, attention


# ----------------------------------------------------------------------------
# Deterministic parameter initialization (weights in bf16, bias/LN/emb in f32)
# ----------------------------------------------------------------------------

def _init_linear(key, d_in, d_out):
    kw, kb = jax.random.split(key)
    w = (jax.random.normal(kw, (d_in, d_out), jnp.float32) * 0.02).astype(jnp.bfloat16)
    b = jax.random.normal(kb, (1, d_out), jnp.float32) * 0.02
    return w, b


def _init_mha(key, d):
    k1, k2, k3 = jax.random.split(key, 3)
    wq, bq = _init_linear(k1, d, d)
    wkv, bkv = _init_linear(k2, d, 2 * d)   # fused K+V projection weight
    wo, bo = _init_linear(k3, d, d)
    return dict(wq=wq, bq=bq, wkv=wkv, bkv=bkv, wo=wo, bo=bo)


def _ln(d):
    return jnp.ones((1, d), jnp.float32), jnp.zeros((1, d), jnp.float32)


def _init_enc_layer(key, d, pf):
    k1, k2, k3 = jax.random.split(key, 3)
    w1, b1 = _init_linear(k2, d, pf)
    w2, b2 = _init_linear(k3, pf, d)
    g1, be1 = _ln(d)
    g2, be2 = _ln(d)
    return dict(attn=_init_mha(k1, d),
                ln1_g=g1, ln1_b=be1, ln2_g=g2, ln2_b=be2,
                ff_w1=w1, ff_b1=b1, ff_w2=w2, ff_b2=b2)


def _init_dec_layer(key, d, pf):
    k1, k2, k3, k4 = jax.random.split(key, 4)
    w1, b1 = _init_linear(k3, d, pf)
    w2, b2 = _init_linear(k4, pf, d)
    g1, be1 = _ln(d)
    g2, be2 = _ln(d)
    g3, be3 = _ln(d)
    return dict(self_attn=_init_mha(k1, d), cross_attn=_init_mha(k2, d),
                ln1_g=g1, ln1_b=be1, ln2_g=g2, ln2_b=be2, ln3_g=g3, ln3_b=be3,
                ff_w1=w1, ff_b1=b1, ff_w2=w2, ff_b2=b2)


def init_params(key, src_vocab, trg_vocab, d, pf, n_layers, max_len=64):
    ke, kd = jax.random.split(key)
    kes = jax.random.split(ke, n_layers + 2)
    kds = jax.random.split(kd, n_layers + 3)
    enc = dict(
        tok_emb=jax.random.normal(kes[0], (src_vocab, d), jnp.float32) * 0.02,
        pos_emb=jax.random.normal(kes[1], (max_len, d), jnp.float32) * 0.02,
        layers=[_init_enc_layer(kes[2 + i], d, pf) for i in range(n_layers)],
    )
    fc_w, fc_b = _init_linear(kds[2], d, trg_vocab)
    dec = dict(
        tok_emb=jax.random.normal(kds[0], (trg_vocab, d), jnp.float32) * 0.02,
        pos_emb=jax.random.normal(kds[1], (max_len, d), jnp.float32) * 0.02,
        fc_out_w=fc_w, fc_out_b=fc_b,
        layers=[_init_dec_layer(kds[3 + i], d, pf) for i in range(n_layers)],
    )
    return dict(encoder=enc, decoder=dec)


# ----------------------------------------------------------------------------
# Main
# ----------------------------------------------------------------------------

if __name__ == "__main__":
    # Small config
    B = 2
    SRC_LEN = 8
    TRG_LEN = 8
    HID_DIM = 32
    N_HEADS = 4
    PF_DIM = 64
    N_LAYERS = 2
    SRC_VOCAB = 20
    TRG_VOCAB = 20
    SRC_PAD_IDX = 0
    TRG_PAD_IDX = 0

    root = jax.random.PRNGKey(0)
    k_params, k_src, k_trg = jax.random.split(root, 3)

    params = init_params(k_params, SRC_VOCAB, TRG_VOCAB, HID_DIM, PF_DIM, N_LAYERS)

    src = jax.random.randint(k_src, (B, SRC_LEN), 1, SRC_VOCAB, dtype=jnp.int32)
    trg = jax.random.randint(k_trg, (B, TRG_LEN), 1, TRG_VOCAB, dtype=jnp.int32)
    # introduce some padding tokens to exercise the masks
    src = src.at[0, -2:].set(SRC_PAD_IDX)
    trg = trg.at[1, -3:].set(TRG_PAD_IDX)

    fwd = jax.jit(
        partial(
            seq2seq_forward,
            src_pad_idx=SRC_PAD_IDX,
            trg_pad_idx=TRG_PAD_IDX,
            n_heads=N_HEADS,
        )
    )
    output, attention = fwd(params, src, trg)
    jax.block_until_ready((output, attention))

    assert output.shape == (B, TRG_LEN, TRG_VOCAB)
    assert attention.shape == (B, N_HEADS, TRG_LEN, SRC_LEN)
    assert bool(jnp.all(jnp.isfinite(output)))
    assert bool(jnp.all(jnp.isfinite(attention)))
    # attention rows are softmax distributions over src positions
    # (tolerance accounts for the EUP approximate reciprocal in the softmax)
    assert bool(jnp.allclose(attention.sum(-1), 1.0, atol=1e-2))

    print("KERNEL_OK")
</pallas_src>

<mosaic_0001>
module attributes {stable_mosaic.version = 11 : i64} {
  func.func @_mha_block_kernel(%arg0: i32, %arg1: i32, %arg2: memref<1x8x32xbf16, #tpu.memory_space<vmem>>, %arg3: memref<1x8x32xbf16, #tpu.memory_space<vmem>>, %arg4: memref<1x1x8xf32, #tpu.memory_space<vmem>>, %arg5: memref<32x32xbf16, #tpu.memory_space<vmem>>, %arg6: memref<1x32xf32, #tpu.memory_space<vmem>>, %arg7: memref<32x64xbf16, #tpu.memory_space<vmem>>, %arg8: memref<1x64xf32, #tpu.memory_space<vmem>>, %arg9: memref<32x32xbf16, #tpu.memory_space<vmem>>, %arg10: memref<1x32xf32, #tpu.memory_space<vmem>>, %arg11: memref<1x32xf32, #tpu.memory_space<vmem>>, %arg12: memref<1x32xf32, #tpu.memory_space<vmem>>, %arg13: memref<1x8x32xbf16, #tpu.memory_space<vmem>>) attributes {dimension_semantics = [#tpu.dimension_semantics<parallel>, #tpu.dimension_semantics<parallel>], iteration_bounds = array<i64: 2, 1>, scalar_prefetch = 0 : i64, scratch_operands = 0 : i64, tpu.core_type = #tpu.core_type<tc>, window_params = [{transform_indices = @transform_0, window_bounds = array<i64: 1, 8, 32>}, {transform_indices = @transform_1, window_bounds = array<i64: 1, 8, 32>}, {transform_indices = @transform_2, window_bounds = array<i64: 1, 1, 8>}, {pipeline_mode = #tpu.pipeline_mode<synchronous>, transform_indices = @transform_3, window_bounds = array<i64: 32, 32>}, {pipeline_mode = #tpu.pipeline_mode<synchronous>, transform_indices = @transform_4, window_bounds = array<i64: 1, 32>}, {pipeline_mode = #tpu.pipeline_mode<synchronous>, transform_indices = @transform_5, window_bounds = array<i64: 32, 64>}, {pipeline_mode = #tpu.pipeline_mode<synchronous>, transform_indices = @transform_6, window_bounds = array<i64: 1, 64>}, {pipeline_mode = #tpu.pipeline_mode<synchronous>, transform_indices = @transform_7, window_bounds = array<i64: 32, 32>}, {pipeline_mode = #tpu.pipeline_mode<synchronous>, transform_indices = @transform_8, window_bounds = array<i64: 1, 32>}, {pipeline_mode = #tpu.pipeline_mode<synchronous>, transform_indices = @transform_9, window_bounds = array<i64: 1, 32>}, {pipeline_mode = #tpu.pipeline_mode<synchronous>, transform_indices = @transform_10, window_bounds = array<i64: 1, 32>}, {transform_indices = @transform_11, window_bounds = array<i64: 1, 8, 32>}]} {
    %c0 = arith.constant 0 : index
    %c0_0 = arith.constant 0 : index
    %c0_1 = arith.constant 0 : index
    %0 = vector.load %arg2[%c0, %c0_0, %c0_1] : memref<1x8x32xbf16, #tpu.memory_space<vmem>>, vector<1x8x32xbf16>
    %1 = vector.shape_cast %0 : vector<1x8x32xbf16> to vector<8x32xbf16>
    %c0_2 = arith.constant 0 : index
    %c0_3 = arith.constant 0 : index
    %c0_4 = arith.constant 0 : index
    %2 = vector.load %arg3[%c0_2, %c0_3, %c0_4] : memref<1x8x32xbf16, #tpu.memory_space<vmem>>, vector<1x8x32xbf16>
    %3 = vector.shape_cast %2 : vector<1x8x32xbf16> to vector<8x32xbf16>
    %c0_5 = arith.constant 0 : index
    %c0_6 = arith.constant 0 : index
    %c0_7 = arith.constant 0 : index
    %4 = vector.load %arg4[%c0_5, %c0_6, %c0_7] : memref<1x1x8xf32, #tpu.memory_space<vmem>>, vector<1x1x8xf32>
    %5 = vector.shape_cast %4 : vector<1x1x8xf32> to vector<1x8xf32>
    %c0_8 = arith.constant 0 : index
    %c0_9 = arith.constant 0 : index
    %6 = vector.load %arg5[%c0_8, %c0_9] : memref<32x32xbf16, #tpu.memory_space<vmem>>, vector<32x32xbf16>
    %c0_10 = arith.constant 0 : index
    %c0_11 = arith.constant 0 : index
    %7 = vector.load %arg6[%c0_10, %c0_11] : memref<1x32xf32, #tpu.memory_space<vmem>>, vector<1x32xf32>
    %c0_12 = arith.constant 0 : index
    %c0_13 = arith.constant 0 : index
    %8 = vector.load %arg7[%c0_12, %c0_13] : memref<32x64xbf16, #tpu.memory_space<vmem>>, vector<32x64xbf16>
    %c0_14 = arith.constant 0 : index
    %c0_15 = arith.constant 0 : index
    %9 = vector.load %arg8[%c0_14, %c0_15] : memref<1x64xf32, #tpu.memory_space<vmem>>, vector<1x64xf32>
    %c0_16 = arith.constant 0 : index
    %c0_17 = arith.constant 0 : index
    %10 = vector.load %arg9[%c0_16, %c0_17] : memref<32x32xbf16, #tpu.memory_space<vmem>>, vector<32x32xbf16>
    %c0_18 = arith.constant 0 : index
    %c0_19 = arith.constant 0 : index
    %11 = vector.load %arg10[%c0_18, %c0_19] : memref<1x32xf32, #tpu.memory_space<vmem>>, vector<1x32xf32>
    %c0_20 = arith.constant 0 : index
    %c0_21 = arith.constant 0 : index
    %12 = vector.load %arg11[%c0_20, %c0_21] : memref<1x32xf32, #tpu.memory_space<vmem>>, vector<1x32xf32>
    %c0_22 = arith.constant 0 : index
    %c0_23 = arith.constant 0 : index
    %13 = vector.load %arg12[%c0_22, %c0_23] : memref<1x32xf32, #tpu.memory_space<vmem>>, vector<1x32xf32>
    %cst = arith.constant dense<0.000000e+00> : vector<8x32xf32>
    %14 = tpu.matmul %1, %6, %cst {dimension_numbers = #tpu.dot_dimension_numbers<[1], [0], [0], [1], [0, 0, 1, 1], [], []>} : vector<8x32xbf16>, vector<32x32xbf16>, vector<8x32xf32> -> vector<8x32xf32>
    %15 = vector.broadcast %7 : vector<1x32xf32> to vector<8x32xf32>
    %16 = arith.addf %14, %15 : vector<8x32xf32>
    %cst_24 = arith.constant dense<0.000000e+00> : vector<8x64xf32>
    %17 = tpu.matmul %3, %8, %cst_24 {dimension_numbers = #tpu.dot_dimension_numbers<[1], [0], [0], [1], [0, 0, 1, 1], [], []>} : vector<8x32xbf16>, vector<32x64xbf16>, vector<8x64xf32> -> vector<8x64xf32>
    %18 = vector.broadcast %9 : vector<1x64xf32> to vector<8x64xf32>
    %19 = arith.addf %17, %18 : vector<8x64xf32>
    %cst_25 = arith.constant 0.353553385 : f32
    %20 = vector.broadcast %cst_25 : f32 to vector<8x32xf32>
    %21 = arith.mulf %16, %20 : vector<8x32xf32>
    %22 = arith.truncf %21 : vector<8x32xf32> to vector<8x32xbf16>
    %23 = vector.extract_strided_slice %19 {offsets = [0, 0], sizes = [8, 32], strides = [1, 1]} : vector<8x64xf32> to vector<8x32xf32>
    %24 = arith.truncf %23 : vector<8x32xf32> to vector<8x32xbf16>
    %25 = vector.extract_strided_slice %19 {offsets = [0, 32], sizes = [8, 32], strides = [1, 1]} : vector<8x64xf32> to vector<8x32xf32>
    %26 = arith.truncf %25 : vector<8x32xf32> to vector<8x32xbf16>
    %cst_26 = arith.constant 0.000000e+00 : f32
    %27 = vector.broadcast %cst_26 : f32 to vector<8x32xf32>
    %28 = vector.extract_strided_slice %22 {offsets = [0, 0], sizes = [8, 8], strides = [1, 1]} : vector<8x32xbf16> to vector<8x8xbf16>
    %29 = vector.extract_strided_slice %24 {offsets = [0, 0], sizes = [8, 8], strides = [1, 1]} : vector<8x32xbf16> to vector<8x8xbf16>
    %cst_27 = arith.constant dense<0.000000e+00> : vector<8x8xf32>
    %30 = tpu.matmul %28, %29, %cst_27 {dimension_numbers = #tpu.dot_dimension_numbers<[1], [1], [0], [0], [0, 0, 1, 0], [], []>} : vector<8x8xbf16>, vector<8x8xbf16>, vector<8x8xf32> -> vector<8x8xf32>
    %31 = vector.broadcast %5 : vector<1x8xf32> to vector<8x8xf32>
    %32 = arith.addf %30, %31 : vector<8x8xf32>
    %cst_28 = arith.constant dense<0xFF800000> : vector<8xf32>
    %33 = vector.multi_reduction <maximumf>, %32, %cst_28 [1] : vector<8x8xf32> to vector<8xf32>
    %34 = vector.shape_cast %33 : vector<8xf32> to vector<8x1xf32>
    %35 = vector.broadcast %34 : vector<8x1xf32> to vector<8x8xf32>
    %36 = arith.subf %32, %35 : vector<8x8xf32>
    %37 = math.exp %36 : vector<8x8xf32>
    %cst_29 = arith.constant dense<0.000000e+00> : vector<8xf32>
    %38 = vector.multi_reduction <add>, %37, %cst_29 [1] : vector<8x8xf32> to vector<8xf32>
    %39 = vector.shape_cast %38 : vector<8xf32> to vector<8x1xf32>
    %40 = tpu.reciprocal %39 {approx = true} : vector<8x1xf32> -> vector<8x1xf32>
    %41 = vector.broadcast %40 : vector<8x1xf32> to vector<8x8xf32>
    %42 = arith.mulf %37, %41 : vector<8x8xf32>
    %43 = arith.truncf %42 : vector<8x8xf32> to vector<8x8xbf16>
    %44 = vector.extract_strided_slice %26 {offsets = [0, 0], sizes = [8, 8], strides = [1, 1]} : vector<8x32xbf16> to vector<8x8xbf16>
    %cst_30 = arith.constant dense<0.000000e+00> : vector<8x8xf32>
    %45 = tpu.matmul %43, %44, %cst_30 {dimension_numbers = #tpu.dot_dimension_numbers<[1], [0], [0], [1], [0, 0, 1, 1], [], []>} : vector<8x8xbf16>, vector<8x8xbf16>, vector<8x8xf32> -> vector<8x8xf32>
    %46 = arith.truncf %45 : vector<8x8xf32> to vector<8x8xbf16>
    %47 = vector.extract_strided_slice %10 {offsets = [0, 0], sizes = [8, 32], strides = [1, 1]} : vector<32x32xbf16> to vector<8x32xbf16>
    %cst_31 = arith.constant dense<0.000000e+00> : vector<8x32xf32>
    %48 = tpu.matmul %46, %47, %cst_31 {dimension_numbers = #tpu.dot_dimension_numbers<[1], [0], [0], [1], [0, 0, 1, 1], [], []>} : vector<8x8xbf16>, vector<8x32xbf16>, vector<8x32xf32> -> vector<8x32xf32>
    %49 = arith.addf %27, %48 : vector<8x32xf32>
    %50 = vector.extract_strided_slice %22 {offsets = [0, 8], sizes = [8, 8], strides = [1, 1]} : vector<8x32xbf16> to vector<8x8xbf16>
    %51 = vector.extract_strided_slice %24 {offsets = [0, 8], sizes = [8, 8], strides = [1, 1]} : vector<8x32xbf16> to vector<8x8xbf16>
    %cst_32 = arith.constant dense<0.000000e+00> : vector<8x8xf32>
    %52 = tpu.matmul %50, %51, %cst_32 {dimension_numbers = #tpu.dot_dimension_numbers<[1], [1], [0], [0], [0, 0, 1, 0], [], []>} : vector<8x8xbf16>, vector<8x8xbf16>, vector<8x8xf32> -> vector<8x8xf32>
    %53 = vector.broadcast %5 : vector<1x8xf32> to vector<8x8xf32>
    %54 = arith.addf %52, %53 : vector<8x8xf32>
    %cst_33 = arith.constant dense<0xFF800000> : vector<8xf32>
    %55 = vector.multi_reduction <maximumf>, %54, %cst_33 [1] : vector<8x8xf32> to vector<8xf32>
    %56 = vector.shape_cast %55 : vector<8xf32> to vector<8x1xf32>
    %57 = vector.broadcast %56 : vector<8x1xf32> to vector<8x8xf32>
    %58 = arith.subf %54, %57 : vector<8x8xf32>
    %59 = math.exp %58 : vector<8x8xf32>
    %cst_34 = arith.constant dense<0.000000e+00> : vector<8xf32>
    %60 = vector.multi_reduction <add>, %59, %cst_34 [1] : vector<8x8xf32> to vector<8xf32>
    %61 = vector.shape_cast %60 : vector<8xf32> to vector<8x1xf32>
    %62 = tpu.reciprocal %61 {approx = true} : vector<8x1xf32> -> vector<8x1xf32>
    %63 = vector.broadcast %62 : vector<8x1xf32> to vector<8x8xf32>
    %64 = arith.mulf %59, %63 : vector<8x8xf32>
    %65 = arith.truncf %64 : vector<8x8xf32> to vector<8x8xbf16>
    %66 = vector.extract_strided_slice %26 {offsets = [0, 8], sizes = [8, 8], strides = [1, 1]} : vector<8x32xbf16> to vector<8x8xbf16>
    %cst_35 = arith.constant dense<0.000000e+00> : vector<8x8xf32>
    %67 = tpu.matmul %65, %66, %cst_35 {dimension_numbers = #tpu.dot_dimension_numbers<[1], [0], [0], [1], [0, 0, 1, 1], [], []>} : vector<8x8xbf16>, vector<8x8xbf16>, vector<8x8xf32> -> vector<8x8xf32>
    %68 = arith.truncf %67 : vector<8x8xf32> to vector<8x8xbf16>
    %69 = vector.extract_strided_slice %10 {offsets = [8, 0], sizes = [8, 32], strides = [1, 1]} : vector<32x32xbf16> to vector<8x32xbf16>
    %cst_36 = arith.constant dense<0.000000e+00> : vector<8x32xf32>
    %70 = tpu.matmul %68, %69, %cst_36 {dimension_numbers = #tpu.dot_dimension_numbers<[1], [0], [0], [1], [0, 0, 1, 1], [], []>} : vector<8x8xbf16>, vector<8x32xbf16>, vector<8x32xf32> -> vector<8x32xf32>
    %71 = arith.addf %49, %70 : vector<8x32xf32>
    %72 = vector.extract_strided_slice %22 {offsets = [0, 16], sizes = [8, 8], strides = [1, 1]} : vector<8x32xbf16> to vector<8x8xbf16>
    %73 = vector.extract_strided_slice %24 {offsets = [0, 16], sizes = [8, 8], strides = [1, 1]} : vector<8x32xbf16> to vector<8x8xbf16>
    %cst_37 = arith.constant dense<0.000000e+00> : vector<8x8xf32>
    %74 = tpu.matmul %72, %73, %cst_37 {dimension_numbers = #tpu.dot_dimension_numbers<[1], [1], [0], [0], [0, 0, 1, 0], [], []>} : vector<8x8xbf16>, vector<8x8xbf16>, vector<8x8xf32> -> vector<8x8xf32>
    %75 = vector.broadcast %5 : vector<1x8xf32> to vector<8x8xf32>
    %76 = arith.addf %74, %75 : vector<8x8xf32>
    %cst_38 = arith.constant dense<0xFF800000> : vector<8xf32>
    %77 = vector.multi_reduction <maximumf>, %76, %cst_38 [1] : vector<8x8xf32> to vector<8xf32>
    %78 = vector.shape_cast %77 : vector<8xf32> to vector<8x1xf32>
    %79 = vector.broadcast %78 : vector<8x1xf32> to vector<8x8xf32>
    %80 = arith.subf %76, %79 : vector<8x8xf32>
    %81 = math.exp %80 : vector<8x8xf32>
    %cst_39 = arith.constant dense<0.000000e+00> : vector<8xf32>
    %82 = vector.multi_reduction <add>, %81, %cst_39 [1] : vector<8x8xf32> to vector<8xf32>
    %83 = vector.shape_cast %82 : vector<8xf32> to vector<8x1xf32>
    %84 = tpu.reciprocal %83 {approx = true} : vector<8x1xf32> -> vector<8x1xf32>
    %85 = vector.broadcast %84 : vector<8x1xf32> to vector<8x8xf32>
    %86 = arith.mulf %81, %85 : vector<8x8xf32>
    %87 = arith.truncf %86 : vector<8x8xf32> to vector<8x8xbf16>
    %88 = vector.extract_strided_slice %26 {offsets = [0, 16], sizes = [8, 8], strides = [1, 1]} : vector<8x32xbf16> to vector<8x8xbf16>
    %cst_40 = arith.constant dense<0.000000e+00> : vector<8x8xf32>
    %89 = tpu.matmul %87, %88, %cst_40 {dimension_numbers = #tpu.dot_dimension_numbers<[1], [0], [0], [1], [0, 0, 1, 1], [], []>} : vector<8x8xbf16>, vector<8x8xbf16>, vector<8x8xf32> -> vector<8x8xf32>
    %90 = arith.truncf %89 : vector<8x8xf32> to vector<8x8xbf16>
    %91 = vector.extract_strided_slice %10 {offsets = [16, 0], sizes = [8, 32], strides = [1, 1]} : vector<32x32xbf16> to vector<8x32xbf16>
    %cst_41 = arith.constant dense<0.000000e+00> : vector<8x32xf32>
    %92 = tpu.matmul %90, %91, %cst_41 {dimension_numbers = #tpu.dot_dimension_numbers<[1], [0], [0], [1], [0, 0, 1, 1], [], []>} : vector<8x8xbf16>, vector<8x32xbf16>, vector<8x32xf32> -> vector<8x32xf32>
    %93 = arith.addf %71, %92 : vector<8x32xf32>
    %94 = vector.extract_strided_slice %22 {offsets = [0, 24], sizes = [8, 8], strides = [1, 1]} : vector<8x32xbf16> to vector<8x8xbf16>
    %95 = vector.extract_strided_slice %24 {offsets = [0, 24], sizes = [8, 8], strides = [1, 1]} : vector<8x32xbf16> to vector<8x8xbf16>
    %cst_42 = arith.constant dense<0.000000e+00> : vector<8x8xf32>
    %96 = tpu.matmul %94, %95, %cst_42 {dimension_numbers = #tpu.dot_dimension_numbers<[1], [1], [0], [0], [0, 0, 1, 0], [], []>} : vector<8x8xbf16>, vector<8x8xbf16>, vector<8x8xf32> -> vector<8x8xf32>
    %97 = vector.broadcast %5 : vector<1x8xf32> to vector<8x8xf32>
    %98 = arith.addf %96, %97 : vector<8x8xf32>
    %cst_43 = arith.constant dense<0xFF800000> : vector<8xf32>
    %99 = vector.multi_reduction <maximumf>, %98, %cst_43 [1] : vector<8x8xf32> to vector<8xf32>
    %100 = vector.shape_cast %99 : vector<8xf32> to vector<8x1xf32>
    %101 = vector.broadcast %100 : vector<8x1xf32> to vector<8x8xf32>
    %102 = arith.subf %98, %101 : vector<8x8xf32>
    %103 = math.exp %102 : vector<8x8xf32>
    %cst_44 = arith.constant dense<0.000000e+00> : vector<8xf32>
    %104 = vector.multi_reduction <add>, %103, %cst_44 [1] : vector<8x8xf32> to vector<8xf32>
    %105 = vector.shape_cast %104 : vector<8xf32> to vector<8x1xf32>
    %106 = tpu.reciprocal %105 {approx = true} : vector<8x1xf32> -> vector<8x1xf32>
    %107 = vector.broadcast %106 : vector<8x1xf32> to vector<8x8xf32>
    %108 = arith.mulf %103, %107 : vector<8x8xf32>
    %109 = arith.truncf %108 : vector<8x8xf32> to vector<8x8xbf16>
    %110 = vector.extract_strided_slice %26 {offsets = [0, 24], sizes = [8, 8], strides = [1, 1]} : vector<8x32xbf16> to vector<8x8xbf16>
    %cst_45 = arith.constant dense<0.000000e+00> : vector<8x8xf32>
    %111 = tpu.matmul %109, %110, %cst_45 {dimension_numbers = #tpu.dot_dimension_numbers<[1], [0], [0], [1], [0, 0, 1, 1], [], []>} : vector<8x8xbf16>, vector<8x8xbf16>, vector<8x8xf32> -> vector<8x8xf32>
    %112 = arith.truncf %111 : vector<8x8xf32> to vector<8x8xbf16>
    %113 = vector.extract_strided_slice %10 {offsets = [24, 0], sizes = [8, 32], strides = [1, 1]} : vector<32x32xbf16> to vector<8x32xbf16>
    %cst_46 = arith.constant dense<0.000000e+00> : vector<8x32xf32>
    %114 = tpu.matmul %112, %113, %cst_46 {dimension_numbers = #tpu.dot_dimension_numbers<[1], [0], [0], [1], [0, 0, 1, 1], [], []>} : vector<8x8xbf16>, vector<8x32xbf16>, vector<8x32xf32> -> vector<8x32xf32>
    %115 = arith.addf %93, %114 : vector<8x32xf32>
    %116 = arith.extf %1 : vector<8x32xbf16> to vector<8x32xf32>
    %117 = arith.addf %116, %115 : vector<8x32xf32>
    %118 = vector.broadcast %11 : vector<1x32xf32> to vector<8x32xf32>
    %119 = arith.addf %117, %118 : vector<8x32xf32>
    %cst_47 = arith.constant dense<0.000000e+00> : vector<8xf32>
    %120 = vector.multi_reduction <add>, %119, %cst_47 [1] : vector<8x32xf32> to vector<8xf32>
    %121 = vector.shape_cast %120 : vector<8xf32> to vector<8x1xf32>
    %cst_48 = arith.constant 3.200000e+01 : f32
    %122 = vector.broadcast %cst_48 : f32 to vector<8x1xf32>
    %123 = arith.divf %121, %122 : vector<8x1xf32>
    %124 = vector.broadcast %123 : vector<8x1xf32> to vector<8x32xf32>
    %125 = arith.subf %119, %124 : vector<8x32xf32>
    %126 = arith.mulf %125, %125 : vector<8x32xf32>
    %cst_49 = arith.constant dense<0.000000e+00> : vector<8xf32>
    %127 = vector.multi_reduction <add>, %126, %cst_49 [1] : vector<8x32xf32> to vector<8xf32>
    %128 = vector.shape_cast %127 : vector<8xf32> to vector<8x1xf32>
    %cst_50 = arith.constant 3.200000e+01 : f32
    %129 = vector.broadcast %cst_50 : f32 to vector<8x1xf32>
    %130 = arith.divf %128, %129 : vector<8x1xf32>
    %131 = vector.broadcast %123 : vector<8x1xf32> to vector<8x32xf32>
    %132 = arith.subf %119, %131 : vector<8x32xf32>
    %cst_51 = arith.constant 9.99999974E-6 : f32
    %133 = vector.broadcast %cst_51 : f32 to vector<8x1xf32>
    %134 = arith.addf %130, %133 : vector<8x1xf32>
    %135 = math.rsqrt %134 : vector<8x1xf32>
    %136 = vector.broadcast %135 : vector<8x1xf32> to vector<8x32xf32>
    %137 = arith.mulf %132, %136 : vector<8x32xf32>
    %138 = vector.broadcast %12 : vector<1x32xf32> to vector<8x32xf32>
    %139 = arith.mulf %137, %138 : vector<8x32xf32>
    %140 = vector.broadcast %13 : vector<1x32xf32> to vector<8x32xf32>
    %141 = arith.addf %139, %140 : vector<8x32xf32>
    %142 = arith.truncf %141 : vector<8x32xf32> to vector<8x32xbf16>
    %c0_52 = arith.constant 0 : index
    %c0_53 = arith.constant 0 : index
    %c0_54 = arith.constant 0 : index
    %143 = vector.load %arg13[%c0_52, %c0_53, %c0_54] : memref<1x8x32xbf16, #tpu.memory_space<vmem>>, vector<1x8x32xbf16>
    %144 = vector.shape_cast %143 : vector<1x8x32xbf16> to vector<8x32xbf16>
    %145 = vector.shape_cast %142 : vector<8x32xbf16> to vector<1x8x32xbf16>
    tpu.vector_store %arg13[%c0_52, %c0_53, %c0_54], %145 {strides = array<i32>} : memref<1x8x32xbf16, #tpu.memory_space<vmem>>, vector<1x8x32xbf16>,
    return
  }
  func.func @transform_0(%arg0: i32, %arg1: i32) -> (i32, i32, i32) {
    %c0_i32 = arith.constant 0 : i32
    %c0_i32_0 = arith.constant 0 : i32
    return %arg0, %arg1, %c0_i32 : i32, i32, i32
  }
  func.func @transform_1(%arg0: i32, %arg1: i32) -> (i32, i32, i32) {
    %c0_i32 = arith.constant 0 : i32
    %c0_i32_0 = arith.constant 0 : i32
    %c0_i32_1 = arith.constant 0 : i32
    return %arg0, %c0_i32, %c0_i32_0 : i32, i32, i32
  }
  func.func @transform_2(%arg0: i32, %arg1: i32) -> (i32, i32, i32) {
    %c0_i32 = arith.constant 0 : i32
    %c0_i32_0 = arith.constant 0 : i32
    %c0_i32_1 = arith.constant 0 : i32
    return %arg0, %c0_i32, %c0_i32_0 : i32, i32, i32
  }
  func.func @transform_3(%arg0: i32, %arg1: i32) -> (i32, i32) {
    %c0_i32 = arith.constant 0 : i32
    %c0_i32_0 = arith.constant 0 : i32
    %c0_i32_1 = arith.constant 0 : i32
    return %c0_i32, %c0_i32_0 : i32, i32
  }
  func.func @transform_4(%arg0: i32, %arg1: i32) -> (i32, i32) {
    %c0_i32 = arith.constant 0 : i32
    %c0_i32_0 = arith.constant 0 : i32
    %c0_i32_1 = arith.constant 0 : i32
    return %c0_i32, %c0_i32_0 : i32, i32
  }
  func.func @transform_5(%arg0: i32, %arg1: i32) -> (i32, i32) {
    %c0_i32 = arith.constant 0 : i32
    %c0_i32_0 = arith.constant 0 : i32
    %c0_i32_1 = arith.constant 0 : i32
    return %c0_i32, %c0_i32_0 : i32, i32
  }
  func.func @transform_6(%arg0: i32, %arg1: i32) -> (i32, i32) {
    %c0_i32 = arith.constant 0 : i32
    %c0_i32_0 = arith.constant 0 : i32
    %c0_i32_1 = arith.constant 0 : i32
    return %c0_i32, %c0_i32_0 : i32, i32
  }
  func.func @transform_7(%arg0: i32, %arg1: i32) -> (i32, i32) {
    %c0_i32 = arith.constant 0 : i32
    %c0_i32_0 = arith.constant 0 : i32
    %c0_i32_1 = arith.constant 0 : i32
    return %c0_i32, %c0_i32_0 : i32, i32
  }
  func.func @transform_8(%arg0: i32, %arg1: i32) -> (i32, i32) {
    %c0_i32 = arith.constant 0 : i32
    %c0_i32_0 = arith.constant 0 : i32
    %c0_i32_1 = arith.constant 0 : i32
    return %c0_i32, %c0_i32_0 : i32, i32
  }
  func.func @transform_9(%arg0: i32, %arg1: i32) -> (i32, i32) {
    %c0_i32 = arith.constant 0 : i32
    %c0_i32_0 = arith.constant 0 : i32
    %c0_i32_1 = arith.constant 0 : i32
    return %c0_i32, %c0_i32_0 : i32, i32
  }
  func.func @transform_10(%arg0: i32, %arg1: i32) -> (i32, i32) {
    %c0_i32 = arith.constant 0 : i32
    %c0_i32_0 = arith.constant 0 : i32
    %c0_i32_1 = arith.constant 0 : i32
    return %c0_i32, %c0_i32_0 : i32, i32
  }
  func.func @transform_11(%arg0: i32, %arg1: i32) -> (i32, i32, i32) {
    %c0_i32 = arith.constant 0 : i32
    %c0_i32_0 = arith.constant 0 : i32
    return %arg0, %arg1, %c0_i32 : i32, i32, i32
  }
}

module attributes {stable_mosaic.version = 11 : i64} {
  func.func @_mha_block_kernel(%arg0: i32, %arg1: i32, %arg2: memref<1x8x32xbf16, #tpu.memory_space<vmem>>, %arg3: memref<1x8x32xbf16, #tpu.memory_space<vmem>>, %arg4: memref<1x1x8xf32, #tpu.memory_space<vmem>>, %arg5: memref<32x32xbf16, #tpu.memory_space<vmem>>, %arg6: memref<1x32xf32, #tpu.memory_space<vmem>>, %arg7: memref<32x64xbf16, #tpu.memory_space<vmem>>, %arg8: memref<1x64xf32, #tpu.memory_space<vmem>>, %arg9: memref<32x32xbf16, #tpu.memory_space<vmem>>, %arg10: memref<1x32xf32, #tpu.memory_space<vmem>>, %arg11: memref<1x32xf32, #tpu.memory_space<vmem>>, %arg12: memref<1x32xf32, #tpu.memory_space<vmem>>, %arg13: memref<1x8x32xbf16, #tpu.memory_space<vmem>>) attributes {dimension_semantics = [#tpu.dimension_semantics<parallel>, #tpu.dimension_semantics<parallel>], iteration_bounds = array<i64: 2, 1>, scalar_prefetch = 0 : i64, scratch_operands = 0 : i64, tpu.core_type = #tpu.core_type<tc>, window_params = [{transform_indices = @transform_0, window_bounds = array<i64: 1, 8, 32>}, {transform_indices = @transform_1, window_bounds = array<i64: 1, 8, 32>}, {transform_indices = @transform_2, window_bounds = array<i64: 1, 1, 8>}, {pipeline_mode = #tpu.pipeline_mode<synchronous>, transform_indices = @transform_3, window_bounds = array<i64: 32, 32>}, {pipeline_mode = #tpu.pipeline_mode<synchronous>, transform_indices = @transform_4, window_bounds = array<i64: 1, 32>}, {pipeline_mode = #tpu.pipeline_mode<synchronous>, transform_indices = @transform_5, window_bounds = array<i64: 32, 64>}, {pipeline_mode = #tpu.pipeline_mode<synchronous>, transform_indices = @transform_6, window_bounds = array<i64: 1, 64>}, {pipeline_mode = #tpu.pipeline_mode<synchronous>, transform_indices = @transform_7, window_bounds = array<i64: 32, 32>}, {pipeline_mode = #tpu.pipeline_mode<synchronous>, transform_indices = @transform_8, window_bounds = array<i64: 1, 32>}, {pipeline_mode = #tpu.pipeline_mode<synchronous>, transform_indices = @transform_9, window_bounds = array<i64: 1, 32>}, {pipeline_mode = #tpu.pipeline_mode<synchronous>, transform_indices = @transform_10, window_bounds = array<i64: 1, 32>}, {transform_indices = @transform_11, window_bounds = array<i64: 1, 8, 32>}]} {
    %c8_i32 = arith.constant 8 : i32
    %0 = arith.muli %arg1, %c8_i32 : i32
    %c0 = arith.constant 0 : index
    %c0_0 = arith.constant 0 : index
    %c0_1 = arith.constant 0 : index
    %1 = vector.load %arg2[%c0, %c0_0, %c0_1] : memref<1x8x32xbf16, #tpu.memory_space<vmem>>, vector<1x8x32xbf16>
    %2 = vector.shape_cast %1 : vector<1x8x32xbf16> to vector<8x32xbf16>
    %c0_2 = arith.constant 0 : index
    %c0_3 = arith.constant 0 : index
    %c0_4 = arith.constant 0 : index
    %3 = vector.load %arg3[%c0_2, %c0_3, %c0_4] : memref<1x8x32xbf16, #tpu.memory_space<vmem>>, vector<1x8x32xbf16>
    %4 = vector.shape_cast %3 : vector<1x8x32xbf16> to vector<8x32xbf16>
    %c0_5 = arith.constant 0 : index
    %c0_6 = arith.constant 0 : index
    %c0_7 = arith.constant 0 : index
    %5 = vector.load %arg4[%c0_5, %c0_6, %c0_7] : memref<1x1x8xf32, #tpu.memory_space<vmem>>, vector<1x1x8xf32>
    %6 = vector.shape_cast %5 : vector<1x1x8xf32> to vector<1x8xf32>
    %c0_8 = arith.constant 0 : index
    %c0_9 = arith.constant 0 : index
    %7 = vector.load %arg5[%c0_8, %c0_9] : memref<32x32xbf16, #tpu.memory_space<vmem>>, vector<32x32xbf16>
    %c0_10 = arith.constant 0 : index
    %c0_11 = arith.constant 0 : index
    %8 = vector.load %arg6[%c0_10, %c0_11] : memref<1x32xf32, #tpu.memory_space<vmem>>, vector<1x32xf32>
    %c0_12 = arith.constant 0 : index
    %c0_13 = arith.constant 0 : index
    %9 = vector.load %arg7[%c0_12, %c0_13] : memref<32x64xbf16, #tpu.memory_space<vmem>>, vector<32x64xbf16>
    %c0_14 = arith.constant 0 : index
    %c0_15 = arith.constant 0 : index
    %10 = vector.load %arg8[%c0_14, %c0_15] : memref<1x64xf32, #tpu.memory_space<vmem>>, vector<1x64xf32>
    %c0_16 = arith.constant 0 : index
    %c0_17 = arith.constant 0 : index
    %11 = vector.load %arg9[%c0_16, %c0_17] : memref<32x32xbf16, #tpu.memory_space<vmem>>, vector<32x32xbf16>
    %c0_18 = arith.constant 0 : index
    %c0_19 = arith.constant 0 : index
    %12 = vector.load %arg10[%c0_18, %c0_19] : memref<1x32xf32, #tpu.memory_space<vmem>>, vector<1x32xf32>
    %c0_20 = arith.constant 0 : index
    %c0_21 = arith.constant 0 : index
    %13 = vector.load %arg11[%c0_20, %c0_21] : memref<1x32xf32, #tpu.memory_space<vmem>>, vector<1x32xf32>
    %c0_22 = arith.constant 0 : index
    %c0_23 = arith.constant 0 : index
    %14 = vector.load %arg12[%c0_22, %c0_23] : memref<1x32xf32, #tpu.memory_space<vmem>>, vector<1x32xf32>
    %cst = arith.constant dense<0.000000e+00> : vector<8x32xf32>
    %15 = tpu.matmul %2, %7, %cst {dimension_numbers = #tpu.dot_dimension_numbers<[1], [0], [0], [1], [0, 0, 1, 1], [], []>} : vector<8x32xbf16>, vector<32x32xbf16>, vector<8x32xf32> -> vector<8x32xf32>
    %16 = vector.broadcast %8 : vector<1x32xf32> to vector<8x32xf32>
    %17 = arith.addf %15, %16 : vector<8x32xf32>
    %cst_24 = arith.constant dense<0.000000e+00> : vector<8x64xf32>
    %18 = tpu.matmul %4, %9, %cst_24 {dimension_numbers = #tpu.dot_dimension_numbers<[1], [0], [0], [1], [0, 0, 1, 1], [], []>} : vector<8x32xbf16>, vector<32x64xbf16>, vector<8x64xf32> -> vector<8x64xf32>
    %19 = vector.broadcast %10 : vector<1x64xf32> to vector<8x64xf32>
    %20 = arith.addf %18, %19 : vector<8x64xf32>
    %cst_25 = arith.constant 0.353553385 : f32
    %21 = vector.broadcast %cst_25 : f32 to vector<8x32xf32>
    %22 = arith.mulf %17, %21 : vector<8x32xf32>
    %23 = arith.truncf %22 : vector<8x32xf32> to vector<8x32xbf16>
    %24 = vector.extract_strided_slice %20 {offsets = [0, 0], sizes = [8, 32], strides = [1, 1]} : vector<8x64xf32> to vector<8x32xf32>
    %25 = arith.truncf %24 : vector<8x32xf32> to vector<8x32xbf16>
    %26 = vector.extract_strided_slice %20 {offsets = [0, 32], sizes = [8, 32], strides = [1, 1]} : vector<8x64xf32> to vector<8x32xf32>
    %27 = arith.truncf %26 : vector<8x32xf32> to vector<8x32xbf16>
    %28 = tpu.iota {dimensions = array<i32: 0>} : vector<8x8xi32>
    %29 = vector.broadcast %0 : i32 to vector<8x8xi32>
    %30 = arith.addi %28, %29 : vector<8x8xi32>
    %31 = tpu.iota {dimensions = array<i32: 1>} : vector<8x8xi32>
    %32 = arith.cmpi sle, %31, %30 : vector<8x8xi32>
    %cst_26 = arith.constant 0.000000e+00 : f32
    %cst_27 = arith.constant -1.000000e+10 : f32
    %33 = vector.broadcast %cst_26 : f32 to vector<8x8xf32>
    %34 = vector.broadcast %cst_27 : f32 to vector<8x8xf32>
    %35 = arith.select %32, %33, %34 : vector<8x8xi1>, vector<8x8xf32>
    %36 = vector.broadcast %6 : vector<1x8xf32> to vector<8x8xf32>
    %37 = arith.addf %36, %35 : vector<8x8xf32>
    %cst_28 = arith.constant 0.000000e+00 : f32
    %38 = vector.broadcast %cst_28 : f32 to vector<8x32xf32>
    %39 = vector.extract_strided_slice %23 {offsets = [0, 0], sizes = [8, 8], strides = [1, 1]} : vector<8x32xbf16> to vector<8x8xbf16>
    %40 = vector.extract_strided_slice %25 {offsets = [0, 0], sizes = [8, 8], strides = [1, 1]} : vector<8x32xbf16> to vector<8x8xbf16>
    %cst_29 = arith.constant dense<0.000000e+00> : vector<8x8xf32>
    %41 = tpu.matmul %39, %40, %cst_29 {dimension_numbers = #tpu.dot_dimension_numbers<[1], [1], [0], [0], [0, 0, 1, 0], [], []>} : vector<8x8xbf16>, vector<8x8xbf16>, vector<8x8xf32> -> vector<8x8xf32>
    %42 = arith.addf %41, %37 : vector<8x8xf32>
    %cst_30 = arith.constant dense<0xFF800000> : vector<8xf32>
    %43 = vector.multi_reduction <maximumf>, %42, %cst_30 [1] : vector<8x8xf32> to vector<8xf32>
    %44 = vector.shape_cast %43 : vector<8xf32> to vector<8x1xf32>
    %45 = vector.broadcast %44 : vector<8x1xf32> to vector<8x8xf32>
    %46 = arith.subf %42, %45 : vector<8x8xf32>
    %47 = math.exp %46 : vector<8x8xf32>
    %cst_31 = arith.constant dense<0.000000e+00> : vector<8xf32>
    %48 = vector.multi_reduction <add>, %47, %cst_31 [1] : vector<8x8xf32> to vector<8xf32>
    %49 = vector.shape_cast %48 : vector<8xf32> to vector<8x1xf32>
    %50 = tpu.reciprocal %49 {approx = true} : vector<8x1xf32> -> vector<8x1xf32>
    %51 = vector.broadcast %50 : vector<8x1xf32> to vector<8x8xf32>
    %52 = arith.mulf %47, %51 : vector<8x8xf32>
    %53 = arith.truncf %52 : vector<8x8xf32> to vector<8x8xbf16>
    %54 = vector.extract_strided_slice %27 {offsets = [0, 0], sizes = [8, 8], strides = [1, 1]} : vector<8x32xbf16> to vector<8x8xbf16>
    %cst_32 = arith.constant dense<0.000000e+00> : vector<8x8xf32>
    %55 = tpu.matmul %53, %54, %cst_32 {dimension_numbers = #tpu.dot_dimension_numbers<[1], [0], [0], [1], [0, 0, 1, 1], [], []>} : vector<8x8xbf16>, vector<8x8xbf16>, vector<8x8xf32> -> vector<8x8xf32>
    %56 = arith.truncf %55 : vector<8x8xf32> to vector<8x8xbf16>
    %57 = vector.extract_strided_slice %11 {offsets = [0, 0], sizes = [8, 32], strides = [1, 1]} : vector<32x32xbf16> to vector<8x32xbf16>
    %cst_33 = arith.constant dense<0.000000e+00> : vector<8x32xf32>
    %58 = tpu.matmul %56, %57, %cst_33 {dimension_numbers = #tpu.dot_dimension_numbers<[1], [0], [0], [1], [0, 0, 1, 1], [], []>} : vector<8x8xbf16>, vector<8x32xbf16>, vector<8x32xf32> -> vector<8x32xf32>
    %59 = arith.addf %38, %58 : vector<8x32xf32>
    %60 = vector.extract_strided_slice %23 {offsets = [0, 8], sizes = [8, 8], strides = [1, 1]} : vector<8x32xbf16> to vector<8x8xbf16>
    %61 = vector.extract_strided_slice %25 {offsets = [0, 8], sizes = [8, 8], strides = [1, 1]} : vector<8x32xbf16> to vector<8x8xbf16>
    %cst_34 = arith.constant dense<0.000000e+00> : vector<8x8xf32>
    %62 = tpu.matmul %60, %61, %cst_34 {dimension_numbers = #tpu.dot_dimension_numbers<[1], [1], [0], [0], [0, 0, 1, 0], [], []>} : vector<8x8xbf16>, vector<8x8xbf16>, vector<8x8xf32> -> vector<8x8xf32>
    %63 = arith.addf %62, %37 : vector<8x8xf32>
    %cst_35 = arith.constant dense<0xFF800000> : vector<8xf32>
    %64 = vector.multi_reduction <maximumf>, %63, %cst_35 [1] : vector<8x8xf32> to vector<8xf32>
    %65 = vector.shape_cast %64 : vector<8xf32> to vector<8x1xf32>
    %66 = vector.broadcast %65 : vector<8x1xf32> to vector<8x8xf32>
    %67 = arith.subf %63, %66 : vector<8x8xf32>
    %68 = math.exp %67 : vector<8x8xf32>
    %cst_36 = arith.constant dense<0.000000e+00> : vector<8xf32>
    %69 = vector.multi_reduction <add>, %68, %cst_36 [1] : vector<8x8xf32> to vector<8xf32>
    %70 = vector.shape_cast %69 : vector<8xf32> to vector<8x1xf32>
    %71 = tpu.reciprocal %70 {approx = true} : vector<8x1xf32> -> vector<8x1xf32>
    %72 = vector.broadcast %71 : vector<8x1xf32> to vector<8x8xf32>
    %73 = arith.mulf %68, %72 : vector<8x8xf32>
    %74 = arith.truncf %73 : vector<8x8xf32> to vector<8x8xbf16>
    %75 = vector.extract_strided_slice %27 {offsets = [0, 8], sizes = [8, 8], strides = [1, 1]} : vector<8x32xbf16> to vector<8x8xbf16>
    %cst_37 = arith.constant dense<0.000000e+00> : vector<8x8xf32>
    %76 = tpu.matmul %74, %75, %cst_37 {dimension_numbers = #tpu.dot_dimension_numbers<[1], [0], [0], [1], [0, 0, 1, 1], [], []>} : vector<8x8xbf16>, vector<8x8xbf16>, vector<8x8xf32> -> vector<8x8xf32>
    %77 = arith.truncf %76 : vector<8x8xf32> to vector<8x8xbf16>
    %78 = vector.extract_strided_slice %11 {offsets = [8, 0], sizes = [8, 32], strides = [1, 1]} : vector<32x32xbf16> to vector<8x32xbf16>
    %cst_38 = arith.constant dense<0.000000e+00> : vector<8x32xf32>
    %79 = tpu.matmul %77, %78, %cst_38 {dimension_numbers = #tpu.dot_dimension_numbers<[1], [0], [0], [1], [0, 0, 1, 1], [], []>} : vector<8x8xbf16>, vector<8x32xbf16>, vector<8x32xf32> -> vector<8x32xf32>
    %80 = arith.addf %59, %79 : vector<8x32xf32>
    %81 = vector.extract_strided_slice %23 {offsets = [0, 16], sizes = [8, 8], strides = [1, 1]} : vector<8x32xbf16> to vector<8x8xbf16>
    %82 = vector.extract_strided_slice %25 {offsets = [0, 16], sizes = [8, 8], strides = [1, 1]} : vector<8x32xbf16> to vector<8x8xbf16>
    %cst_39 = arith.constant dense<0.000000e+00> : vector<8x8xf32>
    %83 = tpu.matmul %81, %82, %cst_39 {dimension_numbers = #tpu.dot_dimension_numbers<[1], [1], [0], [0], [0, 0, 1, 0], [], []>} : vector<8x8xbf16>, vector<8x8xbf16>, vector<8x8xf32> -> vector<8x8xf32>
    %84 = arith.addf %83, %37 : vector<8x8xf32>
    %cst_40 = arith.constant dense<0xFF800000> : vector<8xf32>
    %85 = vector.multi_reduction <maximumf>, %84, %cst_40 [1] : vector<8x8xf32> to vector<8xf32>
    %86 = vector.shape_cast %85 : vector<8xf32> to vector<8x1xf32>
    %87 = vector.broadcast %86 : vector<8x1xf32> to vector<8x8xf32>
    %88 = arith.subf %84, %87 : vector<8x8xf32>
    %89 = math.exp %88 : vector<8x8xf32>
    %cst_41 = arith.constant dense<0.000000e+00> : vector<8xf32>
    %90 = vector.multi_reduction <add>, %89, %cst_41 [1] : vector<8x8xf32> to vector<8xf32>
    %91 = vector.shape_cast %90 : vector<8xf32> to vector<8x1xf32>
    %92 = tpu.reciprocal %91 {approx = true} : vector<8x1xf32> -> vector<8x1xf32>
    %93 = vector.broadcast %92 : vector<8x1xf32> to vector<8x8xf32>
    %94 = arith.mulf %89, %93 : vector<8x8xf32>
    %95 = arith.truncf %94 : vector<8x8xf32> to vector<8x8xbf16>
    %96 = vector.extract_strided_slice %27 {offsets = [0, 16], sizes = [8, 8], strides = [1, 1]} : vector<8x32xbf16> to vector<8x8xbf16>
    %cst_42 = arith.constant dense<0.000000e+00> : vector<8x8xf32>
    %97 = tpu.matmul %95, %96, %cst_42 {dimension_numbers = #tpu.dot_dimension_numbers<[1], [0], [0], [1], [0, 0, 1, 1], [], []>} : vector<8x8xbf16>, vector<8x8xbf16>, vector<8x8xf32> -> vector<8x8xf32>
    %98 = arith.truncf %97 : vector<8x8xf32> to vector<8x8xbf16>
    %99 = vector.extract_strided_slice %11 {offsets = [16, 0], sizes = [8, 32], strides = [1, 1]} : vector<32x32xbf16> to vector<8x32xbf16>
    %cst_43 = arith.constant dense<0.000000e+00> : vector<8x32xf32>
    %100 = tpu.matmul %98, %99, %cst_43 {dimension_numbers = #tpu.dot_dimension_numbers<[1], [0], [0], [1], [0, 0, 1, 1], [], []>} : vector<8x8xbf16>, vector<8x32xbf16>, vector<8x32xf32> -> vector<8x32xf32>
    %101 = arith.addf %80, %100 : vector<8x32xf32>
    %102 = vector.extract_strided_slice %23 {offsets = [0, 24], sizes = [8, 8], strides = [1, 1]} : vector<8x32xbf16> to vector<8x8xbf16>
    %103 = vector.extract_strided_slice %25 {offsets = [0, 24], sizes = [8, 8], strides = [1, 1]} : vector<8x32xbf16> to vector<8x8xbf16>
    %cst_44 = arith.constant dense<0.000000e+00> : vector<8x8xf32>
    %104 = tpu.matmul %102, %103, %cst_44 {dimension_numbers = #tpu.dot_dimension_numbers<[1], [1], [0], [0], [0, 0, 1, 0], [], []>} : vector<8x8xbf16>, vector<8x8xbf16>, vector<8x8xf32> -> vector<8x8xf32>
    %105 = arith.addf %104, %37 : vector<8x8xf32>
    %cst_45 = arith.constant dense<0xFF800000> : vector<8xf32>
    %106 = vector.multi_reduction <maximumf>, %105, %cst_45 [1] : vector<8x8xf32> to vector<8xf32>
    %107 = vector.shape_cast %106 : vector<8xf32> to vector<8x1xf32>
    %108 = vector.broadcast %107 : vector<8x1xf32> to vector<8x8xf32>
    %109 = arith.subf %105, %108 : vector<8x8xf32>
    %110 = math.exp %109 : vector<8x8xf32>
    %cst_46 = arith.constant dense<0.000000e+00> : vector<8xf32>
    %111 = vector.multi_reduction <add>, %110, %cst_46 [1] : vector<8x8xf32> to vector<8xf32>
    %112 = vector.shape_cast %111 : vector<8xf32> to vector<8x1xf32>
    %113 = tpu.reciprocal %112 {approx = true} : vector<8x1xf32> -> vector<8x1xf32>
    %114 = vector.broadcast %113 : vector<8x1xf32> to vector<8x8xf32>
    %115 = arith.mulf %110, %114 : vector<8x8xf32>
    %116 = arith.truncf %115 : vector<8x8xf32> to vector<8x8xbf16>
    %117 = vector.extract_strided_slice %27 {offsets = [0, 24], sizes = [8, 8], strides = [1, 1]} : vector<8x32xbf16> to vector<8x8xbf16>
    %cst_47 = arith.constant dense<0.000000e+00> : vector<8x8xf32>
    %118 = tpu.matmul %116, %117, %cst_47 {dimension_numbers = #tpu.dot_dimension_numbers<[1], [0], [0], [1], [0, 0, 1, 1], [], []>} : vector<8x8xbf16>, vector<8x8xbf16>, vector<8x8xf32> -> vector<8x8xf32>
    %119 = arith.truncf %118 : vector<8x8xf32> to vector<8x8xbf16>
    %120 = vector.extract_strided_slice %11 {offsets = [24, 0], sizes = [8, 32], strides = [1, 1]} : vector<32x32xbf16> to vector<8x32xbf16>
    %cst_48 = arith.constant dense<0.000000e+00> : vector<8x32xf32>
    %121 = tpu.matmul %119, %120, %cst_48 {dimension_numbers = #tpu.dot_dimension_numbers<[1], [0], [0], [1], [0, 0, 1, 1], [], []>} : vector<8x8xbf16>, vector<8x32xbf16>, vector<8x32xf32> -> vector<8x32xf32>
    %122 = arith.addf %101, %121 : vector<8x32xf32>
    %123 = arith.extf %2 : vector<8x32xbf16> to vector<8x32xf32>
    %124 = arith.addf %123, %122 : vector<8x32xf32>
    %125 = vector.broadcast %12 : vector<1x32xf32> to vector<8x32xf32>
    %126 = arith.addf %124, %125 : vector<8x32xf32>
    %cst_49 = arith.constant dense<0.000000e+00> : vector<8xf32>
    %127 = vector.multi_reduction <add>, %126, %cst_49 [1] : vector<8x32xf32> to vector<8xf32>
    %128 = vector.shape_cast %127 : vector<8xf32> to vector<8x1xf32>
    %cst_50 = arith.constant 3.200000e+01 : f32
    %129 = vector.broadcast %cst_50 : f32 to vector<8x1xf32>
    %130 = arith.divf %128, %129 : vector<8x1xf32>
    %131 = vector.broadcast %130 : vector<8x1xf32> to vector<8x32xf32>
    %132 = arith.subf %126, %131 : vector<8x32xf32>
    %133 = arith.mulf %132, %132 : vector<8x32xf32>
    %cst_51 = arith.constant dense<0.000000e+00> : vector<8xf32>
    %134 = vector.multi_reduction <add>, %133, %cst_51 [1] : vector<8x32xf32> to vector<8xf32>
    %135 = vector.shape_cast %134 : vector<8xf32> to vector<8x1xf32>
    %cst_52 = arith.constant 3.200000e+01 : f32
    %136 = vector.broadcast %cst_52 : f32 to vector<8x1xf32>
    %137 = arith.divf %135, %136 : vector<8x1xf32>
    %138 = vector.broadcast %130 : vector<8x1xf32> to vector<8x32xf32>
    %139 = arith.subf %126, %138 : vector<8x32xf32>
    %cst_53 = arith.constant 9.99999974E-6 : f32
    %140 = vector.broadcast %cst_53 : f32 to vector<8x1xf32>
    %141 = arith.addf %137, %140 : vector<8x1xf32>
    %142 = math.rsqrt %141 : vector<8x1xf32>
    %143 = vector.broadcast %142 : vector<8x1xf32> to vector<8x32xf32>
    %144 = arith.mulf %139, %143 : vector<8x32xf32>
    %145 = vector.broadcast %13 : vector<1x32xf32> to vector<8x32xf32>
    %146 = arith.mulf %144, %145 : vector<8x32xf32>
    %147 = vector.broadcast %14 : vector<1x32xf32> to vector<8x32xf32>
    %148 = arith.addf %146, %147 : vector<8x32xf32>
    %149 = arith.truncf %148 : vector<8x32xf32> to vector<8x32xbf16>
    %c0_54 = arith.constant 0 : index
    %c0_55 = arith.constant 0 : index
    %c0_56 = arith.constant 0 : index
    %150 = vector.load %arg13[%c0_54, %c0_55, %c0_56] : memref<1x8x32xbf16, #tpu.memory_space<vmem>>, vector<1x8x32xbf16>
    %151 = vector.shape_cast %150 : vector<1x8x32xbf16> to vector<8x32xbf16>
    %152 = vector.shape_cast %149 : vector<8x32xbf16> to vector<1x8x32xbf16>
    tpu.vector_store %arg13[%c0_54, %c0_55, %c0_56], %152 {strides = array<i32>} : memref<1x8x32xbf16, #tpu.memory_space<vmem>>, vector<1x8x32xbf16>,
    return
  }
  func.func @transform_0(%arg0: i32, %arg1: i32) -> (i32, i32, i32) {
    %c0_i32 = arith.constant 0 : i32
    %c0_i32_0 = arith.constant 0 : i32
    return %arg0, %arg1, %c0_i32 : i32, i32, i32
  }
  func.func @transform_1(%arg0: i32, %arg1: i32) -> (i32, i32, i32) {
    %c0_i32 = arith.constant 0 : i32
    %c0_i32_0 = arith.constant 0 : i32
    %c0_i32_1 = arith.constant 0 : i32
    return %arg0, %c0_i32, %c0_i32_0 : i32, i32, i32
  }
  func.func @transform_2(%arg0: i32, %arg1: i32) -> (i32, i32, i32) {
    %c0_i32 = arith.constant 0 : i32
    %c0_i32_0 = arith.constant 0 : i32
    %c0_i32_1 = arith.constant 0 : i32
    return %arg0, %c0_i32, %c0_i32_0 : i32, i32, i32
  }
  func.func @transform_3(%arg0: i32, %arg1: i32) -> (i32, i32) {
    %c0_i32 = arith.constant 0 : i32
    %c0_i32_0 = arith.constant 0 : i32
    %c0_i32_1 = arith.constant 0 : i32
    return %c0_i32, %c0_i32_0 : i32, i32
  }
  func.func @transform_4(%arg0: i32, %arg1: i32) -> (i32, i32) {
    %c0_i32 = arith.constant 0 : i32
    %c0_i32_0 = arith.constant 0 : i32
    %c0_i32_1 = arith.constant 0 : i32
    return %c0_i32, %c0_i32_0 : i32, i32
  }
  func.func @transform_5(%arg0: i32, %arg1: i32) -> (i32, i32) {
    %c0_i32 = arith.constant 0 : i32
    %c0_i32_0 = arith.constant 0 : i32
    %c0_i32_1 = arith.constant 0 : i32
    return %c0_i32, %c0_i32_0 : i32, i32
  }
  func.func @transform_6(%arg0: i32, %arg1: i32) -> (i32, i32) {
    %c0_i32 = arith.constant 0 : i32
    %c0_i32_0 = arith.constant 0 : i32
    %c0_i32_1 = arith.constant 0 : i32
    return %c0_i32, %c0_i32_0 : i32, i32
  }
  func.func @transform_7(%arg0: i32, %arg1: i32) -> (i32, i32) {
    %c0_i32 = arith.constant 0 : i32
    %c0_i32_0 = arith.constant 0 : i32
    %c0_i32_1 = arith.constant 0 : i32
    return %c0_i32, %c0_i32_0 : i32, i32
  }
  func.func @transform_8(%arg0: i32, %arg1: i32) -> (i32, i32) {
    %c0_i32 = arith.constant 0 : i32
    %c0_i32_0 = arith.constant 0 : i32
    %c0_i32_1 = arith.constant 0 : i32
    return %c0_i32, %c0_i32_0 : i32, i32
  }
  func.func @transform_9(%arg0: i32, %arg1: i32) -> (i32, i32) {
    %c0_i32 = arith.constant 0 : i32
    %c0_i32_0 = arith.constant 0 : i32
    %c0_i32_1 = arith.constant 0 : i32
    return %c0_i32, %c0_i32_0 : i32, i32
  }
  func.func @transform_10(%arg0: i32, %arg1: i32) -> (i32, i32) {
    %c0_i32 = arith.constant 0 : i32
    %c0_i32_0 = arith.constant 0 : i32
    %c0_i32_1 = arith.constant 0 : i32
    return %c0_i32, %c0_i32_0 : i32, i32
  }
  func.func @transform_11(%arg0: i32, %arg1: i32) -> (i32, i32, i32) {
    %c0_i32 = arith.constant 0 : i32
    %c0_i32_0 = arith.constant 0 : i32
    return %arg0, %arg1, %c0_i32 : i32, i32, i32
  }
}

module attributes {stable_mosaic.version = 11 : i64} {
  func.func @_ffn_row_kernel(%arg0: i32, %arg1: memref<16x32xbf16, #tpu.memory_space<vmem>>, %arg2: memref<32x64xbf16, #tpu.memory_space<vmem>>, %arg3: memref<1x64xf32, #tpu.memory_space<vmem>>, %arg4: memref<64x32xbf16, #tpu.memory_space<vmem>>, %arg5: memref<1x32xf32, #tpu.memory_space<vmem>>, %arg6: memref<1x32xf32, #tpu.memory_space<vmem>>, %arg7: memref<1x32xf32, #tpu.memory_space<vmem>>, %arg8: memref<16x32xbf16, #tpu.memory_space<vmem>>) attributes {dimension_semantics = [#tpu.dimension_semantics<parallel>], iteration_bounds = array<i64: 1>, scalar_prefetch = 0 : i64, scratch_operands = 0 : i64, tpu.core_type = #tpu.core_type<tc>, window_params = [{transform_indices = @transform_0, window_bounds = array<i64: 16, 32>}, {pipeline_mode = #tpu.pipeline_mode<synchronous>, transform_indices = @transform_1, window_bounds = array<i64: 32, 64>}, {pipeline_mode = #tpu.pipeline_mode<synchronous>, transform_indices = @transform_2, window_bounds = array<i64: 1, 64>}, {pipeline_mode = #tpu.pipeline_mode<synchronous>, transform_indices = @transform_3, window_bounds = array<i64: 64, 32>}, {pipeline_mode = #tpu.pipeline_mode<synchronous>, transform_indices = @transform_4, window_bounds = array<i64: 1, 32>}, {pipeline_mode = #tpu.pipeline_mode<synchronous>, transform_indices = @transform_5, window_bounds = array<i64: 1, 32>}, {pipeline_mode = #tpu.pipeline_mode<synchronous>, transform_indices = @transform_6, window_bounds = array<i64: 1, 32>}, {transform_indices = @transform_7, window_bounds = array<i64: 16, 32>}]} {
    %c0 = arith.constant 0 : index
    %c0_0 = arith.constant 0 : index
    %0 = vector.load %arg1[%c0, %c0_0] : memref<16x32xbf16, #tpu.memory_space<vmem>>, vector<16x32xbf16>
    %c0_1 = arith.constant 0 : index
    %c0_2 = arith.constant 0 : index
    %1 = vector.load %arg2[%c0_1, %c0_2] : memref<32x64xbf16, #tpu.memory_space<vmem>>, vector<32x64xbf16>
    %cst = arith.constant dense<0.000000e+00> : vector<16x64xf32>
    %2 = tpu.matmul %0, %1, %cst {dimension_numbers = #tpu.dot_dimension_numbers<[1], [0], [0], [1], [0, 0, 1, 1], [], []>} : vector<16x32xbf16>, vector<32x64xbf16>, vector<16x64xf32> -> vector<16x64xf32>
    %c0_3 = arith.constant 0 : index
    %c0_4 = arith.constant 0 : index
    %3 = vector.load %arg3[%c0_3, %c0_4] : memref<1x64xf32, #tpu.memory_space<vmem>>, vector<1x64xf32>
    %4 = vector.broadcast %3 : vector<1x64xf32> to vector<16x64xf32>
    %5 = arith.addf %2, %4 : vector<16x64xf32>
    %cst_5 = arith.constant 0.000000e+00 : f32
    %6 = vector.broadcast %cst_5 : f32 to vector<16x64xf32>
    %7 = arith.maximumf %5, %6 : vector<16x64xf32>
    %8 = arith.truncf %7 : vector<16x64xf32> to vector<16x64xbf16>
    %c0_6 = arith.constant 0 : index
    %c0_7 = arith.constant 0 : index
    %9 = vector.load %arg4[%c0_6, %c0_7] : memref<64x32xbf16, #tpu.memory_space<vmem>>, vector<64x32xbf16>
    %cst_8 = arith.constant dense<0.000000e+00> : vector<16x32xf32>
    %10 = tpu.matmul %8, %9, %cst_8 {dimension_numbers = #tpu.dot_dimension_numbers<[1], [0], [0], [1], [0, 0, 1, 1], [], []>} : vector<16x64xbf16>, vector<64x32xbf16>, vector<16x32xf32> -> vector<16x32xf32>
    %c0_9 = arith.constant 0 : index
    %c0_10 = arith.constant 0 : index
    %11 = vector.load %arg5[%c0_9, %c0_10] : memref<1x32xf32, #tpu.memory_space<vmem>>, vector<1x32xf32>
    %12 = vector.broadcast %11 : vector<1x32xf32> to vector<16x32xf32>
    %13 = arith.addf %10, %12 : vector<16x32xf32>
    %14 = arith.extf %0 : vector<16x32xbf16> to vector<16x32xf32>
    %15 = arith.addf %14, %13 : vector<16x32xf32>
    %cst_11 = arith.constant dense<0.000000e+00> : vector<16xf32>
    %16 = vector.multi_reduction <add>, %15, %cst_11 [1] : vector<16x32xf32> to vector<16xf32>
    %17 = vector.shape_cast %16 : vector<16xf32> to vector<16x1xf32>
    %cst_12 = arith.constant 3.200000e+01 : f32
    %18 = vector.broadcast %cst_12 : f32 to vector<16x1xf32>
    %19 = arith.divf %17, %18 : vector<16x1xf32>
    %20 = vector.broadcast %19 : vector<16x1xf32> to vector<16x32xf32>
    %21 = arith.subf %15, %20 : vector<16x32xf32>
    %22 = arith.mulf %21, %21 : vector<16x32xf32>
    %cst_13 = arith.constant dense<0.000000e+00> : vector<16xf32>
    %23 = vector.multi_reduction <add>, %22, %cst_13 [1] : vector<16x32xf32> to vector<16xf32>
    %24 = vector.shape_cast %23 : vector<16xf32> to vector<16x1xf32>
    %cst_14 = arith.constant 3.200000e+01 : f32
    %25 = vector.broadcast %cst_14 : f32 to vector<16x1xf32>
    %26 = arith.divf %24, %25 : vector<16x1xf32>
    %27 = vector.broadcast %19 : vector<16x1xf32> to vector<16x32xf32>
    %28 = arith.subf %15, %27 : vector<16x32xf32>
    %cst_15 = arith.constant 9.99999974E-6 : f32
    %29 = vector.broadcast %cst_15 : f32 to vector<16x1xf32>
    %30 = arith.addf %26, %29 : vector<16x1xf32>
    %31 = math.rsqrt %30 : vector<16x1xf32>
    %32 = vector.broadcast %31 : vector<16x1xf32> to vector<16x32xf32>
    %33 = arith.mulf %28, %32 : vector<16x32xf32>
    %c0_16 = arith.constant 0 : index
    %c0_17 = arith.constant 0 : index
    %34 = vector.load %arg6[%c0_16, %c0_17] : memref<1x32xf32, #tpu.memory_space<vmem>>, vector<1x32xf32>
    %35 = vector.broadcast %34 : vector<1x32xf32> to vector<16x32xf32>
    %36 = arith.mulf %33, %35 : vector<16x32xf32>
    %c0_18 = arith.constant 0 : index
    %c0_19 = arith.constant 0 : index
    %37 = vector.load %arg7[%c0_18, %c0_19] : memref<1x32xf32, #tpu.memory_space<vmem>>, vector<1x32xf32>
    %38 = vector.broadcast %37 : vector<1x32xf32> to vector<16x32xf32>
    %39 = arith.addf %36, %38 : vector<16x32xf32>
    %40 = arith.truncf %39 : vector<16x32xf32> to vector<16x32xbf16>
    %c0_20 = arith.constant 0 : index
    %c0_21 = arith.constant 0 : index
    %41 = vector.load %arg8[%c0_20, %c0_21] : memref<16x32xbf16, #tpu.memory_space<vmem>>, vector<16x32xbf16>
    tpu.vector_store %arg8[%c0_20, %c0_21], %40 {strides = array<i32>} : memref<16x32xbf16, #tpu.memory_space<vmem>>, vector<16x32xbf16>,
    return
  }
  func.func @transform_0(%arg0: i32) -> (i32, i32) {
    %c0_i32 = arith.constant 0 : i32
    %c0_i32_0 = arith.constant 0 : i32
    return %arg0, %c0_i32 : i32, i32
  }
  func.func @transform_1(%arg0: i32) -> (i32, i32) {
    %c0_i32 = arith.constant 0 : i32
    %c0_i32_0 = arith.constant 0 : i32
    %c0_i32_1 = arith.constant 0 : i32
    return %c0_i32, %c0_i32_0 : i32, i32
  }
  func.func @transform_2(%arg0: i32) -> (i32, i32) {
    %c0_i32 = arith.constant 0 : i32
    %c0_i32_0 = arith.constant 0 : i32
    %c0_i32_1 = arith.constant 0 : i32
    return %c0_i32, %c0_i32_0 : i32, i32
  }
  func.func @transform_3(%arg0: i32) -> (i32, i32) {
    %c0_i32 = arith.constant 0 : i32
    %c0_i32_0 = arith.constant 0 : i32
    %c0_i32_1 = arith.constant 0 : i32
    return %c0_i32, %c0_i32_0 : i32, i32
  }
  func.func @transform_4(%arg0: i32) -> (i32, i32) {
    %c0_i32 = arith.constant 0 : i32
    %c0_i32_0 = arith.constant 0 : i32
    %c0_i32_1 = arith.constant 0 : i32
    return %c0_i32, %c0_i32_0 : i32, i32
  }
  func.func @transform_5(%arg0: i32) -> (i32, i32) {
    %c0_i32 = arith.constant 0 : i32
    %c0_i32_0 = arith.constant 0 : i32
    %c0_i32_1 = arith.constant 0 : i32
    return %c0_i32, %c0_i32_0 : i32, i32
  }
  func.func @transform_6(%arg0: i32) -> (i32, i32) {
    %c0_i32 = arith.constant 0 : i32
    %c0_i32_0 = arith.constant 0 : i32
    %c0_i32_1 = arith.constant 0 : i32
    return %c0_i32, %c0_i32_0 : i32, i32
  }
  func.func @transform_7(%arg0: i32) -> (i32, i32) {
    %c0_i32 = arith.constant 0 : i32
    %c0_i32_0 = arith.constant 0 : i32
    return %arg0, %c0_i32 : i32, i32
  }
}

module attributes {stable_mosaic.version = 11 : i64} {
  func.func @_mha_block_attn_kernel(%arg0: i32, %arg1: i32, %arg2: memref<1x8x32xbf16, #tpu.memory_space<vmem>>, %arg3: memref<1x8x32xbf16, #tpu.memory_space<vmem>>, %arg4: memref<1x1x8xf32, #tpu.memory_space<vmem>>, %arg5: memref<32x32xbf16, #tpu.memory_space<vmem>>, %arg6: memref<1x32xf32, #tpu.memory_space<vmem>>, %arg7: memref<32x64xbf16, #tpu.memory_space<vmem>>, %arg8: memref<1x64xf32, #tpu.memory_space<vmem>>, %arg9: memref<32x32xbf16, #tpu.memory_space<vmem>>, %arg10: memref<1x32xf32, #tpu.memory_space<vmem>>, %arg11: memref<1x32xf32, #tpu.memory_space<vmem>>, %arg12: memref<1x32xf32, #tpu.memory_space<vmem>>, %arg13: memref<1x8x32xbf16, #tpu.memory_space<vmem>>, %arg14: memref<1x4x8x8xf32, #tpu.memory_space<vmem>>) attributes {dimension_semantics = [#tpu.dimension_semantics<parallel>, #tpu.dimension_semantics<parallel>], iteration_bounds = array<i64: 2, 1>, scalar_prefetch = 0 : i64, scratch_operands = 0 : i64, tpu.core_type = #tpu.core_type<tc>, window_params = [{transform_indices = @transform_0, window_bounds = array<i64: 1, 8, 32>}, {transform_indices = @transform_1, window_bounds = array<i64: 1, 8, 32>}, {transform_indices = @transform_2, window_bounds = array<i64: 1, 1, 8>}, {pipeline_mode = #tpu.pipeline_mode<synchronous>, transform_indices = @transform_3, window_bounds = array<i64: 32, 32>}, {pipeline_mode = #tpu.pipeline_mode<synchronous>, transform_indices = @transform_4, window_bounds = array<i64: 1, 32>}, {pipeline_mode = #tpu.pipeline_mode<synchronous>, transform_indices = @transform_5, window_bounds = array<i64: 32, 64>}, {pipeline_mode = #tpu.pipeline_mode<synchronous>, transform_indices = @transform_6, window_bounds = array<i64: 1, 64>}, {pipeline_mode = #tpu.pipeline_mode<synchronous>, transform_indices = @transform_7, window_bounds = array<i64: 32, 32>}, {pipeline_mode = #tpu.pipeline_mode<synchronous>, transform_indices = @transform_8, window_bounds = array<i64: 1, 32>}, {pipeline_mode = #tpu.pipeline_mode<synchronous>, transform_indices = @transform_9, window_bounds = array<i64: 1, 32>}, {pipeline_mode = #tpu.pipeline_mode<synchronous>, transform_indices = @transform_10, window_bounds = array<i64: 1, 32>}, {transform_indices = @transform_11, window_bounds = array<i64: 1, 8, 32>}, {transform_indices = @transform_12, window_bounds = array<i64: 1, 4, 8, 8>}]} {
    %c0 = arith.constant 0 : index
    %c0_0 = arith.constant 0 : index
    %c0_1 = arith.constant 0 : index
    %0 = vector.load %arg2[%c0, %c0_0, %c0_1] : memref<1x8x32xbf16, #tpu.memory_space<vmem>>, vector<1x8x32xbf16>
    %1 = vector.shape_cast %0 : vector<1x8x32xbf16> to vector<8x32xbf16>
    %c0_2 = arith.constant 0 : index
    %c0_3 = arith.constant 0 : index
    %c0_4 = arith.constant 0 : index
    %2 = vector.load %arg3[%c0_2, %c0_3, %c0_4] : memref<1x8x32xbf16, #tpu.memory_space<vmem>>, vector<1x8x32xbf16>
    %3 = vector.shape_cast %2 : vector<1x8x32xbf16> to vector<8x32xbf16>
    %c0_5 = arith.constant 0 : index
    %c0_6 = arith.constant 0 : index
    %c0_7 = arith.constant 0 : index
    %4 = vector.load %arg4[%c0_5, %c0_6, %c0_7] : memref<1x1x8xf32, #tpu.memory_space<vmem>>, vector<1x1x8xf32>
    %5 = vector.shape_cast %4 : vector<1x1x8xf32> to vector<1x8xf32>
    %c0_8 = arith.constant 0 : index
    %c0_9 = arith.constant 0 : index
    %6 = vector.load %arg5[%c0_8, %c0_9] : memref<32x32xbf16, #tpu.memory_space<vmem>>, vector<32x32xbf16>
    %c0_10 = arith.constant 0 : index
    %c0_11 = arith.constant 0 : index
    %7 = vector.load %arg6[%c0_10, %c0_11] : memref<1x32xf32, #tpu.memory_space<vmem>>, vector<1x32xf32>
    %c0_12 = arith.constant 0 : index
    %c0_13 = arith.constant 0 : index
    %8 = vector.load %arg7[%c0_12, %c0_13] : memref<32x64xbf16, #tpu.memory_space<vmem>>, vector<32x64xbf16>
    %c0_14 = arith.constant 0 : index
    %c0_15 = arith.constant 0 : index
    %9 = vector.load %arg8[%c0_14, %c0_15] : memref<1x64xf32, #tpu.memory_space<vmem>>, vector<1x64xf32>
    %c0_16 = arith.constant 0 : index
    %c0_17 = arith.constant 0 : index
    %10 = vector.load %arg9[%c0_16, %c0_17] : memref<32x32xbf16, #tpu.memory_space<vmem>>, vector<32x32xbf16>
    %c0_18 = arith.constant 0 : index
    %c0_19 = arith.constant 0 : index
    %11 = vector.load %arg10[%c0_18, %c0_19] : memref<1x32xf32, #tpu.memory_space<vmem>>, vector<1x32xf32>
    %c0_20 = arith.constant 0 : index
    %c0_21 = arith.constant 0 : index
    %12 = vector.load %arg11[%c0_20, %c0_21] : memref<1x32xf32, #tpu.memory_space<vmem>>, vector<1x32xf32>
    %c0_22 = arith.constant 0 : index
    %c0_23 = arith.constant 0 : index
    %13 = vector.load %arg12[%c0_22, %c0_23] : memref<1x32xf32, #tpu.memory_space<vmem>>, vector<1x32xf32>
    %cst = arith.constant dense<0.000000e+00> : vector<8x32xf32>
    %14 = tpu.matmul %1, %6, %cst {dimension_numbers = #tpu.dot_dimension_numbers<[1], [0], [0], [1], [0, 0, 1, 1], [], []>} : vector<8x32xbf16>, vector<32x32xbf16>, vector<8x32xf32> -> vector<8x32xf32>
    %15 = vector.broadcast %7 : vector<1x32xf32> to vector<8x32xf32>
    %16 = arith.addf %14, %15 : vector<8x32xf32>
    %cst_24 = arith.constant dense<0.000000e+00> : vector<8x64xf32>
    %17 = tpu.matmul %3, %8, %cst_24 {dimension_numbers = #tpu.dot_dimension_numbers<[1], [0], [0], [1], [0, 0, 1, 1], [], []>} : vector<8x32xbf16>, vector<32x64xbf16>, vector<8x64xf32> -> vector<8x64xf32>
    %18 = vector.broadcast %9 : vector<1x64xf32> to vector<8x64xf32>
    %19 = arith.addf %17, %18 : vector<8x64xf32>
    %cst_25 = arith.constant 0.353553385 : f32
    %20 = vector.broadcast %cst_25 : f32 to vector<8x32xf32>
    %21 = arith.mulf %16, %20 : vector<8x32xf32>
    %22 = arith.truncf %21 : vector<8x32xf32> to vector<8x32xbf16>
    %23 = vector.extract_strided_slice %19 {offsets = [0, 0], sizes = [8, 32], strides = [1, 1]} : vector<8x64xf32> to vector<8x32xf32>
    %24 = arith.truncf %23 : vector<8x32xf32> to vector<8x32xbf16>
    %25 = vector.extract_strided_slice %19 {offsets = [0, 32], sizes = [8, 32], strides = [1, 1]} : vector<8x64xf32> to vector<8x32xf32>
    %26 = arith.truncf %25 : vector<8x32xf32> to vector<8x32xbf16>
    %cst_26 = arith.constant 0.000000e+00 : f32
    %27 = vector.broadcast %cst_26 : f32 to vector<8x32xf32>
    %28 = vector.extract_strided_slice %22 {offsets = [0, 0], sizes = [8, 8], strides = [1, 1]} : vector<8x32xbf16> to vector<8x8xbf16>
    %29 = vector.extract_strided_slice %24 {offsets = [0, 0], sizes = [8, 8], strides = [1, 1]} : vector<8x32xbf16> to vector<8x8xbf16>
    %cst_27 = arith.constant dense<0.000000e+00> : vector<8x8xf32>
    %30 = tpu.matmul %28, %29, %cst_27 {dimension_numbers = #tpu.dot_dimension_numbers<[1], [1], [0], [0], [0, 0, 1, 0], [], []>} : vector<8x8xbf16>, vector<8x8xbf16>, vector<8x8xf32> -> vector<8x8xf32>
    %31 = vector.broadcast %5 : vector<1x8xf32> to vector<8x8xf32>
    %32 = arith.addf %30, %31 : vector<8x8xf32>
    %cst_28 = arith.constant dense<0xFF800000> : vector<8xf32>
    %33 = vector.multi_reduction <maximumf>, %32, %cst_28 [1] : vector<8x8xf32> to vector<8xf32>
    %34 = vector.shape_cast %33 : vector<8xf32> to vector<8x1xf32>
    %35 = vector.broadcast %34 : vector<8x1xf32> to vector<8x8xf32>
    %36 = arith.subf %32, %35 : vector<8x8xf32>
    %37 = math.exp %36 : vector<8x8xf32>
    %cst_29 = arith.constant dense<0.000000e+00> : vector<8xf32>
    %38 = vector.multi_reduction <add>, %37, %cst_29 [1] : vector<8x8xf32> to vector<8xf32>
    %39 = vector.shape_cast %38 : vector<8xf32> to vector<8x1xf32>
    %40 = tpu.reciprocal %39 {approx = true} : vector<8x1xf32> -> vector<8x1xf32>
    %41 = vector.broadcast %40 : vector<8x1xf32> to vector<8x8xf32>
    %42 = arith.mulf %37, %41 : vector<8x8xf32>
    %c0_30 = arith.constant 0 : index
    %c0_31 = arith.constant 0 : index
    %c0_32 = arith.constant 0 : index
    %c0_33 = arith.constant 0 : index
    %43 = vector.load %arg14[%c0_30, %c0_31, %c0_32, %c0_33] : memref<1x4x8x8xf32, #tpu.memory_space<vmem>>, vector<1x1x8x8xf32>
    %44 = vector.shape_cast %43 : vector<1x1x8x8xf32> to vector<8x8xf32>
    %45 = vector.shape_cast %42 : vector<8x8xf32> to vector<1x1x8x8xf32>
    tpu.vector_store %arg14[%c0_30, %c0_31, %c0_32, %c0_33], %45 {strides = array<i32>} : memref<1x4x8x8xf32, #tpu.memory_space<vmem>>, vector<1x1x8x8xf32>,
    %46 = arith.truncf %42 : vector<8x8xf32> to vector<8x8xbf16>
    %47 = vector.extract_strided_slice %26 {offsets = [0, 0], sizes = [8, 8], strides = [1, 1]} : vector<8x32xbf16> to vector<8x8xbf16>
    %cst_34 = arith.constant dense<0.000000e+00> : vector<8x8xf32>
    %48 = tpu.matmul %46, %47, %cst_34 {dimension_numbers = #tpu.dot_dimension_numbers<[1], [0], [0], [1], [0, 0, 1, 1], [], []>} : vector<8x8xbf16>, vector<8x8xbf16>, vector<8x8xf32> -> vector<8x8xf32>
    %49 = arith.truncf %48 : vector<8x8xf32> to vector<8x8xbf16>
    %50 = vector.extract_strided_slice %10 {offsets = [0, 0], sizes = [8, 32], strides = [1, 1]} : vector<32x32xbf16> to vector<8x32xbf16>
    %cst_35 = arith.constant dense<0.000000e+00> : vector<8x32xf32>
    %51 = tpu.matmul %49, %50, %cst_35 {dimension_numbers = #tpu.dot_dimension_numbers<[1], [0], [0], [1], [0, 0, 1, 1], [], []>} : vector<8x8xbf16>, vector<8x32xbf16>, vector<8x32xf32> -> vector<8x32xf32>
    %52 = arith.addf %27, %51 : vector<8x32xf32>
    %53 = vector.extract_strided_slice %22 {offsets = [0, 8], sizes = [8, 8], strides = [1, 1]} : vector<8x32xbf16> to vector<8x8xbf16>
    %54 = vector.extract_strided_slice %24 {offsets = [0, 8], sizes = [8, 8], strides = [1, 1]} : vector<8x32xbf16> to vector<8x8xbf16>
    %cst_36 = arith.constant dense<0.000000e+00> : vector<8x8xf32>
    %55 = tpu.matmul %53, %54, %cst_36 {dimension_numbers = #tpu.dot_dimension_numbers<[1], [1], [0], [0], [0, 0, 1, 0], [], []>} : vector<8x8xbf16>, vector<8x8xbf16>, vector<8x8xf32> -> vector<8x8xf32>
    %56 = vector.broadcast %5 : vector<1x8xf32> to vector<8x8xf32>
    %57 = arith.addf %55, %56 : vector<8x8xf32>
    %cst_37 = arith.constant dense<0xFF800000> : vector<8xf32>
    %58 = vector.multi_reduction <maximumf>, %57, %cst_37 [1] : vector<8x8xf32> to vector<8xf32>
    %59 = vector.shape_cast %58 : vector<8xf32> to vector<8x1xf32>
    %60 = vector.broadcast %59 : vector<8x1xf32> to vector<8x8xf32>
    %61 = arith.subf %57, %60 : vector<8x8xf32>
    %62 = math.exp %61 : vector<8x8xf32>
    %cst_38 = arith.constant dense<0.000000e+00> : vector<8xf32>
    %63 = vector.multi_reduction <add>, %62, %cst_38 [1] : vector<8x8xf32> to vector<8xf32>
    %64 = vector.shape_cast %63 : vector<8xf32> to vector<8x1xf32>
    %65 = tpu.reciprocal %64 {approx = true} : vector<8x1xf32> -> vector<8x1xf32>
    %66 = vector.broadcast %65 : vector<8x1xf32> to vector<8x8xf32>
    %67 = arith.mulf %62, %66 : vector<8x8xf32>
    %c0_39 = arith.constant 0 : index
    %c1 = arith.constant 1 : index
    %c0_40 = arith.constant 0 : index
    %c0_41 = arith.constant 0 : index
    %68 = vector.load %arg14[%c0_39, %c1, %c0_40, %c0_41] : memref<1x4x8x8xf32, #tpu.memory_space<vmem>>, vector<1x1x8x8xf32>
    %69 = vector.shape_cast %68 : vector<1x1x8x8xf32> to vector<8x8xf32>
    %70 = vector.shape_cast %67 : vector<8x8xf32> to vector<1x1x8x8xf32>
    tpu.vector_store %arg14[%c0_39, %c1, %c0_40, %c0_41], %70 {strides = array<i32>} : memref<1x4x8x8xf32, #tpu.memory_space<vmem>>, vector<1x1x8x8xf32>,
    %71 = arith.truncf %67 : vector<8x8xf32> to vector<8x8xbf16>
    %72 = vector.extract_strided_slice %26 {offsets = [0, 8], sizes = [8, 8], strides = [1, 1]} : vector<8x32xbf16> to vector<8x8xbf16>
    %cst_42 = arith.constant dense<0.000000e+00> : vector<8x8xf32>
    %73 = tpu.matmul %71, %72, %cst_42 {dimension_numbers = #tpu.dot_dimension_numbers<[1], [0], [0], [1], [0, 0, 1, 1], [], []>} : vector<8x8xbf16>, vector<8x8xbf16>, vector<8x8xf32> -> vector<8x8xf32>
    %74 = arith.truncf %73 : vector<8x8xf32> to vector<8x8xbf16>
    %75 = vector.extract_strided_slice %10 {offsets = [8, 0], sizes = [8, 32], strides = [1, 1]} : vector<32x32xbf16> to vector<8x32xbf16>
    %cst_43 = arith.constant dense<0.000000e+00> : vector<8x32xf32>
    %76 = tpu.matmul %74, %75, %cst_43 {dimension_numbers = #tpu.dot_dimension_numbers<[1], [0], [0], [1], [0, 0, 1, 1], [], []>} : vector<8x8xbf16>, vector<8x32xbf16>, vector<8x32xf32> -> vector<8x32xf32>
    %77 = arith.addf %52, %76 : vector<8x32xf32>
    %78 = vector.extract_strided_slice %22 {offsets = [0, 16], sizes = [8, 8], strides = [1, 1]} : vector<8x32xbf16> to vector<8x8xbf16>
    %79 = vector.extract_strided_slice %24 {offsets = [0, 16], sizes = [8, 8], strides = [1, 1]} : vector<8x32xbf16> to vector<8x8xbf16>
    %cst_44 = arith.constant dense<0.000000e+00> : vector<8x8xf32>
    %80 = tpu.matmul %78, %79, %cst_44 {dimension_numbers = #tpu.dot_dimension_numbers<[1], [1], [0], [0], [0, 0, 1, 0], [], []>} : vector<8x8xbf16>, vector<8x8xbf16>, vector<8x8xf32> -> vector<8x8xf32>
    %81 = vector.broadcast %5 : vector<1x8xf32> to vector<8x8xf32>
    %82 = arith.addf %80, %81 : vector<8x8xf32>
    %cst_45 = arith.constant dense<0xFF800000> : vector<8xf32>
    %83 = vector.multi_reduction <maximumf>, %82, %cst_45 [1] : vector<8x8xf32> to vector<8xf32>
    %84 = vector.shape_cast %83 : vector<8xf32> to vector<8x1xf32>
    %85 = vector.broadcast %84 : vector<8x1xf32> to vector<8x8xf32>
    %86 = arith.subf %82, %85 : vector<8x8xf32>
    %87 = math.exp %86 : vector<8x8xf32>
    %cst_46 = arith.constant dense<0.000000e+00> : vector<8xf32>
    %88 = vector.multi_reduction <add>, %87, %cst_46 [1] : vector<8x8xf32> to vector<8xf32>
    %89 = vector.shape_cast %88 : vector<8xf32> to vector<8x1xf32>
    %90 = tpu.reciprocal %89 {approx = true} : vector<8x1xf32> -> vector<8x1xf32>
    %91 = vector.broadcast %90 : vector<8x1xf32> to vector<8x8xf32>
    %92 = arith.mulf %87, %91 : vector<8x8xf32>
    %c0_47 = arith.constant 0 : index
    %c2 = arith.constant 2 : index
    %c0_48 = arith.constant 0 : index
    %c0_49 = arith.constant 0 : index
    %93 = vector.load %arg14[%c0_47, %c2, %c0_48, %c0_49] : memref<1x4x8x8xf32, #tpu.memory_space<vmem>>, vector<1x1x8x8xf32>
    %94 = vector.shape_cast %93 : vector<1x1x8x8xf32> to vector<8x8xf32>
    %95 = vector.shape_cast %92 : vector<8x8xf32> to vector<1x1x8x8xf32>
    tpu.vector_store %arg14[%c0_47, %c2, %c0_48, %c0_49], %95 {strides = array<i32>} : memref<1x4x8x8xf32, #tpu.memory_space<vmem>>, vector<1x1x8x8xf32>,
    %96 = arith.truncf %92 : vector<8x8xf32> to vector<8x8xbf16>
    %97 = vector.extract_strided_slice %26 {offsets = [0, 16], sizes = [8, 8], strides = [1, 1]} : vector<8x32xbf16> to vector<8x8xbf16>
    %cst_50 = arith.constant dense<0.000000e+00> : vector<8x8xf32>
    %98 = tpu.matmul %96, %97, %cst_50 {dimension_numbers = #tpu.dot_dimension_numbers<[1], [0], [0], [1], [0, 0, 1, 1], [], []>} : vector<8x8xbf16>, vector<8x8xbf16>, vector<8x8xf32> -> vector<8x8xf32>
    %99 = arith.truncf %98 : vector<8x8xf32> to vector<8x8xbf16>
    %100 = vector.extract_strided_slice %10 {offsets = [16, 0], sizes = [8, 32], strides = [1, 1]} : vector<32x32xbf16> to vector<8x32xbf16>
    %cst_51 = arith.constant dense<0.000000e+00> : vector<8x32xf32>
    %101 = tpu.matmul %99, %100, %cst_51 {dimension_numbers = #tpu.dot_dimension_numbers<[1], [0], [0], [1], [0, 0, 1, 1], [], []>} : vector<8x8xbf16>, vector<8x32xbf16>, vector<8x32xf32> -> vector<8x32xf32>
    %102 = arith.addf %77, %101 : vector<8x32xf32>
    %103 = vector.extract_strided_slice %22 {offsets = [0, 24], sizes = [8, 8], strides = [1, 1]} : vector<8x32xbf16> to vector<8x8xbf16>
    %104 = vector.extract_strided_slice %24 {offsets = [0, 24], sizes = [8, 8], strides = [1, 1]} : vector<8x32xbf16> to vector<8x8xbf16>
    %cst_52 = arith.constant dense<0.000000e+00> : vector<8x8xf32>
    %105 = tpu.matmul %103, %104, %cst_52 {dimension_numbers = #tpu.dot_dimension_numbers<[1], [1], [0], [0], [0, 0, 1, 0], [], []>} : vector<8x8xbf16>, vector<8x8xbf16>, vector<8x8xf32> -> vector<8x8xf32>
    %106 = vector.broadcast %5 : vector<1x8xf32> to vector<8x8xf32>
    %107 = arith.addf %105, %106 : vector<8x8xf32>
    %cst_53 = arith.constant dense<0xFF800000> : vector<8xf32>
    %108 = vector.multi_reduction <maximumf>, %107, %cst_53 [1] : vector<8x8xf32> to vector<8xf32>
    %109 = vector.shape_cast %108 : vector<8xf32> to vector<8x1xf32>
    %110 = vector.broadcast %109 : vector<8x1xf32> to vector<8x8xf32>
    %111 = arith.subf %107, %110 : vector<8x8xf32>
    %112 = math.exp %111 : vector<8x8xf32>
    %cst_54 = arith.constant dense<0.000000e+00> : vector<8xf32>
    %113 = vector.multi_reduction <add>, %112, %cst_54 [1] : vector<8x8xf32> to vector<8xf32>
    %114 = vector.shape_cast %113 : vector<8xf32> to vector<8x1xf32>
    %115 = tpu.reciprocal %114 {approx = true} : vector<8x1xf32> -> vector<8x1xf32>
    %116 = vector.broadcast %115 : vector<8x1xf32> to vector<8x8xf32>
    %117 = arith.mulf %112, %116 : vector<8x8xf32>
    %c0_55 = arith.constant 0 : index
    %c3 = arith.constant 3 : index
    %c0_56 = arith.constant 0 : index
    %c0_57 = arith.constant 0 : index
    %118 = vector.load %arg14[%c0_55, %c3, %c0_56, %c0_57] : memref<1x4x8x8xf32, #tpu.memory_space<vmem>>, vector<1x1x8x8xf32>
    %119 = vector.shape_cast %118 : vector<1x1x8x8xf32> to vector<8x8xf32>
    %120 = vector.shape_cast %117 : vector<8x8xf32> to vector<1x1x8x8xf32>
    tpu.vector_store %arg14[%c0_55, %c3, %c0_56, %c0_57], %120 {strides = array<i32>} : memref<1x4x8x8xf32, #tpu.memory_space<vmem>>, vector<1x1x8x8xf32>,
    %121 = arith.truncf %117 : vector<8x8xf32> to vector<8x8xbf16>
    %122 = vector.extract_strided_slice %26 {offsets = [0, 24], sizes = [8, 8], strides = [1, 1]} : vector<8x32xbf16> to vector<8x8xbf16>
    %cst_58 = arith.constant dense<0.000000e+00> : vector<8x8xf32>
    %123 = tpu.matmul %121, %122, %cst_58 {dimension_numbers = #tpu.dot_dimension_numbers<[1], [0], [0], [1], [0, 0, 1, 1], [], []>} : vector<8x8xbf16>, vector<8x8xbf16>, vector<8x8xf32> -> vector<8x8xf32>
    %124 = arith.truncf %123 : vector<8x8xf32> to vector<8x8xbf16>
    %125 = vector.extract_strided_slice %10 {offsets = [24, 0], sizes = [8, 32], strides = [1, 1]} : vector<32x32xbf16> to vector<8x32xbf16>
    %cst_59 = arith.constant dense<0.000000e+00> : vector<8x32xf32>
    %126 = tpu.matmul %124, %125, %cst_59 {dimension_numbers = #tpu.dot_dimension_numbers<[1], [0], [0], [1], [0, 0, 1, 1], [], []>} : vector<8x8xbf16>, vector<8x32xbf16>, vector<8x32xf32> -> vector<8x32xf32>
    %127 = arith.addf %102, %126 : vector<8x32xf32>
    %128 = arith.extf %1 : vector<8x32xbf16> to vector<8x32xf32>
    %129 = arith.addf %128, %127 : vector<8x32xf32>
    %130 = vector.broadcast %11 : vector<1x32xf32> to vector<8x32xf32>
    %131 = arith.addf %129, %130 : vector<8x32xf32>
    %cst_60 = arith.constant dense<0.000000e+00> : vector<8xf32>
    %132 = vector.multi_reduction <add>, %131, %cst_60 [1] : vector<8x32xf32> to vector<8xf32>
    %133 = vector.shape_cast %132 : vector<8xf32> to vector<8x1xf32>
    %cst_61 = arith.constant 3.200000e+01 : f32
    %134 = vector.broadcast %cst_61 : f32 to vector<8x1xf32>
    %135 = arith.divf %133, %134 : vector<8x1xf32>
    %136 = vector.broadcast %135 : vector<8x1xf32> to vector<8x32xf32>
    %137 = arith.subf %131, %136 : vector<8x32xf32>
    %138 = arith.mulf %137, %137 : vector<8x32xf32>
    %cst_62 = arith.constant dense<0.000000e+00> : vector<8xf32>
    %139 = vector.multi_reduction <add>, %138, %cst_62 [1] : vector<8x32xf32> to vector<8xf32>
    %140 = vector.shape_cast %139 : vector<8xf32> to vector<8x1xf32>
    %cst_63 = arith.constant 3.200000e+01 : f32
    %141 = vector.broadcast %cst_63 : f32 to vector<8x1xf32>
    %142 = arith.divf %140, %141 : vector<8x1xf32>
    %143 = vector.broadcast %135 : vector<8x1xf32> to vector<8x32xf32>
    %144 = arith.subf %131, %143 : vector<8x32xf32>
    %cst_64 = arith.constant 9.99999974E-6 : f32
    %145 = vector.broadcast %cst_64 : f32 to vector<8x1xf32>
    %146 = arith.addf %142, %145 : vector<8x1xf32>
    %147 = math.rsqrt %146 : vector<8x1xf32>
    %148 = vector.broadcast %147 : vector<8x1xf32> to vector<8x32xf32>
    %149 = arith.mulf %144, %148 : vector<8x32xf32>
    %150 = vector.broadcast %12 : vector<1x32xf32> to vector<8x32xf32>
    %151 = arith.mulf %149, %150 : vector<8x32xf32>
    %152 = vector.broadcast %13 : vector<1x32xf32> to vector<8x32xf32>
    %153 = arith.addf %151, %152 : vector<8x32xf32>
    %154 = arith.truncf %153 : vector<8x32xf32> to vector<8x32xbf16>
    %c0_65 = arith.constant 0 : index
    %c0_66 = arith.constant 0 : index
    %c0_67 = arith.constant 0 : index
    %155 = vector.load %arg13[%c0_65, %c0_66, %c0_67] : memref<1x8x32xbf16, #tpu.memory_space<vmem>>, vector<1x8x32xbf16>
    %156 = vector.shape_cast %155 : vector<1x8x32xbf16> to vector<8x32xbf16>
    %157 = vector.shape_cast %154 : vector<8x32xbf16> to vector<1x8x32xbf16>
    tpu.vector_store %arg13[%c0_65, %c0_66, %c0_67], %157 {strides = array<i32>} : memref<1x8x32xbf16, #tpu.memory_space<vmem>>, vector<1x8x32xbf16>,
    return
  }
  func.func @transform_0(%arg0: i32, %arg1: i32) -> (i32, i32, i32) {
    %c0_i32 = arith.constant 0 : i32
    %c0_i32_0 = arith.constant 0 : i32
    return %arg0, %arg1, %c0_i32 : i32, i32, i32
  }
  func.func @transform_1(%arg0: i32, %arg1: i32) -> (i32, i32, i32) {
    %c0_i32 = arith.constant 0 : i32
    %c0_i32_0 = arith.constant 0 : i32
    %c0_i32_1 = arith.constant 0 : i32
    return %arg0, %c0_i32, %c0_i32_0 : i32, i32, i32
  }
  func.func @transform_2(%arg0: i32, %arg1: i32) -> (i32, i32, i32) {
    %c0_i32 = arith.constant 0 : i32
    %c0_i32_0 = arith.constant 0 : i32
    %c0_i32_1 = arith.constant 0 : i32
    return %arg0, %c0_i32, %c0_i32_0 : i32, i32, i32
  }
  func.func @transform_3(%arg0: i32, %arg1: i32) -> (i32, i32) {
    %c0_i32 = arith.constant 0 : i32
    %c0_i32_0 = arith.constant 0 : i32
    %c0_i32_1 = arith.constant 0 : i32
    return %c0_i32, %c0_i32_0 : i32, i32
  }
  func.func @transform_4(%arg0: i32, %arg1: i32) -> (i32, i32) {
    %c0_i32 = arith.constant 0 : i32
    %c0_i32_0 = arith.constant 0 : i32
    %c0_i32_1 = arith.constant 0 : i32
    return %c0_i32, %c0_i32_0 : i32, i32
  }
  func.func @transform_5(%arg0: i32, %arg1: i32) -> (i32, i32) {
    %c0_i32 = arith.constant 0 : i32
    %c0_i32_0 = arith.constant 0 : i32
    %c0_i32_1 = arith.constant 0 : i32
    return %c0_i32, %c0_i32_0 : i32, i32
  }
  func.func @transform_6(%arg0: i32, %arg1: i32) -> (i32, i32) {
    %c0_i32 = arith.constant 0 : i32
    %c0_i32_0 = arith.constant 0 : i32
    %c0_i32_1 = arith.constant 0 : i32
    return %c0_i32, %c0_i32_0 : i32, i32
  }
  func.func @transform_7(%arg0: i32, %arg1: i32) -> (i32, i32) {
    %c0_i32 = arith.constant 0 : i32
    %c0_i32_0 = arith.constant 0 : i32
    %c0_i32_1 = arith.constant 0 : i32
    return %c0_i32, %c0_i32_0 : i32, i32
  }
  func.func @transform_8(%arg0: i32, %arg1: i32) -> (i32, i32) {
    %c0_i32 = arith.constant 0 : i32
    %c0_i32_0 = arith.constant 0 : i32
    %c0_i32_1 = arith.constant 0 : i32
    return %c0_i32, %c0_i32_0 : i32, i32
  }
  func.func @transform_9(%arg0: i32, %arg1: i32) -> (i32, i32) {
    %c0_i32 = arith.constant 0 : i32
    %c0_i32_0 = arith.constant 0 : i32
    %c0_i32_1 = arith.constant 0 : i32
    return %c0_i32, %c0_i32_0 : i32, i32
  }
  func.func @transform_10(%arg0: i32, %arg1: i32) -> (i32, i32) {
    %c0_i32 = arith.constant 0 : i32
    %c0_i32_0 = arith.constant 0 : i32
    %c0_i32_1 = arith.constant 0 : i32
    return %c0_i32, %c0_i32_0 : i32, i32
  }
  func.func @transform_11(%arg0: i32, %arg1: i32) -> (i32, i32, i32) {
    %c0_i32 = arith.constant 0 : i32
    %c0_i32_0 = arith.constant 0 : i32
    return %arg0, %arg1, %c0_i32 : i32, i32, i32
  }
  func.func @transform_12(%arg0: i32, %arg1: i32) -> (i32, i32, i32, i32) {
    %c0_i32 = arith.constant 0 : i32
    %c0_i32_0 = arith.constant 0 : i32
    %c0_i32_1 = arith.constant 0 : i32
    return %arg0, %c0_i32, %arg1, %c0_i32_0 : i32, i32, i32, i32
  }
}

module attributes {stable_mosaic.version = 11 : i64} {
  func.func @_dense_tiled_kernel(%arg0: i32, %arg1: i32, %arg2: i32, %arg3: memref<128x128xbf16, #tpu.memory_space<vmem>>, %arg4: memref<128x128xbf16, #tpu.memory_space<vmem>>, %arg5: memref<1x128xf32, #tpu.memory_space<vmem>>, %arg6: memref<128x128xf32, #tpu.memory_space<vmem>>, %arg7: memref<128x128xf32, #tpu.memory_space<vmem>>) attributes {dimension_semantics = [#tpu.dimension_semantics<parallel>, #tpu.dimension_semantics<parallel>, #tpu.dimension_semantics<arbitrary>], iteration_bounds = array<i64: 1, 1, 1>, scalar_prefetch = 0 : i64, scratch_operands = 1 : i64, tpu.core_type = #tpu.core_type<tc>, window_params = [{transform_indices = @transform_0, window_bounds = array<i64: 128, 128>}, {transform_indices = @transform_1, window_bounds = array<i64: 128, 128>}, {transform_indices = @transform_2, window_bounds = array<i64: 1, 128>}, {transform_indices = @transform_3, window_bounds = array<i64: 128, 128>}]} {
    %c0_i32 = arith.constant 0 : i32
    %0 = arith.cmpi eq, %arg2, %c0_i32 : i32
    %1 = arith.extui %0 : i1 to i32
    %c0_i32_0 = arith.constant 0 : i32
    %2 = arith.cmpi ne, %1, %c0_i32_0 : i32
    scf.if %2 {
      %cst_10 = arith.constant 0.000000e+00 : f32
      %12 = vector.broadcast %cst_10 : f32 to vector<128x128xf32>
      %c0_11 = arith.constant 0 : index
      %c0_12 = arith.constant 0 : index
      %13 = vector.load %arg7[%c0_11, %c0_12] : memref<128x128xf32, #tpu.memory_space<vmem>>, vector<128x128xf32>
      tpu.vector_store %arg7[%c0_11, %c0_12], %12 {strides = array<i32>} : memref<128x128xf32, #tpu.memory_space<vmem>>, vector<128x128xf32>,
    } else {
    }
    %c0 = arith.constant 0 : index
    %c0_1 = arith.constant 0 : index
    %3 = vector.load %arg7[%c0, %c0_1] : memref<128x128xf32, #tpu.memory_space<vmem>>, vector<128x128xf32>
    %c0_2 = arith.constant 0 : index
    %c0_3 = arith.constant 0 : index
    %4 = vector.load %arg3[%c0_2, %c0_3] : memref<128x128xbf16, #tpu.memory_space<vmem>>, vector<128x128xbf16>
    %c0_4 = arith.constant 0 : index
    %c0_5 = arith.constant 0 : index
    %5 = vector.load %arg4[%c0_4, %c0_5] : memref<128x128xbf16, #tpu.memory_space<vmem>>, vector<128x128xbf16>
    %cst = arith.constant dense<0.000000e+00> : vector<128x128xf32>
    %6 = tpu.matmul %4, %5, %cst {dimension_numbers = #tpu.dot_dimension_numbers<[1], [0], [0], [1], [0, 0, 1, 1], [], []>} : vector<128x128xbf16>, vector<128x128xbf16>, vector<128x128xf32> -> vector<128x128xf32>
    %7 = arith.addf %3, %6 : vector<128x128xf32>
    %c0_6 = arith.constant 0 : index
    %c0_7 = arith.constant 0 : index
    %8 = vector.load %arg7[%c0_6, %c0_7] : memref<128x128xf32, #tpu.memory_space<vmem>>, vector<128x128xf32>
    tpu.vector_store %arg7[%c0_6, %c0_7], %7 {strides = array<i32>} : memref<128x128xf32, #tpu.memory_space<vmem>>, vector<128x128xf32>,
    %c0_i32_8 = arith.constant 0 : i32
    %9 = arith.cmpi eq, %arg2, %c0_i32_8 : i32
    %10 = arith.extui %9 : i1 to i32
    %c0_i32_9 = arith.constant 0 : i32
    %11 = arith.cmpi ne, %10, %c0_i32_9 : i32
    scf.if %11 {
      %c0_10 = arith.constant 0 : index
      %c0_11 = arith.constant 0 : index
      %12 = vector.load %arg7[%c0_10, %c0_11] : memref<128x128xf32, #tpu.memory_space<vmem>>, vector<128x128xf32>
      %c0_12 = arith.constant 0 : index
      %c0_13 = arith.constant 0 : index
      %13 = vector.load %arg5[%c0_12, %c0_13] : memref<1x128xf32, #tpu.memory_space<vmem>>, vector<1x128xf32>
      %14 = vector.broadcast %13 : vector<1x128xf32> to vector<128x128xf32>
      %15 = arith.addf %12, %14 : vector<128x128xf32>
      %c0_14 = arith.constant 0 : index
      %c0_15 = arith.constant 0 : index
      %16 = vector.load %arg6[%c0_14, %c0_15] : memref<128x128xf32, #tpu.memory_space<vmem>>, vector<128x128xf32>
      tpu.vector_store %arg6[%c0_14, %c0_15], %15 {strides = array<i32>} : memref<128x128xf32, #tpu.memory_space<vmem>>, vector<128x128xf32>,
    } else {
    }
    return
  }
  func.func @transform_0(%arg0: i32, %arg1: i32, %arg2: i32) -> (i32, i32) {
    %c0_i32 = arith.constant 0 : i32
    return %arg0, %arg2 : i32, i32
  }
  func.func @transform_1(%arg0: i32, %arg1: i32, %arg2: i32) -> (i32, i32) {
    %c0_i32 = arith.constant 0 : i32
    return %arg2, %arg1 : i32, i32
  }
  func.func @transform_2(%arg0: i32, %arg1: i32, %arg2: i32) -> (i32, i32) {
    %c0_i32 = arith.constant 0 : i32
    %c0_i32_0 = arith.constant 0 : i32
    return %c0_i32, %arg1 : i32, i32
  }
  func.func @transform_3(%arg0: i32, %arg1: i32, %arg2: i32) -> (i32, i32) {
    %c0_i32 = arith.constant 0 : i32
    return %arg0, %arg1 : i32, i32
  }
}

</mosaic_0001>

<llo_original>
// kernel: seq2seq_forward.12
$region0: #{seq2seq_forward.12}
  #allocation0 [shape = 'u32[]', space=smem, size = 0x4, offset = 0x4, fixed_abs, tag = 'smem constant byte address 0x4 - core index']
  #allocation1 [shape = 'u32[144,128]{1,0:T(1,128)}', space=vmem, size = 0x12000, scoped, tag = 'internal scratch']
  %s0 = inlined_call_operand.hbm [shape: bf16[16,32], index: 0, kind: input, shape index: {}]
  %s1 = inlined_call_operand.hbm [shape: bf16[32,64], index: 1, kind: input, shape index: {}]
  %s2 = inlined_call_operand.hbm [shape: f32[1,64], index: 2, kind: input, shape index: {}]
  %s3 = inlined_call_operand.hbm [shape: bf16[64,32], index: 3, kind: input, shape index: {}]
  %s4 = inlined_call_operand.hbm [shape: f32[1,32], index: 4, kind: input, shape index: {}]
  %s5 = inlined_call_operand.hbm [shape: f32[1,32], index: 5, kind: input, shape index: {}]
  %s6 = inlined_call_operand.hbm [shape: f32[1,32], index: 6, kind: input, shape index: {}]
  %s7 = inlined_call_operand.hbm [shape: bf16[16,32], index: 7, kind: output, shape index: {}]
  %s8 = sld [smem:[#allocation0]]
  $region66: #{seq2seq_forward.12} parent=0
    _
  %s10 = ssub.s32 1, %s8
  %s11 = scalar_select 0, %s10, %s8
  $region1: #{seq2seq_forward.12} parent=0
    #allocation2 [shape = 'u8[4096]{0}', space=vmem, size = 0x1000, scoped, tag = 'input window, operand 0, single buffered']
    #allocation3 [shape = 's32[1]{0}', space=sflag, size = 0x4, scoped, tag = 'scoped memory for seq2seq_forward.12']
    #allocation4 [shape = 's32[1]{0}', space=sflag, size = 0x4, scoped, tag = 'scoped memory for seq2seq_forward.12']
    #allocation5 [shape = 'u8[8192]{0}', space=vmem, size = 0x2000, scoped, tag = 'input window, operand 1, single buffered']
    #allocation6 [shape = 's32[1]{0}', space=sflag, size = 0x4, scoped, tag = 'scoped memory for seq2seq_forward.12']
    #allocation7 [shape = 'u8[512]{0}', space=vmem, size = 0x400, scoped, tag = 'input window, operand 2, single buffered']
    #allocation8 [shape = 'u8[16384]{0}', space=vmem, size = 0x4000, scoped, tag = 'input window, operand 3, single buffered']
    #allocation9 [shape = 's32[1]{0}', space=sflag, size = 0x4, scoped, tag = 'scoped memory for seq2seq_forward.12']
    #allocation10 [shape = 'u8[512]{0}', space=vmem, size = 0x400, scoped, tag = 'input window, operand 4, single buffered']
    #allocation11 [shape = 'u8[512]{0}', space=vmem, size = 0x400, scoped, tag = 'input window, operand 5, single buffered']
    #allocation12 [shape = 's32[1]{0}', space=sflag, size = 0x4, scoped, tag = 'scoped memory for seq2seq_forward.12']
    #allocation13 [shape = 'u8[512]{0}', space=vmem, size = 0x400, scoped, tag = 'input window, operand 6, single buffered']
    #allocation14 [shape = 'u8[4096]{0}', space=vmem, size = 0x1000, scoped, tag = 'output window, operand 0, single buffered']
    %12 = vsyncpa [#allocation3], 0
    %13 = vsyncpa [#allocation6], 0
    %14 = vsyncpa [#allocation9], 0
    %15 = vsyncpa [#allocation12], 0
    %16 = vsyncpa [#allocation4], 0
    // Predicated region
    $region2: #{seq2seq_forward.12} parent=1 // pred_check
      _
    $region3: #{seq2seq_forward.12} parent=1 // pred_check_branch
      %18 = sbr.rel (0) target = $region5
    $region4: #{seq2seq_forward.12} parent=1 // pred_region
      %s20 = ssub.s32 128, 128
      %21 = vsyncadd [#allocation3], %s20
      %s22 = sshll.u32 [#allocation2], 4
      %s23 = int_to_ptr.vmem [resolvable:$true] %s22
      %28 = dma.hbm_to_vmem [thread:$0]  %s0, 128, %s23, [#allocation3], 64, 64, 4
    $region5: #{seq2seq_forward.12} parent=1 // pred_fallthru
      _
    // Predicated region
    $region6: #{seq2seq_forward.12} parent=1 // pred_check
      _
    $region7: #{seq2seq_forward.12} parent=1 // pred_check_branch
      %30 = sbr.rel (0) target = $region9
    $region8: #{seq2seq_forward.12} parent=1 // pred_region
      %s32 = ssub.s32 256, 256
      %33 = vsyncadd [#allocation6], %s32
      %s34 = sshll.u32 [#allocation5], 4
      %s35 = int_to_ptr.vmem [resolvable:$true] %s34
      %40 = dma.hbm_to_vmem [thread:$0]  %s1, 256, %s35, [#allocation6], 64, 64, 4
    $region9: #{seq2seq_forward.12} parent=1 // pred_fallthru
      _
    // Predicated region
    $region10: #{seq2seq_forward.12} parent=1 // pred_check
      _
    $region11: #{seq2seq_forward.12} parent=1 // pred_check_branch
      %42 = sbr.rel (0) target = $region13
    $region12: #{seq2seq_forward.12} parent=1 // pred_region
      %s44 = ssub.s32 16, 16
      %45 = vsyncadd [#allocation6], %s44
      %s47 = sshll.u32 [#allocation7], 4
      %s48 = int_to_ptr.vmem [resolvable:$true] %s47
      %50 = dma.hbm_to_vmem [thread:$0]  %s2, 16, %s48, [#allocation6]
    $region13: #{seq2seq_forward.12} parent=1 // pred_fallthru
      _
    // Predicated region
    $region14: #{seq2seq_forward.12} parent=1 // pred_check
      _
    $region15: #{seq2seq_forward.12} parent=1 // pred_check_branch
      %52 = sbr.rel (0) target = $region17
    $region16: #{seq2seq_forward.12} parent=1 // pred_region
      %s54 = ssub.s32 512, 512
      %55 = vsyncadd [#allocation9], %s54
      %s56 = sshll.u32 [#allocation8], 4
      %s57 = int_to_ptr.vmem [resolvable:$true] %s56
      %62 = dma.hbm_to_vmem [thread:$0]  %s3, 512, %s57, [#allocation9], 64, 64, 4
    $region17: #{seq2seq_forward.12} parent=1 // pred_fallthru
      _
    // Predicated region
    $region18: #{seq2seq_forward.12} parent=1 // pred_check
      _
    $region19: #{seq2seq_forward.12} parent=1 // pred_check_branch
      %64 = sbr.rel (0) target = $region21
    $region20: #{seq2seq_forward.12} parent=1 // pred_region
      %s66 = ssub.s32 16, 16
      %67 = vsyncadd [#allocation9], %s66
      %s69 = sshll.u32 [#allocation10], 4
      %s70 = int_to_ptr.vmem [resolvable:$true] %s69
      %72 = dma.hbm_to_vmem [thread:$0]  %s4, 16, %s70, [#allocation9]
    $region21: #{seq2seq_forward.12} parent=1 // pred_fallthru
      _
    // Predicated region
    $region22: #{seq2seq_forward.12} parent=1 // pred_check
      _
    $region23: #{seq2seq_forward.12} parent=1 // pred_check_branch
      %74 = sbr.rel (0) target = $region25
    $region24: #{seq2seq_forward.12} parent=1 // pred_region
      %s76 = ssub.s32 16, 16
      %77 = vsyncadd [#allocation12], %s76
      %s79 = sshll.u32 [#allocation11], 4
      %s80 = int_to_ptr.vmem [resolvable:$true] %s79
      %82 = dma.hbm_to_vmem [thread:$0]  %s5, 16, %s80, [#allocation12]
    $region25: #{seq2seq_forward.12} parent=1 // pred_fallthru
      _
    // Predicated region
    $region26: #{seq2seq_forward.12} parent=1 // pred_check
      _
    $region27: #{seq2seq_forward.12} parent=1 // pred_check_branch
      %84 = sbr.rel (0) target = $region29
    $region28: #{seq2seq_forward.12} parent=1 // pred_region
      %s86 = ssub.s32 16, 16
      %87 = vsyncadd [#allocation12], %s86
      %s89 = sshll.u32 [#allocation13], 4
      %s90 = int_to_ptr.vmem [resolvable:$true] %s89
      %92 = dma.hbm_to_vmem [thread:$0]  %s6, 16, %s90, [#allocation12]
    $region29: #{seq2seq_forward.12} parent=1 // pred_fallthru
      _
    // Predicated region
    $region30: #{seq2seq_forward.12} parent=1 // pred_check
      _
    $region31: #{seq2seq_forward.12} parent=1 // pred_check_branch
      %94 = sbr.rel (0) target = $region33
    $region32: #{seq2seq_forward.12} parent=1 // pred_region
      %95 = dma.done [#allocation3], 128
    $region33: #{seq2seq_forward.12} parent=1 // pred_fallthru
      _
    // Predicated region
    $region34: #{seq2seq_forward.12} parent=1 // pred_check
      _
    $region35: #{seq2seq_forward.12} parent=1 // pred_check_branch
      %97 = sbr.rel (0) target = $region37
    $region36: #{seq2seq_forward.12} parent=1 // pred_region
      %98 = dma.done [#allocation6], 256
    $region37: #{seq2seq_forward.12} parent=1 // pred_fallthru
      _
    // Predicated region
    $region38: #{seq2seq_forward.12} parent=1 // pred_check
      _
    $region39: #{seq2seq_forward.12} parent=1 // pred_check_branch
      %100 = sbr.rel (0) target = $region41
    $region40: #{seq2seq_forward.12} parent=1 // pred_region
      %101 = dma.done [#allocation6], 16
    $region41: #{seq2seq_forward.12} parent=1 // pred_fallthru
      _
    // Predicated region
    $region42: #{seq2seq_forward.12} parent=1 // pred_check
      _
    $region43: #{seq2seq_forward.12} parent=1 // pred_check_branch
      %103 = sbr.rel (0) target = $region45
    $region44: #{seq2seq_forward.12} parent=1 // pred_region
      %104 = dma.done [#allocation9], 512
    $region45: #{seq2seq_forward.12} parent=1 // pred_fallthru
      _
    // Predicated region
    $region46: #{seq2seq_forward.12} parent=1 // pred_check
      _
    $region47: #{seq2seq_forward.12} parent=1 // pred_check_branch
      %106 = sbr.rel (0) target = $region49
    $region48: #{seq2seq_forward.12} parent=1 // pred_region
      %107 = dma.done [#allocation9], 16
    $region49: #{seq2seq_forward.12} parent=1 // pred_fallthru
      _
    // Predicated region
    $region50: #{seq2seq_forward.12} parent=1 // pred_check
      _
    $region51: #{seq2seq_forward.12} parent=1 // pred_check_branch
      %109 = sbr.rel (0) target = $region53
    $region52: #{seq2seq_forward.12} parent=1 // pred_region
      %110 = dma.done [#allocation12], 16
    $region53: #{seq2seq_forward.12} parent=1 // pred_fallthru
      _
    // Predicated region
    $region54: #{seq2seq_forward.12} parent=1 // pred_check
      _
    $region55: #{seq2seq_forward.12} parent=1 // pred_check_branch
      %112 = sbr.rel (0) target = $region57
    $region56: #{seq2seq_forward.12} parent=1 // pred_region
      %113 = dma.done [#allocation12], 16
    $region57: #{seq2seq_forward.12} parent=1 // pred_fallthru
      _
    %v115 = vld [vmem:[#allocation2] sm:$0xf]
    %v116 = vld [vmem:[#allocation2 + $0x4] sm:$0xf]
    %v117 = vld [vmem:[#allocation5] sm:$0xf]
    %v118 = vld [vmem:[#allocation5 + $0x4] sm:$0xf]
    %v119 = vld [vmem:[#allocation5 + $0x8] sm:$0xf]
    %v120 = vld [vmem:[#allocation5 + $0xc] sm:$0xf]
    %v121 = vld [vmem:[#allocation7] sm:$0x1]
    %v123 = vlaneseq
    %v124 = vshrl.u32 %v123, 7
    %v125 = vsub.s32 0, %v124
    %v126 = vrot.slane %v121, %v125
    %v130 = vunpack.c.l.b16 %v115
    %v131 = vunpack.c.l.b16 %v116
    %v132 = vpack.c.b16 %v131, %v130
    %v137 = vunpack.c.l.b16 %v117
    %v138 = vunpack.c.l.b16 %v118
    %v139 = vunpack.c.l.b16 %v119
    %v140 = vunpack.c.l.b16 %v120
    %v141 = vpack.c.b16 %v138, %v137
    %v142 = vpack.c.b16 %v140, %v139
    %vm145 = vcmask 261120
    %v147 = vsel %vm145, %v132, 0
    %149 = vmatprep.subr.bf16.mxu0 0
    %150 = vmatpush1.bf16.msra.mxu0 %v141
    %151 = vmatprep.subr.bf16.mxu0 0
    %152 = vmatpush1.bf16.msra.mxu0 %v142
    %153 = vmatprep.subr.bf16.mxu0 0
    %154 = vmatpush1.bf16.msra.mxu0 0
    %155 = vmatprep.subr.bf16.mxu0 0
    %156 = vmatpush1.bf16.msra.mxu0 0
    %157 = vmatprep.subr.bf16.mxu0 0
    %158 = vmatpush1.bf16.msra.mxu0 0
    %159 = vmatprep.subr.bf16.mxu0 0
    %160 = vmatpush1.bf16.msra.mxu0 0
    %161 = vmatprep.subr.bf16.mxu0 0
    %162 = vmatpush1.bf16.msra.mxu0 0
    %163 = vmatprep.subr.bf16.mxu0 0
    %164 = vmatpush1.bf16.msra.mxu0 0
    %165 = vmatprep.subr.bf16.mxu0 0
    %166 = vmatpush1.bf16.msra.mxu0 0
    %167 = vmatprep.subr.bf16.mxu0 0
    %168 = vmatpush1.bf16.msra.mxu0 0
    %169 = vmatprep.subr.bf16.mxu0 0
    %170 = vmatpush1.bf16.msra.mxu0 0
    %171 = vmatprep.subr.bf16.mxu0 0
    %172 = vmatpush1.bf16.msra.mxu0 0
    %173 = vmatprep.subr.bf16.mxu0 0
    %174 = vmatpush1.bf16.msra.mxu0 0
    %175 = vmatprep.subr.bf16.mxu0 0
    %176 = vmatpush1.bf16.msra.mxu0 0
    %177 = vmatprep.subr.bf16.mxu0 0
    %178 = vmatpush1.bf16.msra.mxu0 0
    %179 = vmatprep.subr.bf16.mxu0 0
    %180 = vmatpush1.bf16.msra.mxu0 0
    %181 = vmatprep.mubr.bf16.mxu0 0
    %182 = vmatmul.mubr.bf16.gmra.mrb[0].mxu0 %v147
    %v183 = vpop.f32.mrb[0].mxu0
    %v184 = vadd.f32 %v126, %v183
    %v185 = vpop.f32.mrb[0].mxu0
    %v186 = vpop.f32.mrb[0].mxu0
    %v187 = vadd.f32 %v126, %v186
    %v188 = vpop.f32.mrb[0].mxu0
    %189 = vdwg.mxu0
    %v190 = vmax.f32 %v184, 0.0
    %v191 = vmax.f32 %v187, 0.0
    %v192 = vpack.c.bf16 %v191, %v190
    %v193 = vld [vmem:[#allocation8] sm:$0xf]
    %v194 = vld [vmem:[#allocation8 + $0x4] sm:$0xf]
    %v195 = vld [vmem:[#allocation8 + $0x8] sm:$0xf]
    %v196 = vld [vmem:[#allocation8 + $0xc] sm:$0xf]
    %v197 = vld [vmem:[#allocation8 + $0x10] sm:$0xf]
    %v198 = vld [vmem:[#allocation8 + $0x14] sm:$0xf]
    %v199 = vld [vmem:[#allocation8 + $0x18] sm:$0xf]
    %v200 = vld [vmem:[#allocation8 + $0x1c] sm:$0xf]
    %v201 = vld [vmem:[#allocation10] sm:$0x1]
    %v203 = vlaneseq
    %v204 = vshrl.u32 %v203, 7
    %v205 = vsub.s32 0, %v204
    %v206 = vrot.slane %v201, %v205
    %v216 = vunpack.c.l.b16 %v193
    %v217 = vunpack.c.l.b16 %v194
    %v218 = vunpack.c.l.b16 %v195
    %v219 = vunpack.c.l.b16 %v196
    %v220 = vunpack.c.l.b16 %v197
    %v221 = vunpack.c.l.b16 %v198
    %v222 = vunpack.c.l.b16 %v199
    %v223 = vunpack.c.l.b16 %v200
    %v224 = vpack.c.b16 %v217, %v216
    %v225 = vpack.c.b16 %v219, %v218
    %v226 = vpack.c.b16 %v221, %v220
    %v227 = vpack.c.b16 %v223, %v222
    %vm232 = vcmask 523264
    %v234 = vsel %vm232, %v192, 0
    %236 = vmatprep.subr.bf16.mxu0 0
    %237 = vmatpush1.bf16.msra.mxu0 %v224
    %238 = vmatprep.subr.bf16.mxu0 0
    %239 = vmatpush1.bf16.msra.mxu0 %v225
    %240 = vmatprep.subr.bf16.mxu0 0
    %241 = vmatpush1.bf16.msra.mxu0 %v226
    %242 = vmatprep.subr.bf16.mxu0 0
    %243 = vmatpush1.bf16.msra.mxu0 %v227
    %244 = vmatprep.subr.bf16.mxu0 0
    %245 = vmatpush1.bf16.msra.mxu0 0
    %246 = vmatprep.subr.bf16.mxu0 0
    %247 = vmatpush1.bf16.msra.mxu0 0
    %248 = vmatprep.subr.bf16.mxu0 0
    %249 = vmatpush1.bf16.msra.mxu0 0
    %250 = vmatprep.subr.bf16.mxu0 0
    %251 = vmatpush1.bf16.msra.mxu0 0
    %252 = vmatprep.subr.bf16.mxu0 0
    %253 = vmatpush1.bf16.msra.mxu0 0
    %254 = vmatprep.subr.bf16.mxu0 0
    %255 = vmatpush1.bf16.msra.mxu0 0
    %256 = vmatprep.subr.bf16.mxu0 0
    %257 = vmatpush1.bf16.msra.mxu0 0
    %258 = vmatprep.subr.bf16.mxu0 0
    %259 = vmatpush1.bf16.msra.mxu0 0
    %260 = vmatprep.subr.bf16.mxu0 0
    %261 = vmatpush1.bf16.msra.mxu0 0
    %262 = vmatprep.subr.bf16.mxu0 0
    %263 = vmatpush1.bf16.msra.mxu0 0
    %264 = vmatprep.subr.bf16.mxu0 0
    %265 = vmatpush1.bf16.msra.mxu0 0
    %266 = vmatprep.subr.bf16.mxu0 0
    %267 = vmatpush1.bf16.msra.mxu0 0
    %268 = vmatprep.mubr.bf16.mxu0 0
    %269 = vmatmul.mubr.bf16.gmra.mrb[0].mxu0 %v234
    %v270 = vpop.f32.mrb[0].mxu0
    %v271 = vadd.f32 %v206, %v270
    %v272 = vpop.f32.mrb[0].mxu0
    %v273 = vpop.f32.mrb[0].mxu0
    %v274 = vadd.f32 %v206, %v273
    %v275 = vpop.f32.mrb[0].mxu0
    %276 = vdwg.mxu0
    %v277 = vunpack.c.l.bf16 %v115
    %v278 = vunpack.c.l.bf16 %v116
    %v279 = vadd.f32 %v277, %v271
    %v280 = vadd.f32 %v278, %v274
    %v281 = vsel %vm145, %v279, 0.0
    %282 = vadd.xlane.f32.xlu0 %v281
    %v283 = vpop.xlane.xlu0 %282
    %v284 = vsel %vm145, %v280, 0.0
    %285 = vadd.xlane.f32.xlu0 %v284
    %v286 = vpop.xlane.xlu0 %285
    %v287 = vrcp.pop 32.0
    %v288 = vmul.f32 %v283, %v287
    %v289 = vmul.f32 %v286, %v287
    %v290 = vsub.f32 %v279, %v288
    %v291 = vsub.f32 %v280, %v289
    %v292 = vmul.f32 %v290, %v290
    %v293 = vmul.f32 %v291, %v291
    %v294 = vsel %vm145, %v292, 0.0
    %295 = vadd.xlane.f32.xlu0 %v294
    %v296 = vpop.xlane.xlu0 %295
    %v297 = vsel %vm145, %v293, 0.0
    %298 = vadd.xlane.f32.xlu0 %v297
    %v299 = vpop.xlane.xlu0 %298
    %v300 = vmul.f32 %v296, %v287
    %v301 = vmul.f32 %v299, %v287
    %v302 = vadd.f32 %v300, 1e-05
    %v303 = vadd.f32 %v301, 1e-05
    %v304 = vrsqrt.pop %v302
    %v305 = vrsqrt.pop %v303
    %v306 = vmul.f32 %v290, %v304
    %v307 = vmul.f32 %v291, %v305
    %v308 = vld [vmem:[#allocation11] sm:$0x1]
    %v310 = vlaneseq
    %v311 = vshrl.u32 %v310, 7
    %v312 = vsub.s32 0, %v311
    %v313 = vrot.slane %v308, %v312
    %v315 = vmul.f32 %v306, %v313
    %v316 = vmul.f32 %v307, %v313
    %v317 = vld [vmem:[#allocation13] sm:$0x1]
    %v319 = vlaneseq
    %v320 = vshrl.u32 %v319, 7
    %v321 = vsub.s32 0, %v320
    %v322 = vrot.slane %v317, %v321
    %v324 = vadd.f32 %v315, %v322
    %v325 = vadd.f32 %v316, %v322
    %v326 = vpack.c.bf16 %v325, %v324
    %v328 = vunpack.c.l.b16 %v326
    %v329 = vunpack.c.h.b16 %v326
    %v330 = vpack.c.b16 %v328, %v328
    %v331 = vpack.c.b16 %v329, %v329
    %vm334 = vcmask 257024
    %335 = vst.msk [vmem:[#allocation14] sm:$0xf] %vm334, %v330
    %336 = vst.msk [vmem:[#allocation14 + $0x4] sm:$0xf] %vm334, %v331
    // Predicated region
    $region58: #{seq2seq_forward.12} parent=1 // pred_check
      _
    $region59: #{seq2seq_forward.12} parent=1 // pred_check_branch
      %338 = sbr.rel (0) target = $region61
    $region60: #{seq2seq_forward.12} parent=1 // pred_region
      %s340 = ssub.s32 128, 128
      %341 = vsyncadd [#allocation4], %s340
      %s342 = sshll.u32 [#allocation14], 4
      %s343 = int_to_ptr.vmem [resolvable:$true] %s342
      %348 = dma.vmem_to_hbm [thread:$0]  %s343, 128, %s7, [#allocation4], 64, 64, 4
    $region61: #{seq2seq_forward.12} parent=1 // pred_fallthru
      _
    // Predicated region
    $region62: #{seq2seq_forward.12} parent=1 // pred_check
      _
    $region63: #{seq2seq_forward.12} parent=1 // pred_check_branch
      %350 = sbr.rel (0) target = $region65
    $region64: #{seq2seq_forward.12} parent=1 // pred_region
      %351 = dma.done [#allocation4], 128
    $region65: #{seq2seq_forward.12} parent=1 // pred_fallthru
      _
    %352 = vsyncpa [#allocation3], 1
    %353 = vsyncpa [#allocation6], 1
    %354 = vsyncpa [#allocation9], 1
    %355 = vsyncpa [#allocation12], 1
    %356 = vsyncpa [#allocation4], 1

// kernel: seq2seq_forward.11
$region0: #{seq2seq_forward.11}
  #allocation0 [shape = 'u32[]', space=smem, size = 0x4, offset = 0x4, fixed_abs, tag = 'smem constant byte address 0x4 - core index']
  #allocation1 [shape = 'u32[144,128]{1,0:T(1,128)}', space=vmem, size = 0x12000, scoped, tag = 'internal scratch']
  %s0 = inlined_call_operand.hbm [shape: bf16[2,8,32], index: 0, kind: input, shape index: {}, may-alias: {0,1}]
  %s1 = inlined_call_operand.hbm [shape: bf16[2,8,32], index: 1, kind: input, shape index: {}, may-alias: {0,1}]
  %s2 = inlined_call_operand.hbm [shape: f32[2,1,8], index: 2, kind: input, shape index: {}]
  %s3 = inlined_call_operand.hbm [shape: bf16[32,32], index: 3, kind: input, shape index: {}]
  %s4 = inlined_call_operand.hbm [shape: f32[1,32], index: 4, kind: input, shape index: {}]
  %s5 = inlined_call_operand.hbm [shape: bf16[32,64], index: 5, kind: input, shape index: {}]
  %s6 = inlined_call_operand.hbm [shape: f32[1,64], index: 6, kind: input, shape index: {}]
  %s7 = inlined_call_operand.hbm [shape: bf16[32,32], index: 7, kind: input, shape index: {}]
  %s8 = inlined_call_operand.hbm [shape: f32[1,32], index: 8, kind: input, shape index: {}]
  %s9 = inlined_call_operand.hbm [shape: f32[1,32], index: 9, kind: input, shape index: {}]
  %s10 = inlined_call_operand.hbm [shape: f32[1,32], index: 10, kind: input, shape index: {}]
  %s11 = inlined_call_operand.hbm [shape: bf16[2,8,32], index: 11, kind: output, shape index: {}]
  %s12 = sld [smem:[#allocation0]]
  $region121: #{seq2seq_forward.11} parent=0
    _
  %s14 = ssub.s32 1, %s12
  %s15 = scalar_select 0, %s14, %s12
  $region1: #{seq2seq_forward.11} parent=0
    #allocation2 [shape = 'u8[4096]{0}', space=vmem, size = 0x1000, scoped, tag = 'input window, operand 0']
    #allocation3 [shape = 's32[2]{0}', space=sflag, size = 0x8, scoped, tag = 'scoped memory for seq2seq_forward.11']
    #allocation4 [shape = 's32[2]{0}', space=sflag, size = 0x8, scoped, tag = 'scoped memory for seq2seq_forward.11']
    #allocation5 [shape = 'u8[4096]{0}', space=vmem, size = 0x1000, scoped, tag = 'input window, operand 1']
    #allocation6 [shape = 's32[2]{0}', space=sflag, size = 0x8, scoped, tag = 'scoped memory for seq2seq_forward.11']
    #allocation7 [shape = 'u8[1024]{0}', space=vmem, size = 0x400, scoped, tag = 'input window, operand 2']
    #allocation8 [shape = 'u8[8192]{0}', space=vmem, size = 0x2000, scoped, tag = 'input window, operand 3, single buffered']
    #allocation9 [shape = 's32[1]{0}', space=sflag, size = 0x4, scoped, tag = 'scoped memory for seq2seq_forward.11']
    #allocation10 [shape = 'u8[512]{0}', space=vmem, size = 0x400, scoped, tag = 'input window, operand 4, single buffered']
    #allocation11 [shape = 'u8[8192]{0}', space=vmem, size = 0x2000, scoped, tag = 'input window, operand 5, single buffered']
    #allocation12 [shape = 's32[1]{0}', space=sflag, size = 0x4, scoped, tag = 'scoped memory for seq2seq_forward.11']
    #allocation13 [shape = 'u8[512]{0}', space=vmem, size = 0x400, scoped, tag = 'input window, operand 6, single buffered']
    #allocation14 [shape = 'u8[8192]{0}', space=vmem, size = 0x2000, scoped, tag = 'input window, operand 7, single buffered']
    #allocation15 [shape = 's32[1]{0}', space=sflag, size = 0x4, scoped, tag = 'scoped memory for seq2seq_forward.11']
    #allocation16 [shape = 'u8[512]{0}', space=vmem, size = 0x400, scoped, tag = 'input window, operand 8, single buffered']
    #allocation17 [shape = 'u8[512]{0}', space=vmem, size = 0x400, scoped, tag = 'input window, operand 9, single buffered']
    #allocation18 [shape = 's32[1]{0}', space=sflag, size = 0x4, scoped, tag = 'scoped memory for seq2seq_forward.11']
    #allocation19 [shape = 'u8[512]{0}', space=vmem, size = 0x400, scoped, tag = 'input window, operand 10, single buffered']
    #allocation20 [shape = 'u8[4096]{0}', space=vmem, size = 0x1000, scoped, tag = 'output window, operand 0']
    %16 = vsyncpa [#allocation3], 0
    %s17 = scalar_lea.sflag [#allocation3], 1
    %18 = vsyncpa %s17, 0
    %19 = vsyncpa [#allocation6], 0
    %s20 = scalar_lea.sflag [#allocation6], 1
    %21 = vsyncpa %s20, 0
    %22 = vsyncpa [#allocation9], 0
    %23 = vsyncpa [#allocation12], 0
    %24 = vsyncpa [#allocation15], 0
    %25 = vsyncpa [#allocation18], 0
    %26 = vsyncpa [#allocation4], 0
    %s27 = scalar_lea.sflag [#allocation4], 1
    %28 = vsyncpa %s27, 0
    loop: start=0, step=1, limit=4
    $region2: #{seq2seq_forward.11} parent=1 // loop_pre_header
      _
    $region3: #{seq2seq_forward.11} parent=1 // loop_header
      %s30 = sphi 0, %s34
      %p31 = scmp.ge.s32.totalorder %s30, 4
      %s37 = sphi 0, %s49
      %s38 = sphi 0, %s45
      %s39 = sphi 0, %s37
      %s40 = sphi 0, %s38
      %s41 = sphi 0, %s39
      %s42 = sphi 0, %s40
      %s54 = sphi 0, %s56
      %s57 = sphi 0, %s54
      %s58 = sphi 0, %s57
      %s74 = sphi 0, %s58
      %s80 = sphi 0, %s82
      %s83 = sphi 0, %s80
      %s84 = sphi 0, %s83
      %s100 = sphi 0, %s84
      %s106 = sphi 0, %s108
      %s109 = sphi 0, %s106
      %s110 = sphi 0, %s109
      %s126 = sphi 0, %s110
      %s130 = sphi 0, %s130
      %s132 = sphi 0, %s130
      %s133 = sphi 0, %s132
      %s147 = sphi 0, %s133
      %s151 = sphi 0, %s151
      %s153 = sphi 0, %s151
      %s154 = sphi 0, %s153
      %s168 = sphi 0, %s154
      %s172 = sphi 0, %s172
      %s174 = sphi 0, %s172
      %s175 = sphi 0, %s174
      %s189 = sphi 0, %s175
      %s193 = sphi 0, %s193
      %s195 = sphi 0, %s193
      %s196 = sphi 0, %s195
      %s210 = sphi 0, %s196
      %s214 = sphi 0, %s214
      %s216 = sphi 0, %s214
      %s217 = sphi 0, %s216
      %s231 = sphi 0, %s217
      %s235 = sphi 0, %s235
      %s237 = sphi 0, %s235
      %s238 = sphi 0, %s237
      %s252 = sphi 0, %s238
      %s256 = sphi 0, %s256
      %s258 = sphi 0, %s256
      %s259 = sphi 0, %s258
      %s273 = sphi 0, %s259
      %s277 = sphi 0, %s277
      %s279 = sphi 0, %s277
      %s280 = sphi 0, %s279
      %s294 = sphi 0, %s280
      %s302 = sphi 0, %s304
      %s305 = sphi 0, %s302
      %s306 = sphi 0, %s305
      %s322 = sphi 0, %s306
    $region4: #{seq2seq_forward.11} parent=1 // loop_header_branch
      %33 = sbr.rel (%p31) target = $region8
    $region5: #{seq2seq_forward.11} parent=1 // loop_body
      %s35 = ssub.s32 %s30, 1
      %s36 = ssub.s32 %s30, 2
      %s43 = sadd.s32 1, %s38
      %p44 = scmp.ge.s32.totalorder %s43, 1
      %s45 = scalar_select %p44, 0, %s43
      %s46 = sadd.s32 1, %s37
      %s47 = scalar_select %p44, %s46, %s37
      %p48 = scmp.ge.s32.totalorder %s47, 2
      %s49 = scalar_select %p48, 0, %s47
      %s50 = ssub.s32 %s37, %s49
      %s51 = ssub.s32 %s38, %s45
      %s52 = sor.u32 %s50, %s51
      %p53 = scmp.eq.s32.totalorder %s52, 0
      %s55 = sadd.s32 %s54, 1
      %s56 = scalar_select %p53, %s54, %s55
      %p59 = pneg %p53
      %p60 = scmp.eq.s32.totalorder %s30, 1
      %p61 = por %p59, %p60
      %p62 = scmp.ne.s32.totalorder %s54, %s57
      %p63 = scmp.eq.s32.totalorder %s30, 0
      %p64 = por %p62, %p63
      %p65 = scmp.ne.s32.totalorder %s54, %s57
      %p66 = scmp.eq.s32.totalorder %s35, 1
      %p67 = por %p65, %p66
      %p68 = scmp.ne.s32.totalorder %s57, %s58
      %p69 = scmp.eq.s32.totalorder %s35, 0
      %p70 = por %p68, %p69
      %p71 = scmp.ne.s32.totalorder %s57, %s58
      %p72 = scmp.eq.s32.totalorder %s36, 1
      %p73 = por %p71, %p72
      %p75 = scmp.ne.s32.totalorder %s58, %s74
      %p76 = scmp.eq.s32.totalorder %s36, 0
      %p77 = por %p75, %p76
      %s78 = ssub.s32 %s37, %s49
      %p79 = scmp.eq.s32.totalorder %s78, 0
      %s81 = sadd.s32 %s80, 1
      %s82 = scalar_select %p79, %s80, %s81
      %p85 = pneg %p79
      %p86 = scmp.eq.s32.totalorder %s30, 1
      %p87 = por %p85, %p86
      %p88 = scmp.ne.s32.totalorder %s80, %s83
      %p89 = scmp.eq.s32.totalorder %s30, 0
      %p90 = por %p88, %p89
      %p91 = scmp.ne.s32.totalorder %s80, %s83
      %p92 = scmp.eq.s32.totalorder %s35, 1
      %p93 = por %p91, %p92
      %p94 = scmp.ne.s32.totalorder %s83, %s84
      %p95 = scmp.eq.s32.totalorder %s35, 0
      %p96 = por %p94, %p95
      %p97 = scmp.ne.s32.totalorder %s83, %s84
      %p98 = scmp.eq.s32.totalorder %s36, 1
      %p99 = por %p97, %p98
      %p101 = scmp.ne.s32.totalorder %s84, %s100
      %p102 = scmp.eq.s32.totalorder %s36, 0
      %p103 = por %p101, %p102
      %s104 = ssub.s32 %s37, %s49
      %p105 = scmp.eq.s32.totalorder %s104, 0
      %s107 = sadd.s32 %s106, 1
      %s108 = scalar_select %p105, %s106, %s107
      %p111 = pneg %p105
      %p112 = scmp.eq.s32.totalorder %s30, 1
      %p113 = por %p111, %p112
      %p114 = scmp.ne.s32.totalorder %s106, %s109
      %p115 = scmp.eq.s32.totalorder %s30, 0
      %p116 = por %p114, %p115
      %p117 = scmp.ne.s32.totalorder %s106, %s109
      %p118 = scmp.eq.s32.totalorder %s35, 1
      %p119 = por %p117, %p118
      %p120 = scmp.ne.s32.totalorder %s109, %s110
      %p121 = scmp.eq.s32.totalorder %s35, 0
      %p122 = por %p120, %p121
      %p123 = scmp.ne.s32.totalorder %s109, %s110
      %p124 = scmp.eq.s32.totalorder %s36, 1
      %p125 = por %p123, %p124
      %p127 = scmp.ne.s32.totalorder %s110, %s126
      %p128 = scmp.eq.s32.totalorder %s36, 0
      %p129 = por %p127, %p128
      %s131 = sadd.s32 %s130, 1
      %p134 = scmp.eq.s32.totalorder %s30, 1
      %p135 = scmp.ne.s32.totalorder %s130, %s132
      %p136 = scmp.eq.s32.totalorder %s30, 0
      %p137 = por %p135, %p136
      %p138 = scmp.ne.s32.totalorder %s130, %s132
      %p139 = scmp.eq.s32.totalorder %s35, 1
      %p140 = por %p138, %p139
      %p141 = scmp.ne.s32.totalorder %s132, %s133
      %p142 = scmp.eq.s32.totalorder %s35, 0
      %p143 = por %p141, %p142
      %p144 = scmp.ne.s32.totalorder %s132, %s133
      %p145 = scmp.eq.s32.totalorder %s36, 1
      %p146 = por %p144, %p145
      %p148 = scmp.ne.s32.totalorder %s133, %s147
      %p149 = scmp.eq.s32.totalorder %s36, 0
      %p150 = por %p148, %p149
      %s152 = sadd.s32 %s151, 1
      %p155 = scmp.eq.s32.totalorder %s30, 1
      %p156 = scmp.ne.s32.totalorder %s151, %s153
      %p157 = scmp.eq.s32.totalorder %s30, 0
      %p158 = por %p156, %p157
      %p159 = scmp.ne.s32.totalorder %s151, %s153
      %p160 = scmp.eq.s32.totalorder %s35, 1
      %p161 = por %p159, %p160
      %p162 = scmp.ne.s32.totalorder %s153, %s154
      %p163 = scmp.eq.s32.totalorder %s35, 0
      %p164 = por %p162, %p163
      %p165 = scmp.ne.s32.totalorder %s153, %s154
      %p166 = scmp.eq.s32.totalorder %s36, 1
      %p167 = por %p165, %p166
      %p169 = scmp.ne.s32.totalorder %s154, %s168
      %p170 = scmp.eq.s32.totalorder %s36, 0
      %p171 = por %p169, %p170
      %s173 = sadd.s32 %s172, 1
      %p176 = scmp.eq.s32.totalorder %s30, 1
      %p177 = scmp.ne.s32.totalorder %s172, %s174
      %p178 = scmp.eq.s32.totalorder %s30, 0
      %p179 = por %p177, %p178
      %p180 = scmp.ne.s32.totalorder %s172, %s174
      %p181 = scmp.eq.s32.totalorder %s35, 1
      %p182 = por %p180, %p181
      %p183 = scmp.ne.s32.totalorder %s174, %s175
      %p184 = scmp.eq.s32.totalorder %s35, 0
      %p185 = por %p183, %p184
      %p186 = scmp.ne.s32.totalorder %s174, %s175
      %p187 = scmp.eq.s32.totalorder %s36, 1
      %p188 = por %p186, %p187
      %p190 = scmp.ne.s32.totalorder %s175, %s189
      %p191 = scmp.eq.s32.totalorder %s36, 0
      %p192 = por %p190, %p191
      %s194 = sadd.s32 %s193, 1
      %p197 = scmp.eq.s32.totalorder %s30, 1
      %p198 = scmp.ne.s32.totalorder %s193, %s195
      %p199 = scmp.eq.s32.totalorder %s30, 0
      %p200 = por %p198, %p199
      %p201 = scmp.ne.s32.totalorder %s193, %s195
      %p202 = scmp.eq.s32.totalorder %s35, 1
      %p203 = por %p201, %p202
      %p204 = scmp.ne.s32.totalorder %s195, %s196
      %p205 = scmp.eq.s32.totalorder %s35, 0
      %p206 = por %p204, %p205
      %p207 = scmp.ne.s32.totalorder %s195, %s196
      %p208 = scmp.eq.s32.totalorder %s36, 1
      %p209 = por %p207, %p208
      %p211 = scmp.ne.s32.totalorder %s196, %s210
      %p212 = scmp.eq.s32.totalorder %s36, 0
      %p213 = por %p211, %p212
      %s215 = sadd.s32 %s214, 1
      %p218 = scmp.eq.s32.totalorder %s30, 1
      %p219 = scmp.ne.s32.totalorder %s214, %s216
      %p220 = scmp.eq.s32.totalorder %s30, 0
      %p221 = por %p219, %p220
      %p222 = scmp.ne.s32.totalorder %s214, %s216
      %p223 = scmp.eq.s32.totalorder %s35, 1
      %p224 = por %p222, %p223
      %p225 = scmp.ne.s32.totalorder %s216, %s217
      %p226 = scmp.eq.s32.totalorder %s35, 0
      %p227 = por %p225, %p226
      %p228 = scmp.ne.s32.totalorder %s216, %s217
      %p229 = scmp.eq.s32.totalorder %s36, 1
      %p230 = por %p228, %p229
      %p232 = scmp.ne.s32.totalorder %s217, %s231
      %p233 = scmp.eq.s32.totalorder %s36, 0
      %p234 = por %p232, %p233
      %s236 = sadd.s32 %s235, 1
      %p239 = scmp.eq.s32.totalorder %s30, 1
      %p240 = scmp.ne.s32.totalorder %s235, %s237
      %p241 = scmp.eq.s32.totalorder %s30, 0
      %p242 = por %p240, %p241
      %p243 = scmp.ne.s32.totalorder %s235, %s237
      %p244 = scmp.eq.s32.totalorder %s35, 1
      %p245 = por %p243, %p244
      %p246 = scmp.ne.s32.totalorder %s237, %s238
      %p247 = scmp.eq.s32.totalorder %s35, 0
      %p248 = por %p246, %p247
      %p249 = scmp.ne.s32.totalorder %s237, %s238
      %p250 = scmp.eq.s32.totalorder %s36, 1
      %p251 = por %p249, %p250
      %p253 = scmp.ne.s32.totalorder %s238, %s252
      %p254 = scmp.eq.s32.totalorder %s36, 0
      %p255 = por %p253, %p254
      %s257 = sadd.s32 %s256, 1
      %p260 = scmp.eq.s32.totalorder %s30, 1
      %p261 = scmp.ne.s32.totalorder %s256, %s258
      %p262 = scmp.eq.s32.totalorder %s30, 0
      %p263 = por %p261, %p262
      %p264 = scmp.ne.s32.totalorder %s256, %s258
      %p265 = scmp.eq.s32.totalorder %s35, 1
      %p266 = por %p264, %p265
      %p267 = scmp.ne.s32.totalorder %s258, %s259
      %p268 = scmp.eq.s32.totalorder %s35, 0
      %p269 = por %p267, %p268
      %p270 = scmp.ne.s32.totalorder %s258, %s259
      %p271 = scmp.eq.s32.totalorder %s36, 1
      %p272 = por %p270, %p271
      %p274 = scmp.ne.s32.totalorder %s259, %s273
      %p275 = scmp.eq.s32.totalorder %s36, 0
      %p276 = por %p274, %p275
      %s278 = sadd.s32 %s277, 1
      %p281 = scmp.eq.s32.totalorder %s30, 1
      %p282 = scmp.ne.s32.totalorder %s277, %s279
      %p283 = scmp.eq.s32.totalorder %s30, 0
      %p284 = por %p282, %p283
      %p285 = scmp.ne.s32.totalorder %s277, %s279
      %p286 = scmp.eq.s32.totalorder %s35, 1
      %p287 = por %p285, %p286
      %p288 = scmp.ne.s32.totalorder %s279, %s280
      %p289 = scmp.eq.s32.totalorder %s35, 0
      %p290 = por %p288, %p289
      %p291 = scmp.ne.s32.totalorder %s279, %s280
      %p292 = scmp.eq.s32.totalorder %s36, 1
      %p293 = por %p291, %p292
      %p295 = scmp.ne.s32.totalorder %s280, %s294
      %p296 = scmp.eq.s32.totalorder %s36, 0
      %p297 = por %p295, %p296
      %s298 = ssub.s32 %s37, %s49
      %s299 = ssub.s32 %s38, %s45
      %s300 = sor.u32 %s298, %s299
      %p301 = scmp.eq.s32.totalorder %s300, 0
      %s303 = sadd.s32 %s302, 1
      %s304 = scalar_select %p301, %s302, %s303
      %p307 = pneg %p301
      %p308 = scmp.eq.s32.totalorder %s30, 1
      %p309 = por %p307, %p308
      %p310 = scmp.ne.s32.totalorder %s302, %s305
      %p311 = scmp.eq.s32.totalorder %s30, 0
      %p312 = por %p310, %p311
      %p313 = scmp.ne.s32.totalorder %s302, %s305
      %p314 = scmp.eq.s32.totalorder %s35, 1
      %p315 = por %p313, %p314
      %p316 = scmp.ne.s32.totalorder %s305, %s306
      %p317 = scmp.eq.s32.totalorder %s35, 0
      %p318 = por %p316, %p317
      %p319 = scmp.ne.s32.totalorder %s305, %s306
      %p320 = scmp.eq.s32.totalorder %s36, 1
      %p321 = por %p319, %p320
      %p323 = scmp.ne.s32.totalorder %s306, %s322
      %p324 = scmp.eq.s32.totalorder %s36, 0
      %p325 = por %p323, %p324
      %p326 = scmp.le.s32.totalorder 1, %s30
      %p327 = scmp.lt.s32.totalorder %s30, 3
      %p328 = pnand %p326, %p327
      %p329 = pneg %p328
      // Predicated region
      $region9: #{seq2seq_forward.11} parent=5 // pred_check
        _
      $region10: #{seq2seq_forward.11} parent=5 // pred_check_branch
        %331 = sbr.rel (%p328) target = $region12
      $region11: #{seq2seq_forward.11} parent=5 // pred_region
        %s332 = ssub.s32 %s30, 1
        // Predicated region
        $region13: #{seq2seq_forward.11} parent=11 // pred_check
          %p333 = pneg %p143
        $region14: #{seq2seq_forward.11} parent=11 // pred_check_branch
          %335 = sbr.rel (%p333) target = $region16
        $region15: #{seq2seq_forward.11} parent=11 // pred_region
          %s337 = ssub.s32 256, 256
          %338 = vsyncadd [#allocation9], %s337
          %s339 = sshll.u32 [#allocation8], 4
          %s340 = int_to_ptr.vmem [resolvable:$true] %s339
          %345 = dma.hbm_to_vmem [thread:$0]  %s3, 256, %s340, [#allocation9], 64, 64, 4
        $region16: #{seq2seq_forward.11} parent=11 // pred_fallthru
          _
        // Predicated region
        $region17: #{seq2seq_forward.11} parent=11 // pred_check
          %p346 = pneg %p164
        $region18: #{seq2seq_forward.11} parent=11 // pred_check_branch
          %348 = sbr.rel (%p346) target = $region20
        $region19: #{seq2seq_forward.11} parent=11 // pred_region
          %s350 = ssub.s32 16, 16
          %351 = vsyncadd [#allocation9], %s350
          %s353 = sshll.u32 [#allocation10], 4
          %s354 = int_to_ptr.vmem [resolvable:$true] %s353
          %356 = dma.hbm_to_vmem [thread:$0]  %s4, 16, %s354, [#allocation9]
        $region20: #{seq2seq_forward.11} parent=11 // pred_fallthru
          _
        // Predicated region
        $region21: #{seq2seq_forward.11} parent=11 // pred_check
          %p357 = pneg %p185
        $region22: #{seq2seq_forward.11} parent=11 // pred_check_branch
          %359 = sbr.rel (%p357) target = $region24
        $region23: #{seq2seq_forward.11} parent=11 // pred_region
          %s361 = ssub.s32 256, 256
          %362 = vsyncadd [#allocation12], %s361
          %s363 = sshll.u32 [#allocation11], 4
          %s364 = int_to_ptr.vmem [resolvable:$true] %s363
          %369 = dma.hbm_to_vmem [thread:$0]  %s5, 256, %s364, [#allocation12], 64, 64, 4
        $region24: #{seq2seq_forward.11} parent=11 // pred_fallthru
          _
        // Predicated region
        $region25: #{seq2seq_forward.11} parent=11 // pred_check
          %p370 = pneg %p206
        $region26: #{seq2seq_forward.11} parent=11 // pred_check_branch
          %372 = sbr.rel (%p370) target = $region28
        $region27: #{seq2seq_forward.11} parent=11 // pred_region
          %s374 = ssub.s32 16, 16
          %375 = vsyncadd [#allocation12], %s374
          %s377 = sshll.u32 [#allocation13], 4
          %s378 = int_to_ptr.vmem [resolvable:$true] %s377
          %380 = dma.hbm_to_vmem [thread:$0]  %s6, 16, %s378, [#allocation12]
        $region28: #{seq2seq_forward.11} parent=11 // pred_fallthru
          _
        // Predicated region
        $region29: #{seq2seq_forward.11} parent=11 // pred_check
          %p381 = pneg %p227
        $region30: #{seq2seq_forward.11} parent=11 // pred_check_branch
          %383 = sbr.rel (%p381) target = $region32
        $region31: #{seq2seq_forward.11} parent=11 // pred_region
          %s385 = ssub.s32 256, 256
          %386 = vsyncadd [#allocation15], %s385
          %s387 = sshll.u32 [#allocation14], 4
          %s388 = int_to_ptr.vmem [resolvable:$true] %s387
          %393 = dma.hbm_to_vmem [thread:$0]  %s7, 256, %s388, [#allocation15], 64, 64, 4
        $region32: #{seq2seq_forward.11} parent=11 // pred_fallthru
          _
        // Predicated region
        $region33: #{seq2seq_forward.11} parent=11 // pred_check
          %p394 = pneg %p248
        $region34: #{seq2seq_forward.11} parent=11 // pred_check_branch
          %396 = sbr.rel (%p394) target = $region36
        $region35: #{seq2seq_forward.11} parent=11 // pred_region
          %s398 = ssub.s32 16, 16
          %399 = vsyncadd [#allocation15], %s398
          %s401 = sshll.u32 [#allocation16], 4
          %s402 = int_to_ptr.vmem [resolvable:$true] %s401
          %404 = dma.hbm_to_vmem [thread:$0]  %s8, 16, %s402, [#allocation15]
        $region36: #{seq2seq_forward.11} parent=11 // pred_fallthru
          _
        // Predicated region
        $region37: #{seq2seq_forward.11} parent=11 // pred_check
          %p405 = pneg %p269
        $region38: #{seq2seq_forward.11} parent=11 // pred_check_branch
          %407 = sbr.rel (%p405) target = $region40
        $region39: #{seq2seq_forward.11} parent=11 // pred_region
          %s409 = ssub.s32 16, 16
          %410 = vsyncadd [#allocation18], %s409
          %s412 = sshll.u32 [#allocation17], 4
          %s413 = int_to_ptr.vmem [resolvable:$true] %s412
          %415 = dma.hbm_to_vmem [thread:$0]  %s9, 16, %s413, [#allocation18]
        $region40: #{seq2seq_forward.11} parent=11 // pred_fallthru
          _
        // Predicated region
        $region41: #{seq2seq_forward.11} parent=11 // pred_check
          %p416 = pneg %p290
        $region42: #{seq2seq_forward.11} parent=11 // pred_check_branch
          %418 = sbr.rel (%p416) target = $region44
        $region43: #{seq2seq_forward.11} parent=11 // pred_region
          %s420 = ssub.s32 16, 16
          %421 = vsyncadd [#allocation18], %s420
          %s423 = sshll.u32 [#allocation19], 4
          %s424 = int_to_ptr.vmem [resolvable:$true] %s423
          %426 = dma.hbm_to_vmem [thread:$0]  %s10, 16, %s424, [#allocation18]
        $region44: #{seq2seq_forward.11} parent=11 // pred_fallthru
          _
      $region12: #{seq2seq_forward.11} parent=5 // pred_fallthru
        _
      %p427 = scmp.lt.s32.totalorder %s30, 2
      // Predicated region
      $region45: #{seq2seq_forward.11} parent=5 // pred_check
        %p428 = pneg %p427
      $region46: #{seq2seq_forward.11} parent=5 // pred_check_branch
        %430 = sbr.rel (%p428) target = $region48
      $region47: #{seq2seq_forward.11} parent=5 // pred_region
        // Predicated region
        $region49: #{seq2seq_forward.11} parent=47 // pred_check
          %p431 = pneg %p64
        $region50: #{seq2seq_forward.11} parent=47 // pred_check_branch
          %433 = sbr.rel (%p431) target = $region52
        $region51: #{seq2seq_forward.11} parent=47 // pred_region
          %s434 = sand.u32 %s54, 1
          %s435 = scalar_lea.sflag [#allocation3], %s434
          %s436 = sand.u32 %s54, 1
          %s437 = smul.addr %s436, 4
          %s438 = scalar_lea.vmem [#allocation2], %s437
          %s440 = ssub.s32 64, 64
          %441 = vsyncadd %s435, %s440
          %s442 = sadd.s32 %s38, %s37
          %s443 = smul.addr %s442, 64
          %s444 = scalar_lea.hbm %s0, %s443
          %s446 = sshll.u32 %s438, 4
          %s447 = int_to_ptr.vmem [resolvable:$true] %s446
          %449 = dma.hbm_to_vmem [thread:$0]  %s444, 64, %s447, %s435
        $region52: #{seq2seq_forward.11} parent=47 // pred_fallthru
          _
        // Predicated region
        $region53: #{seq2seq_forward.11} parent=47 // pred_check
          %p450 = pneg %p90
        $region54: #{seq2seq_forward.11} parent=47 // pred_check_branch
          %452 = sbr.rel (%p450) target = $region56
        $region55: #{seq2seq_forward.11} parent=47 // pred_region
          %s453 = sand.u32 %s30, 1
          %s454 = scalar_lea.sflag [#allocation6], %s453
          %s455 = sand.u32 %s80, 1
          %s456 = smul.addr %s455, 4
          %s457 = scalar_lea.vmem [#allocation5], %s456
          %s459 = ssub.s32 64, 64
          %460 = vsyncadd %s454, %s459
          %s461 = smul.addr %s37, 64
          %s462 = scalar_lea.hbm %s1, %s461
          %s464 = sshll.u32 %s457, 4
          %s465 = int_to_ptr.vmem [resolvable:$true] %s464
          %467 = dma.hbm_to_vmem [thread:$0]  %s462, 64, %s465, %s454
        $region56: #{seq2seq_forward.11} parent=47 // pred_fallthru
          _
        // Predicated region
        $region57: #{seq2seq_forward.11} parent=47 // pred_check
          %p468 = pneg %p116
        $region58: #{seq2seq_forward.11} parent=47 // pred_check_branch
          %470 = sbr.rel (%p468) target = $region60
        $region59: #{seq2seq_forward.11} parent=47 // pred_region
          %s471 = sand.u32 %s30, 1
          %s472 = scalar_lea.sflag [#allocation6], %s471
          %s473 = sand.u32 %s106, 1
          %s474 = scalar_lea.vmem [#allocation7], %s473
          %s476 = ssub.s32 16, 16
          %477 = vsyncadd %s472, %s476
          %s478 = smul.addr %s37, 16
          %s479 = scalar_lea.hbm %s2, %s478
          %s481 = sshll.u32 %s474, 4
          %s482 = int_to_ptr.vmem [resolvable:$true] %s481
          %484 = dma.hbm_to_vmem [thread:$0]  %s479, 16, %s482, %s472
        $region60: #{seq2seq_forward.11} parent=47 // pred_fallthru
          _
      $region48: #{seq2seq_forward.11} parent=5 // pred_fallthru
        _
      %p485 = scmp.le.s32.totalorder 1, %s30
      %p486 = scmp.lt.s32.totalorder %s30, 3
      %p487 = pnand %p485, %p486
      %p488 = pneg %p487
      // Predicated region
      $region61: #{seq2seq_forward.11} parent=5 // pred_check
        _
      $region62: #{seq2seq_forward.11} parent=5 // pred_check_branch
        %490 = sbr.rel (%p487) target = $region64
      $region63: #{seq2seq_forward.11} parent=5 // pred_region
        %s491 = ssub.s32 %s30, 1
        %s492 = sand.u32 %s57, 1
        %s493 = scalar_lea.sflag [#allocation3], %s492
        %s494 = sand.u32 %s57, 1
        %s495 = smul.addr %s494, 4
        %s496 = scalar_lea.vmem [#allocation2], %s495
        // Predicated region
        $region65: #{seq2seq_forward.11} parent=63 // pred_check
          %p497 = pneg %p70
        $region66: #{seq2seq_forward.11} parent=63 // pred_check_branch
          %499 = sbr.rel (%p497) target = $region68
        $region67: #{seq2seq_forward.11} parent=63 // pred_region
          %500 = dma.done %s493, 64
        $region68: #{seq2seq_forward.11} parent=63 // pred_fallthru
          _
        %s501 = sand.u32 %s35, 1
        %s502 = scalar_lea.sflag [#allocation6], %s501
        %s503 = sand.u32 %s83, 1
        %s504 = smul.addr %s503, 4
        %s505 = scalar_lea.vmem [#allocation5], %s504
        // Predicated region
        $region69: #{seq2seq_forward.11} parent=63 // pred_check
          %p506 = pneg %p96
        $region70: #{seq2seq_forward.11} parent=63 // pred_check_branch
          %508 = sbr.rel (%p506) target = $region72
        $region71: #{seq2seq_forward.11} parent=63 // pred_region
          %509 = dma.done %s502, 64
        $region72: #{seq2seq_forward.11} parent=63 // pred_fallthru
          _
        %s510 = sand.u32 %s35, 1
        %s511 = scalar_lea.sflag [#allocation6], %s510
        %s512 = sand.u32 %s109, 1
        %s513 = scalar_lea.vmem [#allocation7], %s512
        // Predicated region
        $region73: #{seq2seq_forward.11} parent=63 // pred_check
          %p514 = pneg %p122
        $region74: #{seq2seq_forward.11} parent=63 // pred_check_branch
          %516 = sbr.rel (%p514) target = $region76
        $region75: #{seq2seq_forward.11} parent=63 // pred_region
          %517 = dma.done %s511, 16
        $region76: #{seq2seq_forward.11} parent=63 // pred_fallthru
          _
        // Predicated region
        $region77: #{seq2seq_forward.11} parent=63 // pred_check
          %p518 = pneg %p143
        $region78: #{seq2seq_forward.11} parent=63 // pred_check_branch
          %520 = sbr.rel (%p518) target = $region80
        $region79: #{seq2seq_forward.11} parent=63 // pred_region
          %521 = dma.done [#allocation9], 256
        $region80: #{seq2seq_forward.11} parent=63 // pred_fallthru
          _
        // Predicated region
        $region81: #{seq2seq_forward.11} parent=63 // pred_check
          %p522 = pneg %p164
        $region82: #{seq2seq_forward.11} parent=63 // pred_check_branch
          %524 = sbr.rel (%p522) target = $region84
        $region83: #{seq2seq_forward.11} parent=63 // pred_region
          %525 = dma.done [#allocation9], 16
        $region84: #{seq2seq_forward.11} parent=63 // pred_fallthru
          _
        // Predicated region
        $region85: #{seq2seq_forward.11} parent=63 // pred_check
          %p526 = pneg %p185
        $region86: #{seq2seq_forward.11} parent=63 // pred_check_branch
          %528 = sbr.rel (%p526) target = $region88
        $region87: #{seq2seq_forward.11} parent=63 // pred_region
          %529 = dma.done [#allocation12], 256
        $region88: #{seq2seq_forward.11} parent=63 // pred_fallthru
          _
        // Predicated region
        $region89: #{seq2seq_forward.11} parent=63 // pred_check
          %p530 = pneg %p206
        $region90: #{seq2seq_forward.11} parent=63 // pred_check_branch
          %532 = sbr.rel (%p530) target = $region92
        $region91: #{seq2seq_forward.11} parent=63 // pred_region
          %533 = dma.done [#allocation12], 16
        $region92: #{seq2seq_forward.11} parent=63 // pred_fallthru
          _
        // Predicated region
        $region93: #{seq2seq_forward.11} parent=63 // pred_check
          %p534 = pneg %p227
        $region94: #{seq2seq_forward.11} parent=63 // pred_check_branch
          %536 = sbr.rel (%p534) target = $region96
        $region95: #{seq2seq_forward.11} parent=63 // pred_region
          %537 = dma.done [#allocation15], 256
        $region96: #{seq2seq_forward.11} parent=63 // pred_fallthru
          _
        // Predicated region
        $region97: #{seq2seq_forward.11} parent=63 // pred_check
          %p538 = pneg %p248
        $region98: #{seq2seq_forward.11} parent=63 // pred_check_branch
          %540 = sbr.rel (%p538) target = $region100
        $region99: #{seq2seq_forward.11} parent=63 // pred_region
          %541 = dma.done [#allocation15], 16
        $region100: #{seq2seq_forward.11} parent=63 // pred_fallthru
          _
        // Predicated region
        $region101: #{seq2seq_forward.11} parent=63 // pred_check
          %p542 = pneg %p269
        $region102: #{seq2seq_forward.11} parent=63 // pred_check_branch
          %544 = sbr.rel (%p542) target = $region104
        $region103: #{seq2seq_forward.11} parent=63 // pred_region
          %545 = dma.done [#allocation18], 16
        $region104: #{seq2seq_forward.11} parent=63 // pred_fallthru
          _
        // Predicated region
        $region105: #{seq2seq_forward.11} parent=63 // pred_check
          %p546 = pneg %p290
        $region106: #{seq2seq_forward.11} parent=63 // pred_check_branch
          %548 = sbr.rel (%p546) target = $region108
        $region107: #{seq2seq_forward.11} parent=63 // pred_region
          %549 = dma.done [#allocation18], 16
        $region108: #{seq2seq_forward.11} parent=63 // pred_fallthru
          _
        %s550 = sand.u32 %s57, 1
        %s551 = scalar_lea.sflag [#allocation3], %s550
        %s552 = sand.u32 %s57, 1
        %s553 = smul.addr %s552, 4
        %s554 = scalar_lea.vmem [#allocation2], %s553
        %p555 = pneg %p70
        %p556 = pneg %p67
        %s557 = sand.u32 %s35, 1
        %s558 = scalar_lea.sflag [#allocation6], %s557
        %s559 = sand.u32 %s83, 1
        %s560 = smul.addr %s559, 4
        %s561 = scalar_lea.vmem [#allocation5], %s560
        %p562 = pneg %p96
        %p563 = pneg %p93
        %s564 = sand.u32 %s35, 1
        %s565 = scalar_lea.sflag [#allocation6], %s564
        %s566 = sand.u32 %s109, 1
        %s567 = scalar_lea.vmem [#allocation7], %s566
        %p568 = pneg %p122
        %p569 = pneg %p119
        %p570 = pneg %p143
        %p571 = pneg %p140
        %p572 = pneg %p164
        %p573 = pneg %p161
        %p574 = pneg %p185
        %p575 = pneg %p182
        %p576 = pneg %p206
        %p577 = pneg %p203
        %p578 = pneg %p227
        %p579 = pneg %p224
        %p580 = pneg %p248
        %p581 = pneg %p245
        %p582 = pneg %p269
        %p583 = pneg %p266
        %p584 = pneg %p290
        %p585 = pneg %p287
        %p586 = pneg %p318
        %p587 = pneg %p315
        %s588 = sand.u32 %s305, 1
        %s589 = scalar_lea.sflag [#allocation4], %s588
        %s590 = sand.u32 %s305, 1
        %s591 = smul.addr %s590, 4
        %s592 = scalar_lea.vmem [#allocation20], %s591
        %v594 = vld [vmem:[%s496] sm:$0xf]
        %v595 = vld [vmem:[%s505] sm:$0xf]
        %v596 = vld [vmem:[%s513] sm:$0x1]
        %v597 = vld [vmem:[#allocation8] sm:$0xf]
        %v598 = vld [vmem:[#allocation8 + $0x4] sm:$0xf]
        %v599 = vld [vmem:[#allocation8 + $0x8] sm:$0xf]
        %v600 = vld [vmem:[#allocation8 + $0xc] sm:$0xf]
        %v601 = vld [vmem:[#allocation10] sm:$0x1]
        %v602 = vld [vmem:[#allocation11] sm:$0xf]
        %v603 = vld [vmem:[#allocation11 + $0x4] sm:$0xf]
        %v604 = vld [vmem:[#allocation11 + $0x8] sm:$0xf]
        %v605 = vld [vmem:[#allocation11 + $0xc] sm:$0xf]
        %v606 = vld [vmem:[#allocation13] sm:$0x1]
        %v607 = vld [vmem:[#allocation14] sm:$0xf]
        %v608 = vld [vmem:[#allocation14 + $0x4] sm:$0xf]
        %v609 = vld [vmem:[#allocation14 + $0x8] sm:$0xf]
        %v610 = vld [vmem:[#allocation14 + $0xc] sm:$0xf]
        %v611 = vld [vmem:[#allocation16] sm:$0x1]
        %v612 = vld [vmem:[#allocation17] sm:$0x1]
        %v613 = vld [vmem:[#allocation19] sm:$0x1]
        %v615 = vlaneseq
        %v616 = vshrl.u32 %v615, 7
        %v617 = vsub.s32 0, %v616
        %v618 = vrot.slane %v601, %v617
        %v624 = vunpack.c.l.b16 %v597
        %v625 = vunpack.c.l.b16 %v598
        %v626 = vunpack.c.l.b16 %v599
        %v627 = vunpack.c.l.b16 %v600
        %v628 = vpack.c.b16 %v625, %v624
        %v629 = vpack.c.b16 %v627, %v626
        %vm632 = vcmask 261120
        %v634 = vsel %vm632, %v594, 0
        %636 = vmatprep.subr.bf16.mxu0 0
        %637 = vmatpush1.bf16.msra.mxu0 %v628
        %638 = vmatprep.subr.bf16.mxu0 0
        %639 = vmatpush1.bf16.msra.mxu0 %v629
        %640 = vmatprep.subr.bf16.mxu0 0
        %641 = vmatpush1.bf16.msra.mxu0 0
        %642 = vmatprep.subr.bf16.mxu0 0
        %643 = vmatpush1.bf16.msra.mxu0 0
        %644 = vmatprep.subr.bf16.mxu0 0
        %645 = vmatpush1.bf16.msra.mxu0 0
        %646 = vmatprep.subr.bf16.mxu0 0
        %647 = vmatpush1.bf16.msra.mxu0 0
        %648 = vmatprep.subr.bf16.mxu0 0
        %649 = vmatpush1.bf16.msra.mxu0 0
        %650 = vmatprep.subr.bf16.mxu0 0
        %651 = vmatpush1.bf16.msra.mxu0 0
        %652 = vmatprep.subr.bf16.mxu0 0
        %653 = vmatpush1.bf16.msra.mxu0 0
        %654 = vmatprep.subr.bf16.mxu0 0
        %655 = vmatpush1.bf16.msra.mxu0 0
        %656 = vmatprep.subr.bf16.mxu0 0
        %657 = vmatpush1.bf16.msra.mxu0 0
        %658 = vmatprep.subr.bf16.mxu0 0
        %659 = vmatpush1.bf16.msra.mxu0 0
        %660 = vmatprep.subr.bf16.mxu0 0
        %661 = vmatpush1.bf16.msra.mxu0 0
        %662 = vmatprep.subr.bf16.mxu0 0
        %663 = vmatpush1.bf16.msra.mxu0 0
        %664 = vmatprep.subr.bf16.mxu0 0
        %665 = vmatpush1.bf16.msra.mxu0 0
        %666 = vmatprep.subr.bf16.mxu0 0
        %667 = vmatpush1.bf16.msra.mxu0 0
        %668 = vmatprep.mubr.bf16.mxu0 0
        %669 = vmatmul.mubr.bf16.gmra.mrb[0].mxu0 %v634
        %v670 = vpop.f32.mrb[0].mxu0
        %v671 = vadd.f32 %v618, %v670
        %v672 = vpop.f32.mrb[0].mxu0
        %v673 = vpop.f32.mrb[0].mxu0
        %v674 = vpop.f32.mrb[0].mxu0
        %675 = vdwg.mxu0
        %v677 = vlaneseq
        %v678 = vshrl.u32 %v677, 7
        %v679 = vsub.s32 0, %v678
        %v680 = vrot.slane %v606, %v679
        %v686 = vunpack.c.l.b16 %v602
        %v687 = vunpack.c.l.b16 %v603
        %v688 = vunpack.c.l.b16 %v604
        %v689 = vunpack.c.l.b16 %v605
        %v690 = vpack.c.b16 %v687, %v686
        %v691 = vpack.c.b16 %v689, %v688
        %v695 = vsel %vm632, %v595, 0
        %697 = vmatprep.subr.bf16.mxu0 0
        %698 = vmatpush1.bf16.msra.mxu0 %v690
        %699 = vmatprep.subr.bf16.mxu0 0
        %700 = vmatpush1.bf16.msra.mxu0 %v691
        %701 = vmatprep.subr.bf16.mxu0 0
        %702 = vmatpush1.bf16.msra.mxu0 0
        %703 = vmatprep.subr.bf16.mxu0 0
        %704 = vmatpush1.bf16.msra.mxu0 0
        %705 = vmatprep.subr.bf16.mxu0 0
        %706 = vmatpush1.bf16.msra.mxu0 0
        %707 = vmatprep.subr.bf16.mxu0 0
        %708 = vmatpush1.bf16.msra.mxu0 0
        %709 = vmatprep.subr.bf16.mxu0 0
        %710 = vmatpush1.bf16.msra.mxu0 0
        %711 = vmatprep.subr.bf16.mxu0 0
        %712 = vmatpush1.bf16.msra.mxu0 0
        %713 = vmatprep.subr.bf16.mxu0 0
        %714 = vmatpush1.bf16.msra.mxu0 0
        %715 = vmatprep.subr.bf16.mxu0 0
        %716 = vmatpush1.bf16.msra.mxu0 0
        %717 = vmatprep.subr.bf16.mxu0 0
        %718 = vmatpush1.bf16.msra.mxu0 0
        %719 = vmatprep.subr.bf16.mxu0 0
        %720 = vmatpush1.bf16.msra.mxu0 0
        %721 = vmatprep.subr.bf16.mxu0 0
        %722 = vmatpush1.bf16.msra.mxu0 0
        %723 = vmatprep.subr.bf16.mxu0 0
        %724 = vmatpush1.bf16.msra.mxu0 0
        %725 = vmatprep.subr.bf16.mxu0 0
        %726 = vmatpush1.bf16.msra.mxu0 0
        %727 = vmatprep.subr.bf16.mxu0 0
        %728 = vmatpush1.bf16.msra.mxu0 0
        %729 = vmatprep.mubr.bf16.mxu0 0
        %730 = vmatmul.mubr.bf16.gmra.mrb[0].mxu0 %v695
        %v731 = vpop.f32.mrb[0].mxu0
        %v732 = vadd.f32 %v680, %v731
        %v733 = vpop.f32.mrb[0].mxu0
        %v734 = vpop.f32.mrb[0].mxu0
        %v735 = vpop.f32.mrb[0].mxu0
        %736 = vdwg.mxu0
        %v737 = vmul.f32 %v671, 0.35355338
        %v738 = vpack.c.bf16 %v737, %v737
        %v739 = vpack.c.bf16 %v732, %v732
        %v741 = vlaneseq
        %v742 = vshrl.u32 %v741, 7
        %v743 = vsub.s32 0, %v742
        %v744 = vrot.slane %v596, %v743
        %vm746 = vcmask 64512
        %v748 = vsel %vm746, %v738, 0
        %v751 = vsel %vm746, %v739, 0
        %753 = vmatprep.subr.bf16.mxu0 0
        %754 = vmatpush1.bf16.xpose.msra.mxu0 %v751
        %755 = vmatprep.subr.bf16.mxu0 0
        %756 = vmatpush1.bf16.xpose.msra.mxu0 0
        %757 = vmatprep.subr.bf16.mxu0 0
        %758 = vmatpush1.bf16.xpose.msra.mxu0 0
        %759 = vmatprep.subr.bf16.mxu0 0
        %760 = vmatpush1.bf16.xpose.msra.mxu0 0
        %761 = vmatprep.subr.bf16.mxu0 0
        %762 = vmatpush1.bf16.xpose.msra.mxu0 0
        %763 = vmatprep.subr.bf16.mxu0 0
        %764 = vmatpush1.bf16.xpose.msra.mxu0 0
        %765 = vmatprep.subr.bf16.mxu0 0
        %766 = vmatpush1.bf16.xpose.msra.mxu0 0
        %767 = vmatprep.subr.bf16.mxu0 0
        %768 = vmatpush1.bf16.xpose.msra.mxu0 0
        %769 = vmatprep.subr.bf16.mxu0 0
        %770 = vmatpush1.bf16.xpose.msra.mxu0 0
        %771 = vmatprep.subr.bf16.mxu0 0
        %772 = vmatpush1.bf16.xpose.msra.mxu0 0
        %773 = vmatprep.subr.bf16.mxu0 0
        %774 = vmatpush1.bf16.xpose.msra.mxu0 0
        %775 = vmatprep.subr.bf16.mxu0 0
        %776 = vmatpush1.bf16.xpose.msra.mxu0 0
        %777 = vmatprep.subr.bf16.mxu0 0
        %778 = vmatpush1.bf16.xpose.msra.mxu0 0
        %779 = vmatprep.subr.bf16.mxu0 0
        %780 = vmatpush1.bf16.xpose.msra.mxu0 0
        %781 = vmatprep.subr.bf16.mxu0 0
        %782 = vmatpush1.bf16.xpose.msra.mxu0 0
        %783 = vmatprep.subr.bf16.mxu0 0
        %784 = vmatpush1.bf16.xpose.msra.mxu0 0
        %785 = vmatprep.mubr.bf16.mxu0 0
        %786 = vmatmul.mubr.bf16.gmra.mrb[0].mxu0 %v748
        %v787 = vpop.f32.mrb[0].mxu0
        %v788 = vadd.f32 %v744, %v787
        %v789 = vpop.f32.mrb[0].mxu0
        %v790 = vpop.f32.mrb[0].mxu0
        %v791 = vpop.f32.mrb[0].mxu0
        %792 = vdwg.mxu0
        %v793 = vsel %vm746, %v788, -inf
        %794 = vmax.xlane.f32.xlu0 %v793
        %v795 = vpop.xlane.xlu0 %794
        %v796 = vsub.f32 %v788, %v795
        %v797 = vmul.f32 %v796, 1.442695
        %v798 = vpow.pop %v797
        %v799 = vsel %vm746, %v798, 0.0
        %800 = vadd.xlane.f32.xlu0 %v799
        %v801 = vpop.xlane.xlu0 %800
        %v802 = vrcp.pop %v801
        %v803 = vmul.f32 %v798, %v802
        %v804 = vpack.c.bf16 %v803, %v803
        %806 = vrot.lane.b32.xlu0 %v739, 96
        %v807 = vpop.permute.xlu0 %806
        %v809 = vsel %vm746, %v804, 0
        %vm811 = vcmask 1043456
        %v813 = vsel %vm811, %v807, 0
        %815 = vmatprep.subr.bf16.mxu0 0
        %816 = vmatpush1.bf16.msra.mxu0 %v813
        %817 = vmatprep.subr.bf16.mxu0 0
        %818 = vmatpush1.bf16.msra.mxu0 0
        %819 = vmatprep.subr.bf16.mxu0 0
        %820 = vmatpush1.bf16.msra.mxu0 0
        %821 = vmatprep.subr.bf16.mxu0 0
        %822 = vmatpush1.bf16.msra.mxu0 0
        %823 = vmatprep.subr.bf16.mxu0 0
        %824 = vmatpush1.bf16.msra.mxu0 0
        %825 = vmatprep.subr.bf16.mxu0 0
        %826 = vmatpush1.bf16.msra.mxu0 0
        %827 = vmatprep.subr.bf16.mxu0 0
        %828 = vmatpush1.bf16.msra.mxu0 0
        %829 = vmatprep.subr.bf16.mxu0 0
        %830 = vmatpush1.bf16.msra.mxu0 0
        %831 = vmatprep.subr.bf16.mxu0 0
        %832 = vmatpush1.bf16.msra.mxu0 0
        %833 = vmatprep.subr.bf16.mxu0 0
        %834 = vmatpush1.bf16.msra.mxu0 0
        %835 = vmatprep.subr.bf16.mxu0 0
        %836 = vmatpush1.bf16.msra.mxu0 0
        %837 = vmatprep.subr.bf16.mxu0 0
        %838 = vmatpush1.bf16.msra.mxu0 0
        %839 = vmatprep.subr.bf16.mxu0 0
        %840 = vmatpush1.bf16.msra.mxu0 0
        %841 = vmatprep.subr.bf16.mxu0 0
        %842 = vmatpush1.bf16.msra.mxu0 0
        %843 = vmatprep.subr.bf16.mxu0 0
        %844 = vmatpush1.bf16.msra.mxu0 0
        %845 = vmatprep.subr.bf16.mxu0 0
        %846 = vmatpush1.bf16.msra.mxu0 0
        %847 = vmatprep.mubr.bf16.mxu0 0
        %848 = vmatmul.mubr.bf16.gmra.mrb[0].mxu0 %v809
        %v849 = vpop.f32.mrb[0].mxu0
        %v850 = vadd.f32 0.0, %v849
        %v851 = vpop.f32.mrb[0].mxu0
        %v852 = vpop.f32.mrb[0].mxu0
        %v853 = vpop.f32.mrb[0].mxu0
        %854 = vdwg.mxu0
        %v855 = vpack.c.bf16 %v850, %v850
        %857 = vrot.lane.b32.xlu0 %v738, 120
        %v858 = vpop.permute.xlu0 %857
        %859 = vrot.lane.b32.xlu0 %v739, 120
        %v860 = vpop.permute.xlu0 %859
        %v862 = vsel %vm746, %v858, 0
        %v865 = vsel %vm746, %v860, 0
        %867 = vmatprep.subr.bf16.mxu0 0
        %868 = vmatpush1.bf16.xpose.msra.mxu0 %v865
        %869 = vmatprep.subr.bf16.mxu0 0
        %870 = vmatpush1.bf16.xpose.msra.mxu0 0
        %871 = vmatprep.subr.bf16.mxu0 0
        %872 = vmatpush1.bf16.xpose.msra.mxu0 0
        %873 = vmatprep.subr.bf16.mxu0 0
        %874 = vmatpush1.bf16.xpose.msra.mxu0 0
        %875 = vmatprep.subr.bf16.mxu0 0
        %876 = vmatpush1.bf16.xpose.msra.mxu0 0
        %877 = vmatprep.subr.bf16.mxu0 0
        %878 = vmatpush1.bf16.xpose.msra.mxu0 0
        %879 = vmatprep.subr.bf16.mxu0 0
        %880 = vmatpush1.bf16.xpose.msra.mxu0 0
        %881 = vmatprep.subr.bf16.mxu0 0
        %882 = vmatpush1.bf16.xpose.msra.mxu0 0
        %883 = vmatprep.subr.bf16.mxu0 0
        %884 = vmatpush1.bf16.xpose.msra.mxu0 0
        %885 = vmatprep.subr.bf16.mxu0 0
        %886 = vmatpush1.bf16.xpose.msra.mxu0 0
        %887 = vmatprep.subr.bf16.mxu0 0
        %888 = vmatpush1.bf16.xpose.msra.mxu0 0
        %889 = vmatprep.subr.bf16.mxu0 0
        %890 = vmatpush1.bf16.xpose.msra.mxu0 0
        %891 = vmatprep.subr.bf16.mxu0 0
        %892 = vmatpush1.bf16.xpose.msra.mxu0 0
        %893 = vmatprep.subr.bf16.mxu0 0
        %894 = vmatpush1.bf16.xpose.msra.mxu0 0
        %895 = vmatprep.subr.bf16.mxu0 0
        %896 = vmatpush1.bf16.xpose.msra.mxu0 0
        %897 = vmatprep.subr.bf16.mxu0 0
        %898 = vmatpush1.bf16.xpose.msra.mxu0 0
        %899 = vmatprep.mubr.bf16.mxu0 0
        %900 = vmatmul.mubr.bf16.gmra.mrb[0].mxu0 %v862
        %v901 = vpop.f32.mrb[0].mxu0
        %v902 = vadd.f32 %v744, %v901
        %v903 = vpop.f32.mrb[0].mxu0
        %v904 = vpop.f32.mrb[0].mxu0
        %v905 = vpop.f32.mrb[0].mxu0
        %906 = vdwg.mxu0
        %v907 = vsel %vm746, %v902, -inf
        %908 = vmax.xlane.f32.xlu0 %v907
        %v909 = vpop.xlane.xlu0 %908
        %v910 = vsub.f32 %v902, %v909
        %v911 = vmul.f32 %v910, 1.442695
        %v912 = vpow.pop %v911
        %v913 = vsel %vm746, %v912, 0.0
        %914 = vadd.xlane.f32.xlu0 %v913
        %v915 = vpop.xlane.xlu0 %914
        %v916 = vrcp.pop %v915
        %v917 = vmul.f32 %v912, %v916
        %v918 = vpack.c.bf16 %v917, %v917
        %919 = vrot.lane.b32.xlu0 %v739, 88
        %v920 = vpop.permute.xlu0 %919
        %v922 = vsel %vm746, %v918, 0
        %v925 = vsel %vm811, %v920, 0
        %927 = vmatprep.subr.bf16.mxu0 0
        %928 = vmatpush1.bf16.msra.mxu0 %v925
        %929 = vmatprep.subr.bf16.mxu0 0
        %930 = vmatpush1.bf16.msra.mxu0 0
        %931 = vmatprep.subr.bf16.mxu0 0
        %932 = vmatpush1.bf16.msra.mxu0 0
        %933 = vmatprep.subr.bf16.mxu0 0
        %934 = vmatpush1.bf16.msra.mxu0 0
        %935 = vmatprep.subr.bf16.mxu0 0
        %936 = vmatpush1.bf16.msra.mxu0 0
        %937 = vmatprep.subr.bf16.mxu0 0
        %938 = vmatpush1.bf16.msra.mxu0 0
        %939 = vmatprep.subr.bf16.mxu0 0
        %940 = vmatpush1.bf16.msra.mxu0 0
        %941 = vmatprep.subr.bf16.mxu0 0
        %942 = vmatpush1.bf16.msra.mxu0 0
        %943 = vmatprep.subr.bf16.mxu0 0
        %944 = vmatpush1.bf16.msra.mxu0 0
        %945 = vmatprep.subr.bf16.mxu0 0
        %946 = vmatpush1.bf16.msra.mxu0 0
        %947 = vmatprep.subr.bf16.mxu0 0
        %948 = vmatpush1.bf16.msra.mxu0 0
        %949 = vmatprep.subr.bf16.mxu0 0
        %950 = vmatpush1.bf16.msra.mxu0 0
        %951 = vmatprep.subr.bf16.mxu0 0
        %952 = vmatpush1.bf16.msra.mxu0 0
        %953 = vmatprep.subr.bf16.mxu0 0
        %954 = vmatpush1.bf16.msra.mxu0 0
        %955 = vmatprep.subr.bf16.mxu0 0
        %956 = vmatpush1.bf16.msra.mxu0 0
        %957 = vmatprep.subr.bf16.mxu0 0
        %958 = vmatpush1.bf16.msra.mxu0 0
        %959 = vmatprep.mubr.bf16.mxu0 0
        %960 = vmatmul.mubr.bf16.gmra.mrb[0].mxu0 %v922
        %v961 = vpop.f32.mrb[0].mxu0
        %v962 = vadd.f32 0.0, %v961
        %v963 = vpop.f32.mrb[0].mxu0
        %v964 = vpop.f32.mrb[0].mxu0
        %v965 = vpop.f32.mrb[0].mxu0
        %966 = vdwg.mxu0
        %v967 = vpack.c.bf16 %v962, %v962
        %v969 = vsel %vm746, %v967, 0
        %v972 = vsel %vm811, %v608, 0
        %974 = vmatprep.subr.bf16.mxu0 0
        %975 = vmatpush1.bf16.msra.mxu0 %v972
        %976 = vmatprep.subr.bf16.mxu0 0
        %977 = vmatpush1.bf16.msra.mxu0 0
        %978 = vmatprep.subr.bf16.mxu0 0
        %979 = vmatpush1.bf16.msra.mxu0 0
        %980 = vmatprep.subr.bf16.mxu0 0
        %981 = vmatpush1.bf16.msra.mxu0 0
        %982 = vmatprep.subr.bf16.mxu0 0
        %983 = vmatpush1.bf16.msra.mxu0 0
        %984 = vmatprep.subr.bf16.mxu0 0
        %985 = vmatpush1.bf16.msra.mxu0 0
        %986 = vmatprep.subr.bf16.mxu0 0
        %987 = vmatpush1.bf16.msra.mxu0 0
        %988 = vmatprep.subr.bf16.mxu0 0
        %989 = vmatpush1.bf16.msra.mxu0 0
        %990 = vmatprep.subr.bf16.mxu0 0
        %991 = vmatpush1.bf16.msra.mxu0 0
        %992 = vmatprep.subr.bf16.mxu0 0
        %993 = vmatpush1.bf16.msra.mxu0 0
        %994 = vmatprep.subr.bf16.mxu0 0
        %995 = vmatpush1.bf16.msra.mxu0 0
        %996 = vmatprep.subr.bf16.mxu0 0
        %997 = vmatpush1.bf16.msra.mxu0 0
        %998 = vmatprep.subr.bf16.mxu0 0
        %999 = vmatpush1.bf16.msra.mxu0 0
        %1000 = vmatprep.subr.bf16.mxu0 0
        %1001 = vmatpush1.bf16.msra.mxu0 0
        %1002 = vmatprep.subr.bf16.mxu0 0
        %1003 = vmatpush1.bf16.msra.mxu0 0
        %1004 = vmatprep.subr.bf16.mxu0 0
        %1005 = vmatpush1.bf16.msra.mxu0 0
        %1006 = vmatprep.mubr.bf16.mxu0 0
        %1007 = vmatmul.mubr.bf16.gmra.mrb[0].mxu0 %v969
        %v1008 = vpop.f32.mrb[0].mxu0
        %v1009 = vadd.f32 0.0, %v1008
        %v1010 = vpop.f32.mrb[0].mxu0
        %v1011 = vpop.f32.mrb[0].mxu0
        %v1012 = vpop.f32.mrb[0].mxu0
        %1013 = vdwg.mxu0
        %v1015 = vsel %vm746, %v855, 0
        %v1018 = vsel %vm811, %v607, 0
        %1020 = vmatprep.subr.bf16.mxu0 0
        %1021 = vmatpush1.bf16.msra.mxu0 %v1018
        %1022 = vmatprep.subr.bf16.mxu0 0
        %1023 = vmatpush1.bf16.msra.mxu0 0
        %1024 = vmatprep.subr.bf16.mxu0 0
        %1025 = vmatpush1.bf16.msra.mxu0 0
        %1026 = vmatprep.subr.bf16.mxu0 0
        %1027 = vmatpush1.bf16.msra.mxu0 0
        %1028 = vmatprep.subr.bf16.mxu0 0
        %1029 = vmatpush1.bf16.msra.mxu0 0
        %1030 = vmatprep.subr.bf16.mxu0 0
        %1031 = vmatpush1.bf16.msra.mxu0 0
        %1032 = vmatprep.subr.bf16.mxu0 0
        %1033 = vmatpush1.bf16.msra.mxu0 0
        %1034 = vmatprep.subr.bf16.mxu0 0
        %1035 = vmatpush1.bf16.msra.mxu0 0
        %1036 = vmatprep.subr.bf16.mxu0 0
        %1037 = vmatpush1.bf16.msra.mxu0 0
        %1038 = vmatprep.subr.bf16.mxu0 0
        %1039 = vmatpush1.bf16.msra.mxu0 0
        %1040 = vmatprep.subr.bf16.mxu0 0
        %1041 = vmatpush1.bf16.msra.mxu0 0
        %1042 = vmatprep.subr.bf16.mxu0 0
        %1043 = vmatpush1.bf16.msra.mxu0 0
        %1044 = vmatprep.subr.bf16.mxu0 0
        %1045 = vmatpush1.bf16.msra.mxu0 0
        %1046 = vmatprep.subr.bf16.mxu0 0
        %1047 = vmatpush1.bf16.msra.mxu0 0
        %1048 = vmatprep.subr.bf16.mxu0 0
        %1049 = vmatpush1.bf16.msra.mxu0 0
        %1050 = vmatprep.subr.bf16.mxu0 0
        %1051 = vmatpush1.bf16.msra.mxu0 0
        %1052 = vmatprep.mubr.bf16.mxu0 0
        %1053 = vmatmul.mubr.bf16.gmra.mrb[0].mxu0 %v1015
        %v1054 = vpop.f32.mrb[0].mxu0
        %v1055 = vadd.f32 %v1009, %v1054
        %v1056 = vpop.f32.mrb[0].mxu0
        %v1057 = vpop.f32.mrb[0].mxu0
        %v1058 = vpop.f32.mrb[0].mxu0
        %1059 = vdwg.mxu0
        %1060 = vrot.lane.b32.xlu0 %v738, 112
        %v1061 = vpop.permute.xlu0 %1060
        %1062 = vrot.lane.b32.xlu0 %v739, 112
        %v1063 = vpop.permute.xlu0 %1062
        %v1065 = vsel %vm746, %v1061, 0
        %v1068 = vsel %vm746, %v1063, 0
        %1070 = vmatprep.subr.bf16.mxu0 0
        %1071 = vmatpush1.bf16.xpose.msra.mxu0 %v1068
        %1072 = vmatprep.subr.bf16.mxu0 0
        %1073 = vmatpush1.bf16.xpose.msra.mxu0 0
        %1074 = vmatprep.subr.bf16.mxu0 0
        %1075 = vmatpush1.bf16.xpose.msra.mxu0 0
        %1076 = vmatprep.subr.bf16.mxu0 0
        %1077 = vmatpush1.bf16.xpose.msra.mxu0 0
        %1078 = vmatprep.subr.bf16.mxu0 0
        %1079 = vmatpush1.bf16.xpose.msra.mxu0 0
        %1080 = vmatprep.subr.bf16.mxu0 0
        %1081 = vmatpush1.bf16.xpose.msra.mxu0 0
        %1082 = vmatprep.subr.bf16.mxu0 0
        %1083 = vmatpush1.bf16.xpose.msra.mxu0 0
        %1084 = vmatprep.subr.bf16.mxu0 0
        %1085 = vmatpush1.bf16.xpose.msra.mxu0 0
        %1086 = vmatprep.subr.bf16.mxu0 0
        %1087 = vmatpush1.bf16.xpose.msra.mxu0 0
        %1088 = vmatprep.subr.bf16.mxu0 0
        %1089 = vmatpush1.bf16.xpose.msra.mxu0 0
        %1090 = vmatprep.subr.bf16.mxu0 0
        %1091 = vmatpush1.bf16.xpose.msra.mxu0 0
        %1092 = vmatprep.subr.bf16.mxu0 0
        %1093 = vmatpush1.bf16.xpose.msra.mxu0 0
        %1094 = vmatprep.subr.bf16.mxu0 0
        %1095 = vmatpush1.bf16.xpose.msra.mxu0 0
        %1096 = vmatprep.subr.bf16.mxu0 0
        %1097 = vmatpush1.bf16.xpose.msra.mxu0 0
        %1098 = vmatprep.subr.bf16.mxu0 0
        %1099 = vmatpush1.bf16.xpose.msra.mxu0 0
        %1100 = vmatprep.subr.bf16.mxu0 0
        %1101 = vmatpush1.bf16.xpose.msra.mxu0 0
        %1102 = vmatprep.mubr.bf16.mxu0 0
        %1103 = vmatmul.mubr.bf16.gmra.mrb[0].mxu0 %v1065
        %v1104 = vpop.f32.mrb[0].mxu0
        %v1105 = vadd.f32 %v744, %v1104
        %v1106 = vpop.f32.mrb[0].mxu0
        %v1107 = vpop.f32.mrb[0].mxu0
        %v1108 = vpop.f32.mrb[0].mxu0
        %1109 = vdwg.mxu0
        %v1110 = vsel %vm746, %v1105, -inf
        %1111 = vmax.xlane.f32.xlu0 %v1110
        %v1112 = vpop.xlane.xlu0 %1111
        %v1113 = vsub.f32 %v1105, %v1112
        %v1114 = vmul.f32 %v1113, 1.442695
        %v1115 = vpow.pop %v1114
        %v1116 = vsel %vm746, %v1115, 0.0
        %1117 = vadd.xlane.f32.xlu0 %v1116
        %v1118 = vpop.xlane.xlu0 %1117
        %v1119 = vrcp.pop %v1118
        %v1120 = vmul.f32 %v1115, %v1119
        %v1121 = vpack.c.bf16 %v1120, %v1120
        %1122 = vrot.lane.b32.xlu0 %v739, 80
        %v1123 = vpop.permute.xlu0 %1122
        %v1125 = vsel %vm746, %v1121, 0
        %v1128 = vsel %vm811, %v1123, 0
        %1130 = vmatprep.subr.bf16.mxu0 0
        %1131 = vmatpush1.bf16.msra.mxu0 %v1128
        %1132 = vmatprep.subr.bf16.mxu0 0
        %1133 = vmatpush1.bf16.msra.mxu0 0
        %1134 = vmatprep.subr.bf16.mxu0 0
        %1135 = vmatpush1.bf16.msra.mxu0 0
        %1136 = vmatprep.subr.bf16.mxu0 0
        %1137 = vmatpush1.bf16.msra.mxu0 0
        %1138 = vmatprep.subr.bf16.mxu0 0
        %1139 = vmatpush1.bf16.msra.mxu0 0
        %1140 = vmatprep.subr.bf16.mxu0 0
        %1141 = vmatpush1.bf16.msra.mxu0 0
        %1142 = vmatprep.subr.bf16.mxu0 0
        %1143 = vmatpush1.bf16.msra.mxu0 0
        %1144 = vmatprep.subr.bf16.mxu0 0
        %1145 = vmatpush1.bf16.msra.mxu0 0
        %1146 = vmatprep.subr.bf16.mxu0 0
        %1147 = vmatpush1.bf16.msra.mxu0 0
        %1148 = vmatprep.subr.bf16.mxu0 0
        %1149 = vmatpush1.bf16.msra.mxu0 0
        %1150 = vmatprep.subr.bf16.mxu0 0
        %1151 = vmatpush1.bf16.msra.mxu0 0
        %1152 = vmatprep.subr.bf16.mxu0 0
        %1153 = vmatpush1.bf16.msra.mxu0 0
        %1154 = vmatprep.subr.bf16.mxu0 0
        %1155 = vmatpush1.bf16.msra.mxu0 0
        %1156 = vmatprep.subr.bf16.mxu0 0
        %1157 = vmatpush1.bf16.msra.mxu0 0
        %1158 = vmatprep.subr.bf16.mxu0 0
        %1159 = vmatpush1.bf16.msra.mxu0 0
        %1160 = vmatprep.subr.bf16.mxu0 0
        %1161 = vmatpush1.bf16.msra.mxu0 0
        %1162 = vmatprep.mubr.bf16.mxu0 0
        %1163 = vmatmul.mubr.bf16.gmra.mrb[0].mxu0 %v1125
        %v1164 = vpop.f32.mrb[0].mxu0
        %v1165 = vadd.f32 0.0, %v1164
        %v1166 = vpop.f32.mrb[0].mxu0
        %v1167 = vpop.f32.mrb[0].mxu0
        %v1168 = vpop.f32.mrb[0].mxu0
        %1169 = vdwg.mxu0
        %v1170 = vpack.c.bf16 %v1165, %v1165
        %v1172 = vsel %vm746, %v1170, 0
        %v1175 = vsel %vm811, %v609, 0
        %1177 = vmatprep.subr.bf16.mxu0 0
        %1178 = vmatpush1.bf16.msra.mxu0 %v1175
        %1179 = vmatprep.subr.bf16.mxu0 0
        %1180 = vmatpush1.bf16.msra.mxu0 0
        %1181 = vmatprep.subr.bf16.mxu0 0
        %1182 = vmatpush1.bf16.msra.mxu0 0
        %1183 = vmatprep.subr.bf16.mxu0 0
        %1184 = vmatpush1.bf16.msra.mxu0 0
        %1185 = vmatprep.subr.bf16.mxu0 0
        %1186 = vmatpush1.bf16.msra.mxu0 0
        %1187 = vmatprep.subr.bf16.mxu0 0
        %1188 = vmatpush1.bf16.msra.mxu0 0
        %1189 = vmatprep.subr.bf16.mxu0 0
        %1190 = vmatpush1.bf16.msra.mxu0 0
        %1191 = vmatprep.subr.bf16.mxu0 0
        %1192 = vmatpush1.bf16.msra.mxu0 0
        %1193 = vmatprep.subr.bf16.mxu0 0
        %1194 = vmatpush1.bf16.msra.mxu0 0
        %1195 = vmatprep.subr.bf16.mxu0 0
        %1196 = vmatpush1.bf16.msra.mxu0 0
        %1197 = vmatprep.subr.bf16.mxu0 0
        %1198 = vmatpush1.bf16.msra.mxu0 0
        %1199 = vmatprep.subr.bf16.mxu0 0
        %1200 = vmatpush1.bf16.msra.mxu0 0
        %1201 = vmatprep.subr.bf16.mxu0 0
        %1202 = vmatpush1.bf16.msra.mxu0 0
        %1203 = vmatprep.subr.bf16.mxu0 0
        %1204 = vmatpush1.bf16.msra.mxu0 0
        %1205 = vmatprep.subr.bf16.mxu0 0
        %1206 = vmatpush1.bf16.msra.mxu0 0
        %1207 = vmatprep.subr.bf16.mxu0 0
        %1208 = vmatpush1.bf16.msra.mxu0 0
        %1209 = vmatprep.mubr.bf16.mxu0 0
        %1210 = vmatmul.mubr.bf16.gmra.mrb[0].mxu0 %v1172
        %v1211 = vpop.f32.mrb[0].mxu0
        %v1212 = vadd.f32 0.0, %v1211
        %v1213 = vpop.f32.mrb[0].mxu0
        %v1214 = vpop.f32.mrb[0].mxu0
        %v1215 = vpop.f32.mrb[0].mxu0
        %1216 = vdwg.mxu0
        %v1217 = vadd.f32 %v1055, %v1212
        %1218 = vrot.lane.b32.xlu0 %v738, 104
        %v1219 = vpop.permute.xlu0 %1218
        %1220 = vrot.lane.b32.xlu0 %v739, 104
        %v1221 = vpop.permute.xlu0 %1220
        %v1223 = vsel %vm746, %v1219, 0
        %v1226 = vsel %vm746, %v1221, 0
        %1228 = vmatprep.subr.bf16.mxu0 0
        %1229 = vmatpush1.bf16.xpose.msra.mxu0 %v1226
        %1230 = vmatprep.subr.bf16.mxu0 0
        %1231 = vmatpush1.bf16.xpose.msra.mxu0 0
        %1232 = vmatprep.subr.bf16.mxu0 0
        %1233 = vmatpush1.bf16.xpose.msra.mxu0 0
        %1234 = vmatprep.subr.bf16.mxu0 0
        %1235 = vmatpush1.bf16.xpose.msra.mxu0 0
        %1236 = vmatprep.subr.bf16.mxu0 0
        %1237 = vmatpush1.bf16.xpose.msra.mxu0 0
        %1238 = vmatprep.subr.bf16.mxu0 0
        %1239 = vmatpush1.bf16.xpose.msra.mxu0 0
        %1240 = vmatprep.subr.bf16.mxu0 0
        %1241 = vmatpush1.bf16.xpose.msra.mxu0 0
        %1242 = vmatprep.subr.bf16.mxu0 0
        %1243 = vmatpush1.bf16.xpose.msra.mxu0 0
        %1244 = vmatprep.subr.bf16.mxu0 0
        %1245 = vmatpush1.bf16.xpose.msra.mxu0 0
        %1246 = vmatprep.subr.bf16.mxu0 0
        %1247 = vmatpush1.bf16.xpose.msra.mxu0 0
        %1248 = vmatprep.subr.bf16.mxu0 0
        %1249 = vmatpush1.bf16.xpose.msra.mxu0 0
        %1250 = vmatprep.subr.bf16.mxu0 0
        %1251 = vmatpush1.bf16.xpose.msra.mxu0 0
        %1252 = vmatprep.subr.bf16.mxu0 0
        %1253 = vmatpush1.bf16.xpose.msra.mxu0 0
        %1254 = vmatprep.subr.bf16.mxu0 0
        %1255 = vmatpush1.bf16.xpose.msra.mxu0 0
        %1256 = vmatprep.subr.bf16.mxu0 0
        %1257 = vmatpush1.bf16.xpose.msra.mxu0 0
        %1258 = vmatprep.subr.bf16.mxu0 0
        %1259 = vmatpush1.bf16.xpose.msra.mxu0 0
        %1260 = vmatprep.mubr.bf16.mxu0 0
        %1261 = vmatmul.mubr.bf16.gmra.mrb[0].mxu0 %v1223
        %v1262 = vpop.f32.mrb[0].mxu0
        %v1263 = vadd.f32 %v744, %v1262
        %v1264 = vpop.f32.mrb[0].mxu0
        %v1265 = vpop.f32.mrb[0].mxu0
        %v1266 = vpop.f32.mrb[0].mxu0
        %1267 = vdwg.mxu0
        %v1268 = vsel %vm746, %v1263, -inf
        %1269 = vmax.xlane.f32.xlu0 %v1268
        %v1270 = vpop.xlane.xlu0 %1269
        %v1271 = vsub.f32 %v1263, %v1270
        %v1272 = vmul.f32 %v1271, 1.442695
        %v1273 = vpow.pop %v1272
        %v1274 = vsel %vm746, %v1273, 0.0
        %1275 = vadd.xlane.f32.xlu0 %v1274
        %v1276 = vpop.xlane.xlu0 %1275
        %v1277 = vrcp.pop %v1276
        %v1278 = vmul.f32 %v1273, %v1277
        %v1279 = vpack.c.bf16 %v1278, %v1278
        %1280 = vrot.lane.b32.xlu0 %v739, 72
        %v1281 = vpop.permute.xlu0 %1280
        %v1283 = vsel %vm746, %v1279, 0
        %v1286 = vsel %vm811, %v1281, 0
        %1288 = vmatprep.subr.bf16.mxu0 0
        %1289 = vmatpush1.bf16.msra.mxu0 %v1286
        %1290 = vmatprep.subr.bf16.mxu0 0
        %1291 = vmatpush1.bf16.msra.mxu0 0
        %1292 = vmatprep.subr.bf16.mxu0 0
        %1293 = vmatpush1.bf16.msra.mxu0 0
        %1294 = vmatprep.subr.bf16.mxu0 0
        %1295 = vmatpush1.bf16.msra.mxu0 0
        %1296 = vmatprep.subr.bf16.mxu0 0
        %1297 = vmatpush1.bf16.msra.mxu0 0
        %1298 = vmatprep.subr.bf16.mxu0 0
        %1299 = vmatpush1.bf16.msra.mxu0 0
        %1300 = vmatprep.subr.bf16.mxu0 0
        %1301 = vmatpush1.bf16.msra.mxu0 0
        %1302 = vmatprep.subr.bf16.mxu0 0
        %1303 = vmatpush1.bf16.msra.mxu0 0
        %1304 = vmatprep.subr.bf16.mxu0 0
        %1305 = vmatpush1.bf16.msra.mxu0 0
        %1306 = vmatprep.subr.bf16.mxu0 0
        %1307 = vmatpush1.bf16.msra.mxu0 0
        %1308 = vmatprep.subr.bf16.mxu0 0
        %1309 = vmatpush1.bf16.msra.mxu0 0
        %1310 = vmatprep.subr.bf16.mxu0 0
        %1311 = vmatpush1.bf16.msra.mxu0 0
        %1312 = vmatprep.subr.bf16.mxu0 0
        %1313 = vmatpush1.bf16.msra.mxu0 0
        %1314 = vmatprep.subr.bf16.mxu0 0
        %1315 = vmatpush1.bf16.msra.mxu0 0
        %1316 = vmatprep.subr.bf16.mxu0 0
        %1317 = vmatpush1.bf16.msra.mxu0 0
        %1318 = vmatprep.subr.bf16.mxu0 0
        %1319 = vmatpush1.bf16.msra.mxu0 0
        %1320 = vmatprep.mubr.bf16.mxu0 0
        %1321 = vmatmul.mubr.bf16.gmra.mrb[0].mxu0 %v1283
        %v1322 = vpop.f32.mrb[0].mxu0
        %v1323 = vadd.f32 0.0, %v1322
        %v1324 = vpop.f32.mrb[0].mxu0
        %v1325 = vpop.f32.mrb[0].mxu0
        %v1326 = vpop.f32.mrb[0].mxu0
        %1327 = vdwg.mxu0
        %v1328 = vpack.c.bf16 %v1323, %v1323
        %v1330 = vsel %vm746, %v1328, 0
        %v1333 = vsel %vm811, %v610, 0
        %1335 = vmatprep.subr.bf16.mxu0 0
        %1336 = vmatpush1.bf16.msra.mxu0 %v1333
        %1337 = vmatprep.subr.bf16.mxu0 0
        %1338 = vmatpush1.bf16.msra.mxu0 0
        %1339 = vmatprep.subr.bf16.mxu0 0
        %1340 = vmatpush1.bf16.msra.mxu0 0
        %1341 = vmatprep.subr.bf16.mxu0 0
        %1342 = vmatpush1.bf16.msra.mxu0 0
        %1343 = vmatprep.subr.bf16.mxu0 0
        %1344 = vmatpush1.bf16.msra.mxu0 0
        %1345 = vmatprep.subr.bf16.mxu0 0
        %1346 = vmatpush1.bf16.msra.mxu0 0
        %1347 = vmatprep.subr.bf16.mxu0 0
        %1348 = vmatpush1.bf16.msra.mxu0 0
        %1349 = vmatprep.subr.bf16.mxu0 0
        %1350 = vmatpush1.bf16.msra.mxu0 0
        %1351 = vmatprep.subr.bf16.mxu0 0
        %1352 = vmatpush1.bf16.msra.mxu0 0
        %1353 = vmatprep.subr.bf16.mxu0 0
        %1354 = vmatpush1.bf16.msra.mxu0 0
        %1355 = vmatprep.subr.bf16.mxu0 0
        %1356 = vmatpush1.bf16.msra.mxu0 0
        %1357 = vmatprep.subr.bf16.mxu0 0
        %1358 = vmatpush1.bf16.msra.mxu0 0
        %1359 = vmatprep.subr.bf16.mxu0 0
        %1360 = vmatpush1.bf16.msra.mxu0 0
        %1361 = vmatprep.subr.bf16.mxu0 0
        %1362 = vmatpush1.bf16.msra.mxu0 0
        %1363 = vmatprep.subr.bf16.mxu0 0
        %1364 = vmatpush1.bf16.msra.mxu0 0
        %1365 = vmatprep.subr.bf16.mxu0 0
        %1366 = vmatpush1.bf16.msra.mxu0 0
        %1367 = vmatprep.mubr.bf16.mxu0 0
        %1368 = vmatmul.mubr.bf16.gmra.mrb[0].mxu0 %v1330
        %v1369 = vpop.f32.mrb[0].mxu0
        %v1370 = vadd.f32 0.0, %v1369
        %v1371 = vpop.f32.mrb[0].mxu0
        %v1372 = vpop.f32.mrb[0].mxu0
        %v1373 = vpop.f32.mrb[0].mxu0
        %1374 = vdwg.mxu0
        %v1375 = vadd.f32 %v1217, %v1370
        %v1376 = vunpack.c.l.bf16 %v594
        %v1377 = vadd.f32 %v1376, %v1375
        %v1379 = vlaneseq
        %v1380 = vshrl.u32 %v1379, 7
        %v1381 = vsub.s32 0, %v1380
        %v1382 = vrot.slane %v611, %v1381
        %v1384 = vadd.f32 %v1377, %v1382
        %v1385 = vsel %vm632, %v1384, 0.0
        %1386 = vadd.xlane.f32.xlu0 %v1385
        %v1387 = vpop.xlane.xlu0 %1386
        %v1388 = vrcp.pop 32.0
        %v1389 = vmul.f32 %v1387, %v1388
        %v1390 = vsub.f32 %v1384, %v1389
        %v1391 = vmul.f32 %v1390, %v1390
        %v1392 = vsel %vm632, %v1391, 0.0
        %1393 = vadd.xlane.f32.xlu0 %v1392
        %v1394 = vpop.xlane.xlu0 %1393
        %v1395 = vmul.f32 %v1394, %v1388
        %v1396 = vadd.f32 %v1395, 1e-05
        %v1397 = vrsqrt.pop %v1396
        %v1398 = vmul.f32 %v1390, %v1397
        %v1400 = vlaneseq
        %v1401 = vshrl.u32 %v1400, 7
        %v1402 = vsub.s32 0, %v1401
        %v1403 = vrot.slane %v612, %v1402
        %v1405 = vmul.f32 %v1398, %v1403
        %v1407 = vlaneseq
        %v1408 = vshrl.u32 %v1407, 7
        %v1409 = vsub.s32 0, %v1408
        %v1410 = vrot.slane %v613, %v1409
        %v1412 = vadd.f32 %v1405, %v1410
        %v1413 = vpack.c.bf16 %v1412, %v1412
        %vm1414 = vcmask 257024
        %1415 = vst.msk [vmem:[%s592] sm:$0xf] %vm1414, %v1413
        %s1416 = sand.u32 %s305, 1
        %s1417 = scalar_lea.sflag [#allocation4], %s1416
        %s1418 = sand.u32 %s305, 1
        %s1419 = smul.addr %s1418, 4
        %s1420 = scalar_lea.vmem [#allocation20], %s1419
        // Predicated region
        $region109: #{seq2seq_forward.11} parent=63 // pred_check
          %p1421 = pneg %p315
        $region110: #{seq2seq_forward.11} parent=63 // pred_check_branch
          %1423 = sbr.rel (%p1421) target = $region112
        $region111: #{seq2seq_forward.11} parent=63 // pred_region
          %s1425 = ssub.s32 64, 64
          %1426 = vsyncadd %s1417, %s1425
          %s1427 = sadd.s32 %s40, %s39
          %s1428 = smul.addr %s1427, 64
          %s1429 = scalar_lea.hbm %s11, %s1428
          %s1431 = sshll.u32 %s1420, 4
          %s1432 = int_to_ptr.vmem [resolvable:$true] %s1431
          %1434 = dma.vmem_to_hbm [thread:$0]  %s1432, 64, %s1429, %s1417
        $region112: #{seq2seq_forward.11} parent=63 // pred_fallthru
          _
      $region64: #{seq2seq_forward.11} parent=5 // pred_fallthru
        _
      %p1435 = scmp.le.s32.totalorder 2, %s30
      // Predicated region
      $region113: #{seq2seq_forward.11} parent=5 // pred_check
        %p1436 = pneg %p1435
      $region114: #{seq2seq_forward.11} parent=5 // pred_check_branch
        %1438 = sbr.rel (%p1436) target = $region116
      $region115: #{seq2seq_forward.11} parent=5 // pred_region
        %s1439 = ssub.s32 %s30, 2
        // Predicated region
        $region117: #{seq2seq_forward.11} parent=115 // pred_check
          %p1440 = pneg %p321
        $region118: #{seq2seq_forward.11} parent=115 // pred_check_branch
          %1442 = sbr.rel (%p1440) target = $region120
        $region119: #{seq2seq_forward.11} parent=115 // pred_region
          %s1443 = sand.u32 %s306, 1
          %s1444 = scalar_lea.sflag [#allocation4], %s1443
          %s1445 = sand.u32 %s306, 1
          %s1446 = smul.addr %s1445, 4
          %s1447 = scalar_lea.vmem [#allocation20], %s1446
          %1448 = dma.done %s1444, 64
        $region120: #{seq2seq_forward.11} parent=115 // pred_fallthru
          _
      $region116: #{seq2seq_forward.11} parent=5 // pred_fallthru
        _
    $region6: #{seq2seq_forward.11} parent=1 // loop_footer
      %s34 = sadd.s32 1, %s30
    $region7: #{seq2seq_forward.11} parent=1 // loop_footer_branch
      %29 = sbr.rel target = $region3
    $region8: #{seq2seq_forward.11} parent=1 // loop_exit
      _
    %1449 = vsyncpa [#allocation3], 1
    %s1450 = scalar_lea.sflag [#allocation3], 1
    %1451 = vsyncpa %s1450, 1
    %1452 = vsyncpa [#allocation6], 1
    %s1453 = scalar_lea.sflag [#allocation6], 1
    %1454 = vsyncpa %s1453, 1
    %1455 = vsyncpa [#allocation9], 1
    %1456 = vsyncpa [#allocation12], 1
    %1457 = vsyncpa [#allocation15], 1
    %1458 = vsyncpa [#allocation18], 1
    %1459 = vsyncpa [#allocation4], 1
    %s1460 = scalar_lea.sflag [#allocation4], 1
    %1461 = vsyncpa %s1460, 1

// kernel: seq2seq_forward.15
$region0: #{seq2seq_forward.15}
  #allocation0 [shape = 'u32[]', space=smem, size = 0x4, offset = 0x4, fixed_abs, tag = 'smem constant byte address 0x4 - core index']
  #allocation1 [shape = 'u32[144,128]{1,0:T(1,128)}', space=vmem, size = 0x12000, scoped, tag = 'internal scratch']
  %s0 = inlined_call_operand.hbm [shape: bf16[2,8,32], index: 0, kind: input, shape index: {}, may-alias: {0,1}]
  %s1 = inlined_call_operand.hbm [shape: bf16[2,8,32], index: 1, kind: input, shape index: {}, may-alias: {0,1}]
  %s2 = inlined_call_operand.hbm [shape: f32[2,1,8], index: 2, kind: input, shape index: {}]
  %s3 = inlined_call_operand.hbm [shape: bf16[32,32], index: 3, kind: input, shape index: {}]
  %s4 = inlined_call_operand.hbm [shape: f32[1,32], index: 4, kind: input, shape index: {}]
  %s5 = inlined_call_operand.hbm [shape: bf16[32,64], index: 5, kind: input, shape index: {}]
  %s6 = inlined_call_operand.hbm [shape: f32[1,64], index: 6, kind: input, shape index: {}]
  %s7 = inlined_call_operand.hbm [shape: bf16[32,32], index: 7, kind: input, shape index: {}]
  %s8 = inlined_call_operand.hbm [shape: f32[1,32], index: 8, kind: input, shape index: {}]
  %s9 = inlined_call_operand.hbm [shape: f32[1,32], index: 9, kind: input, shape index: {}]
  %s10 = inlined_call_operand.hbm [shape: f32[1,32], index: 10, kind: input, shape index: {}]
  %s11 = inlined_call_operand.hbm [shape: bf16[2,8,32], index: 11, kind: output, shape index: {}]
  %s12 = sld [smem:[#allocation0]]
  $region121: #{seq2seq_forward.15} parent=0
    _
  %s14 = ssub.s32 1, %s12
  %s15 = scalar_select 0, %s14, %s12
  $region1: #{seq2seq_forward.15} parent=0
    #allocation2 [shape = 'u8[4096]{0}', space=vmem, size = 0x1000, scoped, tag = 'input window, operand 0']
    #allocation3 [shape = 's32[2]{0}', space=sflag, size = 0x8, scoped, tag = 'scoped memory for seq2seq_forward.15']
    #allocation4 [shape = 's32[2]{0}', space=sflag, size = 0x8, scoped, tag = 'scoped memory for seq2seq_forward.15']
    #allocation5 [shape = 'u8[4096]{0}', space=vmem, size = 0x1000, scoped, tag = 'input window, operand 1']
    #allocation6 [shape = 's32[2]{0}', space=sflag, size = 0x8, scoped, tag = 'scoped memory for seq2seq_forward.15']
    #allocation7 [shape = 'u8[1024]{0}', space=vmem, size = 0x400, scoped, tag = 'input window, operand 2']
    #allocation8 [shape = 'u8[8192]{0}', space=vmem, size = 0x2000, scoped, tag = 'input window, operand 3, single buffered']
    #allocation9 [shape = 's32[1]{0}', space=sflag, size = 0x4, scoped, tag = 'scoped memory for seq2seq_forward.15']
    #allocation10 [shape = 'u8[512]{0}', space=vmem, size = 0x400, scoped, tag = 'input window, operand 4, single buffered']
    #allocation11 [shape = 'u8[8192]{0}', space=vmem, size = 0x2000, scoped, tag = 'input window, operand 5, single buffered']
    #allocation12 [shape = 's32[1]{0}', space=sflag, size = 0x4, scoped, tag = 'scoped memory for seq2seq_forward.15']
    #allocation13 [shape = 'u8[512]{0}', space=vmem, size = 0x400, scoped, tag = 'input window, operand 6, single buffered']
    #allocation14 [shape = 'u8[8192]{0}', space=vmem, size = 0x2000, scoped, tag = 'input window, operand 7, single buffered']
    #allocation15 [shape = 's32[1]{0}', space=sflag, size = 0x4, scoped, tag = 'scoped memory for seq2seq_forward.15']
    #allocation16 [shape = 'u8[512]{0}', space=vmem, size = 0x400, scoped, tag = 'input window, operand 8, single buffered']
    #allocation17 [shape = 'u8[512]{0}', space=vmem, size = 0x400, scoped, tag = 'input window, operand 9, single buffered']
    #allocation18 [shape = 's32[1]{0}', space=sflag, size = 0x4, scoped, tag = 'scoped memory for seq2seq_forward.15']
    #allocation19 [shape = 'u8[512]{0}', space=vmem, size = 0x400, scoped, tag = 'input window, operand 10, single buffered']
    #allocation20 [shape = 'u8[4096]{0}', space=vmem, size = 0x1000, scoped, tag = 'output window, operand 0']
    %16 = vsyncpa [#allocation3], 0
    %s17 = scalar_lea.sflag [#allocation3], 1
    %18 = vsyncpa %s17, 0
    %19 = vsyncpa [#allocation6], 0
    %s20 = scalar_lea.sflag [#allocation6], 1
    %21 = vsyncpa %s20, 0
    %22 = vsyncpa [#allocation9], 0
    %23 = vsyncpa [#allocation12], 0
    %24 = vsyncpa [#allocation15], 0
    %25 = vsyncpa [#allocation18], 0
    %26 = vsyncpa [#allocation4], 0
    %s27 = scalar_lea.sflag [#allocation4], 1
    %28 = vsyncpa %s27, 0
    loop: start=0, step=1, limit=4
    $region2: #{seq2seq_forward.15} parent=1 // loop_pre_header
      _
    $region3: #{seq2seq_forward.15} parent=1 // loop_header
      %s30 = sphi 0, %s34
      %p31 = scmp.ge.s32.totalorder %s30, 4
      %s37 = sphi 0, %s49
      %s38 = sphi 0, %s45
      %s39 = sphi 0, %s37
      %s40 = sphi 0, %s38
      %s41 = sphi 0, %s39
      %s42 = sphi 0, %s40
      %s54 = sphi 0, %s56
      %s57 = sphi 0, %s54
      %s58 = sphi 0, %s57
      %s74 = sphi 0, %s58
      %s80 = sphi 0, %s82
      %s83 = sphi 0, %s80
      %s84 = sphi 0, %s83
      %s100 = sphi 0, %s84
      %s106 = sphi 0, %s108
      %s109 = sphi 0, %s106
      %s110 = sphi 0, %s109
      %s126 = sphi 0, %s110
      %s130 = sphi 0, %s130
      %s132 = sphi 0, %s130
      %s133 = sphi 0, %s132
      %s147 = sphi 0, %s133
      %s151 = sphi 0, %s151
      %s153 = sphi 0, %s151
      %s154 = sphi 0, %s153
      %s168 = sphi 0, %s154
      %s172 = sphi 0, %s172
      %s174 = sphi 0, %s172
      %s175 = sphi 0, %s174
      %s189 = sphi 0, %s175
      %s193 = sphi 0, %s193
      %s195 = sphi 0, %s193
      %s196 = sphi 0, %s195
      %s210 = sphi 0, %s196
      %s214 = sphi 0, %s214
      %s216 = sphi 0, %s214
      %s217 = sphi 0, %s216
      %s231 = sphi 0, %s217
      %s235 = sphi 0, %s235
      %s237 = sphi 0, %s235
      %s238 = sphi 0, %s237
      %s252 = sphi 0, %s238
      %s256 = sphi 0, %s256
      %s258 = sphi 0, %s256
      %s259 = sphi 0, %s258
      %s273 = sphi 0, %s259
      %s277 = sphi 0, %s277
      %s279 = sphi 0, %s277
      %s280 = sphi 0, %s279
      %s294 = sphi 0, %s280
      %s302 = sphi 0, %s304
      %s305 = sphi 0, %s302
      %s306 = sphi 0, %s305
      %s322 = sphi 0, %s306
    $region4: #{seq2seq_forward.15} parent=1 // loop_header_branch
      %33 = sbr.rel (%p31) target = $region8
    $region5: #{seq2seq_forward.15} parent=1 // loop_body
      %s35 = ssub.s32 %s30, 1
      %s36 = ssub.s32 %s30, 2
      %s43 = sadd.s32 1, %s38
      %p44 = scmp.ge.s32.totalorder %s43, 1
      %s45 = scalar_select %p44, 0, %s43
      %s46 = sadd.s32 1, %s37
      %s47 = scalar_select %p44, %s46, %s37
      %p48 = scmp.ge.s32.totalorder %s47, 2
      %s49 = scalar_select %p48, 0, %s47
      %s50 = ssub.s32 %s37, %s49
      %s51 = ssub.s32 %s38, %s45
      %s52 = sor.u32 %s50, %s51
      %p53 = scmp.eq.s32.totalorder %s52, 0
      %s55 = sadd.s32 %s54, 1
      %s56 = scalar_select %p53, %s54, %s55
      %p59 = pneg %p53
      %p60 = scmp.eq.s32.totalorder %s30, 1
      %p61 = por %p59, %p60
      %p62 = scmp.ne.s32.totalorder %s54, %s57
      %p63 = scmp.eq.s32.totalorder %s30, 0
      %p64 = por %p62, %p63
      %p65 = scmp.ne.s32.totalorder %s54, %s57
      %p66 = scmp.eq.s32.totalorder %s35, 1
      %p67 = por %p65, %p66
      %p68 = scmp.ne.s32.totalorder %s57, %s58
      %p69 = scmp.eq.s32.totalorder %s35, 0
      %p70 = por %p68, %p69
      %p71 = scmp.ne.s32.totalorder %s57, %s58
      %p72 = scmp.eq.s32.totalorder %s36, 1
      %p73 = por %p71, %p72
      %p75 = scmp.ne.s32.totalorder %s58, %s74
      %p76 = scmp.eq.s32.totalorder %s36, 0
      %p77 = por %p75, %p76
      %s78 = ssub.s32 %s37, %s49
      %p79 = scmp.eq.s32.totalorder %s78, 0
      %s81 = sadd.s32 %s80, 1
      %s82 = scalar_select %p79, %s80, %s81
      %p85 = pneg %p79
      %p86 = scmp.eq.s32.totalorder %s30, 1
      %p87 = por %p85, %p86
      %p88 = scmp.ne.s32.totalorder %s80, %s83
      %p89 = scmp.eq.s32.totalorder %s30, 0
      %p90 = por %p88, %p89
      %p91 = scmp.ne.s32.totalorder %s80, %s83
      %p92 = scmp.eq.s32.totalorder %s35, 1
      %p93 = por %p91, %p92
      %p94 = scmp.ne.s32.totalorder %s83, %s84
      %p95 = scmp.eq.s32.totalorder %s35, 0
      %p96 = por %p94, %p95
      %p97 = scmp.ne.s32.totalorder %s83, %s84
      %p98 = scmp.eq.s32.totalorder %s36, 1
      %p99 = por %p97, %p98
      %p101 = scmp.ne.s32.totalorder %s84, %s100
      %p102 = scmp.eq.s32.totalorder %s36, 0
      %p103 = por %p101, %p102
      %s104 = ssub.s32 %s37, %s49
      %p105 = scmp.eq.s32.totalorder %s104, 0
      %s107 = sadd.s32 %s106, 1
      %s108 = scalar_select %p105, %s106, %s107
      %p111 = pneg %p105
      %p112 = scmp.eq.s32.totalorder %s30, 1
      %p113 = por %p111, %p112
      %p114 = scmp.ne.s32.totalorder %s106, %s109
      %p115 = scmp.eq.s32.totalorder %s30, 0
      %p116 = por %p114, %p115
      %p117 = scmp.ne.s32.totalorder %s106, %s109
      %p118 = scmp.eq.s32.totalorder %s35, 1
      %p119 = por %p117, %p118
      %p120 = scmp.ne.s32.totalorder %s109, %s110
      %p121 = scmp.eq.s32.totalorder %s35, 0
      %p122 = por %p120, %p121
      %p123 = scmp.ne.s32.totalorder %s109, %s110
      %p124 = scmp.eq.s32.totalorder %s36, 1
      %p125 = por %p123, %p124
      %p127 = scmp.ne.s32.totalorder %s110, %s126
      %p128 = scmp.eq.s32.totalorder %s36, 0
      %p129 = por %p127, %p128
      %s131 = sadd.s32 %s130, 1
      %p134 = scmp.eq.s32.totalorder %s30, 1
      %p135 = scmp.ne.s32.totalorder %s130, %s132
      %p136 = scmp.eq.s32.totalorder %s30, 0
      %p137 = por %p135, %p136
      %p138 = scmp.ne.s32.totalorder %s130, %s132
      %p139 = scmp.eq.s32.totalorder %s35, 1
      %p140 = por %p138, %p139
      %p141 = scmp.ne.s32.totalorder %s132, %s133
      %p142 = scmp.eq.s32.totalorder %s35, 0
      %p143 = por %p141, %p142
      %p144 = scmp.ne.s32.totalorder %s132, %s133
      %p145 = scmp.eq.s32.totalorder %s36, 1
      %p146 = por %p144, %p145
      %p148 = scmp.ne.s32.totalorder %s133, %s147
      %p149 = scmp.eq.s32.totalorder %s36, 0
      %p150 = por %p148, %p149
      %s152 = sadd.s32 %s151, 1
      %p155 = scmp.eq.s32.totalorder %s30, 1
      %p156 = scmp.ne.s32.totalorder %s151, %s153
      %p157 = scmp.eq.s32.totalorder %s30, 0
      %p158 = por %p156, %p157
      %p159 = scmp.ne.s32.totalorder %s151, %s153
      %p160 = scmp.eq.s32.totalorder %s35, 1
      %p161 = por %p159, %p160
      %p162 = scmp.ne.s32.totalorder %s153, %s154
      %p163 = scmp.eq.s32.totalorder %s35, 0
      %p164 = por %p162, %p163
      %p165 = scmp.ne.s32.totalorder %s153, %s154
      %p166 = scmp.eq.s32.totalorder %s36, 1
      %p167 = por %p165, %p166
      %p169 = scmp.ne.s32.totalorder %s154, %s168
      %p170 = scmp.eq.s32.totalorder %s36, 0
      %p171 = por %p169, %p170
      %s173 = sadd.s32 %s172, 1
      %p176 = scmp.eq.s32.totalorder %s30, 1
      %p177 = scmp.ne.s32.totalorder %s172, %s174
      %p178 = scmp.eq.s32.totalorder %s30, 0
      %p179 = por %p177, %p178
      %p180 = scmp.ne.s32.totalorder %s172, %s174
      %p181 = scmp.eq.s32.totalorder %s35, 1
      %p182 = por %p180, %p181
      %p183 = scmp.ne.s32.totalorder %s174, %s175
      %p184 = scmp.eq.s32.totalorder %s35, 0
      %p185 = por %p183, %p184
      %p186 = scmp.ne.s32.totalorder %s174, %s175
      %p187 = scmp.eq.s32.totalorder %s36, 1
      %p188 = por %p186, %p187
      %p190 = scmp.ne.s32.totalorder %s175, %s189
      %p191 = scmp.eq.s32.totalorder %s36, 0
      %p192 = por %p190, %p191
      %s194 = sadd.s32 %s193, 1
      %p197 = scmp.eq.s32.totalorder %s30, 1
      %p198 = scmp.ne.s32.totalorder %s193, %s195
      %p199 = scmp.eq.s32.totalorder %s30, 0
      %p200 = por %p198, %p199
      %p201 = scmp.ne.s32.totalorder %s193, %s195
      %p202 = scmp.eq.s32.totalorder %s35, 1
      %p203 = por %p201, %p202
      %p204 = scmp.ne.s32.totalorder %s195, %s196
      %p205 = scmp.eq.s32.totalorder %s35, 0
      %p206 = por %p204, %p205
      %p207 = scmp.ne.s32.totalorder %s195, %s196
      %p208 = scmp.eq.s32.totalorder %s36, 1
      %p209 = por %p207, %p208
      %p211 = scmp.ne.s32.totalorder %s196, %s210
      %p212 = scmp.eq.s32.totalorder %s36, 0
      %p213 = por %p211, %p212
      %s215 = sadd.s32 %s214, 1
      %p218 = scmp.eq.s32.totalorder %s30, 1
      %p219 = scmp.ne.s32.totalorder %s214, %s216
      %p220 = scmp.eq.s32.totalorder %s30, 0
      %p221 = por %p219, %p220
      %p222 = scmp.ne.s32.totalorder %s214, %s216
      %p223 = scmp.eq.s32.totalorder %s35, 1
      %p224 = por %p222, %p223
      %p225 = scmp.ne.s32.totalorder %s216, %s217
      %p226 = scmp.eq.s32.totalorder %s35, 0
      %p227 = por %p225, %p226
      %p228 = scmp.ne.s32.totalorder %s216, %s217
      %p229 = scmp.eq.s32.totalorder %s36, 1
      %p230 = por %p228, %p229
      %p232 = scmp.ne.s32.totalorder %s217, %s231
      %p233 = scmp.eq.s32.totalorder %s36, 0
      %p234 = por %p232, %p233
      %s236 = sadd.s32 %s235, 1
      %p239 = scmp.eq.s32.totalorder %s30, 1
      %p240 = scmp.ne.s32.totalorder %s235, %s237
      %p241 = scmp.eq.s32.totalorder %s30, 0
      %p242 = por %p240, %p241
      %p243 = scmp.ne.s32.totalorder %s235, %s237
      %p244 = scmp.eq.s32.totalorder %s35, 1
      %p245 = por %p243, %p244
      %p246 = scmp.ne.s32.totalorder %s237, %s238
      %p247 = scmp.eq.s32.totalorder %s35, 0
      %p248 = por %p246, %p247
      %p249 = scmp.ne.s32.totalorder %s237, %s238
      %p250 = scmp.eq.s32.totalorder %s36, 1
      %p251 = por %p249, %p250
      %p253 = scmp.ne.s32.totalorder %s238, %s252
      %p254 = scmp.eq.s32.totalorder %s36, 0
      %p255 = por %p253, %p254
      %s257 = sadd.s32 %s256, 1
      %p260 = scmp.eq.s32.totalorder %s30, 1
      %p261 = scmp.ne.s32.totalorder %s256, %s258
      %p262 = scmp.eq.s32.totalorder %s30, 0
      %p263 = por %p261, %p262
      %p264 = scmp.ne.s32.totalorder %s256, %s258
      %p265 = scmp.eq.s32.totalorder %s35, 1
      %p266 = por %p264, %p265
      %p267 = scmp.ne.s32.totalorder %s258, %s259
      %p268 = scmp.eq.s32.totalorder %s35, 0
      %p269 = por %p267, %p268
      %p270 = scmp.ne.s32.totalorder %s258, %s259
      %p271 = scmp.eq.s32.totalorder %s36, 1
      %p272 = por %p270, %p271
      %p274 = scmp.ne.s32.totalorder %s259, %s273
      %p275 = scmp.eq.s32.totalorder %s36, 0
      %p276 = por %p274, %p275
      %s278 = sadd.s32 %s277, 1
      %p281 = scmp.eq.s32.totalorder %s30, 1
      %p282 = scmp.ne.s32.totalorder %s277, %s279
      %p283 = scmp.eq.s32.totalorder %s30, 0
      %p284 = por %p282, %p283
      %p285 = scmp.ne.s32.totalorder %s277, %s279
      %p286 = scmp.eq.s32.totalorder %s35, 1
      %p287 = por %p285, %p286
      %p288 = scmp.ne.s32.totalorder %s279, %s280
      %p289 = scmp.eq.s32.totalorder %s35, 0
      %p290 = por %p288, %p289
      %p291 = scmp.ne.s32.totalorder %s279, %s280
      %p292 = scmp.eq.s32.totalorder %s36, 1
      %p293 = por %p291, %p292
      %p295 = scmp.ne.s32.totalorder %s280, %s294
      %p296 = scmp.eq.s32.totalorder %s36, 0
      %p297 = por %p295, %p296
      %s298 = ssub.s32 %s37, %s49
      %s299 = ssub.s32 %s38, %s45
      %s300 = sor.u32 %s298, %s299
      %p301 = scmp.eq.s32.totalorder %s300, 0
      %s303 = sadd.s32 %s302, 1
      %s304 = scalar_select %p301, %s302, %s303
      %p307 = pneg %p301
      %p308 = scmp.eq.s32.totalorder %s30, 1
      %p309 = por %p307, %p308
      %p310 = scmp.ne.s32.totalorder %s302, %s305
      %p311 = scmp.eq.s32.totalorder %s30, 0
      %p312 = por %p310, %p311
      %p313 = scmp.ne.s32.totalorder %s302, %s305
      %p314 = scmp.eq.s32.totalorder %s35, 1
      %p315 = por %p313, %p314
      %p316 = scmp.ne.s32.totalorder %s305, %s306
      %p317 = scmp.eq.s32.totalorder %s35, 0
      %p318 = por %p316, %p317
      %p319 = scmp.ne.s32.totalorder %s305, %s306
      %p320 = scmp.eq.s32.totalorder %s36, 1
      %p321 = por %p319, %p320
      %p323 = scmp.ne.s32.totalorder %s306, %s322
      %p324 = scmp.eq.s32.totalorder %s36, 0
      %p325 = por %p323, %p324
      %p326 = scmp.le.s32.totalorder 1, %s30
      %p327 = scmp.lt.s32.totalorder %s30, 3
      %p328 = pnand %p326, %p327
      %p329 = pneg %p328
      // Predicated region
      $region9: #{seq2seq_forward.15} parent=5 // pred_check
        _
      $region10: #{seq2seq_forward.15} parent=5 // pred_check_branch
        %331 = sbr.rel (%p328) target = $region12
      $region11: #{seq2seq_forward.15} parent=5 // pred_region
        %s332 = ssub.s32 %s30, 1
        // Predicated region
        $region13: #{seq2seq_forward.15} parent=11 // pred_check
          %p333 = pneg %p143
        $region14: #{seq2seq_forward.15} parent=11 // pred_check_branch
          %335 = sbr.rel (%p333) target = $region16
        $region15: #{seq2seq_forward.15} parent=11 // pred_region
          %s337 = ssub.s32 256, 256
          %338 = vsyncadd [#allocation9], %s337
          %s339 = sshll.u32 [#allocation8], 4
          %s340 = int_to_ptr.vmem [resolvable:$true] %s339
          %345 = dma.hbm_to_vmem [thread:$0]  %s3, 256, %s340, [#allocation9], 64, 64, 4
        $region16: #{seq2seq_forward.15} parent=11 // pred_fallthru
          _
        // Predicated region
        $region17: #{seq2seq_forward.15} parent=11 // pred_check
          %p346 = pneg %p164
        $region18: #{seq2seq_forward.15} parent=11 // pred_check_branch
          %348 = sbr.rel (%p346) target = $region20
        $region19: #{seq2seq_forward.15} parent=11 // pred_region
          %s350 = ssub.s32 16, 16
          %351 = vsyncadd [#allocation9], %s350
          %s353 = sshll.u32 [#allocation10], 4
          %s354 = int_to_ptr.vmem [resolvable:$true] %s353
          %356 = dma.hbm_to_vmem [thread:$0]  %s4, 16, %s354, [#allocation9]
        $region20: #{seq2seq_forward.15} parent=11 // pred_fallthru
          _
        // Predicated region
        $region21: #{seq2seq_forward.15} parent=11 // pred_check
          %p357 = pneg %p185
        $region22: #{seq2seq_forward.15} parent=11 // pred_check_branch
          %359 = sbr.rel (%p357) target = $region24
        $region23: #{seq2seq_forward.15} parent=11 // pred_region
          %s361 = ssub.s32 256, 256
          %362 = vsyncadd [#allocation12], %s361
          %s363 = sshll.u32 [#allocation11], 4
          %s364 = int_to_ptr.vmem [resolvable:$true] %s363
          %369 = dma.hbm_to_vmem [thread:$0]  %s5, 256, %s364, [#allocation12], 64, 64, 4
        $region24: #{seq2seq_forward.15} parent=11 // pred_fallthru
          _
        // Predicated region
        $region25: #{seq2seq_forward.15} parent=11 // pred_check
          %p370 = pneg %p206
        $region26: #{seq2seq_forward.15} parent=11 // pred_check_branch
          %372 = sbr.rel (%p370) target = $region28
        $region27: #{seq2seq_forward.15} parent=11 // pred_region
          %s374 = ssub.s32 16, 16
          %375 = vsyncadd [#allocation12], %s374
          %s377 = sshll.u32 [#allocation13], 4
          %s378 = int_to_ptr.vmem [resolvable:$true] %s377
          %380 = dma.hbm_to_vmem [thread:$0]  %s6, 16, %s378, [#allocation12]
        $region28: #{seq2seq_forward.15} parent=11 // pred_fallthru
          _
        // Predicated region
        $region29: #{seq2seq_forward.15} parent=11 // pred_check
          %p381 = pneg %p227
        $region30: #{seq2seq_forward.15} parent=11 // pred_check_branch
          %383 = sbr.rel (%p381) target = $region32
        $region31: #{seq2seq_forward.15} parent=11 // pred_region
          %s385 = ssub.s32 256, 256
          %386 = vsyncadd [#allocation15], %s385
          %s387 = sshll.u32 [#allocation14], 4
          %s388 = int_to_ptr.vmem [resolvable:$true] %s387
          %393 = dma.hbm_to_vmem [thread:$0]  %s7, 256, %s388, [#allocation15], 64, 64, 4
        $region32: #{seq2seq_forward.15} parent=11 // pred_fallthru
          _
        // Predicated region
        $region33: #{seq2seq_forward.15} parent=11 // pred_check
          %p394 = pneg %p248
        $region34: #{seq2seq_forward.15} parent=11 // pred_check_branch
          %396 = sbr.rel (%p394) target = $region36
        $region35: #{seq2seq_forward.15} parent=11 // pred_region
          %s398 = ssub.s32 16, 16
          %399 = vsyncadd [#allocation15], %s398
          %s401 = sshll.u32 [#allocation16], 4
          %s402 = int_to_ptr.vmem [resolvable:$true] %s401
          %404 = dma.hbm_to_vmem [thread:$0]  %s8, 16, %s402, [#allocation15]
        $region36: #{seq2seq_forward.15} parent=11 // pred_fallthru
          _
        // Predicated region
        $region37: #{seq2seq_forward.15} parent=11 // pred_check
          %p405 = pneg %p269
        $region38: #{seq2seq_forward.15} parent=11 // pred_check_branch
          %407 = sbr.rel (%p405) target = $region40
        $region39: #{seq2seq_forward.15} parent=11 // pred_region
          %s409 = ssub.s32 16, 16
          %410 = vsyncadd [#allocation18], %s409
          %s412 = sshll.u32 [#allocation17], 4
          %s413 = int_to_ptr.vmem [resolvable:$true] %s412
          %415 = dma.hbm_to_vmem [thread:$0]  %s9, 16, %s413, [#allocation18]
        $region40: #{seq2seq_forward.15} parent=11 // pred_fallthru
          _
        // Predicated region
        $region41: #{seq2seq_forward.15} parent=11 // pred_check
          %p416 = pneg %p290
        $region42: #{seq2seq_forward.15} parent=11 // pred_check_branch
          %418 = sbr.rel (%p416) target = $region44
        $region43: #{seq2seq_forward.15} parent=11 // pred_region
          %s420 = ssub.s32 16, 16
          %421 = vsyncadd [#allocation18], %s420
          %s423 = sshll.u32 [#allocation19], 4
          %s424 = int_to_ptr.vmem [resolvable:$true] %s423
          %426 = dma.hbm_to_vmem [thread:$0]  %s10, 16, %s424, [#allocation18]
        $region44: #{seq2seq_forward.15} parent=11 // pred_fallthru
          _
      $region12: #{seq2seq_forward.15} parent=5 // pred_fallthru
        _
      %p427 = scmp.lt.s32.totalorder %s30, 2
      // Predicated region
      $region45: #{seq2seq_forward.15} parent=5 // pred_check
        %p428 = pneg %p427
      $region46: #{seq2seq_forward.15} parent=5 // pred_check_branch
        %430 = sbr.rel (%p428) target = $region48
      $region47: #{seq2seq_forward.15} parent=5 // pred_region
        // Predicated region
        $region49: #{seq2seq_forward.15} parent=47 // pred_check
          %p431 = pneg %p64
        $region50: #{seq2seq_forward.15} parent=47 // pred_check_branch
          %433 = sbr.rel (%p431) target = $region52
        $region51: #{seq2seq_forward.15} parent=47 // pred_region
          %s434 = sand.u32 %s54, 1
          %s435 = scalar_lea.sflag [#allocation3], %s434
          %s436 = sand.u32 %s54, 1
          %s437 = smul.addr %s436, 4
          %s438 = scalar_lea.vmem [#allocation2], %s437
          %s440 = ssub.s32 64, 64
          %441 = vsyncadd %s435, %s440
          %s442 = sadd.s32 %s38, %s37
          %s443 = smul.addr %s442, 64
          %s444 = scalar_lea.hbm %s0, %s443
          %s446 = sshll.u32 %s438, 4
          %s447 = int_to_ptr.vmem [resolvable:$true] %s446
          %449 = dma.hbm_to_vmem [thread:$0]  %s444, 64, %s447, %s435
        $region52: #{seq2seq_forward.15} parent=47 // pred_fallthru
          _
        // Predicated region
        $region53: #{seq2seq_forward.15} parent=47 // pred_check
          %p450 = pneg %p90
        $region54: #{seq2seq_forward.15} parent=47 // pred_check_branch
          %452 = sbr.rel (%p450) target = $region56
        $region55: #{seq2seq_forward.15} parent=47 // pred_region
          %s453 = sand.u32 %s30, 1
          %s454 = scalar_lea.sflag [#allocation6], %s453
          %s455 = sand.u32 %s80, 1
          %s456 = smul.addr %s455, 4
          %s457 = scalar_lea.vmem [#allocation5], %s456
          %s459 = ssub.s32 64, 64
          %460 = vsyncadd %s454, %s459
          %s461 = smul.addr %s37, 64
          %s462 = scalar_lea.hbm %s1, %s461
          %s464 = sshll.u32 %s457, 4
          %s465 = int_to_ptr.vmem [resolvable:$true] %s464
          %467 = dma.hbm_to_vmem [thread:$0]  %s462, 64, %s465, %s454
        $region56: #{seq2seq_forward.15} parent=47 // pred_fallthru
          _
        // Predicated region
        $region57: #{seq2seq_forward.15} parent=47 // pred_check
          %p468 = pneg %p116
        $region58: #{seq2seq_forward.15} parent=47 // pred_check_branch
          %470 = sbr.rel (%p468) target = $region60
        $region59: #{seq2seq_forward.15} parent=47 // pred_region
          %s471 = sand.u32 %s30, 1
          %s472 = scalar_lea.sflag [#allocation6], %s471
          %s473 = sand.u32 %s106, 1
          %s474 = scalar_lea.vmem [#allocation7], %s473
          %s476 = ssub.s32 16, 16
          %477 = vsyncadd %s472, %s476
          %s478 = smul.addr %s37, 16
          %s479 = scalar_lea.hbm %s2, %s478
          %s481 = sshll.u32 %s474, 4
          %s482 = int_to_ptr.vmem [resolvable:$true] %s481
          %484 = dma.hbm_to_vmem [thread:$0]  %s479, 16, %s482, %s472
        $region60: #{seq2seq_forward.15} parent=47 // pred_fallthru
          _
      $region48: #{seq2seq_forward.15} parent=5 // pred_fallthru
        _
      %p485 = scmp.le.s32.totalorder 1, %s30
      %p486 = scmp.lt.s32.totalorder %s30, 3
      %p487 = pnand %p485, %p486
      %p488 = pneg %p487
      // Predicated region
      $region61: #{seq2seq_forward.15} parent=5 // pred_check
        _
      $region62: #{seq2seq_forward.15} parent=5 // pred_check_branch
        %490 = sbr.rel (%p487) target = $region64
      $region63: #{seq2seq_forward.15} parent=5 // pred_region
        %s491 = ssub.s32 %s30, 1
        %s492 = sand.u32 %s57, 1
        %s493 = scalar_lea.sflag [#allocation3], %s492
        %s494 = sand.u32 %s57, 1
        %s495 = smul.addr %s494, 4
        %s496 = scalar_lea.vmem [#allocation2], %s495
        // Predicated region
        $region65: #{seq2seq_forward.15} parent=63 // pred_check
          %p497 = pneg %p70
        $region66: #{seq2seq_forward.15} parent=63 // pred_check_branch
          %499 = sbr.rel (%p497) target = $region68
        $region67: #{seq2seq_forward.15} parent=63 // pred_region
          %500 = dma.done %s493, 64
        $region68: #{seq2seq_forward.15} parent=63 // pred_fallthru
          _
        %s501 = sand.u32 %s35, 1
        %s502 = scalar_lea.sflag [#allocation6], %s501
        %s503 = sand.u32 %s83, 1
        %s504 = smul.addr %s503, 4
        %s505 = scalar_lea.vmem [#allocation5], %s504
        // Predicated region
        $region69: #{seq2seq_forward.15} parent=63 // pred_check
          %p506 = pneg %p96
        $region70: #{seq2seq_forward.15} parent=63 // pred_check_branch
          %508 = sbr.rel (%p506) target = $region72
        $region71: #{seq2seq_forward.15} parent=63 // pred_region
          %509 = dma.done %s502, 64
        $region72: #{seq2seq_forward.15} parent=63 // pred_fallthru
          _
        %s510 = sand.u32 %s35, 1
        %s511 = scalar_lea.sflag [#allocation6], %s510
        %s512 = sand.u32 %s109, 1
        %s513 = scalar_lea.vmem [#allocation7], %s512
        // Predicated region
        $region73: #{seq2seq_forward.15} parent=63 // pred_check
          %p514 = pneg %p122
        $region74: #{seq2seq_forward.15} parent=63 // pred_check_branch
          %516 = sbr.rel (%p514) target = $region76
        $region75: #{seq2seq_forward.15} parent=63 // pred_region
          %517 = dma.done %s511, 16
        $region76: #{seq2seq_forward.15} parent=63 // pred_fallthru
          _
        // Predicated region
        $region77: #{seq2seq_forward.15} parent=63 // pred_check
          %p518 = pneg %p143
        $region78: #{seq2seq_forward.15} parent=63 // pred_check_branch
          %520 = sbr.rel (%p518) target = $region80
        $region79: #{seq2seq_forward.15} parent=63 // pred_region
          %521 = dma.done [#allocation9], 256
        $region80: #{seq2seq_forward.15} parent=63 // pred_fallthru
          _
        // Predicated region
        $region81: #{seq2seq_forward.15} parent=63 // pred_check
          %p522 = pneg %p164
        $region82: #{seq2seq_forward.15} parent=63 // pred_check_branch
          %524 = sbr.rel (%p522) target = $region84
        $region83: #{seq2seq_forward.15} parent=63 // pred_region
          %525 = dma.done [#allocation9], 16
        $region84: #{seq2seq_forward.15} parent=63 // pred_fallthru
          _
        // Predicated region
        $region85: #{seq2seq_forward.15} parent=63 // pred_check
          %p526 = pneg %p185
        $region86: #{seq2seq_forward.15} parent=63 // pred_check_branch
          %528 = sbr.rel (%p526) target = $region88
        $region87: #{seq2seq_forward.15} parent=63 // pred_region
          %529 = dma.done [#allocation12], 256
        $region88: #{seq2seq_forward.15} parent=63 // pred_fallthru
          _
        // Predicated region
        $region89: #{seq2seq_forward.15} parent=63 // pred_check
          %p530 = pneg %p206
        $region90: #{seq2seq_forward.15} parent=63 // pred_check_branch
          %532 = sbr.rel (%p530) target = $region92
        $region91: #{seq2seq_forward.15} parent=63 // pred_region
          %533 = dma.done [#allocation12], 16
        $region92: #{seq2seq_forward.15} parent=63 // pred_fallthru
          _
        // Predicated region
        $region93: #{seq2seq_forward.15} parent=63 // pred_check
          %p534 = pneg %p227
        $region94: #{seq2seq_forward.15} parent=63 // pred_check_branch
          %536 = sbr.rel (%p534) target = $region96
        $region95: #{seq2seq_forward.15} parent=63 // pred_region
          %537 = dma.done [#allocation15], 256
        $region96: #{seq2seq_forward.15} parent=63 // pred_fallthru
          _
        // Predicated region
        $region97: #{seq2seq_forward.15} parent=63 // pred_check
          %p538 = pneg %p248
        $region98: #{seq2seq_forward.15} parent=63 // pred_check_branch
          %540 = sbr.rel (%p538) target = $region100
        $region99: #{seq2seq_forward.15} parent=63 // pred_region
          %541 = dma.done [#allocation15], 16
        $region100: #{seq2seq_forward.15} parent=63 // pred_fallthru
          _
        // Predicated region
        $region101: #{seq2seq_forward.15} parent=63 // pred_check
          %p542 = pneg %p269
        $region102: #{seq2seq_forward.15} parent=63 // pred_check_branch
          %544 = sbr.rel (%p542) target = $region104
        $region103: #{seq2seq_forward.15} parent=63 // pred_region
          %545 = dma.done [#allocation18], 16
        $region104: #{seq2seq_forward.15} parent=63 // pred_fallthru
          _
        // Predicated region
        $region105: #{seq2seq_forward.15} parent=63 // pred_check
          %p546 = pneg %p290
        $region106: #{seq2seq_forward.15} parent=63 // pred_check_branch
          %548 = sbr.rel (%p546) target = $region108
        $region107: #{seq2seq_forward.15} parent=63 // pred_region
          %549 = dma.done [#allocation18], 16
        $region108: #{seq2seq_forward.15} parent=63 // pred_fallthru
          _
        %s550 = sand.u32 %s57, 1
        %s551 = scalar_lea.sflag [#allocation3], %s550
        %s552 = sand.u32 %s57, 1
        %s553 = smul.addr %s552, 4
        %s554 = scalar_lea.vmem [#allocation2], %s553
        %p555 = pneg %p70
        %p556 = pneg %p67
        %s557 = sand.u32 %s35, 1
        %s558 = scalar_lea.sflag [#allocation6], %s557
        %s559 = sand.u32 %s83, 1
        %s560 = smul.addr %s559, 4
        %s561 = scalar_lea.vmem [#allocation5], %s560
        %p562 = pneg %p96
        %p563 = pneg %p93
        %s564 = sand.u32 %s35, 1
        %s565 = scalar_lea.sflag [#allocation6], %s564
        %s566 = sand.u32 %s109, 1
        %s567 = scalar_lea.vmem [#allocation7], %s566
        %p568 = pneg %p122
        %p569 = pneg %p119
        %p570 = pneg %p143
        %p571 = pneg %p140
        %p572 = pneg %p164
        %p573 = pneg %p161
        %p574 = pneg %p185
        %p575 = pneg %p182
        %p576 = pneg %p206
        %p577 = pneg %p203
        %p578 = pneg %p227
        %p579 = pneg %p224
        %p580 = pneg %p248
        %p581 = pneg %p245
        %p582 = pneg %p269
        %p583 = pneg %p266
        %p584 = pneg %p290
        %p585 = pneg %p287
        %p586 = pneg %p318
        %p587 = pneg %p315
        %s588 = sand.u32 %s305, 1
        %s589 = scalar_lea.sflag [#allocation4], %s588
        %s590 = sand.u32 %s305, 1
        %s591 = smul.addr %s590, 4
        %s592 = scalar_lea.vmem [#allocation20], %s591
        %s594 = smul.u32 %s40, 8
        %v595 = vld [vmem:[%s496] sm:$0xf]
        %v596 = vld [vmem:[%s505] sm:$0xf]
        %v597 = vld [vmem:[%s513] sm:$0x1]
        %v598 = vld [vmem:[#allocation8] sm:$0xf]
        %v599 = vld [vmem:[#allocation8 + $0x4] sm:$0xf]
        %v600 = vld [vmem:[#allocation8 + $0x8] sm:$0xf]
        %v601 = vld [vmem:[#allocation8 + $0xc] sm:$0xf]
        %v602 = vld [vmem:[#allocation10] sm:$0x1]
        %v603 = vld [vmem:[#allocation11] sm:$0xf]
        %v604 = vld [vmem:[#allocation11 + $0x4] sm:$0xf]
        %v605 = vld [vmem:[#allocation11 + $0x8] sm:$0xf]
        %v606 = vld [vmem:[#allocation11 + $0xc] sm:$0xf]
        %v607 = vld [vmem:[#allocation13] sm:$0x1]
        %v608 = vld [vmem:[#allocation14] sm:$0xf]
        %v609 = vld [vmem:[#allocation14 + $0x4] sm:$0xf]
        %v610 = vld [vmem:[#allocation14 + $0x8] sm:$0xf]
        %v611 = vld [vmem:[#allocation14 + $0xc] sm:$0xf]
        %v612 = vld [vmem:[#allocation16] sm:$0x1]
        %v613 = vld [vmem:[#allocation17] sm:$0x1]
        %v614 = vld [vmem:[#allocation19] sm:$0x1]
        %v616 = vlaneseq
        %v617 = vshrl.u32 %v616, 7
        %v618 = vsub.s32 0, %v617
        %v619 = vrot.slane %v602, %v618
        %v625 = vunpack.c.l.b16 %v598
        %v626 = vunpack.c.l.b16 %v599
        %v627 = vunpack.c.l.b16 %v600
        %v628 = vunpack.c.l.b16 %v601
        %v629 = vpack.c.b16 %v626, %v625
        %v630 = vpack.c.b16 %v628, %v627
        %vm633 = vcmask 261120
        %v635 = vsel %vm633, %v595, 0
        %637 = vmatprep.subr.bf16.mxu0 0
        %638 = vmatpush1.bf16.msra.mxu0 %v629
        %639 = vmatprep.subr.bf16.mxu0 0
        %640 = vmatpush1.bf16.msra.mxu0 %v630
        %641 = vmatprep.subr.bf16.mxu0 0
        %642 = vmatpush1.bf16.msra.mxu0 0
        %643 = vmatprep.subr.bf16.mxu0 0
        %644 = vmatpush1.bf16.msra.mxu0 0
        %645 = vmatprep.subr.bf16.mxu0 0
        %646 = vmatpush1.bf16.msra.mxu0 0
        %647 = vmatprep.subr.bf16.mxu0 0
        %648 = vmatpush1.bf16.msra.mxu0 0
        %649 = vmatprep.subr.bf16.mxu0 0
        %650 = vmatpush1.bf16.msra.mxu0 0
        %651 = vmatprep.subr.bf16.mxu0 0
        %652 = vmatpush1.bf16.msra.mxu0 0
        %653 = vmatprep.subr.bf16.mxu0 0
        %654 = vmatpush1.bf16.msra.mxu0 0
        %655 = vmatprep.subr.bf16.mxu0 0
        %656 = vmatpush1.bf16.msra.mxu0 0
        %657 = vmatprep.subr.bf16.mxu0 0
        %658 = vmatpush1.bf16.msra.mxu0 0
        %659 = vmatprep.subr.bf16.mxu0 0
        %660 = vmatpush1.bf16.msra.mxu0 0
        %661 = vmatprep.subr.bf16.mxu0 0
        %662 = vmatpush1.bf16.msra.mxu0 0
        %663 = vmatprep.subr.bf16.mxu0 0
        %664 = vmatpush1.bf16.msra.mxu0 0
        %665 = vmatprep.subr.bf16.mxu0 0
        %666 = vmatpush1.bf16.msra.mxu0 0
        %667 = vmatprep.subr.bf16.mxu0 0
        %668 = vmatpush1.bf16.msra.mxu0 0
        %669 = vmatprep.mubr.bf16.mxu0 0
        %670 = vmatmul.mubr.bf16.gmra.mrb[0].mxu0 %v635
        %v671 = vpop.f32.mrb[0].mxu0
        %v672 = vadd.f32 %v619, %v671
        %v673 = vpop.f32.mrb[0].mxu0
        %v674 = vpop.f32.mrb[0].mxu0
        %v675 = vpop.f32.mrb[0].mxu0
        %676 = vdwg.mxu0
        %v678 = vlaneseq
        %v679 = vshrl.u32 %v678, 7
        %v680 = vsub.s32 0, %v679
        %v681 = vrot.slane %v607, %v680
        %v687 = vunpack.c.l.b16 %v603
        %v688 = vunpack.c.l.b16 %v604
        %v689 = vunpack.c.l.b16 %v605
        %v690 = vunpack.c.l.b16 %v606
        %v691 = vpack.c.b16 %v688, %v687
        %v692 = vpack.c.b16 %v690, %v689
        %v696 = vsel %vm633, %v596, 0
        %698 = vmatprep.subr.bf16.mxu0 0
        %699 = vmatpush1.bf16.msra.mxu0 %v691
        %700 = vmatprep.subr.bf16.mxu0 0
        %701 = vmatpush1.bf16.msra.mxu0 %v692
        %702 = vmatprep.subr.bf16.mxu0 0
        %703 = vmatpush1.bf16.msra.mxu0 0
        %704 = vmatprep.subr.bf16.mxu0 0
        %705 = vmatpush1.bf16.msra.mxu0 0
        %706 = vmatprep.subr.bf16.mxu0 0
        %707 = vmatpush1.bf16.msra.mxu0 0
        %708 = vmatprep.subr.bf16.mxu0 0
        %709 = vmatpush1.bf16.msra.mxu0 0
        %710 = vmatprep.subr.bf16.mxu0 0
        %711 = vmatpush1.bf16.msra.mxu0 0
        %712 = vmatprep.subr.bf16.mxu0 0
        %713 = vmatpush1.bf16.msra.mxu0 0
        %714 = vmatprep.subr.bf16.mxu0 0
        %715 = vmatpush1.bf16.msra.mxu0 0
        %716 = vmatprep.subr.bf16.mxu0 0
        %717 = vmatpush1.bf16.msra.mxu0 0
        %718 = vmatprep.subr.bf16.mxu0 0
        %719 = vmatpush1.bf16.msra.mxu0 0
        %720 = vmatprep.subr.bf16.mxu0 0
        %721 = vmatpush1.bf16.msra.mxu0 0
        %722 = vmatprep.subr.bf16.mxu0 0
        %723 = vmatpush1.bf16.msra.mxu0 0
        %724 = vmatprep.subr.bf16.mxu0 0
        %725 = vmatpush1.bf16.msra.mxu0 0
        %726 = vmatprep.subr.bf16.mxu0 0
        %727 = vmatpush1.bf16.msra.mxu0 0
        %728 = vmatprep.subr.bf16.mxu0 0
        %729 = vmatpush1.bf16.msra.mxu0 0
        %730 = vmatprep.mubr.bf16.mxu0 0
        %731 = vmatmul.mubr.bf16.gmra.mrb[0].mxu0 %v696
        %v732 = vpop.f32.mrb[0].mxu0
        %v733 = vadd.f32 %v681, %v732
        %v734 = vpop.f32.mrb[0].mxu0
        %v735 = vpop.f32.mrb[0].mxu0
        %v736 = vpop.f32.mrb[0].mxu0
        %737 = vdwg.mxu0
        %v738 = vmul.f32 %v672, 0.35355338
        %v739 = vpack.c.bf16 %v738, %v738
        %v740 = vpack.c.bf16 %v733, %v733
        %v741 = vlaneseq
        %v742 = vshrl.u32 %v741, 7
        %v743 = vstv %s594
        %v744 = vadd.s32 %v742, %v743
        %v745 = vlaneseq
        %v746 = vand.u32 %v745, 127
        %vm747 = vcmp.le.s32.totalorder %v746, %v744
        %v748 = vsel %vm747, 0.0, -1e+10
        %v750 = vlaneseq
        %v751 = vshrl.u32 %v750, 7
        %v752 = vsub.s32 0, %v751
        %v753 = vrot.slane %v597, %v752
        %v755 = vadd.f32 %v753, %v748
        %vm756 = vcmask 64512
        %v758 = vsel %vm756, %v739, 0
        %v761 = vsel %vm756, %v740, 0
        %763 = vmatprep.subr.bf16.mxu0 0
        %764 = vmatpush1.bf16.xpose.msra.mxu0 %v761
        %765 = vmatprep.subr.bf16.mxu0 0
        %766 = vmatpush1.bf16.xpose.msra.mxu0 0
        %767 = vmatprep.subr.bf16.mxu0 0
        %768 = vmatpush1.bf16.xpose.msra.mxu0 0
        %769 = vmatprep.subr.bf16.mxu0 0
        %770 = vmatpush1.bf16.xpose.msra.mxu0 0
        %771 = vmatprep.subr.bf16.mxu0 0
        %772 = vmatpush1.bf16.xpose.msra.mxu0 0
        %773 = vmatprep.subr.bf16.mxu0 0
        %774 = vmatpush1.bf16.xpose.msra.mxu0 0
        %775 = vmatprep.subr.bf16.mxu0 0
        %776 = vmatpush1.bf16.xpose.msra.mxu0 0
        %777 = vmatprep.subr.bf16.mxu0 0
        %778 = vmatpush1.bf16.xpose.msra.mxu0 0
        %779 = vmatprep.subr.bf16.mxu0 0
        %780 = vmatpush1.bf16.xpose.msra.mxu0 0
        %781 = vmatprep.subr.bf16.mxu0 0
        %782 = vmatpush1.bf16.xpose.msra.mxu0 0
        %783 = vmatprep.subr.bf16.mxu0 0
        %784 = vmatpush1.bf16.xpose.msra.mxu0 0
        %785 = vmatprep.subr.bf16.mxu0 0
        %786 = vmatpush1.bf16.xpose.msra.mxu0 0
        %787 = vmatprep.subr.bf16.mxu0 0
        %788 = vmatpush1.bf16.xpose.msra.mxu0 0
        %789 = vmatprep.subr.bf16.mxu0 0
        %790 = vmatpush1.bf16.xpose.msra.mxu0 0
        %791 = vmatprep.subr.bf16.mxu0 0
        %792 = vmatpush1.bf16.xpose.msra.mxu0 0
        %793 = vmatprep.subr.bf16.mxu0 0
        %794 = vmatpush1.bf16.xpose.msra.mxu0 0
        %795 = vmatprep.mubr.bf16.mxu0 0
        %796 = vmatmul.mubr.bf16.gmra.mrb[0].mxu0 %v758
        %v797 = vpop.f32.mrb[0].mxu0
        %v798 = vadd.f32 %v755, %v797
        %v799 = vpop.f32.mrb[0].mxu0
        %v800 = vpop.f32.mrb[0].mxu0
        %v801 = vpop.f32.mrb[0].mxu0
        %802 = vdwg.mxu0
        %v803 = vsel %vm756, %v798, -inf
        %804 = vmax.xlane.f32.xlu0 %v803
        %v805 = vpop.xlane.xlu0 %804
        %v806 = vsub.f32 %v798, %v805
        %v807 = vmul.f32 %v806, 1.442695
        %v808 = vpow.pop %v807
        %v809 = vsel %vm756, %v808, 0.0
        %810 = vadd.xlane.f32.xlu0 %v809
        %v811 = vpop.xlane.xlu0 %810
        %v812 = vrcp.pop %v811
        %v813 = vmul.f32 %v808, %v812
        %v814 = vpack.c.bf16 %v813, %v813
        %816 = vrot.lane.b32.xlu0 %v740, 96
        %v817 = vpop.permute.xlu0 %816
        %v819 = vsel %vm756, %v814, 0
        %vm821 = vcmask 1043456
        %v823 = vsel %vm821, %v817, 0
        %825 = vmatprep.subr.bf16.mxu0 0
        %826 = vmatpush1.bf16.msra.mxu0 %v823
        %827 = vmatprep.subr.bf16.mxu0 0
        %828 = vmatpush1.bf16.msra.mxu0 0
        %829 = vmatprep.subr.bf16.mxu0 0
        %830 = vmatpush1.bf16.msra.mxu0 0
        %831 = vmatprep.subr.bf16.mxu0 0
        %832 = vmatpush1.bf16.msra.mxu0 0
        %833 = vmatprep.subr.bf16.mxu0 0
        %834 = vmatpush1.bf16.msra.mxu0 0
        %835 = vmatprep.subr.bf16.mxu0 0
        %836 = vmatpush1.bf16.msra.mxu0 0
        %837 = vmatprep.subr.bf16.mxu0 0
        %838 = vmatpush1.bf16.msra.mxu0 0
        %839 = vmatprep.subr.bf16.mxu0 0
        %840 = vmatpush1.bf16.msra.mxu0 0
        %841 = vmatprep.subr.bf16.mxu0 0
        %842 = vmatpush1.bf16.msra.mxu0 0
        %843 = vmatprep.subr.bf16.mxu0 0
        %844 = vmatpush1.bf16.msra.mxu0 0
        %845 = vmatprep.subr.bf16.mxu0 0
        %846 = vmatpush1.bf16.msra.mxu0 0
        %847 = vmatprep.subr.bf16.mxu0 0
        %848 = vmatpush1.bf16.msra.mxu0 0
        %849 = vmatprep.subr.bf16.mxu0 0
        %850 = vmatpush1.bf16.msra.mxu0 0
        %851 = vmatprep.subr.bf16.mxu0 0
        %852 = vmatpush1.bf16.msra.mxu0 0
        %853 = vmatprep.subr.bf16.mxu0 0
        %854 = vmatpush1.bf16.msra.mxu0 0
        %855 = vmatprep.subr.bf16.mxu0 0
        %856 = vmatpush1.bf16.msra.mxu0 0
        %857 = vmatprep.mubr.bf16.mxu0 0
        %858 = vmatmul.mubr.bf16.gmra.mrb[0].mxu0 %v819
        %v859 = vpop.f32.mrb[0].mxu0
        %v860 = vadd.f32 0.0, %v859
        %v861 = vpop.f32.mrb[0].mxu0
        %v862 = vpop.f32.mrb[0].mxu0
        %v863 = vpop.f32.mrb[0].mxu0
        %864 = vdwg.mxu0
        %v865 = vpack.c.bf16 %v860, %v860
        %867 = vrot.lane.b32.xlu0 %v739, 120
        %v868 = vpop.permute.xlu0 %867
        %869 = vrot.lane.b32.xlu0 %v740, 120
        %v870 = vpop.permute.xlu0 %869
        %v872 = vsel %vm756, %v868, 0
        %v875 = vsel %vm756, %v870, 0
        %877 = vmatprep.subr.bf16.mxu0 0
        %878 = vmatpush1.bf16.xpose.msra.mxu0 %v875
        %879 = vmatprep.subr.bf16.mxu0 0
        %880 = vmatpush1.bf16.xpose.msra.mxu0 0
        %881 = vmatprep.subr.bf16.mxu0 0
        %882 = vmatpush1.bf16.xpose.msra.mxu0 0
        %883 = vmatprep.subr.bf16.mxu0 0
        %884 = vmatpush1.bf16.xpose.msra.mxu0 0
        %885 = vmatprep.subr.bf16.mxu0 0
        %886 = vmatpush1.bf16.xpose.msra.mxu0 0
        %887 = vmatprep.subr.bf16.mxu0 0
        %888 = vmatpush1.bf16.xpose.msra.mxu0 0
        %889 = vmatprep.subr.bf16.mxu0 0
        %890 = vmatpush1.bf16.xpose.msra.mxu0 0
        %891 = vmatprep.subr.bf16.mxu0 0
        %892 = vmatpush1.bf16.xpose.msra.mxu0 0
        %893 = vmatprep.subr.bf16.mxu0 0
        %894 = vmatpush1.bf16.xpose.msra.mxu0 0
        %895 = vmatprep.subr.bf16.mxu0 0
        %896 = vmatpush1.bf16.xpose.msra.mxu0 0
        %897 = vmatprep.subr.bf16.mxu0 0
        %898 = vmatpush1.bf16.xpose.msra.mxu0 0
        %899 = vmatprep.subr.bf16.mxu0 0
        %900 = vmatpush1.bf16.xpose.msra.mxu0 0
        %901 = vmatprep.subr.bf16.mxu0 0
        %902 = vmatpush1.bf16.xpose.msra.mxu0 0
        %903 = vmatprep.subr.bf16.mxu0 0
        %904 = vmatpush1.bf16.xpose.msra.mxu0 0
        %905 = vmatprep.subr.bf16.mxu0 0
        %906 = vmatpush1.bf16.xpose.msra.mxu0 0
        %907 = vmatprep.subr.bf16.mxu0 0
        %908 = vmatpush1.bf16.xpose.msra.mxu0 0
        %909 = vmatprep.mubr.bf16.mxu0 0
        %910 = vmatmul.mubr.bf16.gmra.mrb[0].mxu0 %v872
        %v911 = vpop.f32.mrb[0].mxu0
        %v912 = vadd.f32 %v755, %v911
        %v913 = vpop.f32.mrb[0].mxu0
        %v914 = vpop.f32.mrb[0].mxu0
        %v915 = vpop.f32.mrb[0].mxu0
        %916 = vdwg.mxu0
        %v917 = vsel %vm756, %v912, -inf
        %918 = vmax.xlane.f32.xlu0 %v917
        %v919 = vpop.xlane.xlu0 %918
        %v920 = vsub.f32 %v912, %v919
        %v921 = vmul.f32 %v920, 1.442695
        %v922 = vpow.pop %v921
        %v923 = vsel %vm756, %v922, 0.0
        %924 = vadd.xlane.f32.xlu0 %v923
        %v925 = vpop.xlane.xlu0 %924
        %v926 = vrcp.pop %v925
        %v927 = vmul.f32 %v922, %v926
        %v928 = vpack.c.bf16 %v927, %v927
        %929 = vrot.lane.b32.xlu0 %v740, 88
        %v930 = vpop.permute.xlu0 %929
        %v932 = vsel %vm756, %v928, 0
        %v935 = vsel %vm821, %v930, 0
        %937 = vmatprep.subr.bf16.mxu0 0
        %938 = vmatpush1.bf16.msra.mxu0 %v935
        %939 = vmatprep.subr.bf16.mxu0 0
        %940 = vmatpush1.bf16.msra.mxu0 0
        %941 = vmatprep.subr.bf16.mxu0 0
        %942 = vmatpush1.bf16.msra.mxu0 0
        %943 = vmatprep.subr.bf16.mxu0 0
        %944 = vmatpush1.bf16.msra.mxu0 0
        %945 = vmatprep.subr.bf16.mxu0 0
        %946 = vmatpush1.bf16.msra.mxu0 0
        %947 = vmatprep.subr.bf16.mxu0 0
        %948 = vmatpush1.bf16.msra.mxu0 0
        %949 = vmatprep.subr.bf16.mxu0 0
        %950 = vmatpush1.bf16.msra.mxu0 0
        %951 = vmatprep.subr.bf16.mxu0 0
        %952 = vmatpush1.bf16.msra.mxu0 0
        %953 = vmatprep.subr.bf16.mxu0 0
        %954 = vmatpush1.bf16.msra.mxu0 0
        %955 = vmatprep.subr.bf16.mxu0 0
        %956 = vmatpush1.bf16.msra.mxu0 0
        %957 = vmatprep.subr.bf16.mxu0 0
        %958 = vmatpush1.bf16.msra.mxu0 0
        %959 = vmatprep.subr.bf16.mxu0 0
        %960 = vmatpush1.bf16.msra.mxu0 0
        %961 = vmatprep.subr.bf16.mxu0 0
        %962 = vmatpush1.bf16.msra.mxu0 0
        %963 = vmatprep.subr.bf16.mxu0 0
        %964 = vmatpush1.bf16.msra.mxu0 0
        %965 = vmatprep.subr.bf16.mxu0 0
        %966 = vmatpush1.bf16.msra.mxu0 0
        %967 = vmatprep.subr.bf16.mxu0 0
        %968 = vmatpush1.bf16.msra.mxu0 0
        %969 = vmatprep.mubr.bf16.mxu0 0
        %970 = vmatmul.mubr.bf16.gmra.mrb[0].mxu0 %v932
        %v971 = vpop.f32.mrb[0].mxu0
        %v972 = vadd.f32 0.0, %v971
        %v973 = vpop.f32.mrb[0].mxu0
        %v974 = vpop.f32.mrb[0].mxu0
        %v975 = vpop.f32.mrb[0].mxu0
        %976 = vdwg.mxu0
        %v977 = vpack.c.bf16 %v972, %v972
        %v979 = vsel %vm756, %v977, 0
        %v982 = vsel %vm821, %v609, 0
        %984 = vmatprep.subr.bf16.mxu0 0
        %985 = vmatpush1.bf16.msra.mxu0 %v982
        %986 = vmatprep.subr.bf16.mxu0 0
        %987 = vmatpush1.bf16.msra.mxu0 0
        %988 = vmatprep.subr.bf16.mxu0 0
        %989 = vmatpush1.bf16.msra.mxu0 0
        %990 = vmatprep.subr.bf16.mxu0 0
        %991 = vmatpush1.bf16.msra.mxu0 0
        %992 = vmatprep.subr.bf16.mxu0 0
        %993 = vmatpush1.bf16.msra.mxu0 0
        %994 = vmatprep.subr.bf16.mxu0 0
        %995 = vmatpush1.bf16.msra.mxu0 0
        %996 = vmatprep.subr.bf16.mxu0 0
        %997 = vmatpush1.bf16.msra.mxu0 0
        %998 = vmatprep.subr.bf16.mxu0 0
        %999 = vmatpush1.bf16.msra.mxu0 0
        %1000 = vmatprep.subr.bf16.mxu0 0
        %1001 = vmatpush1.bf16.msra.mxu0 0
        %1002 = vmatprep.subr.bf16.mxu0 0
        %1003 = vmatpush1.bf16.msra.mxu0 0
        %1004 = vmatprep.subr.bf16.mxu0 0
        %1005 = vmatpush1.bf16.msra.mxu0 0
        %1006 = vmatprep.subr.bf16.mxu0 0
        %1007 = vmatpush1.bf16.msra.mxu0 0
        %1008 = vmatprep.subr.bf16.mxu0 0
        %1009 = vmatpush1.bf16.msra.mxu0 0
        %1010 = vmatprep.subr.bf16.mxu0 0
        %1011 = vmatpush1.bf16.msra.mxu0 0
        %1012 = vmatprep.subr.bf16.mxu0 0
        %1013 = vmatpush1.bf16.msra.mxu0 0
        %1014 = vmatprep.subr.bf16.mxu0 0
        %1015 = vmatpush1.bf16.msra.mxu0 0
        %1016 = vmatprep.mubr.bf16.mxu0 0
        %1017 = vmatmul.mubr.bf16.gmra.mrb[0].mxu0 %v979
        %v1018 = vpop.f32.mrb[0].mxu0
        %v1019 = vadd.f32 0.0, %v1018
        %v1020 = vpop.f32.mrb[0].mxu0
        %v1021 = vpop.f32.mrb[0].mxu0
        %v1022 = vpop.f32.mrb[0].mxu0
        %1023 = vdwg.mxu0
        %v1025 = vsel %vm756, %v865, 0
        %v1028 = vsel %vm821, %v608, 0
        %1030 = vmatprep.subr.bf16.mxu0 0
        %1031 = vmatpush1.bf16.msra.mxu0 %v1028
        %1032 = vmatprep.subr.bf16.mxu0 0
        %1033 = vmatpush1.bf16.msra.mxu0 0
        %1034 = vmatprep.subr.bf16.mxu0 0
        %1035 = vmatpush1.bf16.msra.mxu0 0
        %1036 = vmatprep.subr.bf16.mxu0 0
        %1037 = vmatpush1.bf16.msra.mxu0 0
        %1038 = vmatprep.subr.bf16.mxu0 0
        %1039 = vmatpush1.bf16.msra.mxu0 0
        %1040 = vmatprep.subr.bf16.mxu0 0
        %1041 = vmatpush1.bf16.msra.mxu0 0
        %1042 = vmatprep.subr.bf16.mxu0 0
        %1043 = vmatpush1.bf16.msra.mxu0 0
        %1044 = vmatprep.subr.bf16.mxu0 0
        %1045 = vmatpush1.bf16.msra.mxu0 0
        %1046 = vmatprep.subr.bf16.mxu0 0
        %1047 = vmatpush1.bf16.msra.mxu0 0
        %1048 = vmatprep.subr.bf16.mxu0 0
        %1049 = vmatpush1.bf16.msra.mxu0 0
        %1050 = vmatprep.subr.bf16.mxu0 0
        %1051 = vmatpush1.bf16.msra.mxu0 0
        %1052 = vmatprep.subr.bf16.mxu0 0
        %1053 = vmatpush1.bf16.msra.mxu0 0
        %1054 = vmatprep.subr.bf16.mxu0 0
        %1055 = vmatpush1.bf16.msra.mxu0 0
        %1056 = vmatprep.subr.bf16.mxu0 0
        %1057 = vmatpush1.bf16.msra.mxu0 0
        %1058 = vmatprep.subr.bf16.mxu0 0
        %1059 = vmatpush1.bf16.msra.mxu0 0
        %1060 = vmatprep.subr.bf16.mxu0 0
        %1061 = vmatpush1.bf16.msra.mxu0 0
        %1062 = vmatprep.mubr.bf16.mxu0 0
        %1063 = vmatmul.mubr.bf16.gmra.mrb[0].mxu0 %v1025
        %v1064 = vpop.f32.mrb[0].mxu0
        %v1065 = vadd.f32 %v1019, %v1064
        %v1066 = vpop.f32.mrb[0].mxu0
        %v1067 = vpop.f32.mrb[0].mxu0
        %v1068 = vpop.f32.mrb[0].mxu0
        %1069 = vdwg.mxu0
        %1070 = vrot.lane.b32.xlu0 %v739, 112
        %v1071 = vpop.permute.xlu0 %1070
        %1072 = vrot.lane.b32.xlu0 %v740, 112
        %v1073 = vpop.permute.xlu0 %1072
        %v1075 = vsel %vm756, %v1071, 0
        %v1078 = vsel %vm756, %v1073, 0
        %1080 = vmatprep.subr.bf16.mxu0 0
        %1081 = vmatpush1.bf16.xpose.msra.mxu0 %v1078
        %1082 = vmatprep.subr.bf16.mxu0 0
        %1083 = vmatpush1.bf16.xpose.msra.mxu0 0
        %1084 = vmatprep.subr.bf16.mxu0 0
        %1085 = vmatpush1.bf16.xpose.msra.mxu0 0
        %1086 = vmatprep.subr.bf16.mxu0 0
        %1087 = vmatpush1.bf16.xpose.msra.mxu0 0
        %1088 = vmatprep.subr.bf16.mxu0 0
        %1089 = vmatpush1.bf16.xpose.msra.mxu0 0
        %1090 = vmatprep.subr.bf16.mxu0 0
        %1091 = vmatpush1.bf16.xpose.msra.mxu0 0
        %1092 = vmatprep.subr.bf16.mxu0 0
        %1093 = vmatpush1.bf16.xpose.msra.mxu0 0
        %1094 = vmatprep.subr.bf16.mxu0 0
        %1095 = vmatpush1.bf16.xpose.msra.mxu0 0
        %1096 = vmatprep.subr.bf16.mxu0 0
        %1097 = vmatpush1.bf16.xpose.msra.mxu0 0
        %1098 = vmatprep.subr.bf16.mxu0 0
        %1099 = vmatpush1.bf16.xpose.msra.mxu0 0
        %1100 = vmatprep.subr.bf16.mxu0 0
        %1101 = vmatpush1.bf16.xpose.msra.mxu0 0
        %1102 = vmatprep.subr.bf16.mxu0 0
        %1103 = vmatpush1.bf16.xpose.msra.mxu0 0
        %1104 = vmatprep.subr.bf16.mxu0 0
        %1105 = vmatpush1.bf16.xpose.msra.mxu0 0
        %1106 = vmatprep.subr.bf16.mxu0 0
        %1107 = vmatpush1.bf16.xpose.msra.mxu0 0
        %1108 = vmatprep.subr.bf16.mxu0 0
        %1109 = vmatpush1.bf16.xpose.msra.mxu0 0
        %1110 = vmatprep.subr.bf16.mxu0 0
        %1111 = vmatpush1.bf16.xpose.msra.mxu0 0
        %1112 = vmatprep.mubr.bf16.mxu0 0
        %1113 = vmatmul.mubr.bf16.gmra.mrb[0].mxu0 %v1075
        %v1114 = vpop.f32.mrb[0].mxu0
        %v1115 = vadd.f32 %v755, %v1114
        %v1116 = vpop.f32.mrb[0].mxu0
        %v1117 = vpop.f32.mrb[0].mxu0
        %v1118 = vpop.f32.mrb[0].mxu0
        %1119 = vdwg.mxu0
        %v1120 = vsel %vm756, %v1115, -inf
        %1121 = vmax.xlane.f32.xlu0 %v1120
        %v1122 = vpop.xlane.xlu0 %1121
        %v1123 = vsub.f32 %v1115, %v1122
        %v1124 = vmul.f32 %v1123, 1.442695
        %v1125 = vpow.pop %v1124
        %v1126 = vsel %vm756, %v1125, 0.0
        %1127 = vadd.xlane.f32.xlu0 %v1126
        %v1128 = vpop.xlane.xlu0 %1127
        %v1129 = vrcp.pop %v1128
        %v1130 = vmul.f32 %v1125, %v1129
        %v1131 = vpack.c.bf16 %v1130, %v1130
        %1132 = vrot.lane.b32.xlu0 %v740, 80
        %v1133 = vpop.permute.xlu0 %1132
        %v1135 = vsel %vm756, %v1131, 0
        %v1138 = vsel %vm821, %v1133, 0
        %1140 = vmatprep.subr.bf16.mxu0 0
        %1141 = vmatpush1.bf16.msra.mxu0 %v1138
        %1142 = vmatprep.subr.bf16.mxu0 0
        %1143 = vmatpush1.bf16.msra.mxu0 0
        %1144 = vmatprep.subr.bf16.mxu0 0
        %1145 = vmatpush1.bf16.msra.mxu0 0
        %1146 = vmatprep.subr.bf16.mxu0 0
        %1147 = vmatpush1.bf16.msra.mxu0 0
        %1148 = vmatprep.subr.bf16.mxu0 0
        %1149 = vmatpush1.bf16.msra.mxu0 0
        %1150 = vmatprep.subr.bf16.mxu0 0
        %1151 = vmatpush1.bf16.msra.mxu0 0
        %1152 = vmatprep.subr.bf16.mxu0 0
        %1153 = vmatpush1.bf16.msra.mxu0 0
        %1154 = vmatprep.subr.bf16.mxu0 0
        %1155 = vmatpush1.bf16.msra.mxu0 0
        %1156 = vmatprep.subr.bf16.mxu0 0
        %1157 = vmatpush1.bf16.msra.mxu0 0
        %1158 = vmatprep.subr.bf16.mxu0 0
        %1159 = vmatpush1.bf16.msra.mxu0 0
        %1160 = vmatprep.subr.bf16.mxu0 0
        %1161 = vmatpush1.bf16.msra.mxu0 0
        %1162 = vmatprep.subr.bf16.mxu0 0
        %1163 = vmatpush1.bf16.msra.mxu0 0
        %1164 = vmatprep.subr.bf16.mxu0 0
        %1165 = vmatpush1.bf16.msra.mxu0 0
        %1166 = vmatprep.subr.bf16.mxu0 0
        %1167 = vmatpush1.bf16.msra.mxu0 0
        %1168 = vmatprep.subr.bf16.mxu0 0
        %1169 = vmatpush1.bf16.msra.mxu0 0
        %1170 = vmatprep.subr.bf16.mxu0 0
        %1171 = vmatpush1.bf16.msra.mxu0 0
        %1172 = vmatprep.mubr.bf16.mxu0 0
        %1173 = vmatmul.mubr.bf16.gmra.mrb[0].mxu0 %v1135
        %v1174 = vpop.f32.mrb[0].mxu0
        %v1175 = vadd.f32 0.0, %v1174
        %v1176 = vpop.f32.mrb[0].mxu0
        %v1177 = vpop.f32.mrb[0].mxu0
        %v1178 = vpop.f32.mrb[0].mxu0
        %1179 = vdwg.mxu0
        %v1180 = vpack.c.bf16 %v1175, %v1175
        %v1182 = vsel %vm756, %v1180, 0
        %v1185 = vsel %vm821, %v610, 0
        %1187 = vmatprep.subr.bf16.mxu0 0
        %1188 = vmatpush1.bf16.msra.mxu0 %v1185
        %1189 = vmatprep.subr.bf16.mxu0 0
        %1190 = vmatpush1.bf16.msra.mxu0 0
        %1191 = vmatprep.subr.bf16.mxu0 0
        %1192 = vmatpush1.bf16.msra.mxu0 0
        %1193 = vmatprep.subr.bf16.mxu0 0
        %1194 = vmatpush1.bf16.msra.mxu0 0
        %1195 = vmatprep.subr.bf16.mxu0 0
        %1196 = vmatpush1.bf16.msra.mxu0 0
        %1197 = vmatprep.subr.bf16.mxu0 0
        %1198 = vmatpush1.bf16.msra.mxu0 0
        %1199 = vmatprep.subr.bf16.mxu0 0
        %1200 = vmatpush1.bf16.msra.mxu0 0
        %1201 = vmatprep.subr.bf16.mxu0 0
        %1202 = vmatpush1.bf16.msra.mxu0 0
        %1203 = vmatprep.subr.bf16.mxu0 0
        %1204 = vmatpush1.bf16.msra.mxu0 0
        %1205 = vmatprep.subr.bf16.mxu0 0
        %1206 = vmatpush1.bf16.msra.mxu0 0
        %1207 = vmatprep.subr.bf16.mxu0 0
        %1208 = vmatpush1.bf16.msra.mxu0 0
        %1209 = vmatprep.subr.bf16.mxu0 0
        %1210 = vmatpush1.bf16.msra.mxu0 0
        %1211 = vmatprep.subr.bf16.mxu0 0
        %1212 = vmatpush1.bf16.msra.mxu0 0
        %1213 = vmatprep.subr.bf16.mxu0 0
        %1214 = vmatpush1.bf16.msra.mxu0 0
        %1215 = vmatprep.subr.bf16.mxu0 0
        %1216 = vmatpush1.bf16.msra.mxu0 0
        %1217 = vmatprep.subr.bf16.mxu0 0
        %1218 = vmatpush1.bf16.msra.mxu0 0
        %1219 = vmatprep.mubr.bf16.mxu0 0
        %1220 = vmatmul.mubr.bf16.gmra.mrb[0].mxu0 %v1182
        %v1221 = vpop.f32.mrb[0].mxu0
        %v1222 = vadd.f32 0.0, %v1221
        %v1223 = vpop.f32.mrb[0].mxu0
        %v1224 = vpop.f32.mrb[0].mxu0
        %v1225 = vpop.f32.mrb[0].mxu0
        %1226 = vdwg.mxu0
        %v1227 = vadd.f32 %v1065, %v1222
        %1228 = vrot.lane.b32.xlu0 %v739, 104
        %v1229 = vpop.permute.xlu0 %1228
        %1230 = vrot.lane.b32.xlu0 %v740, 104
        %v1231 = vpop.permute.xlu0 %1230
        %v1233 = vsel %vm756, %v1229, 0
        %v1236 = vsel %vm756, %v1231, 0
        %1238 = vmatprep.subr.bf16.mxu0 0
        %1239 = vmatpush1.bf16.xpose.msra.mxu0 %v1236
        %1240 = vmatprep.subr.bf16.mxu0 0
        %1241 = vmatpush1.bf16.xpose.msra.mxu0 0
        %1242 = vmatprep.subr.bf16.mxu0 0
        %1243 = vmatpush1.bf16.xpose.msra.mxu0 0
        %1244 = vmatprep.subr.bf16.mxu0 0
        %1245 = vmatpush1.bf16.xpose.msra.mxu0 0
        %1246 = vmatprep.subr.bf16.mxu0 0
        %1247 = vmatpush1.bf16.xpose.msra.mxu0 0
        %1248 = vmatprep.subr.bf16.mxu0 0
        %1249 = vmatpush1.bf16.xpose.msra.mxu0 0
        %1250 = vmatprep.subr.bf16.mxu0 0
        %1251 = vmatpush1.bf16.xpose.msra.mxu0 0
        %1252 = vmatprep.subr.bf16.mxu0 0
        %1253 = vmatpush1.bf16.xpose.msra.mxu0 0
        %1254 = vmatprep.subr.bf16.mxu0 0
        %1255 = vmatpush1.bf16.xpose.msra.mxu0 0
        %1256 = vmatprep.subr.bf16.mxu0 0
        %1257 = vmatpush1.bf16.xpose.msra.mxu0 0
        %1258 = vmatprep.subr.bf16.mxu0 0
        %1259 = vmatpush1.bf16.xpose.msra.mxu0 0
        %1260 = vmatprep.subr.bf16.mxu0 0
        %1261 = vmatpush1.bf16.xpose.msra.mxu0 0
        %1262 = vmatprep.subr.bf16.mxu0 0
        %1263 = vmatpush1.bf16.xpose.msra.mxu0 0
        %1264 = vmatprep.subr.bf16.mxu0 0
        %1265 = vmatpush1.bf16.xpose.msra.mxu0 0
        %1266 = vmatprep.subr.bf16.mxu0 0
        %1267 = vmatpush1.bf16.xpose.msra.mxu0 0
        %1268 = vmatprep.subr.bf16.mxu0 0
        %1269 = vmatpush1.bf16.xpose.msra.mxu0 0
        %1270 = vmatprep.mubr.bf16.mxu0 0
        %1271 = vmatmul.mubr.bf16.gmra.mrb[0].mxu0 %v1233
        %v1272 = vpop.f32.mrb[0].mxu0
        %v1273 = vadd.f32 %v755, %v1272
        %v1274 = vpop.f32.mrb[0].mxu0
        %v1275 = vpop.f32.mrb[0].mxu0
        %v1276 = vpop.f32.mrb[0].mxu0
        %1277 = vdwg.mxu0
        %v1278 = vsel %vm756, %v1273, -inf
        %1279 = vmax.xlane.f32.xlu0 %v1278
        %v1280 = vpop.xlane.xlu0 %1279
        %v1281 = vsub.f32 %v1273, %v1280
        %v1282 = vmul.f32 %v1281, 1.442695
        %v1283 = vpow.pop %v1282
        %v1284 = vsel %vm756, %v1283, 0.0
        %1285 = vadd.xlane.f32.xlu0 %v1284
        %v1286 = vpop.xlane.xlu0 %1285
        %v1287 = vrcp.pop %v1286
        %v1288 = vmul.f32 %v1283, %v1287
        %v1289 = vpack.c.bf16 %v1288, %v1288
        %1290 = vrot.lane.b32.xlu0 %v740, 72
        %v1291 = vpop.permute.xlu0 %1290
        %v1293 = vsel %vm756, %v1289, 0
        %v1296 = vsel %vm821, %v1291, 0
        %1298 = vmatprep.subr.bf16.mxu0 0
        %1299 = vmatpush1.bf16.msra.mxu0 %v1296
        %1300 = vmatprep.subr.bf16.mxu0 0
        %1301 = vmatpush1.bf16.msra.mxu0 0
        %1302 = vmatprep.subr.bf16.mxu0 0
        %1303 = vmatpush1.bf16.msra.mxu0 0
        %1304 = vmatprep.subr.bf16.mxu0 0
        %1305 = vmatpush1.bf16.msra.mxu0 0
        %1306 = vmatprep.subr.bf16.mxu0 0
        %1307 = vmatpush1.bf16.msra.mxu0 0
        %1308 = vmatprep.subr.bf16.mxu0 0
        %1309 = vmatpush1.bf16.msra.mxu0 0
        %1310 = vmatprep.subr.bf16.mxu0 0
        %1311 = vmatpush1.bf16.msra.mxu0 0
        %1312 = vmatprep.subr.bf16.mxu0 0
        %1313 = vmatpush1.bf16.msra.mxu0 0
        %1314 = vmatprep.subr.bf16.mxu0 0
        %1315 = vmatpush1.bf16.msra.mxu0 0
        %1316 = vmatprep.subr.bf16.mxu0 0
        %1317 = vmatpush1.bf16.msra.mxu0 0
        %1318 = vmatprep.subr.bf16.mxu0 0
        %1319 = vmatpush1.bf16.msra.mxu0 0
        %1320 = vmatprep.subr.bf16.mxu0 0
        %1321 = vmatpush1.bf16.msra.mxu0 0
        %1322 = vmatprep.subr.bf16.mxu0 0
        %1323 = vmatpush1.bf16.msra.mxu0 0
        %1324 = vmatprep.subr.bf16.mxu0 0
        %1325 = vmatpush1.bf16.msra.mxu0 0
        %1326 = vmatprep.subr.bf16.mxu0 0
        %1327 = vmatpush1.bf16.msra.mxu0 0
        %1328 = vmatprep.subr.bf16.mxu0 0
        %1329 = vmatpush1.bf16.msra.mxu0 0
        %1330 = vmatprep.mubr.bf16.mxu0 0
        %1331 = vmatmul.mubr.bf16.gmra.mrb[0].mxu0 %v1293
        %v1332 = vpop.f32.mrb[0].mxu0
        %v1333 = vadd.f32 0.0, %v1332
        %v1334 = vpop.f32.mrb[0].mxu0
        %v1335 = vpop.f32.mrb[0].mxu0
        %v1336 = vpop.f32.mrb[0].mxu0
        %1337 = vdwg.mxu0
        %v1338 = vpack.c.bf16 %v1333, %v1333
        %v1340 = vsel %vm756, %v1338, 0
        %v1343 = vsel %vm821, %v611, 0
        %1345 = vmatprep.subr.bf16.mxu0 0
        %1346 = vmatpush1.bf16.msra.mxu0 %v1343
        %1347 = vmatprep.subr.bf16.mxu0 0
        %1348 = vmatpush1.bf16.msra.mxu0 0
        %1349 = vmatprep.subr.bf16.mxu0 0
        %1350 = vmatpush1.bf16.msra.mxu0 0
        %1351 = vmatprep.subr.bf16.mxu0 0
        %1352 = vmatpush1.bf16.msra.mxu0 0
        %1353 = vmatprep.subr.bf16.mxu0 0
        %1354 = vmatpush1.bf16.msra.mxu0 0
        %1355 = vmatprep.subr.bf16.mxu0 0
        %1356 = vmatpush1.bf16.msra.mxu0 0
        %1357 = vmatprep.subr.bf16.mxu0 0
        %1358 = vmatpush1.bf16.msra.mxu0 0
        %1359 = vmatprep.subr.bf16.mxu0 0
        %1360 = vmatpush1.bf16.msra.mxu0 0
        %1361 = vmatprep.subr.bf16.mxu0 0
        %1362 = vmatpush1.bf16.msra.mxu0 0
        %1363 = vmatprep.subr.bf16.mxu0 0
        %1364 = vmatpush1.bf16.msra.mxu0 0
        %1365 = vmatprep.subr.bf16.mxu0 0
        %1366 = vmatpush1.bf16.msra.mxu0 0
        %1367 = vmatprep.subr.bf16.mxu0 0
        %1368 = vmatpush1.bf16.msra.mxu0 0
        %1369 = vmatprep.subr.bf16.mxu0 0
        %1370 = vmatpush1.bf16.msra.mxu0 0
        %1371 = vmatprep.subr.bf16.mxu0 0
        %1372 = vmatpush1.bf16.msra.mxu0 0
        %1373 = vmatprep.subr.bf16.mxu0 0
        %1374 = vmatpush1.bf16.msra.mxu0 0
        %1375 = vmatprep.subr.bf16.mxu0 0
        %1376 = vmatpush1.bf16.msra.mxu0 0
        %1377 = vmatprep.mubr.bf16.mxu0 0
        %1378 = vmatmul.mubr.bf16.gmra.mrb[0].mxu0 %v1340
        %v1379 = vpop.f32.mrb[0].mxu0
        %v1380 = vadd.f32 0.0, %v1379
        %v1381 = vpop.f32.mrb[0].mxu0
        %v1382 = vpop.f32.mrb[0].mxu0
        %v1383 = vpop.f32.mrb[0].mxu0
        %1384 = vdwg.mxu0
        %v1385 = vadd.f32 %v1227, %v1380
        %v1386 = vunpack.c.l.bf16 %v595
        %v1387 = vadd.f32 %v1386, %v1385
        %v1389 = vlaneseq
        %v1390 = vshrl.u32 %v1389, 7
        %v1391 = vsub.s32 0, %v1390
        %v1392 = vrot.slane %v612, %v1391
        %v1394 = vadd.f32 %v1387, %v1392
        %v1395 = vsel %vm633, %v1394, 0.0
        %1396 = vadd.xlane.f32.xlu0 %v1395
        %v1397 = vpop.xlane.xlu0 %1396
        %v1398 = vrcp.pop 32.0
        %v1399 = vmul.f32 %v1397, %v1398
        %v1400 = vsub.f32 %v1394, %v1399
        %v1401 = vmul.f32 %v1400, %v1400
        %v1402 = vsel %vm633, %v1401, 0.0
        %1403 = vadd.xlane.f32.xlu0 %v1402
        %v1404 = vpop.xlane.xlu0 %1403
        %v1405 = vmul.f32 %v1404, %v1398
        %v1406 = vadd.f32 %v1405, 1e-05
        %v1407 = vrsqrt.pop %v1406
        %v1408 = vmul.f32 %v1400, %v1407
        %v1410 = vlaneseq
        %v1411 = vshrl.u32 %v1410, 7
        %v1412 = vsub.s32 0, %v1411
        %v1413 = vrot.slane %v613, %v1412
        %v1415 = vmul.f32 %v1408, %v1413
        %v1417 = vlaneseq
        %v1418 = vshrl.u32 %v1417, 7
        %v1419 = vsub.s32 0, %v1418
        %v1420 = vrot.slane %v614, %v1419
        %v1422 = vadd.f32 %v1415, %v1420
        %v1423 = vpack.c.bf16 %v1422, %v1422
        %vm1424 = vcmask 257024
        %1425 = vst.msk [vmem:[%s592] sm:$0xf] %vm1424, %v1423
        %s1426 = sand.u32 %s305, 1
        %s1427 = scalar_lea.sflag [#allocation4], %s1426
        %s1428 = sand.u32 %s305, 1
        %s1429 = smul.addr %s1428, 4
        %s1430 = scalar_lea.vmem [#allocation20], %s1429
        // Predicated region
        $region109: #{seq2seq_forward.15} parent=63 // pred_check
          %p1431 = pneg %p315
        $region110: #{seq2seq_forward.15} parent=63 // pred_check_branch
          %1433 = sbr.rel (%p1431) target = $region112
        $region111: #{seq2seq_forward.15} parent=63 // pred_region
          %s1435 = ssub.s32 64, 64
          %1436 = vsyncadd %s1427, %s1435
          %s1437 = sadd.s32 %s40, %s39
          %s1438 = smul.addr %s1437, 64
          %s1439 = scalar_lea.hbm %s11, %s1438
          %s1441 = sshll.u32 %s1430, 4
          %s1442 = int_to_ptr.vmem [resolvable:$true] %s1441
          %1444 = dma.vmem_to_hbm [thread:$0]  %s1442, 64, %s1439, %s1427
        $region112: #{seq2seq_forward.15} parent=63 // pred_fallthru
          _
      $region64: #{seq2seq_forward.15} parent=5 // pred_fallthru
        _
      %p1445 = scmp.le.s32.totalorder 2, %s30
      // Predicated region
      $region113: #{seq2seq_forward.15} parent=5 // pred_check
        %p1446 = pneg %p1445
      $region114: #{seq2seq_forward.15} parent=5 // pred_check_branch
        %1448 = sbr.rel (%p1446) target = $region116
      $region115: #{seq2seq_forward.15} parent=5 // pred_region
        %s1449 = ssub.s32 %s30, 2
        // Predicated region
        $region117: #{seq2seq_forward.15} parent=115 // pred_check
          %p1450 = pneg %p321
        $region118: #{seq2seq_forward.15} parent=115 // pred_check_branch
          %1452 = sbr.rel (%p1450) target = $region120
        $region119: #{seq2seq_forward.15} parent=115 // pred_region
          %s1453 = sand.u32 %s306, 1
          %s1454 = scalar_lea.sflag [#allocation4], %s1453
          %s1455 = sand.u32 %s306, 1
          %s1456 = smul.addr %s1455, 4
          %s1457 = scalar_lea.vmem [#allocation20], %s1456
          %1458 = dma.done %s1454, 64
        $region120: #{seq2seq_forward.15} parent=115 // pred_fallthru
          _
      $region116: #{seq2seq_forward.15} parent=5 // pred_fallthru
        _
    $region6: #{seq2seq_forward.15} parent=1 // loop_footer
      %s34 = sadd.s32 1, %s30
    $region7: #{seq2seq_forward.15} parent=1 // loop_footer_branch
      %29 = sbr.rel target = $region3
    $region8: #{seq2seq_forward.15} parent=1 // loop_exit
      _
    %1459 = vsyncpa [#allocation3], 1
    %s1460 = scalar_lea.sflag [#allocation3], 1
    %1461 = vsyncpa %s1460, 1
    %1462 = vsyncpa [#allocation6], 1
    %s1463 = scalar_lea.sflag [#allocation6], 1
    %1464 = vsyncpa %s1463, 1
    %1465 = vsyncpa [#allocation9], 1
    %1466 = vsyncpa [#allocation12], 1
    %1467 = vsyncpa [#allocation15], 1
    %1468 = vsyncpa [#allocation18], 1
    %1469 = vsyncpa [#allocation4], 1
    %s1470 = scalar_lea.sflag [#allocation4], 1
    %1471 = vsyncpa %s1470, 1

// kernel: seq2seq_forward.19
$region0: #{seq2seq_forward.19}
  #allocation0 [shape = 'u32[]', space=smem, size = 0x4, offset = 0x4, fixed_abs, tag = 'smem constant byte address 0x4 - core index']
  #allocation1 [shape = 'u32[144,128]{1,0:T(1,128)}', space=vmem, size = 0x12000, scoped, tag = 'internal scratch']
  %s0 = inlined_call_operand.hbm [shape: bf16[2,8,32], index: 0, kind: input, shape index: {}]
  %s1 = inlined_call_operand.hbm [shape: bf16[2,8,32], index: 1, kind: input, shape index: {}]
  %s2 = inlined_call_operand.hbm [shape: f32[2,1,8], index: 2, kind: input, shape index: {}]
  %s3 = inlined_call_operand.hbm [shape: bf16[32,32], index: 3, kind: input, shape index: {}]
  %s4 = inlined_call_operand.hbm [shape: f32[1,32], index: 4, kind: input, shape index: {}]
  %s5 = inlined_call_operand.hbm [shape: bf16[32,64], index: 5, kind: input, shape index: {}]
  %s6 = inlined_call_operand.hbm [shape: f32[1,64], index: 6, kind: input, shape index: {}]
  %s7 = inlined_call_operand.hbm [shape: bf16[32,32], index: 7, kind: input, shape index: {}]
  %s8 = inlined_call_operand.hbm [shape: f32[1,32], index: 8, kind: input, shape index: {}]
  %s9 = inlined_call_operand.hbm [shape: f32[1,32], index: 9, kind: input, shape index: {}]
  %s10 = inlined_call_operand.hbm [shape: f32[1,32], index: 10, kind: input, shape index: {}]
  %s11 = inlined_call_operand.hbm [shape: bf16[2,8,32], index: 11, kind: output, shape index: {0}]
  %s12 = inlined_call_operand.hbm [shape: f32[2,4,8,8], index: 12, kind: output, shape index: {1}]
  %13 = xla_tuple %s11, %s12
  %s14 = sld [smem:[#allocation0]]
  $region129: #{seq2seq_forward.19} parent=0
    _
  %s16 = ssub.s32 1, %s14
  %s17 = scalar_select 0, %s16, %s14
  $region1: #{seq2seq_forward.19} parent=0
    #allocation2 [shape = 'u8[4096]{0}', space=vmem, size = 0x1000, scoped, tag = 'input window, operand 0']
    #allocation3 [shape = 's32[2]{0}', space=sflag, size = 0x8, scoped, tag = 'scoped memory for seq2seq_forward.19']
    #allocation4 [shape = 's32[2]{0}', space=sflag, size = 0x8, scoped, tag = 'scoped memory for seq2seq_forward.19']
    #allocation5 [shape = 'u8[4096]{0}', space=vmem, size = 0x1000, scoped, tag = 'input window, operand 1']
    #allocation6 [shape = 's32[2]{0}', space=sflag, size = 0x8, scoped, tag = 'scoped memory for seq2seq_forward.19']
    #allocation7 [shape = 'u8[1024]{0}', space=vmem, size = 0x400, scoped, tag = 'input window, operand 2']
    #allocation8 [shape = 'u8[8192]{0}', space=vmem, size = 0x2000, scoped, tag = 'input window, operand 3, single buffered']
    #allocation9 [shape = 's32[1]{0}', space=sflag, size = 0x4, scoped, tag = 'scoped memory for seq2seq_forward.19']
    #allocation10 [shape = 'u8[512]{0}', space=vmem, size = 0x400, scoped, tag = 'input window, operand 4, single buffered']
    #allocation11 [shape = 'u8[8192]{0}', space=vmem, size = 0x2000, scoped, tag = 'input window, operand 5, single buffered']
    #allocation12 [shape = 's32[1]{0}', space=sflag, size = 0x4, scoped, tag = 'scoped memory for seq2seq_forward.19']
    #allocation13 [shape = 'u8[512]{0}', space=vmem, size = 0x400, scoped, tag = 'input window, operand 6, single buffered']
    #allocation14 [shape = 'u8[8192]{0}', space=vmem, size = 0x2000, scoped, tag = 'input window, operand 7, single buffered']
    #allocation15 [shape = 's32[1]{0}', space=sflag, size = 0x4, scoped, tag = 'scoped memory for seq2seq_forward.19']
    #allocation16 [shape = 'u8[512]{0}', space=vmem, size = 0x400, scoped, tag = 'input window, operand 8, single buffered']
    #allocation17 [shape = 'u8[512]{0}', space=vmem, size = 0x400, scoped, tag = 'input window, operand 9, single buffered']
    #allocation18 [shape = 's32[1]{0}', space=sflag, size = 0x4, scoped, tag = 'scoped memory for seq2seq_forward.19']
    #allocation19 [shape = 'u8[512]{0}', space=vmem, size = 0x400, scoped, tag = 'input window, operand 10, single buffered']
    #allocation20 [shape = 'u8[4096]{0}', space=vmem, size = 0x1000, scoped, tag = 'output window, operand 0']
    #allocation21 [shape = 'u8[32768]{0}', space=vmem, size = 0x8000, scoped, tag = 'output window, operand 1']
    #allocation22 [shape = 's32[2]{0}', space=sflag, size = 0x8, scoped, tag = 'scoped memory for seq2seq_forward.19']
    %18 = vsyncpa [#allocation3], 0
    %s19 = scalar_lea.sflag [#allocation3], 1
    %20 = vsyncpa %s19, 0
    %21 = vsyncpa [#allocation6], 0
    %s22 = scalar_lea.sflag [#allocation6], 1
    %23 = vsyncpa %s22, 0
    %24 = vsyncpa [#allocation9], 0
    %25 = vsyncpa [#allocation12], 0
    %26 = vsyncpa [#allocation15], 0
    %27 = vsyncpa [#allocation18], 0
    %28 = vsyncpa [#allocation4], 0
    %s29 = scalar_lea.sflag [#allocation4], 1
    %30 = vsyncpa %s29, 0
    %31 = vsyncpa [#allocation22], 0
    %s32 = scalar_lea.sflag [#allocation22], 1
    %33 = vsyncpa %s32, 0
    loop: start=0, step=1, limit=4
    $region2: #{seq2seq_forward.19} parent=1 // loop_pre_header
      _
    $region3: #{seq2seq_forward.19} parent=1 // loop_header
      %s35 = sphi 0, %s39
      %p36 = scmp.ge.s32.totalorder %s35, 4
      %s42 = sphi 0, %s54
      %s43 = sphi 0, %s50
      %s44 = sphi 0, %s42
      %s45 = sphi 0, %s43
      %s46 = sphi 0, %s44
      %s47 = sphi 0, %s45
      %s59 = sphi 0, %s61
      %s62 = sphi 0, %s59
      %s63 = sphi 0, %s62
      %s79 = sphi 0, %s63
      %s85 = sphi 0, %s87
      %s88 = sphi 0, %s85
      %s89 = sphi 0, %s88
      %s105 = sphi 0, %s89
      %s111 = sphi 0, %s113
      %s114 = sphi 0, %s111
      %s115 = sphi 0, %s114
      %s131 = sphi 0, %s115
      %s135 = sphi 0, %s135
      %s137 = sphi 0, %s135
      %s138 = sphi 0, %s137
      %s152 = sphi 0, %s138
      %s156 = sphi 0, %s156
      %s158 = sphi 0, %s156
      %s159 = sphi 0, %s158
      %s173 = sphi 0, %s159
      %s177 = sphi 0, %s177
      %s179 = sphi 0, %s177
      %s180 = sphi 0, %s179
      %s194 = sphi 0, %s180
      %s198 = sphi 0, %s198
      %s200 = sphi 0, %s198
      %s201 = sphi 0, %s200
      %s215 = sphi 0, %s201
      %s219 = sphi 0, %s219
      %s221 = sphi 0, %s219
      %s222 = sphi 0, %s221
      %s236 = sphi 0, %s222
      %s240 = sphi 0, %s240
      %s242 = sphi 0, %s240
      %s243 = sphi 0, %s242
      %s257 = sphi 0, %s243
      %s261 = sphi 0, %s261
      %s263 = sphi 0, %s261
      %s264 = sphi 0, %s263
      %s278 = sphi 0, %s264
      %s282 = sphi 0, %s282
      %s284 = sphi 0, %s282
      %s285 = sphi 0, %s284
      %s299 = sphi 0, %s285
      %s307 = sphi 0, %s309
      %s310 = sphi 0, %s307
      %s311 = sphi 0, %s310
      %s327 = sphi 0, %s311
      %s335 = sphi 0, %s337
      %s338 = sphi 0, %s335
      %s339 = sphi 0, %s338
      %s355 = sphi 0, %s339
    $region4: #{seq2seq_forward.19} parent=1 // loop_header_branch
      %38 = sbr.rel (%p36) target = $region8
    $region5: #{seq2seq_forward.19} parent=1 // loop_body
      %s40 = ssub.s32 %s35, 1
      %s41 = ssub.s32 %s35, 2
      %s48 = sadd.s32 1, %s43
      %p49 = scmp.ge.s32.totalorder %s48, 1
      %s50 = scalar_select %p49, 0, %s48
      %s51 = sadd.s32 1, %s42
      %s52 = scalar_select %p49, %s51, %s42
      %p53 = scmp.ge.s32.totalorder %s52, 2
      %s54 = scalar_select %p53, 0, %s52
      %s55 = ssub.s32 %s42, %s54
      %s56 = ssub.s32 %s43, %s50
      %s57 = sor.u32 %s55, %s56
      %p58 = scmp.eq.s32.totalorder %s57, 0
      %s60 = sadd.s32 %s59, 1
      %s61 = scalar_select %p58, %s59, %s60
      %p64 = pneg %p58
      %p65 = scmp.eq.s32.totalorder %s35, 1
      %p66 = por %p64, %p65
      %p67 = scmp.ne.s32.totalorder %s59, %s62
      %p68 = scmp.eq.s32.totalorder %s35, 0
      %p69 = por %p67, %p68
      %p70 = scmp.ne.s32.totalorder %s59, %s62
      %p71 = scmp.eq.s32.totalorder %s40, 1
      %p72 = por %p70, %p71
      %p73 = scmp.ne.s32.totalorder %s62, %s63
      %p74 = scmp.eq.s32.totalorder %s40, 0
      %p75 = por %p73, %p74
      %p76 = scmp.ne.s32.totalorder %s62, %s63
      %p77 = scmp.eq.s32.totalorder %s41, 1
      %p78 = por %p76, %p77
      %p80 = scmp.ne.s32.totalorder %s63, %s79
      %p81 = scmp.eq.s32.totalorder %s41, 0
      %p82 = por %p80, %p81
      %s83 = ssub.s32 %s42, %s54
      %p84 = scmp.eq.s32.totalorder %s83, 0
      %s86 = sadd.s32 %s85, 1
      %s87 = scalar_select %p84, %s85, %s86
      %p90 = pneg %p84
      %p91 = scmp.eq.s32.totalorder %s35, 1
      %p92 = por %p90, %p91
      %p93 = scmp.ne.s32.totalorder %s85, %s88
      %p94 = scmp.eq.s32.totalorder %s35, 0
      %p95 = por %p93, %p94
      %p96 = scmp.ne.s32.totalorder %s85, %s88
      %p97 = scmp.eq.s32.totalorder %s40, 1
      %p98 = por %p96, %p97
      %p99 = scmp.ne.s32.totalorder %s88, %s89
      %p100 = scmp.eq.s32.totalorder %s40, 0
      %p101 = por %p99, %p100
      %p102 = scmp.ne.s32.totalorder %s88, %s89
      %p103 = scmp.eq.s32.totalorder %s41, 1
      %p104 = por %p102, %p103
      %p106 = scmp.ne.s32.totalorder %s89, %s105
      %p107 = scmp.eq.s32.totalorder %s41, 0
      %p108 = por %p106, %p107
      %s109 = ssub.s32 %s42, %s54
      %p110 = scmp.eq.s32.totalorder %s109, 0
      %s112 = sadd.s32 %s111, 1
      %s113 = scalar_select %p110, %s111, %s112
      %p116 = pneg %p110
      %p117 = scmp.eq.s32.totalorder %s35, 1
      %p118 = por %p116, %p117
      %p119 = scmp.ne.s32.totalorder %s111, %s114
      %p120 = scmp.eq.s32.totalorder %s35, 0
      %p121 = por %p119, %p120
      %p122 = scmp.ne.s32.totalorder %s111, %s114
      %p123 = scmp.eq.s32.totalorder %s40, 1
      %p124 = por %p122, %p123
      %p125 = scmp.ne.s32.totalorder %s114, %s115
      %p126 = scmp.eq.s32.totalorder %s40, 0
      %p127 = por %p125, %p126
      %p128 = scmp.ne.s32.totalorder %s114, %s115
      %p129 = scmp.eq.s32.totalorder %s41, 1
      %p130 = por %p128, %p129
      %p132 = scmp.ne.s32.totalorder %s115, %s131
      %p133 = scmp.eq.s32.totalorder %s41, 0
      %p134 = por %p132, %p133
      %s136 = sadd.s32 %s135, 1
      %p139 = scmp.eq.s32.totalorder %s35, 1
      %p140 = scmp.ne.s32.totalorder %s135, %s137
      %p141 = scmp.eq.s32.totalorder %s35, 0
      %p142 = por %p140, %p141
      %p143 = scmp.ne.s32.totalorder %s135, %s137
      %p144 = scmp.eq.s32.totalorder %s40, 1
      %p145 = por %p143, %p144
      %p146 = scmp.ne.s32.totalorder %s137, %s138
      %p147 = scmp.eq.s32.totalorder %s40, 0
      %p148 = por %p146, %p147
      %p149 = scmp.ne.s32.totalorder %s137, %s138
      %p150 = scmp.eq.s32.totalorder %s41, 1
      %p151 = por %p149, %p150
      %p153 = scmp.ne.s32.totalorder %s138, %s152
      %p154 = scmp.eq.s32.totalorder %s41, 0
      %p155 = por %p153, %p154
      %s157 = sadd.s32 %s156, 1
      %p160 = scmp.eq.s32.totalorder %s35, 1
      %p161 = scmp.ne.s32.totalorder %s156, %s158
      %p162 = scmp.eq.s32.totalorder %s35, 0
      %p163 = por %p161, %p162
      %p164 = scmp.ne.s32.totalorder %s156, %s158
      %p165 = scmp.eq.s32.totalorder %s40, 1
      %p166 = por %p164, %p165
      %p167 = scmp.ne.s32.totalorder %s158, %s159
      %p168 = scmp.eq.s32.totalorder %s40, 0
      %p169 = por %p167, %p168
      %p170 = scmp.ne.s32.totalorder %s158, %s159
      %p171 = scmp.eq.s32.totalorder %s41, 1
      %p172 = por %p170, %p171
      %p174 = scmp.ne.s32.totalorder %s159, %s173
      %p175 = scmp.eq.s32.totalorder %s41, 0
      %p176 = por %p174, %p175
      %s178 = sadd.s32 %s177, 1
      %p181 = scmp.eq.s32.totalorder %s35, 1
      %p182 = scmp.ne.s32.totalorder %s177, %s179
      %p183 = scmp.eq.s32.totalorder %s35, 0
      %p184 = por %p182, %p183
      %p185 = scmp.ne.s32.totalorder %s177, %s179
      %p186 = scmp.eq.s32.totalorder %s40, 1
      %p187 = por %p185, %p186
      %p188 = scmp.ne.s32.totalorder %s179, %s180
      %p189 = scmp.eq.s32.totalorder %s40, 0
      %p190 = por %p188, %p189
      %p191 = scmp.ne.s32.totalorder %s179, %s180
      %p192 = scmp.eq.s32.totalorder %s41, 1
      %p193 = por %p191, %p192
      %p195 = scmp.ne.s32.totalorder %s180, %s194
      %p196 = scmp.eq.s32.totalorder %s41, 0
      %p197 = por %p195, %p196
      %s199 = sadd.s32 %s198, 1
      %p202 = scmp.eq.s32.totalorder %s35, 1
      %p203 = scmp.ne.s32.totalorder %s198, %s200
      %p204 = scmp.eq.s32.totalorder %s35, 0
      %p205 = por %p203, %p204
      %p206 = scmp.ne.s32.totalorder %s198, %s200
      %p207 = scmp.eq.s32.totalorder %s40, 1
      %p208 = por %p206, %p207
      %p209 = scmp.ne.s32.totalorder %s200, %s201
      %p210 = scmp.eq.s32.totalorder %s40, 0
      %p211 = por %p209, %p210
      %p212 = scmp.ne.s32.totalorder %s200, %s201
      %p213 = scmp.eq.s32.totalorder %s41, 1
      %p214 = por %p212, %p213
      %p216 = scmp.ne.s32.totalorder %s201, %s215
      %p217 = scmp.eq.s32.totalorder %s41, 0
      %p218 = por %p216, %p217
      %s220 = sadd.s32 %s219, 1
      %p223 = scmp.eq.s32.totalorder %s35, 1
      %p224 = scmp.ne.s32.totalorder %s219, %s221
      %p225 = scmp.eq.s32.totalorder %s35, 0
      %p226 = por %p224, %p225
      %p227 = scmp.ne.s32.totalorder %s219, %s221
      %p228 = scmp.eq.s32.totalorder %s40, 1
      %p229 = por %p227, %p228
      %p230 = scmp.ne.s32.totalorder %s221, %s222
      %p231 = scmp.eq.s32.totalorder %s40, 0
      %p232 = por %p230, %p231
      %p233 = scmp.ne.s32.totalorder %s221, %s222
      %p234 = scmp.eq.s32.totalorder %s41, 1
      %p235 = por %p233, %p234
      %p237 = scmp.ne.s32.totalorder %s222, %s236
      %p238 = scmp.eq.s32.totalorder %s41, 0
      %p239 = por %p237, %p238
      %s241 = sadd.s32 %s240, 1
      %p244 = scmp.eq.s32.totalorder %s35, 1
      %p245 = scmp.ne.s32.totalorder %s240, %s242
      %p246 = scmp.eq.s32.totalorder %s35, 0
      %p247 = por %p245, %p246
      %p248 = scmp.ne.s32.totalorder %s240, %s242
      %p249 = scmp.eq.s32.totalorder %s40, 1
      %p250 = por %p248, %p249
      %p251 = scmp.ne.s32.totalorder %s242, %s243
      %p252 = scmp.eq.s32.totalorder %s40, 0
      %p253 = por %p251, %p252
      %p254 = scmp.ne.s32.totalorder %s242, %s243
      %p255 = scmp.eq.s32.totalorder %s41, 1
      %p256 = por %p254, %p255
      %p258 = scmp.ne.s32.totalorder %s243, %s257
      %p259 = scmp.eq.s32.totalorder %s41, 0
      %p260 = por %p258, %p259
      %s262 = sadd.s32 %s261, 1
      %p265 = scmp.eq.s32.totalorder %s35, 1
      %p266 = scmp.ne.s32.totalorder %s261, %s263
      %p267 = scmp.eq.s32.totalorder %s35, 0
      %p268 = por %p266, %p267
      %p269 = scmp.ne.s32.totalorder %s261, %s263
      %p270 = scmp.eq.s32.totalorder %s40, 1
      %p271 = por %p269, %p270
      %p272 = scmp.ne.s32.totalorder %s263, %s264
      %p273 = scmp.eq.s32.totalorder %s40, 0
      %p274 = por %p272, %p273
      %p275 = scmp.ne.s32.totalorder %s263, %s264
      %p276 = scmp.eq.s32.totalorder %s41, 1
      %p277 = por %p275, %p276
      %p279 = scmp.ne.s32.totalorder %s264, %s278
      %p280 = scmp.eq.s32.totalorder %s41, 0
      %p281 = por %p279, %p280
      %s283 = sadd.s32 %s282, 1
      %p286 = scmp.eq.s32.totalorder %s35, 1
      %p287 = scmp.ne.s32.totalorder %s282, %s284
      %p288 = scmp.eq.s32.totalorder %s35, 0
      %p289 = por %p287, %p288
      %p290 = scmp.ne.s32.totalorder %s282, %s284
      %p291 = scmp.eq.s32.totalorder %s40, 1
      %p292 = por %p290, %p291
      %p293 = scmp.ne.s32.totalorder %s284, %s285
      %p294 = scmp.eq.s32.totalorder %s40, 0
      %p295 = por %p293, %p294
      %p296 = scmp.ne.s32.totalorder %s284, %s285
      %p297 = scmp.eq.s32.totalorder %s41, 1
      %p298 = por %p296, %p297
      %p300 = scmp.ne.s32.totalorder %s285, %s299
      %p301 = scmp.eq.s32.totalorder %s41, 0
      %p302 = por %p300, %p301
      %s303 = ssub.s32 %s42, %s54
      %s304 = ssub.s32 %s43, %s50
      %s305 = sor.u32 %s303, %s304
      %p306 = scmp.eq.s32.totalorder %s305, 0
      %s308 = sadd.s32 %s307, 1
      %s309 = scalar_select %p306, %s307, %s308
      %p312 = pneg %p306
      %p313 = scmp.eq.s32.totalorder %s35, 1
      %p314 = por %p312, %p313
      %p315 = scmp.ne.s32.totalorder %s307, %s310
      %p316 = scmp.eq.s32.totalorder %s35, 0
      %p317 = por %p315, %p316
      %p318 = scmp.ne.s32.totalorder %s307, %s310
      %p319 = scmp.eq.s32.totalorder %s40, 1
      %p320 = por %p318, %p319
      %p321 = scmp.ne.s32.totalorder %s310, %s311
      %p322 = scmp.eq.s32.totalorder %s40, 0
      %p323 = por %p321, %p322
      %p324 = scmp.ne.s32.totalorder %s310, %s311
      %p325 = scmp.eq.s32.totalorder %s41, 1
      %p326 = por %p324, %p325
      %p328 = scmp.ne.s32.totalorder %s311, %s327
      %p329 = scmp.eq.s32.totalorder %s41, 0
      %p330 = por %p328, %p329
      %s331 = ssub.s32 %s42, %s54
      %s332 = ssub.s32 %s43, %s50
      %s333 = sor.u32 %s331, %s332
      %p334 = scmp.eq.s32.totalorder %s333, 0
      %s336 = sadd.s32 %s335, 1
      %s337 = scalar_select %p334, %s335, %s336
      %p340 = pneg %p334
      %p341 = scmp.eq.s32.totalorder %s35, 1
      %p342 = por %p340, %p341
      %p343 = scmp.ne.s32.totalorder %s335, %s338
      %p344 = scmp.eq.s32.totalorder %s35, 0
      %p345 = por %p343, %p344
      %p346 = scmp.ne.s32.totalorder %s335, %s338
      %p347 = scmp.eq.s32.totalorder %s40, 1
      %p348 = por %p346, %p347
      %p349 = scmp.ne.s32.totalorder %s338, %s339
      %p350 = scmp.eq.s32.totalorder %s40, 0
      %p351 = por %p349, %p350
      %p352 = scmp.ne.s32.totalorder %s338, %s339
      %p353 = scmp.eq.s32.totalorder %s41, 1
      %p354 = por %p352, %p353
      %p356 = scmp.ne.s32.totalorder %s339, %s355
      %p357 = scmp.eq.s32.totalorder %s41, 0
      %p358 = por %p356, %p357
      %p359 = scmp.le.s32.totalorder 1, %s35
      %p360 = scmp.lt.s32.totalorder %s35, 3
      %p361 = pnand %p359, %p360
      %p362 = pneg %p361
      // Predicated region
      $region9: #{seq2seq_forward.19} parent=5 // pred_check
        _
      $region10: #{seq2seq_forward.19} parent=5 // pred_check_branch
        %364 = sbr.rel (%p361) target = $region12
      $region11: #{seq2seq_forward.19} parent=5 // pred_region
        %s365 = ssub.s32 %s35, 1
        // Predicated region
        $region13: #{seq2seq_forward.19} parent=11 // pred_check
          %p366 = pneg %p148
        $region14: #{seq2seq_forward.19} parent=11 // pred_check_branch
          %368 = sbr.rel (%p366) target = $region16
        $region15: #{seq2seq_forward.19} parent=11 // pred_region
          %s370 = ssub.s32 256, 256
          %371 = vsyncadd [#allocation9], %s370
          %s372 = sshll.u32 [#allocation8], 4
          %s373 = int_to_ptr.vmem [resolvable:$true] %s372
          %378 = dma.hbm_to_vmem [thread:$0]  %s3, 256, %s373, [#allocation9], 64, 64, 4
        $region16: #{seq2seq_forward.19} parent=11 // pred_fallthru
          _
        // Predicated region
        $region17: #{seq2seq_forward.19} parent=11 // pred_check
          %p379 = pneg %p169
        $region18: #{seq2seq_forward.19} parent=11 // pred_check_branch
          %381 = sbr.rel (%p379) target = $region20
        $region19: #{seq2seq_forward.19} parent=11 // pred_region
          %s383 = ssub.s32 16, 16
          %384 = vsyncadd [#allocation9], %s383
          %s386 = sshll.u32 [#allocation10], 4
          %s387 = int_to_ptr.vmem [resolvable:$true] %s386
          %389 = dma.hbm_to_vmem [thread:$0]  %s4, 16, %s387, [#allocation9]
        $region20: #{seq2seq_forward.19} parent=11 // pred_fallthru
          _
        // Predicated region
        $region21: #{seq2seq_forward.19} parent=11 // pred_check
          %p390 = pneg %p190
        $region22: #{seq2seq_forward.19} parent=11 // pred_check_branch
          %392 = sbr.rel (%p390) target = $region24
        $region23: #{seq2seq_forward.19} parent=11 // pred_region
          %s394 = ssub.s32 256, 256
          %395 = vsyncadd [#allocation12], %s394
          %s396 = sshll.u32 [#allocation11], 4
          %s397 = int_to_ptr.vmem [resolvable:$true] %s396
          %402 = dma.hbm_to_vmem [thread:$0]  %s5, 256, %s397, [#allocation12], 64, 64, 4
        $region24: #{seq2seq_forward.19} parent=11 // pred_fallthru
          _
        // Predicated region
        $region25: #{seq2seq_forward.19} parent=11 // pred_check
          %p403 = pneg %p211
        $region26: #{seq2seq_forward.19} parent=11 // pred_check_branch
          %405 = sbr.rel (%p403) target = $region28
        $region27: #{seq2seq_forward.19} parent=11 // pred_region
          %s407 = ssub.s32 16, 16
          %408 = vsyncadd [#allocation12], %s407
          %s410 = sshll.u32 [#allocation13], 4
          %s411 = int_to_ptr.vmem [resolvable:$true] %s410
          %413 = dma.hbm_to_vmem [thread:$0]  %s6, 16, %s411, [#allocation12]
        $region28: #{seq2seq_forward.19} parent=11 // pred_fallthru
          _
        // Predicated region
        $region29: #{seq2seq_forward.19} parent=11 // pred_check
          %p414 = pneg %p232
        $region30: #{seq2seq_forward.19} parent=11 // pred_check_branch
          %416 = sbr.rel (%p414) target = $region32
        $region31: #{seq2seq_forward.19} parent=11 // pred_region
          %s418 = ssub.s32 256, 256
          %419 = vsyncadd [#allocation15], %s418
          %s420 = sshll.u32 [#allocation14], 4
          %s421 = int_to_ptr.vmem [resolvable:$true] %s420
          %426 = dma.hbm_to_vmem [thread:$0]  %s7, 256, %s421, [#allocation15], 64, 64, 4
        $region32: #{seq2seq_forward.19} parent=11 // pred_fallthru
          _
        // Predicated region
        $region33: #{seq2seq_forward.19} parent=11 // pred_check
          %p427 = pneg %p253
        $region34: #{seq2seq_forward.19} parent=11 // pred_check_branch
          %429 = sbr.rel (%p427) target = $region36
        $region35: #{seq2seq_forward.19} parent=11 // pred_region
          %s431 = ssub.s32 16, 16
          %432 = vsyncadd [#allocation15], %s431
          %s434 = sshll.u32 [#allocation16], 4
          %s435 = int_to_ptr.vmem [resolvable:$true] %s434
          %437 = dma.hbm_to_vmem [thread:$0]  %s8, 16, %s435, [#allocation15]
        $region36: #{seq2seq_forward.19} parent=11 // pred_fallthru
          _
        // Predicated region
        $region37: #{seq2seq_forward.19} parent=11 // pred_check
          %p438 = pneg %p274
        $region38: #{seq2seq_forward.19} parent=11 // pred_check_branch
          %440 = sbr.rel (%p438) target = $region40
        $region39: #{seq2seq_forward.19} parent=11 // pred_region
          %s442 = ssub.s32 16, 16
          %443 = vsyncadd [#allocation18], %s442
          %s445 = sshll.u32 [#allocation17], 4
          %s446 = int_to_ptr.vmem [resolvable:$true] %s445
          %448 = dma.hbm_to_vmem [thread:$0]  %s9, 16, %s446, [#allocation18]
        $region40: #{seq2seq_forward.19} parent=11 // pred_fallthru
          _
        // Predicated region
        $region41: #{seq2seq_forward.19} parent=11 // pred_check
          %p449 = pneg %p295
        $region42: #{seq2seq_forward.19} parent=11 // pred_check_branch
          %451 = sbr.rel (%p449) target = $region44
        $region43: #{seq2seq_forward.19} parent=11 // pred_region
          %s453 = ssub.s32 16, 16
          %454 = vsyncadd [#allocation18], %s453
          %s456 = sshll.u32 [#allocation19], 4
          %s457 = int_to_ptr.vmem [resolvable:$true] %s456
          %459 = dma.hbm_to_vmem [thread:$0]  %s10, 16, %s457, [#allocation18]
        $region44: #{seq2seq_forward.19} parent=11 // pred_fallthru
          _
      $region12: #{seq2seq_forward.19} parent=5 // pred_fallthru
        _
      %p460 = scmp.lt.s32.totalorder %s35, 2
      // Predicated region
      $region45: #{seq2seq_forward.19} parent=5 // pred_check
        %p461 = pneg %p460
      $region46: #{seq2seq_forward.19} parent=5 // pred_check_branch
        %463 = sbr.rel (%p461) target = $region48
      $region47: #{seq2seq_forward.19} parent=5 // pred_region
        // Predicated region
        $region49: #{seq2seq_forward.19} parent=47 // pred_check
          %p464 = pneg %p69
        $region50: #{seq2seq_forward.19} parent=47 // pred_check_branch
          %466 = sbr.rel (%p464) target = $region52
        $region51: #{seq2seq_forward.19} parent=47 // pred_region
          %s467 = sand.u32 %s59, 1
          %s468 = scalar_lea.sflag [#allocation3], %s467
          %s469 = sand.u32 %s59, 1
          %s470 = smul.addr %s469, 4
          %s471 = scalar_lea.vmem [#allocation2], %s470
          %s473 = ssub.s32 64, 64
          %474 = vsyncadd %s468, %s473
          %s475 = sadd.s32 %s43, %s42
          %s476 = smul.addr %s475, 64
          %s477 = scalar_lea.hbm %s0, %s476
          %s479 = sshll.u32 %s471, 4
          %s480 = int_to_ptr.vmem [resolvable:$true] %s479
          %482 = dma.hbm_to_vmem [thread:$0]  %s477, 64, %s480, %s468
        $region52: #{seq2seq_forward.19} parent=47 // pred_fallthru
          _
        // Predicated region
        $region53: #{seq2seq_forward.19} parent=47 // pred_check
          %p483 = pneg %p95
        $region54: #{seq2seq_forward.19} parent=47 // pred_check_branch
          %485 = sbr.rel (%p483) target = $region56
        $region55: #{seq2seq_forward.19} parent=47 // pred_region
          %s486 = sand.u32 %s35, 1
          %s487 = scalar_lea.sflag [#allocation6], %s486
          %s488 = sand.u32 %s85, 1
          %s489 = smul.addr %s488, 4
          %s490 = scalar_lea.vmem [#allocation5], %s489
          %s492 = ssub.s32 64, 64
          %493 = vsyncadd %s487, %s492
          %s494 = smul.addr %s42, 64
          %s495 = scalar_lea.hbm %s1, %s494
          %s497 = sshll.u32 %s490, 4
          %s498 = int_to_ptr.vmem [resolvable:$true] %s497
          %500 = dma.hbm_to_vmem [thread:$0]  %s495, 64, %s498, %s487
        $region56: #{seq2seq_forward.19} parent=47 // pred_fallthru
          _
        // Predicated region
        $region57: #{seq2seq_forward.19} parent=47 // pred_check
          %p501 = pneg %p121
        $region58: #{seq2seq_forward.19} parent=47 // pred_check_branch
          %503 = sbr.rel (%p501) target = $region60
        $region59: #{seq2seq_forward.19} parent=47 // pred_region
          %s504 = sand.u32 %s35, 1
          %s505 = scalar_lea.sflag [#allocation6], %s504
          %s506 = sand.u32 %s111, 1
          %s507 = scalar_lea.vmem [#allocation7], %s506
          %s509 = ssub.s32 16, 16
          %510 = vsyncadd %s505, %s509
          %s511 = smul.addr %s42, 16
          %s512 = scalar_lea.hbm %s2, %s511
          %s514 = sshll.u32 %s507, 4
          %s515 = int_to_ptr.vmem [resolvable:$true] %s514
          %517 = dma.hbm_to_vmem [thread:$0]  %s512, 16, %s515, %s505
        $region60: #{seq2seq_forward.19} parent=47 // pred_fallthru
          _
      $region48: #{seq2seq_forward.19} parent=5 // pred_fallthru
        _
      %p518 = scmp.le.s32.totalorder 1, %s35
      %p519 = scmp.lt.s32.totalorder %s35, 3
      %p520 = pnand %p518, %p519
      %p521 = pneg %p520
      // Predicated region
      $region61: #{seq2seq_forward.19} parent=5 // pred_check
        _
      $region62: #{seq2seq_forward.19} parent=5 // pred_check_branch
        %523 = sbr.rel (%p520) target = $region64
      $region63: #{seq2seq_forward.19} parent=5 // pred_region
        %s524 = ssub.s32 %s35, 1
        %s525 = sand.u32 %s62, 1
        %s526 = scalar_lea.sflag [#allocation3], %s525
        %s527 = sand.u32 %s62, 1
        %s528 = smul.addr %s527, 4
        %s529 = scalar_lea.vmem [#allocation2], %s528
        // Predicated region
        $region65: #{seq2seq_forward.19} parent=63 // pred_check
          %p530 = pneg %p75
        $region66: #{seq2seq_forward.19} parent=63 // pred_check_branch
          %532 = sbr.rel (%p530) target = $region68
        $region67: #{seq2seq_forward.19} parent=63 // pred_region
          %533 = dma.done %s526, 64
        $region68: #{seq2seq_forward.19} parent=63 // pred_fallthru
          _
        %s534 = sand.u32 %s40, 1
        %s535 = scalar_lea.sflag [#allocation6], %s534
        %s536 = sand.u32 %s88, 1
        %s537 = smul.addr %s536, 4
        %s538 = scalar_lea.vmem [#allocation5], %s537
        // Predicated region
        $region69: #{seq2seq_forward.19} parent=63 // pred_check
          %p539 = pneg %p101
        $region70: #{seq2seq_forward.19} parent=63 // pred_check_branch
          %541 = sbr.rel (%p539) target = $region72
        $region71: #{seq2seq_forward.19} parent=63 // pred_region
          %542 = dma.done %s535, 64
        $region72: #{seq2seq_forward.19} parent=63 // pred_fallthru
          _
        %s543 = sand.u32 %s40, 1
        %s544 = scalar_lea.sflag [#allocation6], %s543
        %s545 = sand.u32 %s114, 1
        %s546 = scalar_lea.vmem [#allocation7], %s545
        // Predicated region
        $region73: #{seq2seq_forward.19} parent=63 // pred_check
          %p547 = pneg %p127
        $region74: #{seq2seq_forward.19} parent=63 // pred_check_branch
          %549 = sbr.rel (%p547) target = $region76
        $region75: #{seq2seq_forward.19} parent=63 // pred_region
          %550 = dma.done %s544, 16
        $region76: #{seq2seq_forward.19} parent=63 // pred_fallthru
          _
        // Predicated region
        $region77: #{seq2seq_forward.19} parent=63 // pred_check
          %p551 = pneg %p148
        $region78: #{seq2seq_forward.19} parent=63 // pred_check_branch
          %553 = sbr.rel (%p551) target = $region80
        $region79: #{seq2seq_forward.19} parent=63 // pred_region
          %554 = dma.done [#allocation9], 256
        $region80: #{seq2seq_forward.19} parent=63 // pred_fallthru
          _
        // Predicated region
        $region81: #{seq2seq_forward.19} parent=63 // pred_check
          %p555 = pneg %p169
        $region82: #{seq2seq_forward.19} parent=63 // pred_check_branch
          %557 = sbr.rel (%p555) target = $region84
        $region83: #{seq2seq_forward.19} parent=63 // pred_region
          %558 = dma.done [#allocation9], 16
        $region84: #{seq2seq_forward.19} parent=63 // pred_fallthru
          _
        // Predicated region
        $region85: #{seq2seq_forward.19} parent=63 // pred_check
          %p559 = pneg %p190
        $region86: #{seq2seq_forward.19} parent=63 // pred_check_branch
          %561 = sbr.rel (%p559) target = $region88
        $region87: #{seq2seq_forward.19} parent=63 // pred_region
          %562 = dma.done [#allocation12], 256
        $region88: #{seq2seq_forward.19} parent=63 // pred_fallthru
          _
        // Predicated region
        $region89: #{seq2seq_forward.19} parent=63 // pred_check
          %p563 = pneg %p211
        $region90: #{seq2seq_forward.19} parent=63 // pred_check_branch
          %565 = sbr.rel (%p563) target = $region92
        $region91: #{seq2seq_forward.19} parent=63 // pred_region
          %566 = dma.done [#allocation12], 16
        $region92: #{seq2seq_forward.19} parent=63 // pred_fallthru
          _
        // Predicated region
        $region93: #{seq2seq_forward.19} parent=63 // pred_check
          %p567 = pneg %p232
        $region94: #{seq2seq_forward.19} parent=63 // pred_check_branch
          %569 = sbr.rel (%p567) target = $region96
        $region95: #{seq2seq_forward.19} parent=63 // pred_region
          %570 = dma.done [#allocation15], 256
        $region96: #{seq2seq_forward.19} parent=63 // pred_fallthru
          _
        // Predicated region
        $region97: #{seq2seq_forward.19} parent=63 // pred_check
          %p571 = pneg %p253
        $region98: #{seq2seq_forward.19} parent=63 // pred_check_branch
          %573 = sbr.rel (%p571) target = $region100
        $region99: #{seq2seq_forward.19} parent=63 // pred_region
          %574 = dma.done [#allocation15], 16
        $region100: #{seq2seq_forward.19} parent=63 // pred_fallthru
          _
        // Predicated region
        $region101: #{seq2seq_forward.19} parent=63 // pred_check
          %p575 = pneg %p274
        $region102: #{seq2seq_forward.19} parent=63 // pred_check_branch
          %577 = sbr.rel (%p575) target = $region104
        $region103: #{seq2seq_forward.19} parent=63 // pred_region
          %578 = dma.done [#allocation18], 16
        $region104: #{seq2seq_forward.19} parent=63 // pred_fallthru
          _
        // Predicated region
        $region105: #{seq2seq_forward.19} parent=63 // pred_check
          %p579 = pneg %p295
        $region106: #{seq2seq_forward.19} parent=63 // pred_check_branch
          %581 = sbr.rel (%p579) target = $region108
        $region107: #{seq2seq_forward.19} parent=63 // pred_region
          %582 = dma.done [#allocation18], 16
        $region108: #{seq2seq_forward.19} parent=63 // pred_fallthru
          _
        %s583 = sand.u32 %s62, 1
        %s584 = scalar_lea.sflag [#allocation3], %s583
        %s585 = sand.u32 %s62, 1
        %s586 = smul.addr %s585, 4
        %s587 = scalar_lea.vmem [#allocation2], %s586
        %p588 = pneg %p75
        %p589 = pneg %p72
        %s590 = sand.u32 %s40, 1
        %s591 = scalar_lea.sflag [#allocation6], %s590
        %s592 = sand.u32 %s88, 1
        %s593 = smul.addr %s592, 4
        %s594 = scalar_lea.vmem [#allocation5], %s593
        %p595 = pneg %p101
        %p596 = pneg %p98
        %s597 = sand.u32 %s40, 1
        %s598 = scalar_lea.sflag [#allocation6], %s597
        %s599 = sand.u32 %s114, 1
        %s600 = scalar_lea.vmem [#allocation7], %s599
        %p601 = pneg %p127
        %p602 = pneg %p124
        %p603 = pneg %p148
        %p604 = pneg %p145
        %p605 = pneg %p169
        %p606 = pneg %p166
        %p607 = pneg %p190
        %p608 = pneg %p187
        %p609 = pneg %p211
        %p610 = pneg %p208
        %p611 = pneg %p232
        %p612 = pneg %p229
        %p613 = pneg %p253
        %p614 = pneg %p250
        %p615 = pneg %p274
        %p616 = pneg %p271
        %p617 = pneg %p295
        %p618 = pneg %p292
        %p619 = pneg %p323
        %p620 = pneg %p320
        %s621 = sand.u32 %s310, 1
        %s622 = scalar_lea.sflag [#allocation4], %s621
        %s623 = sand.u32 %s310, 1
        %s624 = smul.addr %s623, 4
        %s625 = scalar_lea.vmem [#allocation20], %s624
        %p626 = pneg %p351
        %p627 = pneg %p348
        %s628 = sand.u32 %s338, 1
        %s629 = scalar_lea.sflag [#allocation22], %s628
        %s630 = sand.u32 %s338, 1
        %s631 = smul.addr %s630, 32
        %s632 = scalar_lea.vmem [#allocation21], %s631
        %v634 = vld [vmem:[%s529] sm:$0xf]
        %v635 = vld [vmem:[%s538] sm:$0xf]
        %v636 = vld [vmem:[%s546] sm:$0x1]
        %v637 = vld [vmem:[#allocation8] sm:$0xf]
        %v638 = vld [vmem:[#allocation8 + $0x4] sm:$0xf]
        %v639 = vld [vmem:[#allocation8 + $0x8] sm:$0xf]
        %v640 = vld [vmem:[#allocation8 + $0xc] sm:$0xf]
        %v641 = vld [vmem:[#allocation10] sm:$0x1]
        %v642 = vld [vmem:[#allocation11] sm:$0xf]
        %v643 = vld [vmem:[#allocation11 + $0x4] sm:$0xf]
        %v644 = vld [vmem:[#allocation11 + $0x8] sm:$0xf]
        %v645 = vld [vmem:[#allocation11 + $0xc] sm:$0xf]
        %v646 = vld [vmem:[#allocation13] sm:$0x1]
        %v647 = vld [vmem:[#allocation14] sm:$0xf]
        %v648 = vld [vmem:[#allocation14 + $0x4] sm:$0xf]
        %v649 = vld [vmem:[#allocation14 + $0x8] sm:$0xf]
        %v650 = vld [vmem:[#allocation14 + $0xc] sm:$0xf]
        %v651 = vld [vmem:[#allocation16] sm:$0x1]
        %v652 = vld [vmem:[#allocation17] sm:$0x1]
        %v653 = vld [vmem:[#allocation19] sm:$0x1]
        %v655 = vlaneseq
        %v656 = vshrl.u32 %v655, 7
        %v657 = vsub.s32 0, %v656
        %v658 = vrot.slane %v641, %v657
        %v664 = vunpack.c.l.b16 %v637
        %v665 = vunpack.c.l.b16 %v638
        %v666 = vunpack.c.l.b16 %v639
        %v667 = vunpack.c.l.b16 %v640
        %v668 = vpack.c.b16 %v665, %v664
        %v669 = vpack.c.b16 %v667, %v666
        %vm672 = vcmask 261120
        %v674 = vsel %vm672, %v634, 0
        %676 = vmatprep.subr.bf16.mxu0 0
        %677 = vmatpush1.bf16.msra.mxu0 %v668
        %678 = vmatprep.subr.bf16.mxu0 0
        %679 = vmatpush1.bf16.msra.mxu0 %v669
        %680 = vmatprep.subr.bf16.mxu0 0
        %681 = vmatpush1.bf16.msra.mxu0 0
        %682 = vmatprep.subr.bf16.mxu0 0
        %683 = vmatpush1.bf16.msra.mxu0 0
        %684 = vmatprep.subr.bf16.mxu0 0
        %685 = vmatpush1.bf16.msra.mxu0 0
        %686 = vmatprep.subr.bf16.mxu0 0
        %687 = vmatpush1.bf16.msra.mxu0 0
        %688 = vmatprep.subr.bf16.mxu0 0
        %689 = vmatpush1.bf16.msra.mxu0 0
        %690 = vmatprep.subr.bf16.mxu0 0
        %691 = vmatpush1.bf16.msra.mxu0 0
        %692 = vmatprep.subr.bf16.mxu0 0
        %693 = vmatpush1.bf16.msra.mxu0 0
        %694 = vmatprep.subr.bf16.mxu0 0
        %695 = vmatpush1.bf16.msra.mxu0 0
        %696 = vmatprep.subr.bf16.mxu0 0
        %697 = vmatpush1.bf16.msra.mxu0 0
        %698 = vmatprep.subr.bf16.mxu0 0
        %699 = vmatpush1.bf16.msra.mxu0 0
        %700 = vmatprep.subr.bf16.mxu0 0
        %701 = vmatpush1.bf16.msra.mxu0 0
        %702 = vmatprep.subr.bf16.mxu0 0
        %703 = vmatpush1.bf16.msra.mxu0 0
        %704 = vmatprep.subr.bf16.mxu0 0
        %705 = vmatpush1.bf16.msra.mxu0 0
        %706 = vmatprep.subr.bf16.mxu0 0
        %707 = vmatpush1.bf16.msra.mxu0 0
        %708 = vmatprep.mubr.bf16.mxu0 0
        %709 = vmatmul.mubr.bf16.gmra.mrb[0].mxu0 %v674
        %v710 = vpop.f32.mrb[0].mxu0
        %v711 = vadd.f32 %v658, %v710
        %v712 = vpop.f32.mrb[0].mxu0
        %v713 = vpop.f32.mrb[0].mxu0
        %v714 = vpop.f32.mrb[0].mxu0
        %715 = vdwg.mxu0
        %v717 = vlaneseq
        %v718 = vshrl.u32 %v717, 7
        %v719 = vsub.s32 0, %v718
        %v720 = vrot.slane %v646, %v719
        %v726 = vunpack.c.l.b16 %v642
        %v727 = vunpack.c.l.b16 %v643
        %v728 = vunpack.c.l.b16 %v644
        %v729 = vunpack.c.l.b16 %v645
        %v730 = vpack.c.b16 %v727, %v726
        %v731 = vpack.c.b16 %v729, %v728
        %v735 = vsel %vm672, %v635, 0
        %737 = vmatprep.subr.bf16.mxu0 0
        %738 = vmatpush1.bf16.msra.mxu0 %v730
        %739 = vmatprep.subr.bf16.mxu0 0
        %740 = vmatpush1.bf16.msra.mxu0 %v731
        %741 = vmatprep.subr.bf16.mxu0 0
        %742 = vmatpush1.bf16.msra.mxu0 0
        %743 = vmatprep.subr.bf16.mxu0 0
        %744 = vmatpush1.bf16.msra.mxu0 0
        %745 = vmatprep.subr.bf16.mxu0 0
        %746 = vmatpush1.bf16.msra.mxu0 0
        %747 = vmatprep.subr.bf16.mxu0 0
        %748 = vmatpush1.bf16.msra.mxu0 0
        %749 = vmatprep.subr.bf16.mxu0 0
        %750 = vmatpush1.bf16.msra.mxu0 0
        %751 = vmatprep.subr.bf16.mxu0 0
        %752 = vmatpush1.bf16.msra.mxu0 0
        %753 = vmatprep.subr.bf16.mxu0 0
        %754 = vmatpush1.bf16.msra.mxu0 0
        %755 = vmatprep.subr.bf16.mxu0 0
        %756 = vmatpush1.bf16.msra.mxu0 0
        %757 = vmatprep.subr.bf16.mxu0 0
        %758 = vmatpush1.bf16.msra.mxu0 0
        %759 = vmatprep.subr.bf16.mxu0 0
        %760 = vmatpush1.bf16.msra.mxu0 0
        %761 = vmatprep.subr.bf16.mxu0 0
        %762 = vmatpush1.bf16.msra.mxu0 0
        %763 = vmatprep.subr.bf16.mxu0 0
        %764 = vmatpush1.bf16.msra.mxu0 0
        %765 = vmatprep.subr.bf16.mxu0 0
        %766 = vmatpush1.bf16.msra.mxu0 0
        %767 = vmatprep.subr.bf16.mxu0 0
        %768 = vmatpush1.bf16.msra.mxu0 0
        %769 = vmatprep.mubr.bf16.mxu0 0
        %770 = vmatmul.mubr.bf16.gmra.mrb[0].mxu0 %v735
        %v771 = vpop.f32.mrb[0].mxu0
        %v772 = vadd.f32 %v720, %v771
        %v773 = vpop.f32.mrb[0].mxu0
        %v774 = vpop.f32.mrb[0].mxu0
        %v775 = vpop.f32.mrb[0].mxu0
        %776 = vdwg.mxu0
        %v777 = vmul.f32 %v711, 0.35355338
        %v778 = vpack.c.bf16 %v777, %v777
        %v779 = vpack.c.bf16 %v772, %v772
        %v781 = vlaneseq
        %v782 = vshrl.u32 %v781, 7
        %v783 = vsub.s32 0, %v782
        %v784 = vrot.slane %v636, %v783
        %vm786 = vcmask 64512
        %v788 = vsel %vm786, %v778, 0
        %v791 = vsel %vm786, %v779, 0
        %793 = vmatprep.subr.bf16.mxu0 0
        %794 = vmatpush1.bf16.xpose.msra.mxu0 %v791
        %795 = vmatprep.subr.bf16.mxu0 0
        %796 = vmatpush1.bf16.xpose.msra.mxu0 0
        %797 = vmatprep.subr.bf16.mxu0 0
        %798 = vmatpush1.bf16.xpose.msra.mxu0 0
        %799 = vmatprep.subr.bf16.mxu0 0
        %800 = vmatpush1.bf16.xpose.msra.mxu0 0
        %801 = vmatprep.subr.bf16.mxu0 0
        %802 = vmatpush1.bf16.xpose.msra.mxu0 0
        %803 = vmatprep.subr.bf16.mxu0 0
        %804 = vmatpush1.bf16.xpose.msra.mxu0 0
        %805 = vmatprep.subr.bf16.mxu0 0
        %806 = vmatpush1.bf16.xpose.msra.mxu0 0
        %807 = vmatprep.subr.bf16.mxu0 0
        %808 = vmatpush1.bf16.xpose.msra.mxu0 0
        %809 = vmatprep.subr.bf16.mxu0 0
        %810 = vmatpush1.bf16.xpose.msra.mxu0 0
        %811 = vmatprep.subr.bf16.mxu0 0
        %812 = vmatpush1.bf16.xpose.msra.mxu0 0
        %813 = vmatprep.subr.bf16.mxu0 0
        %814 = vmatpush1.bf16.xpose.msra.mxu0 0
        %815 = vmatprep.subr.bf16.mxu0 0
        %816 = vmatpush1.bf16.xpose.msra.mxu0 0
        %817 = vmatprep.subr.bf16.mxu0 0
        %818 = vmatpush1.bf16.xpose.msra.mxu0 0
        %819 = vmatprep.subr.bf16.mxu0 0
        %820 = vmatpush1.bf16.xpose.msra.mxu0 0
        %821 = vmatprep.subr.bf16.mxu0 0
        %822 = vmatpush1.bf16.xpose.msra.mxu0 0
        %823 = vmatprep.subr.bf16.mxu0 0
        %824 = vmatpush1.bf16.xpose.msra.mxu0 0
        %825 = vmatprep.mubr.bf16.mxu0 0
        %826 = vmatmul.mubr.bf16.gmra.mrb[0].mxu0 %v788
        %v827 = vpop.f32.mrb[0].mxu0
        %v828 = vadd.f32 %v784, %v827
        %v829 = vpop.f32.mrb[0].mxu0
        %v830 = vpop.f32.mrb[0].mxu0
        %v831 = vpop.f32.mrb[0].mxu0
        %832 = vdwg.mxu0
        %v833 = vsel %vm786, %v828, -inf
        %834 = vmax.xlane.f32.xlu0 %v833
        %v835 = vpop.xlane.xlu0 %834
        %v836 = vsub.f32 %v828, %v835
        %v837 = vmul.f32 %v836, 1.442695
        %v838 = vpow.pop %v837
        %v839 = vsel %vm786, %v838, 0.0
        %840 = vadd.xlane.f32.xlu0 %v839
        %v841 = vpop.xlane.xlu0 %840
        %v842 = vrcp.pop %v841
        %v843 = vmul.f32 %v838, %v842
        %844 = vst.msk [vmem:[%s632] sm:$0xff] %vm786, %v843
        %v845 = vpack.c.bf16 %v843, %v843
        %847 = vrot.lane.b32.xlu0 %v779, 96
        %v848 = vpop.permute.xlu0 %847
        %v850 = vsel %vm786, %v845, 0
        %vm852 = vcmask 1043456
        %v854 = vsel %vm852, %v848, 0
        %856 = vmatprep.subr.bf16.mxu0 0
        %857 = vmatpush1.bf16.msra.mxu0 %v854
        %858 = vmatprep.subr.bf16.mxu0 0
        %859 = vmatpush1.bf16.msra.mxu0 0
        %860 = vmatprep.subr.bf16.mxu0 0
        %861 = vmatpush1.bf16.msra.mxu0 0
        %862 = vmatprep.subr.bf16.mxu0 0
        %863 = vmatpush1.bf16.msra.mxu0 0
        %864 = vmatprep.subr.bf16.mxu0 0
        %865 = vmatpush1.bf16.msra.mxu0 0
        %866 = vmatprep.subr.bf16.mxu0 0
        %867 = vmatpush1.bf16.msra.mxu0 0
        %868 = vmatprep.subr.bf16.mxu0 0
        %869 = vmatpush1.bf16.msra.mxu0 0
        %870 = vmatprep.subr.bf16.mxu0 0
        %871 = vmatpush1.bf16.msra.mxu0 0
        %872 = vmatprep.subr.bf16.mxu0 0
        %873 = vmatpush1.bf16.msra.mxu0 0
        %874 = vmatprep.subr.bf16.mxu0 0
        %875 = vmatpush1.bf16.msra.mxu0 0
        %876 = vmatprep.subr.bf16.mxu0 0
        %877 = vmatpush1.bf16.msra.mxu0 0
        %878 = vmatprep.subr.bf16.mxu0 0
        %879 = vmatpush1.bf16.msra.mxu0 0
        %880 = vmatprep.subr.bf16.mxu0 0
        %881 = vmatpush1.bf16.msra.mxu0 0
        %882 = vmatprep.subr.bf16.mxu0 0
        %883 = vmatpush1.bf16.msra.mxu0 0
        %884 = vmatprep.subr.bf16.mxu0 0
        %885 = vmatpush1.bf16.msra.mxu0 0
        %886 = vmatprep.subr.bf16.mxu0 0
        %887 = vmatpush1.bf16.msra.mxu0 0
        %888 = vmatprep.mubr.bf16.mxu0 0
        %889 = vmatmul.mubr.bf16.gmra.mrb[0].mxu0 %v850
        %v890 = vpop.f32.mrb[0].mxu0
        %v891 = vadd.f32 0.0, %v890
        %v892 = vpop.f32.mrb[0].mxu0
        %v893 = vpop.f32.mrb[0].mxu0
        %v894 = vpop.f32.mrb[0].mxu0
        %895 = vdwg.mxu0
        %v896 = vpack.c.bf16 %v891, %v891
        %898 = vrot.lane.b32.xlu0 %v778, 120
        %v899 = vpop.permute.xlu0 %898
        %900 = vrot.lane.b32.xlu0 %v779, 120
        %v901 = vpop.permute.xlu0 %900
        %v903 = vsel %vm786, %v899, 0
        %v906 = vsel %vm786, %v901, 0
        %908 = vmatprep.subr.bf16.mxu0 0
        %909 = vmatpush1.bf16.xpose.msra.mxu0 %v906
        %910 = vmatprep.subr.bf16.mxu0 0
        %911 = vmatpush1.bf16.xpose.msra.mxu0 0
        %912 = vmatprep.subr.bf16.mxu0 0
        %913 = vmatpush1.bf16.xpose.msra.mxu0 0
        %914 = vmatprep.subr.bf16.mxu0 0
        %915 = vmatpush1.bf16.xpose.msra.mxu0 0
        %916 = vmatprep.subr.bf16.mxu0 0
        %917 = vmatpush1.bf16.xpose.msra.mxu0 0
        %918 = vmatprep.subr.bf16.mxu0 0
        %919 = vmatpush1.bf16.xpose.msra.mxu0 0
        %920 = vmatprep.subr.bf16.mxu0 0
        %921 = vmatpush1.bf16.xpose.msra.mxu0 0
        %922 = vmatprep.subr.bf16.mxu0 0
        %923 = vmatpush1.bf16.xpose.msra.mxu0 0
        %924 = vmatprep.subr.bf16.mxu0 0
        %925 = vmatpush1.bf16.xpose.msra.mxu0 0
        %926 = vmatprep.subr.bf16.mxu0 0
        %927 = vmatpush1.bf16.xpose.msra.mxu0 0
        %928 = vmatprep.subr.bf16.mxu0 0
        %929 = vmatpush1.bf16.xpose.msra.mxu0 0
        %930 = vmatprep.subr.bf16.mxu0 0
        %931 = vmatpush1.bf16.xpose.msra.mxu0 0
        %932 = vmatprep.subr.bf16.mxu0 0
        %933 = vmatpush1.bf16.xpose.msra.mxu0 0
        %934 = vmatprep.subr.bf16.mxu0 0
        %935 = vmatpush1.bf16.xpose.msra.mxu0 0
        %936 = vmatprep.subr.bf16.mxu0 0
        %937 = vmatpush1.bf16.xpose.msra.mxu0 0
        %938 = vmatprep.subr.bf16.mxu0 0
        %939 = vmatpush1.bf16.xpose.msra.mxu0 0
        %940 = vmatprep.mubr.bf16.mxu0 0
        %941 = vmatmul.mubr.bf16.gmra.mrb[0].mxu0 %v903
        %v942 = vpop.f32.mrb[0].mxu0
        %v943 = vadd.f32 %v784, %v942
        %v944 = vpop.f32.mrb[0].mxu0
        %v945 = vpop.f32.mrb[0].mxu0
        %v946 = vpop.f32.mrb[0].mxu0
        %947 = vdwg.mxu0
        %v948 = vsel %vm786, %v943, -inf
        %949 = vmax.xlane.f32.xlu0 %v948
        %v950 = vpop.xlane.xlu0 %949
        %v951 = vsub.f32 %v943, %v950
        %v952 = vmul.f32 %v951, 1.442695
        %v953 = vpow.pop %v952
        %v954 = vsel %vm786, %v953, 0.0
        %955 = vadd.xlane.f32.xlu0 %v954
        %v956 = vpop.xlane.xlu0 %955
        %v957 = vrcp.pop %v956
        %v958 = vmul.f32 %v953, %v957
        %s959 = scalar_lea.vmem %s632, 8 [#allocation21]
        %960 = vst.msk [vmem:[%s959] sm:$0xff] %vm786, %v958
        %v961 = vpack.c.bf16 %v958, %v958
        %962 = vrot.lane.b32.xlu0 %v779, 88
        %v963 = vpop.permute.xlu0 %962
        %v965 = vsel %vm786, %v961, 0
        %v968 = vsel %vm852, %v963, 0
        %970 = vmatprep.subr.bf16.mxu0 0
        %971 = vmatpush1.bf16.msra.mxu0 %v968
        %972 = vmatprep.subr.bf16.mxu0 0
        %973 = vmatpush1.bf16.msra.mxu0 0
        %974 = vmatprep.subr.bf16.mxu0 0
        %975 = vmatpush1.bf16.msra.mxu0 0
        %976 = vmatprep.subr.bf16.mxu0 0
        %977 = vmatpush1.bf16.msra.mxu0 0
        %978 = vmatprep.subr.bf16.mxu0 0
        %979 = vmatpush1.bf16.msra.mxu0 0
        %980 = vmatprep.subr.bf16.mxu0 0
        %981 = vmatpush1.bf16.msra.mxu0 0
        %982 = vmatprep.subr.bf16.mxu0 0
        %983 = vmatpush1.bf16.msra.mxu0 0
        %984 = vmatprep.subr.bf16.mxu0 0
        %985 = vmatpush1.bf16.msra.mxu0 0
        %986 = vmatprep.subr.bf16.mxu0 0
        %987 = vmatpush1.bf16.msra.mxu0 0
        %988 = vmatprep.subr.bf16.mxu0 0
        %989 = vmatpush1.bf16.msra.mxu0 0
        %990 = vmatprep.subr.bf16.mxu0 0
        %991 = vmatpush1.bf16.msra.mxu0 0
        %992 = vmatprep.subr.bf16.mxu0 0
        %993 = vmatpush1.bf16.msra.mxu0 0
        %994 = vmatprep.subr.bf16.mxu0 0
        %995 = vmatpush1.bf16.msra.mxu0 0
        %996 = vmatprep.subr.bf16.mxu0 0
        %997 = vmatpush1.bf16.msra.mxu0 0
        %998 = vmatprep.subr.bf16.mxu0 0
        %999 = vmatpush1.bf16.msra.mxu0 0
        %1000 = vmatprep.subr.bf16.mxu0 0
        %1001 = vmatpush1.bf16.msra.mxu0 0
        %1002 = vmatprep.mubr.bf16.mxu0 0
        %1003 = vmatmul.mubr.bf16.gmra.mrb[0].mxu0 %v965
        %v1004 = vpop.f32.mrb[0].mxu0
        %v1005 = vadd.f32 0.0, %v1004
        %v1006 = vpop.f32.mrb[0].mxu0
        %v1007 = vpop.f32.mrb[0].mxu0
        %v1008 = vpop.f32.mrb[0].mxu0
        %1009 = vdwg.mxu0
        %v1010 = vpack.c.bf16 %v1005, %v1005
        %v1012 = vsel %vm786, %v1010, 0
        %v1015 = vsel %vm852, %v648, 0
        %1017 = vmatprep.subr.bf16.mxu0 0
        %1018 = vmatpush1.bf16.msra.mxu0 %v1015
        %1019 = vmatprep.subr.bf16.mxu0 0
        %1020 = vmatpush1.bf16.msra.mxu0 0
        %1021 = vmatprep.subr.bf16.mxu0 0
        %1022 = vmatpush1.bf16.msra.mxu0 0
        %1023 = vmatprep.subr.bf16.mxu0 0
        %1024 = vmatpush1.bf16.msra.mxu0 0
        %1025 = vmatprep.subr.bf16.mxu0 0
        %1026 = vmatpush1.bf16.msra.mxu0 0
        %1027 = vmatprep.subr.bf16.mxu0 0
        %1028 = vmatpush1.bf16.msra.mxu0 0
        %1029 = vmatprep.subr.bf16.mxu0 0
        %1030 = vmatpush1.bf16.msra.mxu0 0
        %1031 = vmatprep.subr.bf16.mxu0 0
        %1032 = vmatpush1.bf16.msra.mxu0 0
        %1033 = vmatprep.subr.bf16.mxu0 0
        %1034 = vmatpush1.bf16.msra.mxu0 0
        %1035 = vmatprep.subr.bf16.mxu0 0
        %1036 = vmatpush1.bf16.msra.mxu0 0
        %1037 = vmatprep.subr.bf16.mxu0 0
        %1038 = vmatpush1.bf16.msra.mxu0 0
        %1039 = vmatprep.subr.bf16.mxu0 0
        %1040 = vmatpush1.bf16.msra.mxu0 0
        %1041 = vmatprep.subr.bf16.mxu0 0
        %1042 = vmatpush1.bf16.msra.mxu0 0
        %1043 = vmatprep.subr.bf16.mxu0 0
        %1044 = vmatpush1.bf16.msra.mxu0 0
        %1045 = vmatprep.subr.bf16.mxu0 0
        %1046 = vmatpush1.bf16.msra.mxu0 0
        %1047 = vmatprep.subr.bf16.mxu0 0
        %1048 = vmatpush1.bf16.msra.mxu0 0
        %1049 = vmatprep.mubr.bf16.mxu0 0
        %1050 = vmatmul.mubr.bf16.gmra.mrb[0].mxu0 %v1012
        %v1051 = vpop.f32.mrb[0].mxu0
        %v1052 = vadd.f32 0.0, %v1051
        %v1053 = vpop.f32.mrb[0].mxu0
        %v1054 = vpop.f32.mrb[0].mxu0
        %v1055 = vpop.f32.mrb[0].mxu0
        %1056 = vdwg.mxu0
        %v1058 = vsel %vm786, %v896, 0
        %v1061 = vsel %vm852, %v647, 0
        %1063 = vmatprep.subr.bf16.mxu0 0
        %1064 = vmatpush1.bf16.msra.mxu0 %v1061
        %1065 = vmatprep.subr.bf16.mxu0 0
        %1066 = vmatpush1.bf16.msra.mxu0 0
        %1067 = vmatprep.subr.bf16.mxu0 0
        %1068 = vmatpush1.bf16.msra.mxu0 0
        %1069 = vmatprep.subr.bf16.mxu0 0
        %1070 = vmatpush1.bf16.msra.mxu0 0
        %1071 = vmatprep.subr.bf16.mxu0 0
        %1072 = vmatpush1.bf16.msra.mxu0 0
        %1073 = vmatprep.subr.bf16.mxu0 0
        %1074 = vmatpush1.bf16.msra.mxu0 0
        %1075 = vmatprep.subr.bf16.mxu0 0
        %1076 = vmatpush1.bf16.msra.mxu0 0
        %1077 = vmatprep.subr.bf16.mxu0 0
        %1078 = vmatpush1.bf16.msra.mxu0 0
        %1079 = vmatprep.subr.bf16.mxu0 0
        %1080 = vmatpush1.bf16.msra.mxu0 0
        %1081 = vmatprep.subr.bf16.mxu0 0
        %1082 = vmatpush1.bf16.msra.mxu0 0
        %1083 = vmatprep.subr.bf16.mxu0 0
        %1084 = vmatpush1.bf16.msra.mxu0 0
        %1085 = vmatprep.subr.bf16.mxu0 0
        %1086 = vmatpush1.bf16.msra.mxu0 0
        %1087 = vmatprep.subr.bf16.mxu0 0
        %1088 = vmatpush1.bf16.msra.mxu0 0
        %1089 = vmatprep.subr.bf16.mxu0 0
        %1090 = vmatpush1.bf16.msra.mxu0 0
        %1091 = vmatprep.subr.bf16.mxu0 0
        %1092 = vmatpush1.bf16.msra.mxu0 0
        %1093 = vmatprep.subr.bf16.mxu0 0
        %1094 = vmatpush1.bf16.msra.mxu0 0
        %1095 = vmatprep.mubr.bf16.mxu0 0
        %1096 = vmatmul.mubr.bf16.gmra.mrb[0].mxu0 %v1058
        %v1097 = vpop.f32.mrb[0].mxu0
        %v1098 = vadd.f32 %v1052, %v1097
        %v1099 = vpop.f32.mrb[0].mxu0
        %v1100 = vpop.f32.mrb[0].mxu0
        %v1101 = vpop.f32.mrb[0].mxu0
        %1102 = vdwg.mxu0
        %1103 = vrot.lane.b32.xlu0 %v778, 112
        %v1104 = vpop.permute.xlu0 %1103
        %1105 = vrot.lane.b32.xlu0 %v779, 112
        %v1106 = vpop.permute.xlu0 %1105
        %v1108 = vsel %vm786, %v1104, 0
        %v1111 = vsel %vm786, %v1106, 0
        %1113 = vmatprep.subr.bf16.mxu0 0
        %1114 = vmatpush1.bf16.xpose.msra.mxu0 %v1111
        %1115 = vmatprep.subr.bf16.mxu0 0
        %1116 = vmatpush1.bf16.xpose.msra.mxu0 0
        %1117 = vmatprep.subr.bf16.mxu0 0
        %1118 = vmatpush1.bf16.xpose.msra.mxu0 0
        %1119 = vmatprep.subr.bf16.mxu0 0
        %1120 = vmatpush1.bf16.xpose.msra.mxu0 0
        %1121 = vmatprep.subr.bf16.mxu0 0
        %1122 = vmatpush1.bf16.xpose.msra.mxu0 0
        %1123 = vmatprep.subr.bf16.mxu0 0
        %1124 = vmatpush1.bf16.xpose.msra.mxu0 0
        %1125 = vmatprep.subr.bf16.mxu0 0
        %1126 = vmatpush1.bf16.xpose.msra.mxu0 0
        %1127 = vmatprep.subr.bf16.mxu0 0
        %1128 = vmatpush1.bf16.xpose.msra.mxu0 0
        %1129 = vmatprep.subr.bf16.mxu0 0
        %1130 = vmatpush1.bf16.xpose.msra.mxu0 0
        %1131 = vmatprep.subr.bf16.mxu0 0
        %1132 = vmatpush1.bf16.xpose.msra.mxu0 0
        %1133 = vmatprep.subr.bf16.mxu0 0
        %1134 = vmatpush1.bf16.xpose.msra.mxu0 0
        %1135 = vmatprep.subr.bf16.mxu0 0
        %1136 = vmatpush1.bf16.xpose.msra.mxu0 0
        %1137 = vmatprep.subr.bf16.mxu0 0
        %1138 = vmatpush1.bf16.xpose.msra.mxu0 0
        %1139 = vmatprep.subr.bf16.mxu0 0
        %1140 = vmatpush1.bf16.xpose.msra.mxu0 0
        %1141 = vmatprep.subr.bf16.mxu0 0
        %1142 = vmatpush1.bf16.xpose.msra.mxu0 0
        %1143 = vmatprep.subr.bf16.mxu0 0
        %1144 = vmatpush1.bf16.xpose.msra.mxu0 0
        %1145 = vmatprep.mubr.bf16.mxu0 0
        %1146 = vmatmul.mubr.bf16.gmra.mrb[0].mxu0 %v1108
        %v1147 = vpop.f32.mrb[0].mxu0
        %v1148 = vadd.f32 %v784, %v1147
        %v1149 = vpop.f32.mrb[0].mxu0
        %v1150 = vpop.f32.mrb[0].mxu0
        %v1151 = vpop.f32.mrb[0].mxu0
        %1152 = vdwg.mxu0
        %v1153 = vsel %vm786, %v1148, -inf
        %1154 = vmax.xlane.f32.xlu0 %v1153
        %v1155 = vpop.xlane.xlu0 %1154
        %v1156 = vsub.f32 %v1148, %v1155
        %v1157 = vmul.f32 %v1156, 1.442695
        %v1158 = vpow.pop %v1157
        %v1159 = vsel %vm786, %v1158, 0.0
        %1160 = vadd.xlane.f32.xlu0 %v1159
        %v1161 = vpop.xlane.xlu0 %1160
        %v1162 = vrcp.pop %v1161
        %v1163 = vmul.f32 %v1158, %v1162
        %s1164 = scalar_lea.vmem %s632, 16 [#allocation21]
        %1165 = vst.msk [vmem:[%s1164] sm:$0xff] %vm786, %v1163
        %v1166 = vpack.c.bf16 %v1163, %v1163
        %1167 = vrot.lane.b32.xlu0 %v779, 80
        %v1168 = vpop.permute.xlu0 %1167
        %v1170 = vsel %vm786, %v1166, 0
        %v1173 = vsel %vm852, %v1168, 0
        %1175 = vmatprep.subr.bf16.mxu0 0
        %1176 = vmatpush1.bf16.msra.mxu0 %v1173
        %1177 = vmatprep.subr.bf16.mxu0 0
        %1178 = vmatpush1.bf16.msra.mxu0 0
        %1179 = vmatprep.subr.bf16.mxu0 0
        %1180 = vmatpush1.bf16.msra.mxu0 0
        %1181 = vmatprep.subr.bf16.mxu0 0
        %1182 = vmatpush1.bf16.msra.mxu0 0
        %1183 = vmatprep.subr.bf16.mxu0 0
        %1184 = vmatpush1.bf16.msra.mxu0 0
        %1185 = vmatprep.subr.bf16.mxu0 0
        %1186 = vmatpush1.bf16.msra.mxu0 0
        %1187 = vmatprep.subr.bf16.mxu0 0
        %1188 = vmatpush1.bf16.msra.mxu0 0
        %1189 = vmatprep.subr.bf16.mxu0 0
        %1190 = vmatpush1.bf16.msra.mxu0 0
        %1191 = vmatprep.subr.bf16.mxu0 0
        %1192 = vmatpush1.bf16.msra.mxu0 0
        %1193 = vmatprep.subr.bf16.mxu0 0
        %1194 = vmatpush1.bf16.msra.mxu0 0
        %1195 = vmatprep.subr.bf16.mxu0 0
        %1196 = vmatpush1.bf16.msra.mxu0 0
        %1197 = vmatprep.subr.bf16.mxu0 0
        %1198 = vmatpush1.bf16.msra.mxu0 0
        %1199 = vmatprep.subr.bf16.mxu0 0
        %1200 = vmatpush1.bf16.msra.mxu0 0
        %1201 = vmatprep.subr.bf16.mxu0 0
        %1202 = vmatpush1.bf16.msra.mxu0 0
        %1203 = vmatprep.subr.bf16.mxu0 0
        %1204 = vmatpush1.bf16.msra.mxu0 0
        %1205 = vmatprep.subr.bf16.mxu0 0
        %1206 = vmatpush1.bf16.msra.mxu0 0
        %1207 = vmatprep.mubr.bf16.mxu0 0
        %1208 = vmatmul.mubr.bf16.gmra.mrb[0].mxu0 %v1170
        %v1209 = vpop.f32.mrb[0].mxu0
        %v1210 = vadd.f32 0.0, %v1209
        %v1211 = vpop.f32.mrb[0].mxu0
        %v1212 = vpop.f32.mrb[0].mxu0
        %v1213 = vpop.f32.mrb[0].mxu0
        %1214 = vdwg.mxu0
        %v1215 = vpack.c.bf16 %v1210, %v1210
        %v1217 = vsel %vm786, %v1215, 0
        %v1220 = vsel %vm852, %v649, 0
        %1222 = vmatprep.subr.bf16.mxu0 0
        %1223 = vmatpush1.bf16.msra.mxu0 %v1220
        %1224 = vmatprep.subr.bf16.mxu0 0
        %1225 = vmatpush1.bf16.msra.mxu0 0
        %1226 = vmatprep.subr.bf16.mxu0 0
        %1227 = vmatpush1.bf16.msra.mxu0 0
        %1228 = vmatprep.subr.bf16.mxu0 0
        %1229 = vmatpush1.bf16.msra.mxu0 0
        %1230 = vmatprep.subr.bf16.mxu0 0
        %1231 = vmatpush1.bf16.msra.mxu0 0
        %1232 = vmatprep.subr.bf16.mxu0 0
        %1233 = vmatpush1.bf16.msra.mxu0 0
        %1234 = vmatprep.subr.bf16.mxu0 0
        %1235 = vmatpush1.bf16.msra.mxu0 0
        %1236 = vmatprep.subr.bf16.mxu0 0
        %1237 = vmatpush1.bf16.msra.mxu0 0
        %1238 = vmatprep.subr.bf16.mxu0 0
        %1239 = vmatpush1.bf16.msra.mxu0 0
        %1240 = vmatprep.subr.bf16.mxu0 0
        %1241 = vmatpush1.bf16.msra.mxu0 0
        %1242 = vmatprep.subr.bf16.mxu0 0
        %1243 = vmatpush1.bf16.msra.mxu0 0
        %1244 = vmatprep.subr.bf16.mxu0 0
        %1245 = vmatpush1.bf16.msra.mxu0 0
        %1246 = vmatprep.subr.bf16.mxu0 0
        %1247 = vmatpush1.bf16.msra.mxu0 0
        %1248 = vmatprep.subr.bf16.mxu0 0
        %1249 = vmatpush1.bf16.msra.mxu0 0
        %1250 = vmatprep.subr.bf16.mxu0 0
        %1251 = vmatpush1.bf16.msra.mxu0 0
        %1252 = vmatprep.subr.bf16.mxu0 0
        %1253 = vmatpush1.bf16.msra.mxu0 0
        %1254 = vmatprep.mubr.bf16.mxu0 0
        %1255 = vmatmul.mubr.bf16.gmra.mrb[0].mxu0 %v1217
        %v1256 = vpop.f32.mrb[0].mxu0
        %v1257 = vadd.f32 0.0, %v1256
        %v1258 = vpop.f32.mrb[0].mxu0
        %v1259 = vpop.f32.mrb[0].mxu0
        %v1260 = vpop.f32.mrb[0].mxu0
        %1261 = vdwg.mxu0
        %v1262 = vadd.f32 %v1098, %v1257
        %1263 = vrot.lane.b32.xlu0 %v778, 104
        %v1264 = vpop.permute.xlu0 %1263
        %1265 = vrot.lane.b32.xlu0 %v779, 104
        %v1266 = vpop.permute.xlu0 %1265
        %v1268 = vsel %vm786, %v1264, 0
        %v1271 = vsel %vm786, %v1266, 0
        %1273 = vmatprep.subr.bf16.mxu0 0
        %1274 = vmatpush1.bf16.xpose.msra.mxu0 %v1271
        %1275 = vmatprep.subr.bf16.mxu0 0
        %1276 = vmatpush1.bf16.xpose.msra.mxu0 0
        %1277 = vmatprep.subr.bf16.mxu0 0
        %1278 = vmatpush1.bf16.xpose.msra.mxu0 0
        %1279 = vmatprep.subr.bf16.mxu0 0
        %1280 = vmatpush1.bf16.xpose.msra.mxu0 0
        %1281 = vmatprep.subr.bf16.mxu0 0
        %1282 = vmatpush1.bf16.xpose.msra.mxu0 0
        %1283 = vmatprep.subr.bf16.mxu0 0
        %1284 = vmatpush1.bf16.xpose.msra.mxu0 0
        %1285 = vmatprep.subr.bf16.mxu0 0
        %1286 = vmatpush1.bf16.xpose.msra.mxu0 0
        %1287 = vmatprep.subr.bf16.mxu0 0
        %1288 = vmatpush1.bf16.xpose.msra.mxu0 0
        %1289 = vmatprep.subr.bf16.mxu0 0
        %1290 = vmatpush1.bf16.xpose.msra.mxu0 0
        %1291 = vmatprep.subr.bf16.mxu0 0
        %1292 = vmatpush1.bf16.xpose.msra.mxu0 0
        %1293 = vmatprep.subr.bf16.mxu0 0
        %1294 = vmatpush1.bf16.xpose.msra.mxu0 0
        %1295 = vmatprep.subr.bf16.mxu0 0
        %1296 = vmatpush1.bf16.xpose.msra.mxu0 0
        %1297 = vmatprep.subr.bf16.mxu0 0
        %1298 = vmatpush1.bf16.xpose.msra.mxu0 0
        %1299 = vmatprep.subr.bf16.mxu0 0
        %1300 = vmatpush1.bf16.xpose.msra.mxu0 0
        %1301 = vmatprep.subr.bf16.mxu0 0
        %1302 = vmatpush1.bf16.xpose.msra.mxu0 0
        %1303 = vmatprep.subr.bf16.mxu0 0
        %1304 = vmatpush1.bf16.xpose.msra.mxu0 0
        %1305 = vmatprep.mubr.bf16.mxu0 0
        %1306 = vmatmul.mubr.bf16.gmra.mrb[0].mxu0 %v1268
        %v1307 = vpop.f32.mrb[0].mxu0
        %v1308 = vadd.f32 %v784, %v1307
        %v1309 = vpop.f32.mrb[0].mxu0
        %v1310 = vpop.f32.mrb[0].mxu0
        %v1311 = vpop.f32.mrb[0].mxu0
        %1312 = vdwg.mxu0
        %v1313 = vsel %vm786, %v1308, -inf
        %1314 = vmax.xlane.f32.xlu0 %v1313
        %v1315 = vpop.xlane.xlu0 %1314
        %v1316 = vsub.f32 %v1308, %v1315
        %v1317 = vmul.f32 %v1316, 1.442695
        %v1318 = vpow.pop %v1317
        %v1319 = vsel %vm786, %v1318, 0.0
        %1320 = vadd.xlane.f32.xlu0 %v1319
        %v1321 = vpop.xlane.xlu0 %1320
        %v1322 = vrcp.pop %v1321
        %v1323 = vmul.f32 %v1318, %v1322
        %s1324 = scalar_lea.vmem %s632, 24 [#allocation21]
        %1325 = vst.msk [vmem:[%s1324] sm:$0xff] %vm786, %v1323
        %v1326 = vpack.c.bf16 %v1323, %v1323
        %1327 = vrot.lane.b32.xlu0 %v779, 72
        %v1328 = vpop.permute.xlu0 %1327
        %v1330 = vsel %vm786, %v1326, 0
        %v1333 = vsel %vm852, %v1328, 0
        %1335 = vmatprep.subr.bf16.mxu0 0
        %1336 = vmatpush1.bf16.msra.mxu0 %v1333
        %1337 = vmatprep.subr.bf16.mxu0 0
        %1338 = vmatpush1.bf16.msra.mxu0 0
        %1339 = vmatprep.subr.bf16.mxu0 0
        %1340 = vmatpush1.bf16.msra.mxu0 0
        %1341 = vmatprep.subr.bf16.mxu0 0
        %1342 = vmatpush1.bf16.msra.mxu0 0
        %1343 = vmatprep.subr.bf16.mxu0 0
        %1344 = vmatpush1.bf16.msra.mxu0 0
        %1345 = vmatprep.subr.bf16.mxu0 0
        %1346 = vmatpush1.bf16.msra.mxu0 0
        %1347 = vmatprep.subr.bf16.mxu0 0
        %1348 = vmatpush1.bf16.msra.mxu0 0
        %1349 = vmatprep.subr.bf16.mxu0 0
        %1350 = vmatpush1.bf16.msra.mxu0 0
        %1351 = vmatprep.subr.bf16.mxu0 0
        %1352 = vmatpush1.bf16.msra.mxu0 0
        %1353 = vmatprep.subr.bf16.mxu0 0
        %1354 = vmatpush1.bf16.msra.mxu0 0
        %1355 = vmatprep.subr.bf16.mxu0 0
        %1356 = vmatpush1.bf16.msra.mxu0 0
        %1357 = vmatprep.subr.bf16.mxu0 0
        %1358 = vmatpush1.bf16.msra.mxu0 0
        %1359 = vmatprep.subr.bf16.mxu0 0
        %1360 = vmatpush1.bf16.msra.mxu0 0
        %1361 = vmatprep.subr.bf16.mxu0 0
        %1362 = vmatpush1.bf16.msra.mxu0 0
        %1363 = vmatprep.subr.bf16.mxu0 0
        %1364 = vmatpush1.bf16.msra.mxu0 0
        %1365 = vmatprep.subr.bf16.mxu0 0
        %1366 = vmatpush1.bf16.msra.mxu0 0
        %1367 = vmatprep.mubr.bf16.mxu0 0
        %1368 = vmatmul.mubr.bf16.gmra.mrb[0].mxu0 %v1330
        %v1369 = vpop.f32.mrb[0].mxu0
        %v1370 = vadd.f32 0.0, %v1369
        %v1371 = vpop.f32.mrb[0].mxu0
        %v1372 = vpop.f32.mrb[0].mxu0
        %v1373 = vpop.f32.mrb[0].mxu0
        %1374 = vdwg.mxu0
        %v1375 = vpack.c.bf16 %v1370, %v1370
        %v1377 = vsel %vm786, %v1375, 0
        %v1380 = vsel %vm852, %v650, 0
        %1382 = vmatprep.subr.bf16.mxu0 0
        %1383 = vmatpush1.bf16.msra.mxu0 %v1380
        %1384 = vmatprep.subr.bf16.mxu0 0
        %1385 = vmatpush1.bf16.msra.mxu0 0
        %1386 = vmatprep.subr.bf16.mxu0 0
        %1387 = vmatpush1.bf16.msra.mxu0 0
        %1388 = vmatprep.subr.bf16.mxu0 0
        %1389 = vmatpush1.bf16.msra.mxu0 0
        %1390 = vmatprep.subr.bf16.mxu0 0
        %1391 = vmatpush1.bf16.msra.mxu0 0
        %1392 = vmatprep.subr.bf16.mxu0 0
        %1393 = vmatpush1.bf16.msra.mxu0 0
        %1394 = vmatprep.subr.bf16.mxu0 0
        %1395 = vmatpush1.bf16.msra.mxu0 0
        %1396 = vmatprep.subr.bf16.mxu0 0
        %1397 = vmatpush1.bf16.msra.mxu0 0
        %1398 = vmatprep.subr.bf16.mxu0 0
        %1399 = vmatpush1.bf16.msra.mxu0 0
        %1400 = vmatprep.subr.bf16.mxu0 0
        %1401 = vmatpush1.bf16.msra.mxu0 0
        %1402 = vmatprep.subr.bf16.mxu0 0
        %1403 = vmatpush1.bf16.msra.mxu0 0
        %1404 = vmatprep.subr.bf16.mxu0 0
        %1405 = vmatpush1.bf16.msra.mxu0 0
        %1406 = vmatprep.subr.bf16.mxu0 0
        %1407 = vmatpush1.bf16.msra.mxu0 0
        %1408 = vmatprep.subr.bf16.mxu0 0
        %1409 = vmatpush1.bf16.msra.mxu0 0
        %1410 = vmatprep.subr.bf16.mxu0 0
        %1411 = vmatpush1.bf16.msra.mxu0 0
        %1412 = vmatprep.subr.bf16.mxu0 0
        %1413 = vmatpush1.bf16.msra.mxu0 0
        %1414 = vmatprep.mubr.bf16.mxu0 0
        %1415 = vmatmul.mubr.bf16.gmra.mrb[0].mxu0 %v1377
        %v1416 = vpop.f32.mrb[0].mxu0
        %v1417 = vadd.f32 0.0, %v1416
        %v1418 = vpop.f32.mrb[0].mxu0
        %v1419 = vpop.f32.mrb[0].mxu0
        %v1420 = vpop.f32.mrb[0].mxu0
        %1421 = vdwg.mxu0
        %v1422 = vadd.f32 %v1262, %v1417
        %v1423 = vunpack.c.l.bf16 %v634
        %v1424 = vadd.f32 %v1423, %v1422
        %v1426 = vlaneseq
        %v1427 = vshrl.u32 %v1426, 7
        %v1428 = vsub.s32 0, %v1427
        %v1429 = vrot.slane %v651, %v1428
        %v1431 = vadd.f32 %v1424, %v1429
        %v1432 = vsel %vm672, %v1431, 0.0
        %1433 = vadd.xlane.f32.xlu0 %v1432
        %v1434 = vpop.xlane.xlu0 %1433
        %v1435 = vrcp.pop 32.0
        %v1436 = vmul.f32 %v1434, %v1435
        %v1437 = vsub.f32 %v1431, %v1436
        %v1438 = vmul.f32 %v1437, %v1437
        %v1439 = vsel %vm672, %v1438, 0.0
        %1440 = vadd.xlane.f32.xlu0 %v1439
        %v1441 = vpop.xlane.xlu0 %1440
        %v1442 = vmul.f32 %v1441, %v1435
        %v1443 = vadd.f32 %v1442, 1e-05
        %v1444 = vrsqrt.pop %v1443
        %v1445 = vmul.f32 %v1437, %v1444
        %v1447 = vlaneseq
        %v1448 = vshrl.u32 %v1447, 7
        %v1449 = vsub.s32 0, %v1448
        %v1450 = vrot.slane %v652, %v1449
        %v1452 = vmul.f32 %v1445, %v1450
        %v1454 = vlaneseq
        %v1455 = vshrl.u32 %v1454, 7
        %v1456 = vsub.s32 0, %v1455
        %v1457 = vrot.slane %v653, %v1456
        %v1459 = vadd.f32 %v1452, %v1457
        %v1460 = vpack.c.bf16 %v1459, %v1459
        %vm1461 = vcmask 257024
        %1462 = vst.msk [vmem:[%s625] sm:$0xf] %vm1461, %v1460
        %s1463 = sand.u32 %s310, 1
        %s1464 = scalar_lea.sflag [#allocation4], %s1463
        %s1465 = sand.u32 %s310, 1
        %s1466 = smul.addr %s1465, 4
        %s1467 = scalar_lea.vmem [#allocation20], %s1466
        %s1468 = sand.u32 %s338, 1
        %s1469 = scalar_lea.sflag [#allocation22], %s1468
        %s1470 = sand.u32 %s338, 1
        %s1471 = smul.addr %s1470, 32
        %s1472 = scalar_lea.vmem [#allocation21], %s1471
        // Predicated region
        $region109: #{seq2seq_forward.19} parent=63 // pred_check
          %p1473 = pneg %p320
        $region110: #{seq2seq_forward.19} parent=63 // pred_check_branch
          %1475 = sbr.rel (%p1473) target = $region112
        $region111: #{seq2seq_forward.19} parent=63 // pred_region
          %s1477 = ssub.s32 64, 64
          %1478 = vsyncadd %s1464, %s1477
          %s1479 = sadd.s32 %s45, %s44
          %s1480 = smul.addr %s1479, 64
          %s1481 = scalar_lea.hbm %s11, %s1480
          %s1483 = sshll.u32 %s1467, 4
          %s1484 = int_to_ptr.vmem [resolvable:$true] %s1483
          %1486 = dma.vmem_to_hbm [thread:$0]  %s1484, 64, %s1481, %s1464
        $region112: #{seq2seq_forward.19} parent=63 // pred_fallthru
          _
        // Predicated region
        $region113: #{seq2seq_forward.19} parent=63 // pred_check
          %p1487 = pneg %p348
        $region114: #{seq2seq_forward.19} parent=63 // pred_check_branch
          %1489 = sbr.rel (%p1487) target = $region116
        $region115: #{seq2seq_forward.19} parent=63 // pred_region
          %s1491 = ssub.s32 512, 512
          %1492 = vsyncadd %s1469, %s1491
          %s1493 = smul.addr %s44, 4
          %s1494 = sadd.s32 %s45, %s1493
          %s1495 = smul.addr %s1494, 128
          %s1496 = scalar_lea.hbm %s12, %s1495
          %s1497 = sshll.u32 %s1472, 4
          %s1498 = int_to_ptr.vmem [resolvable:$true] %s1497
          %1503 = dma.vmem_to_hbm [thread:$0]  %s1498, 512, %s1496, %s1469, 128, 128, 8
        $region116: #{seq2seq_forward.19} parent=63 // pred_fallthru
          _
      $region64: #{seq2seq_forward.19} parent=5 // pred_fallthru
        _
      %p1504 = scmp.le.s32.totalorder 2, %s35
      // Predicated region
      $region117: #{seq2seq_forward.19} parent=5 // pred_check
        %p1505 = pneg %p1504
      $region118: #{seq2seq_forward.19} parent=5 // pred_check_branch
        %1507 = sbr.rel (%p1505) target = $region120
      $region119: #{seq2seq_forward.19} parent=5 // pred_region
        %s1508 = ssub.s32 %s35, 2
        // Predicated region
        $region121: #{seq2seq_forward.19} parent=119 // pred_check
          %p1509 = pneg %p326
        $region122: #{seq2seq_forward.19} parent=119 // pred_check_branch
          %1511 = sbr.rel (%p1509) target = $region124
        $region123: #{seq2seq_forward.19} parent=119 // pred_region
          %s1512 = sand.u32 %s311, 1
          %s1513 = scalar_lea.sflag [#allocation4], %s1512
          %s1514 = sand.u32 %s311, 1
          %s1515 = smul.addr %s1514, 4
          %s1516 = scalar_lea.vmem [#allocation20], %s1515
          %1517 = dma.done %s1513, 64
        $region124: #{seq2seq_forward.19} parent=119 // pred_fallthru
          _
        // Predicated region
        $region125: #{seq2seq_forward.19} parent=119 // pred_check
          %p1518 = pneg %p354
        $region126: #{seq2seq_forward.19} parent=119 // pred_check_branch
          %1520 = sbr.rel (%p1518) target = $region128
        $region127: #{seq2seq_forward.19} parent=119 // pred_region
          %s1521 = sand.u32 %s339, 1
          %s1522 = scalar_lea.sflag [#allocation22], %s1521
          %s1523 = sand.u32 %s339, 1
          %s1524 = smul.addr %s1523, 32
          %s1525 = scalar_lea.vmem [#allocation21], %s1524
          %1526 = dma.done %s1522, 512
        $region128: #{seq2seq_forward.19} parent=119 // pred_fallthru
          _
      $region120: #{seq2seq_forward.19} parent=5 // pred_fallthru
        _
    $region6: #{seq2seq_forward.19} parent=1 // loop_footer
      %s39 = sadd.s32 1, %s35
    $region7: #{seq2seq_forward.19} parent=1 // loop_footer_branch
      %34 = sbr.rel target = $region3
    $region8: #{seq2seq_forward.19} parent=1 // loop_exit
      _
    %1527 = vsyncpa [#allocation3], 1
    %s1528 = scalar_lea.sflag [#allocation3], 1
    %1529 = vsyncpa %s1528, 1
    %1530 = vsyncpa [#allocation6], 1
    %s1531 = scalar_lea.sflag [#allocation6], 1
    %1532 = vsyncpa %s1531, 1
    %1533 = vsyncpa [#allocation9], 1
    %1534 = vsyncpa [#allocation12], 1
    %1535 = vsyncpa [#allocation15], 1
    %1536 = vsyncpa [#allocation18], 1
    %1537 = vsyncpa [#allocation4], 1
    %s1538 = scalar_lea.sflag [#allocation4], 1
    %1539 = vsyncpa %s1538, 1
    %1540 = vsyncpa [#allocation22], 1
    %s1541 = scalar_lea.sflag [#allocation22], 1
    %1542 = vsyncpa %s1541, 1

// kernel: seq2seq_forward.21
$region0: #{seq2seq_forward.21}
  #allocation0 [shape = 'u32[]', space=smem, size = 0x4, offset = 0x4, fixed_abs, tag = 'smem constant byte address 0x4 - core index']
  #allocation1 [shape = 'u32[144,128]{1,0:T(1,128)}', space=vmem, size = 0x12000, scoped, tag = 'internal scratch']
  #allocation2 [shape = 'f32[128,128]{1,0:T(8,128)}', space=vmem, size = 0x10000, scoped, tag = 'scratch operand']
  %s0 = inlined_call_operand.hbm [shape: bf16[128,128], index: 0, kind: input, shape index: {}]
  %s1 = inlined_call_operand.hbm [shape: bf16[128,128], index: 1, kind: input, shape index: {}]
  %s2 = inlined_call_operand.hbm [shape: f32[1,128], index: 2, kind: input, shape index: {}]
  %s3 = inlined_call_operand.hbm [shape: f32[128,128], index: 3, kind: output, shape index: {}]
  %s4 = sld [smem:[#allocation0]]
  $region42: #{seq2seq_forward.21} parent=0
    _
  %s6 = ssub.s32 1, %s4
  %s7 = scalar_select 0, %s6, %s4
  $region1: #{seq2seq_forward.21} parent=0
    #allocation3 [shape = 'u8[32768]{0}', space=vmem, size = 0x8000, scoped, tag = 'input window, operand 0, single buffered']
    #allocation4 [shape = 's32[1]{0}', space=sflag, size = 0x4, scoped, tag = 'scoped memory for seq2seq_forward.21']
    #allocation5 [shape = 's32[1]{0}', space=sflag, size = 0x4, scoped, tag = 'scoped memory for seq2seq_forward.21']
    #allocation6 [shape = 'u8[32768]{0}', space=vmem, size = 0x8000, scoped, tag = 'input window, operand 1, single buffered']
    #allocation7 [shape = 's32[1]{0}', space=sflag, size = 0x4, scoped, tag = 'scoped memory for seq2seq_forward.21']
    #allocation8 [shape = 'u8[512]{0}', space=vmem, size = 0x400, scoped, tag = 'input window, operand 2, single buffered']
    #allocation9 [shape = 'u8[65536]{0}', space=vmem, size = 0x10000, scoped, tag = 'output window, operand 0, single buffered']
    %8 = vsyncpa [#allocation4], 0
    %9 = vsyncpa [#allocation7], 0
    %10 = vsyncpa [#allocation5], 0
    // Predicated region
    $region2: #{seq2seq_forward.21} parent=1 // pred_check
      _
    $region3: #{seq2seq_forward.21} parent=1 // pred_check_branch
      %12 = sbr.rel (0) target = $region5
    $region4: #{seq2seq_forward.21} parent=1 // pred_region
      %s14 = ssub.s32 1024, 1024
      %15 = vsyncadd [#allocation4], %s14
      %s16 = sshll.u32 [#allocation3], 4
      %s17 = int_to_ptr.vmem [resolvable:$true] %s16
      %22 = dma.hbm_to_vmem [thread:$0]  %s0, 1024, %s17, [#allocation4], 64, 64, 4
    $region5: #{seq2seq_forward.21} parent=1 // pred_fallthru
      _
    // Predicated region
    $region6: #{seq2seq_forward.21} parent=1 // pred_check
      _
    $region7: #{seq2seq_forward.21} parent=1 // pred_check_branch
      %24 = sbr.rel (0) target = $region9
    $region8: #{seq2seq_forward.21} parent=1 // pred_region
      %s26 = ssub.s32 1024, 1024
      %27 = vsyncadd [#allocation7], %s26
      %s28 = sshll.u32 [#allocation6], 4
      %s29 = int_to_ptr.vmem [resolvable:$true] %s28
      %34 = dma.hbm_to_vmem [thread:$0]  %s1, 1024, %s29, [#allocation7], 64, 64, 4
    $region9: #{seq2seq_forward.21} parent=1 // pred_fallthru
      _
    // Predicated region
    $region10: #{seq2seq_forward.21} parent=1 // pred_check
      _
    $region11: #{seq2seq_forward.21} parent=1 // pred_check_branch
      %36 = sbr.rel (0) target = $region13
    $region12: #{seq2seq_forward.21} parent=1 // pred_region
      %s38 = ssub.s32 16, 16
      %39 = vsyncadd [#allocation7], %s38
      %s41 = sshll.u32 [#allocation8], 4
      %s42 = int_to_ptr.vmem [resolvable:$true] %s41
      %44 = dma.hbm_to_vmem [thread:$0]  %s2, 16, %s42, [#allocation7]
    $region13: #{seq2seq_forward.21} parent=1 // pred_fallthru
      _
    // Predicated region
    $region14: #{seq2seq_forward.21} parent=1 // pred_check
      _
    $region15: #{seq2seq_forward.21} parent=1 // pred_check_branch
      %46 = sbr.rel (0) target = $region17
    $region16: #{seq2seq_forward.21} parent=1 // pred_region
      %47 = dma.done [#allocation4], 1024
    $region17: #{seq2seq_forward.21} parent=1 // pred_fallthru
      _
    // Predicated region
    $region18: #{seq2seq_forward.21} parent=1 // pred_check
      _
    $region19: #{seq2seq_forward.21} parent=1 // pred_check_branch
      %49 = sbr.rel (0) target = $region21
    $region20: #{seq2seq_forward.21} parent=1 // pred_region
      %50 = dma.done [#allocation7], 1024
    $region21: #{seq2seq_forward.21} parent=1 // pred_fallthru
      _
    // Predicated region
    $region22: #{seq2seq_forward.21} parent=1 // pred_check
      _
    $region23: #{seq2seq_forward.21} parent=1 // pred_check_branch
      %52 = sbr.rel (0) target = $region25
    $region24: #{seq2seq_forward.21} parent=1 // pred_region
      %53 = dma.done [#allocation7], 16
    $region25: #{seq2seq_forward.21} parent=1 // pred_fallthru
      _
    %p55 = scmp.eq.s32.totalorder 0, 0
    // Predicated region
    $region26: #{seq2seq_forward.21} parent=1 // pred_check
      %p56 = pneg %p55
    $region27: #{seq2seq_forward.21} parent=1 // pred_check_branch
      %58 = sbr.rel (%p56) target = $region29
    $region28: #{seq2seq_forward.21} parent=1 // pred_region
      %59 = vst [vmem:[#allocation2] sm:$0xff] 0.0
      %60 = vst [vmem:[#allocation2 + $0x8] sm:$0xff] 0.0
      %61 = vst [vmem:[#allocation2 + $0x10] sm:$0xff] 0.0
      %62 = vst [vmem:[#allocation2 + $0x18] sm:$0xff] 0.0
      %63 = vst [vmem:[#allocation2 + $0x20] sm:$0xff] 0.0
      %64 = vst [vmem:[#allocation2 + $0x28] sm:$0xff] 0.0
      %65 = vst [vmem:[#allocation2 + $0x30] sm:$0xff] 0.0
      %66 = vst [vmem:[#allocation2 + $0x38] sm:$0xff] 0.0
      %67 = vst [vmem:[#allocation2 + $0x40] sm:$0xff] 0.0
      %68 = vst [vmem:[#allocation2 + $0x48] sm:$0xff] 0.0
      %69 = vst [vmem:[#allocation2 + $0x50] sm:$0xff] 0.0
      %70 = vst [vmem:[#allocation2 + $0x58] sm:$0xff] 0.0
      %71 = vst [vmem:[#allocation2 + $0x60] sm:$0xff] 0.0
      %72 = vst [vmem:[#allocation2 + $0x68] sm:$0xff] 0.0
      %73 = vst [vmem:[#allocation2 + $0x70] sm:$0xff] 0.0
      %74 = vst [vmem:[#allocation2 + $0x78] sm:$0xff] 0.0
    $region29: #{seq2seq_forward.21} parent=1 // pred_fallthru
      _
    %v75 = vld [vmem:[#allocation2] sm:$0xff]
    %v76 = vld [vmem:[#allocation2 + $0x8] sm:$0xff]
    %v77 = vld [vmem:[#allocation2 + $0x10] sm:$0xff]
    %v78 = vld [vmem:[#allocation2 + $0x18] sm:$0xff]
    %v79 = vld [vmem:[#allocation2 + $0x20] sm:$0xff]
    %v80 = vld [vmem:[#allocation2 + $0x28] sm:$0xff]
    %v81 = vld [vmem:[#allocation2 + $0x30] sm:$0xff]
    %v82 = vld [vmem:[#allocation2 + $0x38] sm:$0xff]
    %v83 = vld [vmem:[#allocation2 + $0x40] sm:$0xff]
    %v84 = vld [vmem:[#allocation2 + $0x48] sm:$0xff]
    %v85 = vld [vmem:[#allocation2 + $0x50] sm:$0xff]
    %v86 = vld [vmem:[#allocation2 + $0x58] sm:$0xff]
    %v87 = vld [vmem:[#allocation2 + $0x60] sm:$0xff]
    %v88 = vld [vmem:[#allocation2 + $0x68] sm:$0xff]
    %v89 = vld [vmem:[#allocation2 + $0x70] sm:$0xff]
    %v90 = vld [vmem:[#allocation2 + $0x78] sm:$0xff]
    %v91 = vld [vmem:[#allocation3] sm:$0xf]
    %v92 = vld [vmem:[#allocation3 + $0x4] sm:$0xf]
    %v93 = vld [vmem:[#allocation3 + $0x8] sm:$0xf]
    %v94 = vld [vmem:[#allocation3 + $0xc] sm:$0xf]
    %v95 = vld [vmem:[#allocation3 + $0x10] sm:$0xf]
    %v96 = vld [vmem:[#allocation3 + $0x14] sm:$0xf]
    %v97 = vld [vmem:[#allocation3 + $0x18] sm:$0xf]
    %v98 = vld [vmem:[#allocation3 + $0x1c] sm:$0xf]
    %v99 = vld [vmem:[#allocation3 + $0x20] sm:$0xf]
    %v100 = vld [vmem:[#allocation3 + $0x24] sm:$0xf]
    %v101 = vld [vmem:[#allocation3 + $0x28] sm:$0xf]
    %v102 = vld [vmem:[#allocation3 + $0x2c] sm:$0xf]
    %v103 = vld [vmem:[#allocation3 + $0x30] sm:$0xf]
    %v104 = vld [vmem:[#allocation3 + $0x34] sm:$0xf]
    %v105 = vld [vmem:[#allocation3 + $0x38] sm:$0xf]
    %v106 = vld [vmem:[#allocation3 + $0x3c] sm:$0xf]
    %v107 = vld [vmem:[#allocation6] sm:$0xf]
    %v108 = vld [vmem:[#allocation6 + $0x4] sm:$0xf]
    %v109 = vld [vmem:[#allocation6 + $0x8] sm:$0xf]
    %v110 = vld [vmem:[#allocation6 + $0xc] sm:$0xf]
    %v111 = vld [vmem:[#allocation6 + $0x10] sm:$0xf]
    %v112 = vld [vmem:[#allocation6 + $0x14] sm:$0xf]
    %v113 = vld [vmem:[#allocation6 + $0x18] sm:$0xf]
    %v114 = vld [vmem:[#allocation6 + $0x1c] sm:$0xf]
    %v115 = vld [vmem:[#allocation6 + $0x20] sm:$0xf]
    %v116 = vld [vmem:[#allocation6 + $0x24] sm:$0xf]
    %v117 = vld [vmem:[#allocation6 + $0x28] sm:$0xf]
    %v118 = vld [vmem:[#allocation6 + $0x2c] sm:$0xf]
    %v119 = vld [vmem:[#allocation6 + $0x30] sm:$0xf]
    %v120 = vld [vmem:[#allocation6 + $0x34] sm:$0xf]
    %v121 = vld [vmem:[#allocation6 + $0x38] sm:$0xf]
    %v122 = vld [vmem:[#allocation6 + $0x3c] sm:$0xf]
    %v139 = vunpack.c.l.b16 %v91
    %v140 = vunpack.c.l.b16 %v92
    %v141 = vunpack.c.l.b16 %v93
    %v142 = vunpack.c.l.b16 %v94
    %v143 = vunpack.c.l.b16 %v95
    %v144 = vunpack.c.l.b16 %v96
    %v145 = vunpack.c.l.b16 %v97
    %v146 = vunpack.c.l.b16 %v98
    %v147 = vunpack.c.l.b16 %v99
    %v148 = vunpack.c.l.b16 %v100
    %v149 = vunpack.c.l.b16 %v101
    %v150 = vunpack.c.l.b16 %v102
    %v151 = vunpack.c.l.b16 %v103
    %v152 = vunpack.c.l.b16 %v104
    %v153 = vunpack.c.l.b16 %v105
    %v154 = vunpack.c.l.b16 %v106
    %v155 = vpack.c.b16 %v140, %v139
    %v156 = vpack.c.b16 %v142, %v141
    %v157 = vpack.c.b16 %v144, %v143
    %v158 = vpack.c.b16 %v146, %v145
    %v159 = vpack.c.b16 %v148, %v147
    %v160 = vpack.c.b16 %v150, %v149
    %v161 = vpack.c.b16 %v152, %v151
    %v162 = vpack.c.b16 %v154, %v153
    %v187 = vunpack.c.l.b16 %v107
    %v188 = vunpack.c.l.b16 %v108
    %v189 = vunpack.c.l.b16 %v109
    %v190 = vunpack.c.l.b16 %v110
    %v191 = vunpack.c.l.b16 %v111
    %v192 = vunpack.c.l.b16 %v112
    %v193 = vunpack.c.l.b16 %v113
    %v194 = vunpack.c.l.b16 %v114
    %v195 = vunpack.c.l.b16 %v115
    %v196 = vunpack.c.l.b16 %v116
    %v197 = vunpack.c.l.b16 %v117
    %v198 = vunpack.c.l.b16 %v118
    %v199 = vunpack.c.l.b16 %v119
    %v200 = vunpack.c.l.b16 %v120
    %v201 = vunpack.c.l.b16 %v121
    %v202 = vunpack.c.l.b16 %v122
    %v203 = vpack.c.b16 %v188, %v187
    %v204 = vpack.c.b16 %v190, %v189
    %v205 = vpack.c.b16 %v192, %v191
    %v206 = vpack.c.b16 %v194, %v193
    %v207 = vpack.c.b16 %v196, %v195
    %v208 = vpack.c.b16 %v198, %v197
    %v209 = vpack.c.b16 %v200, %v199
    %v210 = vpack.c.b16 %v202, %v201
    %219 = vmatprep.subr.bf16.mxu0 0
    %220 = vmatpush1.bf16.msra.mxu0 %v203
    %221 = vmatprep.subr.bf16.mxu0 0
    %222 = vmatpush1.bf16.msra.mxu0 %v204
    %223 = vmatprep.subr.bf16.mxu0 0
    %224 = vmatpush1.bf16.msra.mxu0 %v205
    %225 = vmatprep.subr.bf16.mxu0 0
    %226 = vmatpush1.bf16.msra.mxu0 %v206
    %227 = vmatprep.subr.bf16.mxu0 0
    %228 = vmatpush1.bf16.msra.mxu0 %v207
    %229 = vmatprep.subr.bf16.mxu0 0
    %230 = vmatpush1.bf16.msra.mxu0 %v208
    %231 = vmatprep.subr.bf16.mxu0 0
    %232 = vmatpush1.bf16.msra.mxu0 %v209
    %233 = vmatprep.subr.bf16.mxu0 0
    %234 = vmatpush1.bf16.msra.mxu0 %v210
    %235 = vmatprep.subr.bf16.mxu0 0
    %236 = vmatpush1.bf16.msra.mxu0 0
    %237 = vmatprep.subr.bf16.mxu0 0
    %238 = vmatpush1.bf16.msra.mxu0 0
    %239 = vmatprep.subr.bf16.mxu0 0
    %240 = vmatpush1.bf16.msra.mxu0 0
    %241 = vmatprep.subr.bf16.mxu0 0
    %242 = vmatpush1.bf16.msra.mxu0 0
    %243 = vmatprep.subr.bf16.mxu0 0
    %244 = vmatpush1.bf16.msra.mxu0 0
    %245 = vmatprep.subr.bf16.mxu0 0
    %246 = vmatpush1.bf16.msra.mxu0 0
    %247 = vmatprep.subr.bf16.mxu0 0
    %248 = vmatpush1.bf16.msra.mxu0 0
    %249 = vmatprep.subr.bf16.mxu0 0
    %250 = vmatpush1.bf16.msra.mxu0 0
    %251 = vmatprep.mubr.bf16.mxu0 0
    %252 = vmatmul.mubr.bf16.gmra.mrb[0].mxu0 %v155
    %v253 = vpop.f32.mrb[0].mxu0
    %v254 = vadd.f32 0.0, %v253
    %v255 = vpop.f32.mrb[0].mxu0
    %v256 = vpop.f32.mrb[0].mxu0
    %v257 = vadd.f32 0.0, %v256
    %v258 = vpop.f32.mrb[0].mxu0
    %259 = vmatprep.mubr.bf16.mxu0 0
    %260 = vmatmul.mubr.bf16.gmra.mrb[0].mxu0 %v156
    %v261 = vpop.f32.mrb[0].mxu0
    %v262 = vadd.f32 0.0, %v261
    %v263 = vpop.f32.mrb[0].mxu0
    %v264 = vpop.f32.mrb[0].mxu0
    %v265 = vadd.f32 0.0, %v264
    %v266 = vpop.f32.mrb[0].mxu0
    %267 = vmatprep.mubr.bf16.mxu0 0
    %268 = vmatmul.mubr.bf16.gmra.mrb[0].mxu0 %v157
    %v269 = vpop.f32.mrb[0].mxu0
    %v270 = vadd.f32 0.0, %v269
    %v271 = vpop.f32.mrb[0].mxu0
    %v272 = vpop.f32.mrb[0].mxu0
    %v273 = vadd.f32 0.0, %v272
    %v274 = vpop.f32.mrb[0].mxu0
    %275 = vmatprep.mubr.bf16.mxu0 0
    %276 = vmatmul.mubr.bf16.gmra.mrb[0].mxu0 %v158
    %v277 = vpop.f32.mrb[0].mxu0
    %v278 = vadd.f32 0.0, %v277
    %v279 = vpop.f32.mrb[0].mxu0
    %v280 = vpop.f32.mrb[0].mxu0
    %v281 = vadd.f32 0.0, %v280
    %v282 = vpop.f32.mrb[0].mxu0
    %283 = vmatprep.mubr.bf16.mxu0 0
    %284 = vmatmul.mubr.bf16.gmra.mrb[0].mxu0 %v159
    %v285 = vpop.f32.mrb[0].mxu0
    %v286 = vadd.f32 0.0, %v285
    %v287 = vpop.f32.mrb[0].mxu0
    %v288 = vpop.f32.mrb[0].mxu0
    %v289 = vadd.f32 0.0, %v288
    %v290 = vpop.f32.mrb[0].mxu0
    %291 = vmatprep.mubr.bf16.mxu0 0
    %292 = vmatmul.mubr.bf16.gmra.mrb[0].mxu0 %v160
    %v293 = vpop.f32.mrb[0].mxu0
    %v294 = vadd.f32 0.0, %v293
    %v295 = vpop.f32.mrb[0].mxu0
    %v296 = vpop.f32.mrb[0].mxu0
    %v297 = vadd.f32 0.0, %v296
    %v298 = vpop.f32.mrb[0].mxu0
    %299 = vmatprep.mubr.bf16.mxu0 0
    %300 = vmatmul.mubr.bf16.gmra.mrb[0].mxu0 %v161
    %v301 = vpop.f32.mrb[0].mxu0
    %v302 = vadd.f32 0.0, %v301
    %v303 = vpop.f32.mrb[0].mxu0
    %v304 = vpop.f32.mrb[0].mxu0
    %v305 = vadd.f32 0.0, %v304
    %v306 = vpop.f32.mrb[0].mxu0
    %307 = vmatprep.mubr.bf16.mxu0 0
    %308 = vmatmul.mubr.bf16.gmra.mrb[0].mxu0 %v162
    %v309 = vpop.f32.mrb[0].mxu0
    %v310 = vadd.f32 0.0, %v309
    %v311 = vpop.f32.mrb[0].mxu0
    %v312 = vpop.f32.mrb[0].mxu0
    %v313 = vadd.f32 0.0, %v312
    %v314 = vpop.f32.mrb[0].mxu0
    %315 = vdwg.mxu0
    %v316 = vadd.f32 %v75, %v254
    %v317 = vadd.f32 %v76, %v257
    %v318 = vadd.f32 %v77, %v262
    %v319 = vadd.f32 %v78, %v265
    %v320 = vadd.f32 %v79, %v270
    %v321 = vadd.f32 %v80, %v273
    %v322 = vadd.f32 %v81, %v278
    %v323 = vadd.f32 %v82, %v281
    %v324 = vadd.f32 %v83, %v286
    %v325 = vadd.f32 %v84, %v289
    %v326 = vadd.f32 %v85, %v294
    %v327 = vadd.f32 %v86, %v297
    %v328 = vadd.f32 %v87, %v302
    %v329 = vadd.f32 %v88, %v305
    %v330 = vadd.f32 %v89, %v310
    %v331 = vadd.f32 %v90, %v313
    %332 = vst [vmem:[#allocation2] sm:$0xff] %v316
    %333 = vst [vmem:[#allocation2 + $0x8] sm:$0xff] %v317
    %334 = vst [vmem:[#allocation2 + $0x10] sm:$0xff] %v318
    %335 = vst [vmem:[#allocation2 + $0x18] sm:$0xff] %v319
    %336 = vst [vmem:[#allocation2 + $0x20] sm:$0xff] %v320
    %337 = vst [vmem:[#allocation2 + $0x28] sm:$0xff] %v321
    %338 = vst [vmem:[#allocation2 + $0x30] sm:$0xff] %v322
    %339 = vst [vmem:[#allocation2 + $0x38] sm:$0xff] %v323
    %340 = vst [vmem:[#allocation2 + $0x40] sm:$0xff] %v324
    %341 = vst [vmem:[#allocation2 + $0x48] sm:$0xff] %v325
    %342 = vst [vmem:[#allocation2 + $0x50] sm:$0xff] %v326
    %343 = vst [vmem:[#allocation2 + $0x58] sm:$0xff] %v327
    %344 = vst [vmem:[#allocation2 + $0x60] sm:$0xff] %v328
    %345 = vst [vmem:[#allocation2 + $0x68] sm:$0xff] %v329
    %346 = vst [vmem:[#allocation2 + $0x70] sm:$0xff] %v330
    %347 = vst [vmem:[#allocation2 + $0x78] sm:$0xff] %v331
    // Predicated region
    $region30: #{seq2seq_forward.21} parent=1 // pred_check
      %p348 = pneg %p55
    $region31: #{seq2seq_forward.21} parent=1 // pred_check_branch
      %350 = sbr.rel (%p348) target = $region33
    $region32: #{seq2seq_forward.21} parent=1 // pred_region
      %v351 = vld [vmem:[#allocation2] sm:$0xff]
      %v352 = vld [vmem:[#allocation2 + $0x8] sm:$0xff]
      %v353 = vld [vmem:[#allocation2 + $0x10] sm:$0xff]
      %v354 = vld [vmem:[#allocation2 + $0x18] sm:$0xff]
      %v355 = vld [vmem:[#allocation2 + $0x20] sm:$0xff]
      %v356 = vld [vmem:[#allocation2 + $0x28] sm:$0xff]
      %v357 = vld [vmem:[#allocation2 + $0x30] sm:$0xff]
      %v358 = vld [vmem:[#allocation2 + $0x38] sm:$0xff]
      %v359 = vld [vmem:[#allocation2 + $0x40] sm:$0xff]
      %v360 = vld [vmem:[#allocation2 + $0x48] sm:$0xff]
      %v361 = vld [vmem:[#allocation2 + $0x50] sm:$0xff]
      %v362 = vld [vmem:[#allocation2 + $0x58] sm:$0xff]
      %v363 = vld [vmem:[#allocation2 + $0x60] sm:$0xff]
      %v364 = vld [vmem:[#allocation2 + $0x68] sm:$0xff]
      %v365 = vld [vmem:[#allocation2 + $0x70] sm:$0xff]
      %v366 = vld [vmem:[#allocation2 + $0x78] sm:$0xff]
      %v367 = vld [vmem:[#allocation8] sm:$0x1]
      %v369 = vlaneseq
      %v370 = vshrl.u32 %v369, 7
      %v371 = vsub.s32 0, %v370
      %v372 = vrot.slane %v367, %v371
      %v374 = vadd.f32 %v351, %v372
      %v375 = vadd.f32 %v352, %v372
      %v376 = vadd.f32 %v353, %v372
      %v377 = vadd.f32 %v354, %v372
      %v378 = vadd.f32 %v355, %v372
      %v379 = vadd.f32 %v356, %v372
      %v380 = vadd.f32 %v357, %v372
      %v381 = vadd.f32 %v358, %v372
      %v382 = vadd.f32 %v359, %v372
      %v383 = vadd.f32 %v360, %v372
      %v384 = vadd.f32 %v361, %v372
      %v385 = vadd.f32 %v362, %v372
      %v386 = vadd.f32 %v363, %v372
      %v387 = vadd.f32 %v364, %v372
      %v388 = vadd.f32 %v365, %v372
      %v389 = vadd.f32 %v366, %v372
      %390 = vst [vmem:[#allocation9] sm:$0xff] %v374
      %391 = vst [vmem:[#allocation9 + $0x8] sm:$0xff] %v375
      %392 = vst [vmem:[#allocation9 + $0x10] sm:$0xff] %v376
      %393 = vst [vmem:[#allocation9 + $0x18] sm:$0xff] %v377
      %394 = vst [vmem:[#allocation9 + $0x20] sm:$0xff] %v378
      %395 = vst [vmem:[#allocation9 + $0x28] sm:$0xff] %v379
      %396 = vst [vmem:[#allocation9 + $0x30] sm:$0xff] %v380
      %397 = vst [vmem:[#allocation9 + $0x38] sm:$0xff] %v381
      %398 = vst [vmem:[#allocation9 + $0x40] sm:$0xff] %v382
      %399 = vst [vmem:[#allocation9 + $0x48] sm:$0xff] %v383
      %400 = vst [vmem:[#allocation9 + $0x50] sm:$0xff] %v384
      %401 = vst [vmem:[#allocation9 + $0x58] sm:$0xff] %v385
      %402 = vst [vmem:[#allocation9 + $0x60] sm:$0xff] %v386
      %403 = vst [vmem:[#allocation9 + $0x68] sm:$0xff] %v387
      %404 = vst [vmem:[#allocation9 + $0x70] sm:$0xff] %v388
      %405 = vst [vmem:[#allocation9 + $0x78] sm:$0xff] %v389
    $region33: #{seq2seq_forward.21} parent=1 // pred_fallthru
      _
    // Predicated region
    $region34: #{seq2seq_forward.21} parent=1 // pred_check
      _
    $region35: #{seq2seq_forward.21} parent=1 // pred_check_branch
      %407 = sbr.rel (0) target = $region37
    $region36: #{seq2seq_forward.21} parent=1 // pred_region
      %s409 = ssub.s32 2048, 2048
      %410 = vsyncadd [#allocation5], %s409
      %s411 = sshll.u32 [#allocation9], 4
      %s412 = int_to_ptr.vmem [resolvable:$true] %s411
      %417 = dma.vmem_to_hbm [thread:$0]  %s412, 2048, %s3, [#allocation5], 128, 128, 8
    $region37: #{seq2seq_forward.21} parent=1 // pred_fallthru
      _
    // Predicated region
    $region38: #{seq2seq_forward.21} parent=1 // pred_check
      _
    $region39: #{seq2seq_forward.21} parent=1 // pred_check_branch
      %419 = sbr.rel (0) target = $region41
    $region40: #{seq2seq_forward.21} parent=1 // pred_region
      %420 = dma.done [#allocation5], 2048
    $region41: #{seq2seq_forward.21} parent=1 // pred_fallthru
      _
    %421 = vsyncpa [#allocation4], 1
    %422 = vsyncpa [#allocation7], 1
    %423 = vsyncpa [#allocation5], 1

</llo_original>
